<compile_context>
chip_gen: v5e
topology: v5e:2x2
jax: 0.10.0
libtpu: 0.0.40
codegen_flags: <defaults>
</compile_context>

<pallas_src>
import functools
import math

import jax
import jax.numpy as jnp
from jax import lax
from jax.experimental import pallas as pl
from jax.experimental.pallas import tpu as pltpu


# ----------------------------------------------------------------------------
# tiling helpers
# ----------------------------------------------------------------------------

def _pick_tile(dim, cap, mult):
    """Largest multiple of `mult` <= min(cap, dim) that divides dim, else the full dim."""
    t = (min(cap, dim) // mult) * mult
    while t >= mult:
        if dim % t == 0:
            return t
        t -= mult
    return dim


def _row_tile(m):
    # Prefer >= 2 row blocks (v7x has 2 TensorCores); cap the tile for VMEM budget.
    return _pick_tile(m, min(256, max(8, m // 2)), 8)


# ----------------------------------------------------------------------------
# Pallas kernels
# ----------------------------------------------------------------------------

def _linear_kernel(x_ref, w_ref, b_ref, o_ref, acc_ref, *, relu):
    @pl.when(pl.program_id(2) == 0)
    def _init():
        acc_ref[...] = jnp.zeros_like(acc_ref)

    acc_ref[...] += jnp.dot(x_ref[...].astype(jnp.bfloat16),
                            w_ref[...].astype(jnp.bfloat16),
                            preferred_element_type=jnp.float32)

    @pl.when(pl.program_id(2) == pl.num_programs(2) - 1)
    def _finish():
        y = acc_ref[...] + b_ref[...]
        if relu:
            y = jnp.maximum(y, 0.0)
        o_ref[...] = y


def linear(x, w, b, relu=False):
    """y = x @ w + b (optional ReLU). x:(M,K) f32, w:(K,N) bf16, b:(N,) -> (M,N) f32."""
    M, K = x.shape
    N = w.shape[1]
    tm = _row_tile(M)
    tn = _pick_tile(N, 512, 128)
    tk = _pick_tile(K, 512, 128)
    flops = 2 * M * N * K
    bytes_accessed = int(x.size * x.dtype.itemsize + w.size * w.dtype.itemsize
                         + N * 4 + M * N * 4)
    return pl.pallas_call(
        functools.partial(_linear_kernel, relu=relu),
        grid=(M // tm, N // tn, K // tk),
        in_specs=[pl.BlockSpec((tm, tk), lambda i, j, k: (i, k)),
                  pl.BlockSpec((tk, tn), lambda i, j, k: (k, j)),
                  pl.BlockSpec((1, tn), lambda i, j, k: (0, j))],
        out_specs=pl.BlockSpec((tm, tn), lambda i, j, k: (i, j)),
        out_shape=jax.ShapeDtypeStruct((M, N), jnp.float32),
        scratch_shapes=[pltpu.VMEM((tm, tn), jnp.float32)],
        compiler_params=pltpu.CompilerParams(
            dimension_semantics=("parallel", "parallel", "arbitrary"),
            vmem_limit_bytes=64 * 1024 * 1024),
        cost_estimate=pl.CostEstimate(flops=flops, transcendentals=0,
                                      bytes_accessed=bytes_accessed),
    )(x, w, b.reshape(1, N))


def _linear_add_ln_kernel(x_ref, w_ref, b_ref, r_ref, g_ref, be_ref, o_ref, acc_ref,
                          *, eps):
    @pl.when(pl.program_id(1) == 0)
    def _init():
        acc_ref[...] = jnp.zeros_like(acc_ref)

    acc_ref[...] += jnp.dot(x_ref[...].astype(jnp.bfloat16),
                            w_ref[...].astype(jnp.bfloat16),
                            preferred_element_type=jnp.float32)

    @pl.when(pl.program_id(1) == pl.num_programs(1) - 1)
    def _finish():
        # epilogue: bias + residual add + LayerNorm over the feature dim (f32 math)
        z = acc_ref[...] + b_ref[...] + r_ref[...]
        mean = jnp.mean(z, axis=-1, keepdims=True)
        var = jnp.mean(jnp.square(z - mean), axis=-1, keepdims=True)
        o_ref[...] = (z - mean) * lax.rsqrt(var + eps) * g_ref[...] + be_ref[...]


def linear_add_ln(x, w, b, resid, gamma, beta, eps=1e-5):
    """LayerNorm(resid + (x @ w + b)). x:(M,K), w:(K,D), resid:(M,D) -> (M,D) f32."""
    M, K = x.shape
    D = w.shape[1]
    tm = _row_tile(M)
    tk = _pick_tile(K, 512, 128)
    flops = 2 * M * D * K
    bytes_accessed = int(x.size * x.dtype.itemsize + w.size * w.dtype.itemsize
                         + 3 * M * D * 4)
    return pl.pallas_call(
        functools.partial(_linear_add_ln_kernel, eps=eps),
        grid=(M // tm, K // tk),
        in_specs=[pl.BlockSpec((tm, tk), lambda i, k: (i, k)),
                  pl.BlockSpec((tk, D), lambda i, k: (k, 0)),
                  pl.BlockSpec((1, D), lambda i, k: (0, 0)),
                  pl.BlockSpec((tm, D), lambda i, k: (i, 0)),
                  pl.BlockSpec((1, D), lambda i, k: (0, 0)),
                  pl.BlockSpec((1, D), lambda i, k: (0, 0))],
        out_specs=pl.BlockSpec((tm, D), lambda i, k: (i, 0)),
        out_shape=jax.ShapeDtypeStruct((M, D), jnp.float32),
        scratch_shapes=[pltpu.VMEM((tm, D), jnp.float32)],
        compiler_params=pltpu.CompilerParams(
            dimension_semantics=("parallel", "arbitrary"),
            vmem_limit_bytes=64 * 1024 * 1024),
        cost_estimate=pl.CostEstimate(flops=flops, transcendentals=0,
                                      bytes_accessed=bytes_accessed),
    )(x, w, b.reshape(1, D), resid, gamma.reshape(1, D), beta.reshape(1, D))


def _mha_body(qsrc_ref, kvsrc_ref, o_ref, *, q_off, kv_off, num_heads, scale, causal):
    """Multi-head attention on lane-packed refs.  Heads are split via static lane
    slices inside the kernel (no HBM-side transposes)."""
    Tq = o_ref.shape[1]
    D = o_ref.shape[2]
    Tk = kvsrc_ref.shape[1]
    Dk = D // num_heads
    if causal:
        row = lax.broadcasted_iota(jnp.int32, (Tq, Tk), 0)
        col = lax.broadcasted_iota(jnp.int32, (Tq, Tk), 1)
        neg = jnp.where(col > row, -1e9, 0.0)  # masked_fill(mask==0, -1e9)
    # TODO(synk): flash-style online-softmax tiling over Tk for long sequences.
    for h in range(num_heads):
        qs = q_off + h * Dk
        ks = kv_off + h * Dk
        vs = kv_off + D + h * Dk
        # fold 1/sqrt(Dk) into q once (not into the (Tq,Tk) score matrix)
        qh = (qsrc_ref[0, :, qs:qs + Dk] * scale).astype(jnp.bfloat16)
        kh = kvsrc_ref[0, :, ks:ks + Dk].astype(jnp.bfloat16)
        vh = kvsrc_ref[0, :, vs:vs + Dk].astype(jnp.bfloat16)
        # q @ k^T without an explicit transpose (contract last dims), f32 accumulate
        s = lax.dot_general(qh, kh, (((1,), (1,)), ((), ())),
                            preferred_element_type=jnp.float32)
        if causal:
            s = s + neg
        m = jnp.max(s, axis=-1, keepdims=True)
        e = jnp.exp(s - m)                                     # f32 softmax math
        p = e * pl.reciprocal(jnp.sum(e, axis=-1, keepdims=True), approx=True)
        o_ref[0, :, h * Dk:(h + 1) * Dk] = jnp.dot(
            p.astype(jnp.bfloat16), vh, preferred_element_type=jnp.float32)


def _self_attn_kernel(qkv_ref, o_ref, *, num_heads, scale):
    # qkv packed as [q | k | v] along the last dim
    _mha_body(qkv_ref, qkv_ref, o_ref, q_off=0, kv_off=o_ref.shape[2],
              num_heads=num_heads, scale=scale, causal=True)


def _cross_attn_kernel(q_ref, kv_ref, o_ref, *, num_heads, scale):
    _mha_body(q_ref, kv_ref, o_ref, q_off=0, kv_off=0,
              num_heads=num_heads, scale=scale, causal=False)


def self_attention(qkv, num_heads):
    """qkv: (B, T, 3*D) packed [q|k|v] -> (B, T, D). Causal."""
    B, T, threeD = qkv.shape
    D = threeD // 3
    Dk = D // num_heads
    scale = 1.0 / math.sqrt(Dk)
    flops = 4 * B * num_heads * T * T * Dk
    return pl.pallas_call(
        functools.partial(_self_attn_kernel, num_heads=num_heads, scale=scale),
        grid=(B,),
        in_specs=[pl.BlockSpec((1, T, threeD), lambda b: (b, 0, 0))],
        out_specs=pl.BlockSpec((1, T, D), lambda b: (b, 0, 0)),
        out_shape=jax.ShapeDtypeStruct((B, T, D), jnp.float32),
        compiler_params=pltpu.CompilerParams(dimension_semantics=("parallel",)),
        cost_estimate=pl.CostEstimate(flops=flops,
                                      transcendentals=B * num_heads * T * T,
                                      bytes_accessed=int(4 * (qkv.size + B * T * D))),
    )(qkv)


def cross_attention(q, kv, num_heads):
    """q: (B, Tq, D), kv: (B, Tk, 2*D) packed [k|v] -> (B, Tq, D). No mask."""
    B, Tq, D = q.shape
    Tk = kv.shape[1]
    Dk = D // num_heads
    scale = 1.0 / math.sqrt(Dk)
    flops = 4 * B * num_heads * Tq * Tk * Dk
    return pl.pallas_call(
        functools.partial(_cross_attn_kernel, num_heads=num_heads, scale=scale),
        grid=(B,),
        in_specs=[pl.BlockSpec((1, Tq, D), lambda b: (b, 0, 0)),
                  pl.BlockSpec((1, Tk, 2 * D), lambda b: (b, 0, 0))],
        out_specs=pl.BlockSpec((1, Tq, D), lambda b: (b, 0, 0)),
        out_shape=jax.ShapeDtypeStruct((B, Tq, D), jnp.float32),
        compiler_params=pltpu.CompilerParams(dimension_semantics=("parallel",)),
        cost_estimate=pl.CostEstimate(flops=flops,
                                      transcendentals=B * num_heads * Tq * Tk,
                                      bytes_accessed=int(4 * (q.size + kv.size
                                                              + B * Tq * D))),
    )(q, kv)


def _conv_ln_relu_kernel(x_ref, w_ref, b_ref, g_ref, be_ref, o_ref, *, eps):
    # Conv1d(k=3, p=1) as 3 shifted matmuls on a halo-padded (T+2, C) block,
    # fused with LayerNorm([d_model, T]) (normalize jointly over channel+time) + ReLU.
    T = o_ref.shape[1]
    y = jnp.dot(x_ref[0, 0:T, :].astype(jnp.bfloat16), w_ref[0],
                preferred_element_type=jnp.float32)
    y = y + jnp.dot(x_ref[0, 1:T + 1, :].astype(jnp.bfloat16), w_ref[1],
                    preferred_element_type=jnp.float32)
    y = y + jnp.dot(x_ref[0, 2:T + 2, :].astype(jnp.bfloat16), w_ref[2],
                    preferred_element_type=jnp.float32)
    y = y + b_ref[...]
    mean = jnp.mean(y)
    var = jnp.mean(jnp.square(y - mean))
    y = (y - mean) * lax.rsqrt(var + eps)
    y = y * g_ref[...] + be_ref[...]
    o_ref[0] = jnp.maximum(y, 0.0)


def conv_ln_relu(x_pad, w, b, gamma_t, beta_t, eps=1e-6):
    """x_pad: (B, T+2, C) halo-padded, w: (3, C, D) bf16 -> (B, T, D) f32."""
    B, Tp, C = x_pad.shape
    T = Tp - 2
    D = w.shape[2]
    return pl.pallas_call(
        functools.partial(_conv_ln_relu_kernel, eps=eps),
        grid=(B,),
        in_specs=[pl.BlockSpec((1, Tp, C), lambda bidx: (bidx, 0, 0)),
                  pl.BlockSpec((3, C, D), lambda bidx: (0, 0, 0)),
                  pl.BlockSpec((1, D), lambda bidx: (0, 0)),
                  pl.BlockSpec((T, D), lambda bidx: (0, 0)),
                  pl.BlockSpec((T, D), lambda bidx: (0, 0))],
        out_specs=pl.BlockSpec((1, T, D), lambda bidx: (bidx, 0, 0)),
        out_shape=jax.ShapeDtypeStruct((B, T, D), jnp.float32),
        compiler_params=pltpu.CompilerParams(dimension_semantics=("parallel",)),
    )(x_pad, w, b.reshape(1, D), gamma_t, beta_t)


# ----------------------------------------------------------------------------
# JAX glue (positional encoding, parameter setup, forward)
# ----------------------------------------------------------------------------

def make_positional_encoding(T, D):
    position = jnp.arange(T, dtype=jnp.float32)[:, None]
    div_term = jnp.exp(jnp.arange(0, D, 2, dtype=jnp.float32)
                       * (-math.log(10000.0) / D))
    pe = jnp.zeros((T, D), jnp.float32)
    pe = pe.at[:, 0::2].set(jnp.sin(position * div_term))
    pe = pe.at[:, 1::2].set(jnp.cos(position * div_term))
    return pe


def init_params(key, d_model, num_heads, num_layers, d_ff, input_shape,
                num_conv_layers=7):
    T, F = input_shape
    keys = list(jax.random.split(key, 8 + 2 * num_conv_layers + 16 * num_layers))
    kit = iter(keys)

    def w(shape, scale=0.05, dtype=jnp.float32):
        v = scale * jax.random.normal(next(kit), shape, dtype=jnp.float32)
        return v.astype(dtype)

    params = {}

    # Conv1DLayer: 7 x [Conv1d(k=3,p=1) -> Dropout -> LayerNorm([D, T], eps=1e-6) -> ReLU]
    conv_layers = []
    for i in range(num_conv_layers):
        c_in = F if i == 0 else d_model
        w_torch = w((d_model, c_in, 3))                        # torch layout (out, in, k)
        conv_layers.append(dict(
            # stored as (k, in, out) so the kernel does x_pad[t+k] @ w[k]
            w=jnp.transpose(w_torch, (2, 1, 0)).astype(jnp.bfloat16),
            b=w((d_model,), 0.02),
            # NOTE: torch LayerNorm([d_model, T]).weight is (d_model, T); stored here
            # transposed as (T, d_model) -- transpose when importing real torch weights.
            gamma_t=jnp.ones((T, d_model), jnp.float32),
            beta_t=jnp.zeros((T, d_model), jnp.float32),
        ))
    params["conv_layers"] = conv_layers

    params["pe"] = make_positional_encoding(T, d_model)
    params["emb_w"] = w((d_model,))           # torch Linear(1, D).weight squeezed
    params["emb_b"] = w((d_model,), 0.02)
    params["out_w"] = w((d_model, F), dtype=jnp.bfloat16)      # stored as (in, out)
    params["out_b"] = w((F,), 0.02)

    layers = []
    for _ in range(num_layers):
        layers.append(dict(
            wqkv=w((d_model, 3 * d_model), dtype=jnp.bfloat16),   # fused Q|K|V
            bqkv=w((3 * d_model,), 0.02),
            wo=w((d_model, d_model), dtype=jnp.bfloat16),
            bo=w((d_model,), 0.02),
            cwq=w((d_model, d_model), dtype=jnp.bfloat16),
            cbq=w((d_model,), 0.02),
            cwkv=w((d_model, 2 * d_model), dtype=jnp.bfloat16),   # fused cross K|V
            cbkv=w((2 * d_model,), 0.02),
            cwo=w((d_model, d_model), dtype=jnp.bfloat16),
            cbo=w((d_model,), 0.02),
            w1=w((d_model, d_ff), dtype=jnp.bfloat16),
            bf1=w((d_ff,), 0.02),
            w2=w((d_ff, d_model), dtype=jnp.bfloat16),
            bf2=w((d_model,), 0.02),
            g1=jnp.ones((d_model,), jnp.float32), b1=jnp.zeros((d_model,), jnp.float32),
            g2=jnp.ones((d_model,), jnp.float32), b2=jnp.zeros((d_model,), jnp.float32),
            g3=jnp.ones((d_model,), jnp.float32), b3=jnp.zeros((d_model,), jnp.float32),
        ))
    params["layers"] = layers
    return params


def transformer_d_forward(params, src, tgt, *, num_heads):
    B, T, F = tgt.shape
    D = params["pe"].shape[1]

    # --- Conv1DLayer front end: fused conv(k=3) + LN([D,T]) + ReLU per layer ---
    x = tgt
    for cl in params["conv_layers"]:
        x_pad = jnp.pad(x, ((0, 0), (1, 1), (0, 0)))   # halo rows for the 3 taps
        x = conv_ln_relu(x_pad, cl["w"], cl["b"], cl["gamma_t"], cl["beta_t"])

    # --- positional encoding (+ dropout == identity in eval mode) ---
    tgt_out = (x + params["pe"][None]).reshape(B * T, D)

    # --- param embeddings: relu(Linear(1, D)(src[..., None])) -- tiny op; per perf
    #     review a dedicated 1-lane-wide pallas_call is pure overhead, so plain JAX.
    emb = jnp.maximum(src[..., None] * params["emb_w"] + params["emb_b"], 0.0)
    N = emb.shape[1]
    emb2d = emb.reshape(B * N, D)

    # --- decoder layers ---
    for lyr in params["layers"]:
        # self-attention: fused QKV projection, packed lane-dense qkv, causal
        qkv = linear(tgt_out, lyr["wqkv"], lyr["bqkv"]).reshape(B, T, 3 * D)
        a = self_attention(qkv, num_heads).reshape(B * T, D)
        x1 = linear_add_ln(a, lyr["wo"], lyr["bo"], tgt_out, lyr["g1"], lyr["b1"])

        # cross-attention over param embeddings: fused KV projection
        q = linear(x1, lyr["cwq"], lyr["cbq"]).reshape(B, T, D)
        kv = linear(emb2d, lyr["cwkv"], lyr["cbkv"]).reshape(B, N, 2 * D)
        a = cross_attention(q, kv, num_heads).reshape(B * T, D)
        x2 = linear_add_ln(a, lyr["cwo"], lyr["cbo"], x1, lyr["g2"], lyr["b2"])

        # feed-forward: fc1+ReLU, fc2 fused with residual add + LayerNorm
        h = linear(x2, lyr["w1"], lyr["bf1"], relu=True)
        tgt_out = linear_add_ln(h, lyr["w2"], lyr["bf2"], x2, lyr["g3"], lyr["b3"])

    out = linear(tgt_out, params["out_w"], params["out_b"], relu=True)
    return out.reshape(B, T, F)


if __name__ == "__main__":
    # small shapes: batch=2, time T=16, freq F=8, d_model=32, heads=4, layers=2, d_ff=64
    B = 2
    T, F = 16, 8          # input_shape = (time_length, frequency)
    D_MODEL = 32
    NUM_HEADS = 4
    NUM_LAYERS = 2
    D_FF = 64
    N_PARAMS = 8          # length of the synth-param vector `src`

    key = jax.random.PRNGKey(0)
    k_params, k_src, k_tgt = jax.random.split(key, 3)

    params = init_params(k_params, D_MODEL, NUM_HEADS, NUM_LAYERS, D_FF, (T, F))
    src = jax.random.normal(k_src, (B, N_PARAMS), dtype=jnp.float32)
    tgt = jax.random.normal(k_tgt, (B, T, F), dtype=jnp.float32)

    fwd = jax.jit(functools.partial(transformer_d_forward, num_heads=NUM_HEADS))
    out = jax.block_until_ready(fwd(params, src, tgt))
    assert out.shape == (B, T, F), out.shape
    assert bool(jnp.all(jnp.isfinite(out)))
    print("KERNEL_OK")
</pallas_src>

<mosaic_0001>
module attributes {stable_mosaic.version = 11 : i64} {
  func.func @_conv_ln_relu_kernel(%arg0: i32, %arg1: memref<1x18x8xf32, #tpu.memory_space<vmem>>, %arg2: memref<3x8x32xbf16, #tpu.memory_space<vmem>>, %arg3: memref<1x32xf32, #tpu.memory_space<vmem>>, %arg4: memref<16x32xf32, #tpu.memory_space<vmem>>, %arg5: memref<16x32xf32, #tpu.memory_space<vmem>>, %arg6: memref<1x16x32xf32, #tpu.memory_space<vmem>>) attributes {dimension_semantics = [#tpu.dimension_semantics<parallel>], iteration_bounds = array<i64: 2>, scalar_prefetch = 0 : i64, scratch_operands = 0 : i64, tpu.core_type = #tpu.core_type<tc>, window_params = [{transform_indices = @transform_0, window_bounds = array<i64: 1, 18, 8>}, {pipeline_mode = #tpu.pipeline_mode<synchronous>, transform_indices = @transform_1, window_bounds = array<i64: 3, 8, 32>}, {pipeline_mode = #tpu.pipeline_mode<synchronous>, transform_indices = @transform_2, window_bounds = array<i64: 1, 32>}, {pipeline_mode = #tpu.pipeline_mode<synchronous>, transform_indices = @transform_3, window_bounds = array<i64: 16, 32>}, {pipeline_mode = #tpu.pipeline_mode<synchronous>, transform_indices = @transform_4, window_bounds = array<i64: 16, 32>}, {transform_indices = @transform_5, window_bounds = array<i64: 1, 16, 32>}]} {
    %c0 = arith.constant 0 : index
    %c0_0 = arith.constant 0 : index
    %c0_1 = arith.constant 0 : index
    %0 = vector.load %arg1[%c0, %c0_0, %c0_1] : memref<1x18x8xf32, #tpu.memory_space<vmem>>, vector<1x16x8xf32>
    %1 = vector.shape_cast %0 : vector<1x16x8xf32> to vector<16x8xf32>
    %2 = arith.truncf %1 : vector<16x8xf32> to vector<16x8xbf16>
    %c0_2 = arith.constant 0 : index
    %c0_3 = arith.constant 0 : index
    %c0_4 = arith.constant 0 : index
    %3 = vector.load %arg2[%c0_2, %c0_3, %c0_4] : memref<3x8x32xbf16, #tpu.memory_space<vmem>>, vector<1x8x32xbf16>
    %4 = vector.shape_cast %3 : vector<1x8x32xbf16> to vector<8x32xbf16>
    %cst = arith.constant dense<0.000000e+00> : vector<16x32xf32>
    %5 = tpu.matmul %2, %4, %cst {dimension_numbers = #tpu.dot_dimension_numbers<[1], [0], [0], [1], [0, 0, 1, 1], [], []>} : vector<16x8xbf16>, vector<8x32xbf16>, vector<16x32xf32> -> vector<16x32xf32>
    %c0_5 = arith.constant 0 : index
    %c1 = arith.constant 1 : index
    %c0_6 = arith.constant 0 : index
    %6 = vector.load %arg1[%c0_5, %c1, %c0_6] : memref<1x18x8xf32, #tpu.memory_space<vmem>>, vector<1x16x8xf32>
    %7 = vector.shape_cast %6 : vector<1x16x8xf32> to vector<16x8xf32>
    %8 = arith.truncf %7 : vector<16x8xf32> to vector<16x8xbf16>
    %c1_7 = arith.constant 1 : index
    %c0_8 = arith.constant 0 : index
    %c0_9 = arith.constant 0 : index
    %9 = vector.load %arg2[%c1_7, %c0_8, %c0_9] : memref<3x8x32xbf16, #tpu.memory_space<vmem>>, vector<1x8x32xbf16>
    %10 = vector.shape_cast %9 : vector<1x8x32xbf16> to vector<8x32xbf16>
    %cst_10 = arith.constant dense<0.000000e+00> : vector<16x32xf32>
    %11 = tpu.matmul %8, %10, %cst_10 {dimension_numbers = #tpu.dot_dimension_numbers<[1], [0], [0], [1], [0, 0, 1, 1], [], []>} : vector<16x8xbf16>, vector<8x32xbf16>, vector<16x32xf32> -> vector<16x32xf32>
    %12 = arith.addf %5, %11 : vector<16x32xf32>
    %c0_11 = arith.constant 0 : index
    %c2 = arith.constant 2 : index
    %c0_12 = arith.constant 0 : index
    %13 = vector.load %arg1[%c0_11, %c2, %c0_12] : memref<1x18x8xf32, #tpu.memory_space<vmem>>, vector<1x16x8xf32>
    %14 = vector.shape_cast %13 : vector<1x16x8xf32> to vector<16x8xf32>
    %15 = arith.truncf %14 : vector<16x8xf32> to vector<16x8xbf16>
    %c2_13 = arith.constant 2 : index
    %c0_14 = arith.constant 0 : index
    %c0_15 = arith.constant 0 : index
    %16 = vector.load %arg2[%c2_13, %c0_14, %c0_15] : memref<3x8x32xbf16, #tpu.memory_space<vmem>>, vector<1x8x32xbf16>
    %17 = vector.shape_cast %16 : vector<1x8x32xbf16> to vector<8x32xbf16>
    %cst_16 = arith.constant dense<0.000000e+00> : vector<16x32xf32>
    %18 = tpu.matmul %15, %17, %cst_16 {dimension_numbers = #tpu.dot_dimension_numbers<[1], [0], [0], [1], [0, 0, 1, 1], [], []>} : vector<16x8xbf16>, vector<8x32xbf16>, vector<16x32xf32> -> vector<16x32xf32>
    %19 = arith.addf %12, %18 : vector<16x32xf32>
    %c0_17 = arith.constant 0 : index
    %c0_18 = arith.constant 0 : index
    %20 = vector.load %arg3[%c0_17, %c0_18] : memref<1x32xf32, #tpu.memory_space<vmem>>, vector<1x32xf32>
    %21 = vector.broadcast %20 : vector<1x32xf32> to vector<16x32xf32>
    %22 = arith.addf %19, %21 : vector<16x32xf32>
    %23 = vector.shape_cast %22 : vector<16x32xf32> to vector<1x16x32xf32>
    %cst_19 = arith.constant dense<0.000000e+00> : vector<1xf32>
    %24 = vector.multi_reduction <add>, %23, %cst_19 [1, 2] : vector<1x16x32xf32> to vector<1xf32>
    %25 = vector.shape_cast %24 : vector<1xf32> to vector<1x1x1xf32>
    %26 = vector.extract %25[0, 0, 0] : f32 from vector<1x1x1xf32>
    %cst_20 = arith.constant 5.120000e+02 : f32
    %27 = arith.divf %26, %cst_20 : f32
    %28 = vector.broadcast %27 : f32 to vector<16x32xf32>
    %29 = arith.subf %22, %28 : vector<16x32xf32>
    %30 = arith.mulf %29, %29 : vector<16x32xf32>
    %31 = vector.shape_cast %30 : vector<16x32xf32> to vector<1x16x32xf32>
    %cst_21 = arith.constant dense<0.000000e+00> : vector<1xf32>
    %32 = vector.multi_reduction <add>, %31, %cst_21 [1, 2] : vector<1x16x32xf32> to vector<1xf32>
    %33 = vector.shape_cast %32 : vector<1xf32> to vector<1x1x1xf32>
    %34 = vector.extract %33[0, 0, 0] : f32 from vector<1x1x1xf32>
    %cst_22 = arith.constant 5.120000e+02 : f32
    %35 = arith.divf %34, %cst_22 : f32
    %36 = vector.broadcast %27 : f32 to vector<16x32xf32>
    %37 = arith.subf %22, %36 : vector<16x32xf32>
    %cst_23 = arith.constant 9.99999997E-7 : f32
    %38 = arith.addf %35, %cst_23 : f32
    %39 = math.rsqrt %38 : f32
    %40 = vector.broadcast %39 : f32 to vector<16x32xf32>
    %41 = arith.mulf %37, %40 : vector<16x32xf32>
    %c0_24 = arith.constant 0 : index
    %c0_25 = arith.constant 0 : index
    %42 = vector.load %arg4[%c0_24, %c0_25] : memref<16x32xf32, #tpu.memory_space<vmem>>, vector<16x32xf32>
    %43 = arith.mulf %41, %42 : vector<16x32xf32>
    %c0_26 = arith.constant 0 : index
    %c0_27 = arith.constant 0 : index
    %44 = vector.load %arg5[%c0_26, %c0_27] : memref<16x32xf32, #tpu.memory_space<vmem>>, vector<16x32xf32>
    %45 = arith.addf %43, %44 : vector<16x32xf32>
    %cst_28 = arith.constant 0.000000e+00 : f32
    %46 = vector.broadcast %cst_28 : f32 to vector<16x32xf32>
    %47 = arith.maximumf %45, %46 : vector<16x32xf32>
    %c0_29 = arith.constant 0 : index
    %c0_30 = arith.constant 0 : index
    %c0_31 = arith.constant 0 : index
    %48 = vector.load %arg6[%c0_29, %c0_30, %c0_31] : memref<1x16x32xf32, #tpu.memory_space<vmem>>, vector<1x16x32xf32>
    %49 = vector.shape_cast %48 : vector<1x16x32xf32> to vector<16x32xf32>
    %50 = vector.shape_cast %47 : vector<16x32xf32> to vector<1x16x32xf32>
    tpu.vector_store %arg6[%c0_29, %c0_30, %c0_31], %50 {strides = array<i32>} : memref<1x16x32xf32, #tpu.memory_space<vmem>>, vector<1x16x32xf32>,
    return
  }
  func.func @transform_0(%arg0: i32) -> (i32, i32, i32) {
    %c0_i32 = arith.constant 0 : i32
    %c0_i32_0 = arith.constant 0 : i32
    %c0_i32_1 = arith.constant 0 : i32
    return %arg0, %c0_i32, %c0_i32_0 : i32, i32, i32
  }
  func.func @transform_1(%arg0: i32) -> (i32, i32, i32) {
    %c0_i32 = arith.constant 0 : i32
    %c0_i32_0 = arith.constant 0 : i32
    %c0_i32_1 = arith.constant 0 : i32
    %c0_i32_2 = arith.constant 0 : i32
    return %c0_i32, %c0_i32_0, %c0_i32_1 : i32, i32, i32
  }
  func.func @transform_2(%arg0: i32) -> (i32, i32) {
    %c0_i32 = arith.constant 0 : i32
    %c0_i32_0 = arith.constant 0 : i32
    %c0_i32_1 = arith.constant 0 : i32
    return %c0_i32, %c0_i32_0 : i32, i32
  }
  func.func @transform_3(%arg0: i32) -> (i32, i32) {
    %c0_i32 = arith.constant 0 : i32
    %c0_i32_0 = arith.constant 0 : i32
    %c0_i32_1 = arith.constant 0 : i32
    return %c0_i32, %c0_i32_0 : i32, i32
  }
  func.func @transform_4(%arg0: i32) -> (i32, i32) {
    %c0_i32 = arith.constant 0 : i32
    %c0_i32_0 = arith.constant 0 : i32
    %c0_i32_1 = arith.constant 0 : i32
    return %c0_i32, %c0_i32_0 : i32, i32
  }
  func.func @transform_5(%arg0: i32) -> (i32, i32, i32) {
    %c0_i32 = arith.constant 0 : i32
    %c0_i32_0 = arith.constant 0 : i32
    %c0_i32_1 = arith.constant 0 : i32
    return %arg0, %c0_i32, %c0_i32_0 : i32, i32, i32
  }
}

module attributes {stable_mosaic.version = 11 : i64} {
  func.func @_conv_ln_relu_kernel(%arg0: i32, %arg1: memref<1x18x32xf32, #tpu.memory_space<vmem>>, %arg2: memref<3x32x32xbf16, #tpu.memory_space<vmem>>, %arg3: memref<1x32xf32, #tpu.memory_space<vmem>>, %arg4: memref<16x32xf32, #tpu.memory_space<vmem>>, %arg5: memref<16x32xf32, #tpu.memory_space<vmem>>, %arg6: memref<1x16x32xf32, #tpu.memory_space<vmem>>) attributes {dimension_semantics = [#tpu.dimension_semantics<parallel>], iteration_bounds = array<i64: 2>, scalar_prefetch = 0 : i64, scratch_operands = 0 : i64, tpu.core_type = #tpu.core_type<tc>, window_params = [{transform_indices = @transform_0, window_bounds = array<i64: 1, 18, 32>}, {pipeline_mode = #tpu.pipeline_mode<synchronous>, transform_indices = @transform_1, window_bounds = array<i64: 3, 32, 32>}, {pipeline_mode = #tpu.pipeline_mode<synchronous>, transform_indices = @transform_2, window_bounds = array<i64: 1, 32>}, {pipeline_mode = #tpu.pipeline_mode<synchronous>, transform_indices = @transform_3, window_bounds = array<i64: 16, 32>}, {pipeline_mode = #tpu.pipeline_mode<synchronous>, transform_indices = @transform_4, window_bounds = array<i64: 16, 32>}, {transform_indices = @transform_5, window_bounds = array<i64: 1, 16, 32>}]} {
    %c0 = arith.constant 0 : index
    %c0_0 = arith.constant 0 : index
    %c0_1 = arith.constant 0 : index
    %0 = vector.load %arg1[%c0, %c0_0, %c0_1] : memref<1x18x32xf32, #tpu.memory_space<vmem>>, vector<1x16x32xf32>
    %1 = vector.shape_cast %0 : vector<1x16x32xf32> to vector<16x32xf32>
    %2 = arith.truncf %1 : vector<16x32xf32> to vector<16x32xbf16>
    %c0_2 = arith.constant 0 : index
    %c0_3 = arith.constant 0 : index
    %c0_4 = arith.constant 0 : index
    %3 = vector.load %arg2[%c0_2, %c0_3, %c0_4] : memref<3x32x32xbf16, #tpu.memory_space<vmem>>, vector<1x32x32xbf16>
    %4 = vector.shape_cast %3 : vector<1x32x32xbf16> to vector<32x32xbf16>
    %cst = arith.constant dense<0.000000e+00> : vector<16x32xf32>
    %5 = tpu.matmul %2, %4, %cst {dimension_numbers = #tpu.dot_dimension_numbers<[1], [0], [0], [1], [0, 0, 1, 1], [], []>} : vector<16x32xbf16>, vector<32x32xbf16>, vector<16x32xf32> -> vector<16x32xf32>
    %c0_5 = arith.constant 0 : index
    %c1 = arith.constant 1 : index
    %c0_6 = arith.constant 0 : index
    %6 = vector.load %arg1[%c0_5, %c1, %c0_6] : memref<1x18x32xf32, #tpu.memory_space<vmem>>, vector<1x16x32xf32>
    %7 = vector.shape_cast %6 : vector<1x16x32xf32> to vector<16x32xf32>
    %8 = arith.truncf %7 : vector<16x32xf32> to vector<16x32xbf16>
    %c1_7 = arith.constant 1 : index
    %c0_8 = arith.constant 0 : index
    %c0_9 = arith.constant 0 : index
    %9 = vector.load %arg2[%c1_7, %c0_8, %c0_9] : memref<3x32x32xbf16, #tpu.memory_space<vmem>>, vector<1x32x32xbf16>
    %10 = vector.shape_cast %9 : vector<1x32x32xbf16> to vector<32x32xbf16>
    %cst_10 = arith.constant dense<0.000000e+00> : vector<16x32xf32>
    %11 = tpu.matmul %8, %10, %cst_10 {dimension_numbers = #tpu.dot_dimension_numbers<[1], [0], [0], [1], [0, 0, 1, 1], [], []>} : vector<16x32xbf16>, vector<32x32xbf16>, vector<16x32xf32> -> vector<16x32xf32>
    %12 = arith.addf %5, %11 : vector<16x32xf32>
    %c0_11 = arith.constant 0 : index
    %c2 = arith.constant 2 : index
    %c0_12 = arith.constant 0 : index
    %13 = vector.load %arg1[%c0_11, %c2, %c0_12] : memref<1x18x32xf32, #tpu.memory_space<vmem>>, vector<1x16x32xf32>
    %14 = vector.shape_cast %13 : vector<1x16x32xf32> to vector<16x32xf32>
    %15 = arith.truncf %14 : vector<16x32xf32> to vector<16x32xbf16>
    %c2_13 = arith.constant 2 : index
    %c0_14 = arith.constant 0 : index
    %c0_15 = arith.constant 0 : index
    %16 = vector.load %arg2[%c2_13, %c0_14, %c0_15] : memref<3x32x32xbf16, #tpu.memory_space<vmem>>, vector<1x32x32xbf16>
    %17 = vector.shape_cast %16 : vector<1x32x32xbf16> to vector<32x32xbf16>
    %cst_16 = arith.constant dense<0.000000e+00> : vector<16x32xf32>
    %18 = tpu.matmul %15, %17, %cst_16 {dimension_numbers = #tpu.dot_dimension_numbers<[1], [0], [0], [1], [0, 0, 1, 1], [], []>} : vector<16x32xbf16>, vector<32x32xbf16>, vector<16x32xf32> -> vector<16x32xf32>
    %19 = arith.addf %12, %18 : vector<16x32xf32>
    %c0_17 = arith.constant 0 : index
    %c0_18 = arith.constant 0 : index
    %20 = vector.load %arg3[%c0_17, %c0_18] : memref<1x32xf32, #tpu.memory_space<vmem>>, vector<1x32xf32>
    %21 = vector.broadcast %20 : vector<1x32xf32> to vector<16x32xf32>
    %22 = arith.addf %19, %21 : vector<16x32xf32>
    %23 = vector.shape_cast %22 : vector<16x32xf32> to vector<1x16x32xf32>
    %cst_19 = arith.constant dense<0.000000e+00> : vector<1xf32>
    %24 = vector.multi_reduction <add>, %23, %cst_19 [1, 2] : vector<1x16x32xf32> to vector<1xf32>
    %25 = vector.shape_cast %24 : vector<1xf32> to vector<1x1x1xf32>
    %26 = vector.extract %25[0, 0, 0] : f32 from vector<1x1x1xf32>
    %cst_20 = arith.constant 5.120000e+02 : f32
    %27 = arith.divf %26, %cst_20 : f32
    %28 = vector.broadcast %27 : f32 to vector<16x32xf32>
    %29 = arith.subf %22, %28 : vector<16x32xf32>
    %30 = arith.mulf %29, %29 : vector<16x32xf32>
    %31 = vector.shape_cast %30 : vector<16x32xf32> to vector<1x16x32xf32>
    %cst_21 = arith.constant dense<0.000000e+00> : vector<1xf32>
    %32 = vector.multi_reduction <add>, %31, %cst_21 [1, 2] : vector<1x16x32xf32> to vector<1xf32>
    %33 = vector.shape_cast %32 : vector<1xf32> to vector<1x1x1xf32>
    %34 = vector.extract %33[0, 0, 0] : f32 from vector<1x1x1xf32>
    %cst_22 = arith.constant 5.120000e+02 : f32
    %35 = arith.divf %34, %cst_22 : f32
    %36 = vector.broadcast %27 : f32 to vector<16x32xf32>
    %37 = arith.subf %22, %36 : vector<16x32xf32>
    %cst_23 = arith.constant 9.99999997E-7 : f32
    %38 = arith.addf %35, %cst_23 : f32
    %39 = math.rsqrt %38 : f32
    %40 = vector.broadcast %39 : f32 to vector<16x32xf32>
    %41 = arith.mulf %37, %40 : vector<16x32xf32>
    %c0_24 = arith.constant 0 : index
    %c0_25 = arith.constant 0 : index
    %42 = vector.load %arg4[%c0_24, %c0_25] : memref<16x32xf32, #tpu.memory_space<vmem>>, vector<16x32xf32>
    %43 = arith.mulf %41, %42 : vector<16x32xf32>
    %c0_26 = arith.constant 0 : index
    %c0_27 = arith.constant 0 : index
    %44 = vector.load %arg5[%c0_26, %c0_27] : memref<16x32xf32, #tpu.memory_space<vmem>>, vector<16x32xf32>
    %45 = arith.addf %43, %44 : vector<16x32xf32>
    %cst_28 = arith.constant 0.000000e+00 : f32
    %46 = vector.broadcast %cst_28 : f32 to vector<16x32xf32>
    %47 = arith.maximumf %45, %46 : vector<16x32xf32>
    %c0_29 = arith.constant 0 : index
    %c0_30 = arith.constant 0 : index
    %c0_31 = arith.constant 0 : index
    %48 = vector.load %arg6[%c0_29, %c0_30, %c0_31] : memref<1x16x32xf32, #tpu.memory_space<vmem>>, vector<1x16x32xf32>
    %49 = vector.shape_cast %48 : vector<1x16x32xf32> to vector<16x32xf32>
    %50 = vector.shape_cast %47 : vector<16x32xf32> to vector<1x16x32xf32>
    tpu.vector_store %arg6[%c0_29, %c0_30, %c0_31], %50 {strides = array<i32>} : memref<1x16x32xf32, #tpu.memory_space<vmem>>, vector<1x16x32xf32>,
    return
  }
  func.func @transform_0(%arg0: i32) -> (i32, i32, i32) {
    %c0_i32 = arith.constant 0 : i32
    %c0_i32_0 = arith.constant 0 : i32
    %c0_i32_1 = arith.constant 0 : i32
    return %arg0, %c0_i32, %c0_i32_0 : i32, i32, i32
  }
  func.func @transform_1(%arg0: i32) -> (i32, i32, i32) {
    %c0_i32 = arith.constant 0 : i32
    %c0_i32_0 = arith.constant 0 : i32
    %c0_i32_1 = arith.constant 0 : i32
    %c0_i32_2 = arith.constant 0 : i32
    return %c0_i32, %c0_i32_0, %c0_i32_1 : i32, i32, i32
  }
  func.func @transform_2(%arg0: i32) -> (i32, i32) {
    %c0_i32 = arith.constant 0 : i32
    %c0_i32_0 = arith.constant 0 : i32
    %c0_i32_1 = arith.constant 0 : i32
    return %c0_i32, %c0_i32_0 : i32, i32
  }
  func.func @transform_3(%arg0: i32) -> (i32, i32) {
    %c0_i32 = arith.constant 0 : i32
    %c0_i32_0 = arith.constant 0 : i32
    %c0_i32_1 = arith.constant 0 : i32
    return %c0_i32, %c0_i32_0 : i32, i32
  }
  func.func @transform_4(%arg0: i32) -> (i32, i32) {
    %c0_i32 = arith.constant 0 : i32
    %c0_i32_0 = arith.constant 0 : i32
    %c0_i32_1 = arith.constant 0 : i32
    return %c0_i32, %c0_i32_0 : i32, i32
  }
  func.func @transform_5(%arg0: i32) -> (i32, i32, i32) {
    %c0_i32 = arith.constant 0 : i32
    %c0_i32_0 = arith.constant 0 : i32
    %c0_i32_1 = arith.constant 0 : i32
    return %arg0, %c0_i32, %c0_i32_0 : i32, i32, i32
  }
}

module attributes {stable_mosaic.version = 11 : i64} {
  func.func @_linear_kernel(%arg0: i32, %arg1: i32, %arg2: i32, %arg3: memref<16x32xf32, #tpu.memory_space<vmem>>, %arg4: memref<32x96xbf16, #tpu.memory_space<vmem>>, %arg5: memref<1x96xf32, #tpu.memory_space<vmem>>, %arg6: memref<16x96xf32, #tpu.memory_space<vmem>>, %arg7: memref<16x96xf32, #tpu.memory_space<vmem>>) attributes {dimension_semantics = [#tpu.dimension_semantics<parallel>, #tpu.dimension_semantics<parallel>, #tpu.dimension_semantics<arbitrary>], iteration_bounds = array<i64: 2, 1, 1>, scalar_prefetch = 0 : i64, scratch_operands = 1 : i64, tpu.core_type = #tpu.core_type<tc>, window_params = [{transform_indices = @transform_0, window_bounds = array<i64: 16, 32>}, {transform_indices = @transform_1, window_bounds = array<i64: 32, 96>}, {transform_indices = @transform_2, window_bounds = array<i64: 1, 96>}, {transform_indices = @transform_3, window_bounds = array<i64: 16, 96>}]} {
    %c0_i32 = arith.constant 0 : i32
    %0 = arith.cmpi eq, %arg2, %c0_i32 : i32
    %1 = arith.extui %0 : i1 to i32
    %c0_i32_0 = arith.constant 0 : i32
    %2 = arith.cmpi ne, %1, %c0_i32_0 : i32
    scf.if %2 {
      %cst_10 = arith.constant 0.000000e+00 : f32
      %13 = vector.broadcast %cst_10 : f32 to vector<16x96xf32>
      %c0_11 = arith.constant 0 : index
      %c0_12 = arith.constant 0 : index
      %14 = vector.load %arg7[%c0_11, %c0_12] : memref<16x96xf32, #tpu.memory_space<vmem>>, vector<16x96xf32>
      tpu.vector_store %arg7[%c0_11, %c0_12], %13 {strides = array<i32>} : memref<16x96xf32, #tpu.memory_space<vmem>>, vector<16x96xf32>,
    } else {
    }
    %c0 = arith.constant 0 : index
    %c0_1 = arith.constant 0 : index
    %3 = vector.load %arg7[%c0, %c0_1] : memref<16x96xf32, #tpu.memory_space<vmem>>, vector<16x96xf32>
    %c0_2 = arith.constant 0 : index
    %c0_3 = arith.constant 0 : index
    %4 = vector.load %arg3[%c0_2, %c0_3] : memref<16x32xf32, #tpu.memory_space<vmem>>, vector<16x32xf32>
    %5 = arith.truncf %4 : vector<16x32xf32> to vector<16x32xbf16>
    %c0_4 = arith.constant 0 : index
    %c0_5 = arith.constant 0 : index
    %6 = vector.load %arg4[%c0_4, %c0_5] : memref<32x96xbf16, #tpu.memory_space<vmem>>, vector<32x96xbf16>
    %cst = arith.constant dense<0.000000e+00> : vector<16x96xf32>
    %7 = tpu.matmul %5, %6, %cst {dimension_numbers = #tpu.dot_dimension_numbers<[1], [0], [0], [1], [0, 0, 1, 1], [], []>} : vector<16x32xbf16>, vector<32x96xbf16>, vector<16x96xf32> -> vector<16x96xf32>
    %8 = arith.addf %3, %7 : vector<16x96xf32>
    %c0_6 = arith.constant 0 : index
    %c0_7 = arith.constant 0 : index
    %9 = vector.load %arg7[%c0_6, %c0_7] : memref<16x96xf32, #tpu.memory_space<vmem>>, vector<16x96xf32>
    tpu.vector_store %arg7[%c0_6, %c0_7], %8 {strides = array<i32>} : memref<16x96xf32, #tpu.memory_space<vmem>>, vector<16x96xf32>,
    %c0_i32_8 = arith.constant 0 : i32
    %10 = arith.cmpi eq, %arg2, %c0_i32_8 : i32
    %11 = arith.extui %10 : i1 to i32
    %c0_i32_9 = arith.constant 0 : i32
    %12 = arith.cmpi ne, %11, %c0_i32_9 : i32
    scf.if %12 {
      %c0_10 = arith.constant 0 : index
      %c0_11 = arith.constant 0 : index
      %13 = vector.load %arg7[%c0_10, %c0_11] : memref<16x96xf32, #tpu.memory_space<vmem>>, vector<16x96xf32>
      %c0_12 = arith.constant 0 : index
      %c0_13 = arith.constant 0 : index
      %14 = vector.load %arg5[%c0_12, %c0_13] : memref<1x96xf32, #tpu.memory_space<vmem>>, vector<1x96xf32>
      %15 = vector.broadcast %14 : vector<1x96xf32> to vector<16x96xf32>
      %16 = arith.addf %13, %15 : vector<16x96xf32>
      %c0_14 = arith.constant 0 : index
      %c0_15 = arith.constant 0 : index
      %17 = vector.load %arg6[%c0_14, %c0_15] : memref<16x96xf32, #tpu.memory_space<vmem>>, vector<16x96xf32>
      tpu.vector_store %arg6[%c0_14, %c0_15], %16 {strides = array<i32>} : memref<16x96xf32, #tpu.memory_space<vmem>>, vector<16x96xf32>,
    } else {
    }
    return
  }
  func.func @transform_0(%arg0: i32, %arg1: i32, %arg2: i32) -> (i32, i32) {
    %c0_i32 = arith.constant 0 : i32
    return %arg0, %arg2 : i32, i32
  }
  func.func @transform_1(%arg0: i32, %arg1: i32, %arg2: i32) -> (i32, i32) {
    %c0_i32 = arith.constant 0 : i32
    return %arg2, %arg1 : i32, i32
  }
  func.func @transform_2(%arg0: i32, %arg1: i32, %arg2: i32) -> (i32, i32) {
    %c0_i32 = arith.constant 0 : i32
    %c0_i32_0 = arith.constant 0 : i32
    return %c0_i32, %arg1 : i32, i32
  }
  func.func @transform_3(%arg0: i32, %arg1: i32, %arg2: i32) -> (i32, i32) {
    %c0_i32 = arith.constant 0 : i32
    return %arg0, %arg1 : i32, i32
  }
}

module attributes {stable_mosaic.version = 11 : i64} {
  func.func @_self_attn_kernel(%arg0: i32, %arg1: memref<1x16x96xf32, #tpu.memory_space<vmem>>, %arg2: memref<1x16x32xf32, #tpu.memory_space<vmem>>) attributes {dimension_semantics = [#tpu.dimension_semantics<parallel>], iteration_bounds = array<i64: 2>, scalar_prefetch = 0 : i64, scratch_operands = 0 : i64, tpu.core_type = #tpu.core_type<tc>, window_params = [{transform_indices = @transform_0, window_bounds = array<i64: 1, 16, 96>}, {transform_indices = @transform_1, window_bounds = array<i64: 1, 16, 32>}]} {
    %0 = tpu.iota {dimensions = array<i32: 0>} : vector<16x16xi32>
    %1 = tpu.iota {dimensions = array<i32: 1>} : vector<16x16xi32>
    %2 = arith.cmpi sgt, %1, %0 : vector<16x16xi32>
    %cst = arith.constant -1.000000e+09 : f32
    %cst_0 = arith.constant 0.000000e+00 : f32
    %3 = vector.broadcast %cst : f32 to vector<16x16xf32>
    %4 = vector.broadcast %cst_0 : f32 to vector<16x16xf32>
    %5 = arith.select %2, %3, %4 : vector<16x16xi1>, vector<16x16xf32>
    %c0 = arith.constant 0 : index
    %c0_1 = arith.constant 0 : index
    %c0_2 = arith.constant 0 : index
    %6 = vector.load %arg1[%c0, %c0_1, %c0_2] : memref<1x16x96xf32, #tpu.memory_space<vmem>>, vector<1x16x8xf32>
    %7 = vector.shape_cast %6 : vector<1x16x8xf32> to vector<16x8xf32>
    %cst_3 = arith.constant 0.353553385 : f32
    %8 = vector.broadcast %cst_3 : f32 to vector<16x8xf32>
    %9 = arith.mulf %7, %8 : vector<16x8xf32>
    %10 = arith.truncf %9 : vector<16x8xf32> to vector<16x8xbf16>
    %c0_4 = arith.constant 0 : index
    %c0_5 = arith.constant 0 : index
    %c32 = arith.constant 32 : index
    %11 = vector.load %arg1[%c0_4, %c0_5, %c32] : memref<1x16x96xf32, #tpu.memory_space<vmem>>, vector<1x16x8xf32>
    %12 = vector.shape_cast %11 : vector<1x16x8xf32> to vector<16x8xf32>
    %13 = arith.truncf %12 : vector<16x8xf32> to vector<16x8xbf16>
    %c0_6 = arith.constant 0 : index
    %c0_7 = arith.constant 0 : index
    %c64 = arith.constant 64 : index
    %14 = vector.load %arg1[%c0_6, %c0_7, %c64] : memref<1x16x96xf32, #tpu.memory_space<vmem>>, vector<1x16x8xf32>
    %15 = vector.shape_cast %14 : vector<1x16x8xf32> to vector<16x8xf32>
    %16 = arith.truncf %15 : vector<16x8xf32> to vector<16x8xbf16>
    %cst_8 = arith.constant dense<0.000000e+00> : vector<16x16xf32>
    %17 = tpu.matmul %10, %13, %cst_8 {dimension_numbers = #tpu.dot_dimension_numbers<[1], [1], [0], [0], [0, 0, 1, 0], [], []>} : vector<16x8xbf16>, vector<16x8xbf16>, vector<16x16xf32> -> vector<16x16xf32>
    %18 = arith.addf %17, %5 : vector<16x16xf32>
    %cst_9 = arith.constant dense<0xFF800000> : vector<16xf32>
    %19 = vector.multi_reduction <maximumf>, %18, %cst_9 [1] : vector<16x16xf32> to vector<16xf32>
    %20 = vector.shape_cast %19 : vector<16xf32> to vector<16x1xf32>
    %21 = vector.broadcast %20 : vector<16x1xf32> to vector<16x16xf32>
    %22 = arith.subf %18, %21 : vector<16x16xf32>
    %23 = math.exp %22 : vector<16x16xf32>
    %cst_10 = arith.constant dense<0.000000e+00> : vector<16xf32>
    %24 = vector.multi_reduction <add>, %23, %cst_10 [1] : vector<16x16xf32> to vector<16xf32>
    %25 = vector.shape_cast %24 : vector<16xf32> to vector<16x1xf32>
    %26 = tpu.reciprocal %25 {approx = true} : vector<16x1xf32> -> vector<16x1xf32>
    %27 = vector.broadcast %26 : vector<16x1xf32> to vector<16x16xf32>
    %28 = arith.mulf %23, %27 : vector<16x16xf32>
    %29 = arith.truncf %28 : vector<16x16xf32> to vector<16x16xbf16>
    %cst_11 = arith.constant dense<0.000000e+00> : vector<16x8xf32>
    %30 = tpu.matmul %29, %16, %cst_11 {dimension_numbers = #tpu.dot_dimension_numbers<[1], [0], [0], [1], [0, 0, 1, 1], [], []>} : vector<16x16xbf16>, vector<16x8xbf16>, vector<16x8xf32> -> vector<16x8xf32>
    %c0_12 = arith.constant 0 : index
    %c0_13 = arith.constant 0 : index
    %c0_14 = arith.constant 0 : index
    %31 = vector.load %arg2[%c0_12, %c0_13, %c0_14] : memref<1x16x32xf32, #tpu.memory_space<vmem>>, vector<1x16x8xf32>
    %32 = vector.shape_cast %31 : vector<1x16x8xf32> to vector<16x8xf32>
    %33 = vector.shape_cast %30 : vector<16x8xf32> to vector<1x16x8xf32>
    tpu.vector_store %arg2[%c0_12, %c0_13, %c0_14], %33 {strides = array<i32>} : memref<1x16x32xf32, #tpu.memory_space<vmem>>, vector<1x16x8xf32>,
    %c0_15 = arith.constant 0 : index
    %c0_16 = arith.constant 0 : index
    %c8 = arith.constant 8 : index
    %34 = vector.load %arg1[%c0_15, %c0_16, %c8] : memref<1x16x96xf32, #tpu.memory_space<vmem>>, vector<1x16x8xf32>
    %35 = vector.shape_cast %34 : vector<1x16x8xf32> to vector<16x8xf32>
    %cst_17 = arith.constant 0.353553385 : f32
    %36 = vector.broadcast %cst_17 : f32 to vector<16x8xf32>
    %37 = arith.mulf %35, %36 : vector<16x8xf32>
    %38 = arith.truncf %37 : vector<16x8xf32> to vector<16x8xbf16>
    %c0_18 = arith.constant 0 : index
    %c0_19 = arith.constant 0 : index
    %c40 = arith.constant 40 : index
    %39 = vector.load %arg1[%c0_18, %c0_19, %c40] : memref<1x16x96xf32, #tpu.memory_space<vmem>>, vector<1x16x8xf32>
    %40 = vector.shape_cast %39 : vector<1x16x8xf32> to vector<16x8xf32>
    %41 = arith.truncf %40 : vector<16x8xf32> to vector<16x8xbf16>
    %c0_20 = arith.constant 0 : index
    %c0_21 = arith.constant 0 : index
    %c72 = arith.constant 72 : index
    %42 = vector.load %arg1[%c0_20, %c0_21, %c72] : memref<1x16x96xf32, #tpu.memory_space<vmem>>, vector<1x16x8xf32>
    %43 = vector.shape_cast %42 : vector<1x16x8xf32> to vector<16x8xf32>
    %44 = arith.truncf %43 : vector<16x8xf32> to vector<16x8xbf16>
    %cst_22 = arith.constant dense<0.000000e+00> : vector<16x16xf32>
    %45 = tpu.matmul %38, %41, %cst_22 {dimension_numbers = #tpu.dot_dimension_numbers<[1], [1], [0], [0], [0, 0, 1, 0], [], []>} : vector<16x8xbf16>, vector<16x8xbf16>, vector<16x16xf32> -> vector<16x16xf32>
    %46 = arith.addf %45, %5 : vector<16x16xf32>
    %cst_23 = arith.constant dense<0xFF800000> : vector<16xf32>
    %47 = vector.multi_reduction <maximumf>, %46, %cst_23 [1] : vector<16x16xf32> to vector<16xf32>
    %48 = vector.shape_cast %47 : vector<16xf32> to vector<16x1xf32>
    %49 = vector.broadcast %48 : vector<16x1xf32> to vector<16x16xf32>
    %50 = arith.subf %46, %49 : vector<16x16xf32>
    %51 = math.exp %50 : vector<16x16xf32>
    %cst_24 = arith.constant dense<0.000000e+00> : vector<16xf32>
    %52 = vector.multi_reduction <add>, %51, %cst_24 [1] : vector<16x16xf32> to vector<16xf32>
    %53 = vector.shape_cast %52 : vector<16xf32> to vector<16x1xf32>
    %54 = tpu.reciprocal %53 {approx = true} : vector<16x1xf32> -> vector<16x1xf32>
    %55 = vector.broadcast %54 : vector<16x1xf32> to vector<16x16xf32>
    %56 = arith.mulf %51, %55 : vector<16x16xf32>
    %57 = arith.truncf %56 : vector<16x16xf32> to vector<16x16xbf16>
    %cst_25 = arith.constant dense<0.000000e+00> : vector<16x8xf32>
    %58 = tpu.matmul %57, %44, %cst_25 {dimension_numbers = #tpu.dot_dimension_numbers<[1], [0], [0], [1], [0, 0, 1, 1], [], []>} : vector<16x16xbf16>, vector<16x8xbf16>, vector<16x8xf32> -> vector<16x8xf32>
    %c0_26 = arith.constant 0 : index
    %c0_27 = arith.constant 0 : index
    %c8_28 = arith.constant 8 : index
    %59 = vector.load %arg2[%c0_26, %c0_27, %c8_28] : memref<1x16x32xf32, #tpu.memory_space<vmem>>, vector<1x16x8xf32>
    %60 = vector.shape_cast %59 : vector<1x16x8xf32> to vector<16x8xf32>
    %61 = vector.shape_cast %58 : vector<16x8xf32> to vector<1x16x8xf32>
    tpu.vector_store %arg2[%c0_26, %c0_27, %c8_28], %61 {strides = array<i32>} : memref<1x16x32xf32, #tpu.memory_space<vmem>>, vector<1x16x8xf32>,
    %c0_29 = arith.constant 0 : index
    %c0_30 = arith.constant 0 : index
    %c16 = arith.constant 16 : index
    %62 = vector.load %arg1[%c0_29, %c0_30, %c16] : memref<1x16x96xf32, #tpu.memory_space<vmem>>, vector<1x16x8xf32>
    %63 = vector.shape_cast %62 : vector<1x16x8xf32> to vector<16x8xf32>
    %cst_31 = arith.constant 0.353553385 : f32
    %64 = vector.broadcast %cst_31 : f32 to vector<16x8xf32>
    %65 = arith.mulf %63, %64 : vector<16x8xf32>
    %66 = arith.truncf %65 : vector<16x8xf32> to vector<16x8xbf16>
    %c0_32 = arith.constant 0 : index
    %c0_33 = arith.constant 0 : index
    %c48 = arith.constant 48 : index
    %67 = vector.load %arg1[%c0_32, %c0_33, %c48] : memref<1x16x96xf32, #tpu.memory_space<vmem>>, vector<1x16x8xf32>
    %68 = vector.shape_cast %67 : vector<1x16x8xf32> to vector<16x8xf32>
    %69 = arith.truncf %68 : vector<16x8xf32> to vector<16x8xbf16>
    %c0_34 = arith.constant 0 : index
    %c0_35 = arith.constant 0 : index
    %c80 = arith.constant 80 : index
    %70 = vector.load %arg1[%c0_34, %c0_35, %c80] : memref<1x16x96xf32, #tpu.memory_space<vmem>>, vector<1x16x8xf32>
    %71 = vector.shape_cast %70 : vector<1x16x8xf32> to vector<16x8xf32>
    %72 = arith.truncf %71 : vector<16x8xf32> to vector<16x8xbf16>
    %cst_36 = arith.constant dense<0.000000e+00> : vector<16x16xf32>
    %73 = tpu.matmul %66, %69, %cst_36 {dimension_numbers = #tpu.dot_dimension_numbers<[1], [1], [0], [0], [0, 0, 1, 0], [], []>} : vector<16x8xbf16>, vector<16x8xbf16>, vector<16x16xf32> -> vector<16x16xf32>
    %74 = arith.addf %73, %5 : vector<16x16xf32>
    %cst_37 = arith.constant dense<0xFF800000> : vector<16xf32>
    %75 = vector.multi_reduction <maximumf>, %74, %cst_37 [1] : vector<16x16xf32> to vector<16xf32>
    %76 = vector.shape_cast %75 : vector<16xf32> to vector<16x1xf32>
    %77 = vector.broadcast %76 : vector<16x1xf32> to vector<16x16xf32>
    %78 = arith.subf %74, %77 : vector<16x16xf32>
    %79 = math.exp %78 : vector<16x16xf32>
    %cst_38 = arith.constant dense<0.000000e+00> : vector<16xf32>
    %80 = vector.multi_reduction <add>, %79, %cst_38 [1] : vector<16x16xf32> to vector<16xf32>
    %81 = vector.shape_cast %80 : vector<16xf32> to vector<16x1xf32>
    %82 = tpu.reciprocal %81 {approx = true} : vector<16x1xf32> -> vector<16x1xf32>
    %83 = vector.broadcast %82 : vector<16x1xf32> to vector<16x16xf32>
    %84 = arith.mulf %79, %83 : vector<16x16xf32>
    %85 = arith.truncf %84 : vector<16x16xf32> to vector<16x16xbf16>
    %cst_39 = arith.constant dense<0.000000e+00> : vector<16x8xf32>
    %86 = tpu.matmul %85, %72, %cst_39 {dimension_numbers = #tpu.dot_dimension_numbers<[1], [0], [0], [1], [0, 0, 1, 1], [], []>} : vector<16x16xbf16>, vector<16x8xbf16>, vector<16x8xf32> -> vector<16x8xf32>
    %c0_40 = arith.constant 0 : index
    %c0_41 = arith.constant 0 : index
    %c16_42 = arith.constant 16 : index
    %87 = vector.load %arg2[%c0_40, %c0_41, %c16_42] : memref<1x16x32xf32, #tpu.memory_space<vmem>>, vector<1x16x8xf32>
    %88 = vector.shape_cast %87 : vector<1x16x8xf32> to vector<16x8xf32>
    %89 = vector.shape_cast %86 : vector<16x8xf32> to vector<1x16x8xf32>
    tpu.vector_store %arg2[%c0_40, %c0_41, %c16_42], %89 {strides = array<i32>} : memref<1x16x32xf32, #tpu.memory_space<vmem>>, vector<1x16x8xf32>,
    %c0_43 = arith.constant 0 : index
    %c0_44 = arith.constant 0 : index
    %c24 = arith.constant 24 : index
    %90 = vector.load %arg1[%c0_43, %c0_44, %c24] : memref<1x16x96xf32, #tpu.memory_space<vmem>>, vector<1x16x8xf32>
    %91 = vector.shape_cast %90 : vector<1x16x8xf32> to vector<16x8xf32>
    %cst_45 = arith.constant 0.353553385 : f32
    %92 = vector.broadcast %cst_45 : f32 to vector<16x8xf32>
    %93 = arith.mulf %91, %92 : vector<16x8xf32>
    %94 = arith.truncf %93 : vector<16x8xf32> to vector<16x8xbf16>
    %c0_46 = arith.constant 0 : index
    %c0_47 = arith.constant 0 : index
    %c56 = arith.constant 56 : index
    %95 = vector.load %arg1[%c0_46, %c0_47, %c56] : memref<1x16x96xf32, #tpu.memory_space<vmem>>, vector<1x16x8xf32>
    %96 = vector.shape_cast %95 : vector<1x16x8xf32> to vector<16x8xf32>
    %97 = arith.truncf %96 : vector<16x8xf32> to vector<16x8xbf16>
    %c0_48 = arith.constant 0 : index
    %c0_49 = arith.constant 0 : index
    %c88 = arith.constant 88 : index
    %98 = vector.load %arg1[%c0_48, %c0_49, %c88] : memref<1x16x96xf32, #tpu.memory_space<vmem>>, vector<1x16x8xf32>
    %99 = vector.shape_cast %98 : vector<1x16x8xf32> to vector<16x8xf32>
    %100 = arith.truncf %99 : vector<16x8xf32> to vector<16x8xbf16>
    %cst_50 = arith.constant dense<0.000000e+00> : vector<16x16xf32>
    %101 = tpu.matmul %94, %97, %cst_50 {dimension_numbers = #tpu.dot_dimension_numbers<[1], [1], [0], [0], [0, 0, 1, 0], [], []>} : vector<16x8xbf16>, vector<16x8xbf16>, vector<16x16xf32> -> vector<16x16xf32>
    %102 = arith.addf %101, %5 : vector<16x16xf32>
    %cst_51 = arith.constant dense<0xFF800000> : vector<16xf32>
    %103 = vector.multi_reduction <maximumf>, %102, %cst_51 [1] : vector<16x16xf32> to vector<16xf32>
    %104 = vector.shape_cast %103 : vector<16xf32> to vector<16x1xf32>
    %105 = vector.broadcast %104 : vector<16x1xf32> to vector<16x16xf32>
    %106 = arith.subf %102, %105 : vector<16x16xf32>
    %107 = math.exp %106 : vector<16x16xf32>
    %cst_52 = arith.constant dense<0.000000e+00> : vector<16xf32>
    %108 = vector.multi_reduction <add>, %107, %cst_52 [1] : vector<16x16xf32> to vector<16xf32>
    %109 = vector.shape_cast %108 : vector<16xf32> to vector<16x1xf32>
    %110 = tpu.reciprocal %109 {approx = true} : vector<16x1xf32> -> vector<16x1xf32>
    %111 = vector.broadcast %110 : vector<16x1xf32> to vector<16x16xf32>
    %112 = arith.mulf %107, %111 : vector<16x16xf32>
    %113 = arith.truncf %112 : vector<16x16xf32> to vector<16x16xbf16>
    %cst_53 = arith.constant dense<0.000000e+00> : vector<16x8xf32>
    %114 = tpu.matmul %113, %100, %cst_53 {dimension_numbers = #tpu.dot_dimension_numbers<[1], [0], [0], [1], [0, 0, 1, 1], [], []>} : vector<16x16xbf16>, vector<16x8xbf16>, vector<16x8xf32> -> vector<16x8xf32>
    %c0_54 = arith.constant 0 : index
    %c0_55 = arith.constant 0 : index
    %c24_56 = arith.constant 24 : index
    %115 = vector.load %arg2[%c0_54, %c0_55, %c24_56] : memref<1x16x32xf32, #tpu.memory_space<vmem>>, vector<1x16x8xf32>
    %116 = vector.shape_cast %115 : vector<1x16x8xf32> to vector<16x8xf32>
    %117 = vector.shape_cast %114 : vector<16x8xf32> to vector<1x16x8xf32>
    tpu.vector_store %arg2[%c0_54, %c0_55, %c24_56], %117 {strides = array<i32>} : memref<1x16x32xf32, #tpu.memory_space<vmem>>, vector<1x16x8xf32>,
    return
  }
  func.func @transform_0(%arg0: i32) -> (i32, i32, i32) {
    %c0_i32 = arith.constant 0 : i32
    %c0_i32_0 = arith.constant 0 : i32
    %c0_i32_1 = arith.constant 0 : i32
    return %arg0, %c0_i32, %c0_i32_0 : i32, i32, i32
  }
  func.func @transform_1(%arg0: i32) -> (i32, i32, i32) {
    %c0_i32 = arith.constant 0 : i32
    %c0_i32_0 = arith.constant 0 : i32
    %c0_i32_1 = arith.constant 0 : i32
    return %arg0, %c0_i32, %c0_i32_0 : i32, i32, i32
  }
}

module attributes {stable_mosaic.version = 11 : i64} {
  func.func @_linear_add_ln_kernel(%arg0: i32, %arg1: i32, %arg2: memref<16x32xf32, #tpu.memory_space<vmem>>, %arg3: memref<32x32xbf16, #tpu.memory_space<vmem>>, %arg4: memref<1x32xf32, #tpu.memory_space<vmem>>, %arg5: memref<16x32xf32, #tpu.memory_space<vmem>>, %arg6: memref<1x32xf32, #tpu.memory_space<vmem>>, %arg7: memref<1x32xf32, #tpu.memory_space<vmem>>, %arg8: memref<16x32xf32, #tpu.memory_space<vmem>>, %arg9: memref<16x32xf32, #tpu.memory_space<vmem>>) attributes {dimension_semantics = [#tpu.dimension_semantics<parallel>, #tpu.dimension_semantics<arbitrary>], iteration_bounds = array<i64: 2, 1>, scalar_prefetch = 0 : i64, scratch_operands = 1 : i64, tpu.core_type = #tpu.core_type<tc>, window_params = [{transform_indices = @transform_0, window_bounds = array<i64: 16, 32>}, {transform_indices = @transform_1, window_bounds = array<i64: 32, 32>}, {pipeline_mode = #tpu.pipeline_mode<synchronous>, transform_indices = @transform_2, window_bounds = array<i64: 1, 32>}, {transform_indices = @transform_3, window_bounds = array<i64: 16, 32>}, {pipeline_mode = #tpu.pipeline_mode<synchronous>, transform_indices = @transform_4, window_bounds = array<i64: 1, 32>}, {pipeline_mode = #tpu.pipeline_mode<synchronous>, transform_indices = @transform_5, window_bounds = array<i64: 1, 32>}, {transform_indices = @transform_6, window_bounds = array<i64: 16, 32>}]} {
    %c0_i32 = arith.constant 0 : i32
    %0 = arith.cmpi eq, %arg1, %c0_i32 : i32
    %1 = arith.extui %0 : i1 to i32
    %c0_i32_0 = arith.constant 0 : i32
    %2 = arith.cmpi ne, %1, %c0_i32_0 : i32
    scf.if %2 {
      %cst_10 = arith.constant 0.000000e+00 : f32
      %13 = vector.broadcast %cst_10 : f32 to vector<16x32xf32>
      %c0_11 = arith.constant 0 : index
      %c0_12 = arith.constant 0 : index
      %14 = vector.load %arg9[%c0_11, %c0_12] : memref<16x32xf32, #tpu.memory_space<vmem>>, vector<16x32xf32>
      tpu.vector_store %arg9[%c0_11, %c0_12], %13 {strides = array<i32>} : memref<16x32xf32, #tpu.memory_space<vmem>>, vector<16x32xf32>,
    } else {
    }
    %c0 = arith.constant 0 : index
    %c0_1 = arith.constant 0 : index
    %3 = vector.load %arg9[%c0, %c0_1] : memref<16x32xf32, #tpu.memory_space<vmem>>, vector<16x32xf32>
    %c0_2 = arith.constant 0 : index
    %c0_3 = arith.constant 0 : index
    %4 = vector.load %arg2[%c0_2, %c0_3] : memref<16x32xf32, #tpu.memory_space<vmem>>, vector<16x32xf32>
    %5 = arith.truncf %4 : vector<16x32xf32> to vector<16x32xbf16>
    %c0_4 = arith.constant 0 : index
    %c0_5 = arith.constant 0 : index
    %6 = vector.load %arg3[%c0_4, %c0_5] : memref<32x32xbf16, #tpu.memory_space<vmem>>, vector<32x32xbf16>
    %cst = arith.constant dense<0.000000e+00> : vector<16x32xf32>
    %7 = tpu.matmul %5, %6, %cst {dimension_numbers = #tpu.dot_dimension_numbers<[1], [0], [0], [1], [0, 0, 1, 1], [], []>} : vector<16x32xbf16>, vector<32x32xbf16>, vector<16x32xf32> -> vector<16x32xf32>
    %8 = arith.addf %3, %7 : vector<16x32xf32>
    %c0_6 = arith.constant 0 : index
    %c0_7 = arith.constant 0 : index
    %9 = vector.load %arg9[%c0_6, %c0_7] : memref<16x32xf32, #tpu.memory_space<vmem>>, vector<16x32xf32>
    tpu.vector_store %arg9[%c0_6, %c0_7], %8 {strides = array<i32>} : memref<16x32xf32, #tpu.memory_space<vmem>>, vector<16x32xf32>,
    %c0_i32_8 = arith.constant 0 : i32
    %10 = arith.cmpi eq, %arg1, %c0_i32_8 : i32
    %11 = arith.extui %10 : i1 to i32
    %c0_i32_9 = arith.constant 0 : i32
    %12 = arith.cmpi ne, %11, %c0_i32_9 : i32
    scf.if %12 {
      %c0_10 = arith.constant 0 : index
      %c0_11 = arith.constant 0 : index
      %13 = vector.load %arg9[%c0_10, %c0_11] : memref<16x32xf32, #tpu.memory_space<vmem>>, vector<16x32xf32>
      %c0_12 = arith.constant 0 : index
      %c0_13 = arith.constant 0 : index
      %14 = vector.load %arg4[%c0_12, %c0_13] : memref<1x32xf32, #tpu.memory_space<vmem>>, vector<1x32xf32>
      %15 = vector.broadcast %14 : vector<1x32xf32> to vector<16x32xf32>
      %16 = arith.addf %13, %15 : vector<16x32xf32>
      %c0_14 = arith.constant 0 : index
      %c0_15 = arith.constant 0 : index
      %17 = vector.load %arg5[%c0_14, %c0_15] : memref<16x32xf32, #tpu.memory_space<vmem>>, vector<16x32xf32>
      %18 = arith.addf %16, %17 : vector<16x32xf32>
      %cst_16 = arith.constant dense<0.000000e+00> : vector<16xf32>
      %19 = vector.multi_reduction <add>, %18, %cst_16 [1] : vector<16x32xf32> to vector<16xf32>
      %20 = vector.shape_cast %19 : vector<16xf32> to vector<16x1xf32>
      %cst_17 = arith.constant 3.200000e+01 : f32
      %21 = vector.broadcast %cst_17 : f32 to vector<16x1xf32>
      %22 = arith.divf %20, %21 : vector<16x1xf32>
      %23 = vector.broadcast %22 : vector<16x1xf32> to vector<16x32xf32>
      %24 = arith.subf %18, %23 : vector<16x32xf32>
      %25 = arith.mulf %24, %24 : vector<16x32xf32>
      %cst_18 = arith.constant dense<0.000000e+00> : vector<16xf32>
      %26 = vector.multi_reduction <add>, %25, %cst_18 [1] : vector<16x32xf32> to vector<16xf32>
      %27 = vector.shape_cast %26 : vector<16xf32> to vector<16x1xf32>
      %cst_19 = arith.constant 3.200000e+01 : f32
      %28 = vector.broadcast %cst_19 : f32 to vector<16x1xf32>
      %29 = arith.divf %27, %28 : vector<16x1xf32>
      %30 = vector.broadcast %22 : vector<16x1xf32> to vector<16x32xf32>
      %31 = arith.subf %18, %30 : vector<16x32xf32>
      %cst_20 = arith.constant 9.99999974E-6 : f32
      %32 = vector.broadcast %cst_20 : f32 to vector<16x1xf32>
      %33 = arith.addf %29, %32 : vector<16x1xf32>
      %34 = math.rsqrt %33 : vector<16x1xf32>
      %35 = vector.broadcast %34 : vector<16x1xf32> to vector<16x32xf32>
      %36 = arith.mulf %31, %35 : vector<16x32xf32>
      %c0_21 = arith.constant 0 : index
      %c0_22 = arith.constant 0 : index
      %37 = vector.load %arg6[%c0_21, %c0_22] : memref<1x32xf32, #tpu.memory_space<vmem>>, vector<1x32xf32>
      %38 = vector.broadcast %37 : vector<1x32xf32> to vector<16x32xf32>
      %39 = arith.mulf %36, %38 : vector<16x32xf32>
      %c0_23 = arith.constant 0 : index
      %c0_24 = arith.constant 0 : index
      %40 = vector.load %arg7[%c0_23, %c0_24] : memref<1x32xf32, #tpu.memory_space<vmem>>, vector<1x32xf32>
      %41 = vector.broadcast %40 : vector<1x32xf32> to vector<16x32xf32>
      %42 = arith.addf %39, %41 : vector<16x32xf32>
      %c0_25 = arith.constant 0 : index
      %c0_26 = arith.constant 0 : index
      %43 = vector.load %arg8[%c0_25, %c0_26] : memref<16x32xf32, #tpu.memory_space<vmem>>, vector<16x32xf32>
      tpu.vector_store %arg8[%c0_25, %c0_26], %42 {strides = array<i32>} : memref<16x32xf32, #tpu.memory_space<vmem>>, vector<16x32xf32>,
    } else {
    }
    return
  }
  func.func @transform_0(%arg0: i32, %arg1: i32) -> (i32, i32) {
    %c0_i32 = arith.constant 0 : i32
    return %arg0, %arg1 : i32, i32
  }
  func.func @transform_1(%arg0: i32, %arg1: i32) -> (i32, i32) {
    %c0_i32 = arith.constant 0 : i32
    %c0_i32_0 = arith.constant 0 : i32
    return %arg1, %c0_i32 : i32, i32
  }
  func.func @transform_2(%arg0: i32, %arg1: i32) -> (i32, i32) {
    %c0_i32 = arith.constant 0 : i32
    %c0_i32_0 = arith.constant 0 : i32
    %c0_i32_1 = arith.constant 0 : i32
    return %c0_i32, %c0_i32_0 : i32, i32
  }
  func.func @transform_3(%arg0: i32, %arg1: i32) -> (i32, i32) {
    %c0_i32 = arith.constant 0 : i32
    %c0_i32_0 = arith.constant 0 : i32
    return %arg0, %c0_i32 : i32, i32
  }
  func.func @transform_4(%arg0: i32, %arg1: i32) -> (i32, i32) {
    %c0_i32 = arith.constant 0 : i32
    %c0_i32_0 = arith.constant 0 : i32
    %c0_i32_1 = arith.constant 0 : i32
    return %c0_i32, %c0_i32_0 : i32, i32
  }
  func.func @transform_5(%arg0: i32, %arg1: i32) -> (i32, i32) {
    %c0_i32 = arith.constant 0 : i32
    %c0_i32_0 = arith.constant 0 : i32
    %c0_i32_1 = arith.constant 0 : i32
    return %c0_i32, %c0_i32_0 : i32, i32
  }
  func.func @transform_6(%arg0: i32, %arg1: i32) -> (i32, i32) {
    %c0_i32 = arith.constant 0 : i32
    %c0_i32_0 = arith.constant 0 : i32
    return %arg0, %c0_i32 : i32, i32
  }
}

module attributes {stable_mosaic.version = 11 : i64} {
  func.func @_linear_kernel(%arg0: i32, %arg1: i32, %arg2: i32, %arg3: memref<16x32xf32, #tpu.memory_space<vmem>>, %arg4: memref<32x32xbf16, #tpu.memory_space<vmem>>, %arg5: memref<1x32xf32, #tpu.memory_space<vmem>>, %arg6: memref<16x32xf32, #tpu.memory_space<vmem>>, %arg7: memref<16x32xf32, #tpu.memory_space<vmem>>) attributes {dimension_semantics = [#tpu.dimension_semantics<parallel>, #tpu.dimension_semantics<parallel>, #tpu.dimension_semantics<arbitrary>], iteration_bounds = array<i64: 2, 1, 1>, scalar_prefetch = 0 : i64, scratch_operands = 1 : i64, tpu.core_type = #tpu.core_type<tc>, window_params = [{transform_indices = @transform_0, window_bounds = array<i64: 16, 32>}, {transform_indices = @transform_1, window_bounds = array<i64: 32, 32>}, {transform_indices = @transform_2, window_bounds = array<i64: 1, 32>}, {transform_indices = @transform_3, window_bounds = array<i64: 16, 32>}]} {
    %c0_i32 = arith.constant 0 : i32
    %0 = arith.cmpi eq, %arg2, %c0_i32 : i32
    %1 = arith.extui %0 : i1 to i32
    %c0_i32_0 = arith.constant 0 : i32
    %2 = arith.cmpi ne, %1, %c0_i32_0 : i32
    scf.if %2 {
      %cst_10 = arith.constant 0.000000e+00 : f32
      %13 = vector.broadcast %cst_10 : f32 to vector<16x32xf32>
      %c0_11 = arith.constant 0 : index
      %c0_12 = arith.constant 0 : index
      %14 = vector.load %arg7[%c0_11, %c0_12] : memref<16x32xf32, #tpu.memory_space<vmem>>, vector<16x32xf32>
      tpu.vector_store %arg7[%c0_11, %c0_12], %13 {strides = array<i32>} : memref<16x32xf32, #tpu.memory_space<vmem>>, vector<16x32xf32>,
    } else {
    }
    %c0 = arith.constant 0 : index
    %c0_1 = arith.constant 0 : index
    %3 = vector.load %arg7[%c0, %c0_1] : memref<16x32xf32, #tpu.memory_space<vmem>>, vector<16x32xf32>
    %c0_2 = arith.constant 0 : index
    %c0_3 = arith.constant 0 : index
    %4 = vector.load %arg3[%c0_2, %c0_3] : memref<16x32xf32, #tpu.memory_space<vmem>>, vector<16x32xf32>
    %5 = arith.truncf %4 : vector<16x32xf32> to vector<16x32xbf16>
    %c0_4 = arith.constant 0 : index
    %c0_5 = arith.constant 0 : index
    %6 = vector.load %arg4[%c0_4, %c0_5] : memref<32x32xbf16, #tpu.memory_space<vmem>>, vector<32x32xbf16>
    %cst = arith.constant dense<0.000000e+00> : vector<16x32xf32>
    %7 = tpu.matmul %5, %6, %cst {dimension_numbers = #tpu.dot_dimension_numbers<[1], [0], [0], [1], [0, 0, 1, 1], [], []>} : vector<16x32xbf16>, vector<32x32xbf16>, vector<16x32xf32> -> vector<16x32xf32>
    %8 = arith.addf %3, %7 : vector<16x32xf32>
    %c0_6 = arith.constant 0 : index
    %c0_7 = arith.constant 0 : index
    %9 = vector.load %arg7[%c0_6, %c0_7] : memref<16x32xf32, #tpu.memory_space<vmem>>, vector<16x32xf32>
    tpu.vector_store %arg7[%c0_6, %c0_7], %8 {strides = array<i32>} : memref<16x32xf32, #tpu.memory_space<vmem>>, vector<16x32xf32>,
    %c0_i32_8 = arith.constant 0 : i32
    %10 = arith.cmpi eq, %arg2, %c0_i32_8 : i32
    %11 = arith.extui %10 : i1 to i32
    %c0_i32_9 = arith.constant 0 : i32
    %12 = arith.cmpi ne, %11, %c0_i32_9 : i32
    scf.if %12 {
      %c0_10 = arith.constant 0 : index
      %c0_11 = arith.constant 0 : index
      %13 = vector.load %arg7[%c0_10, %c0_11] : memref<16x32xf32, #tpu.memory_space<vmem>>, vector<16x32xf32>
      %c0_12 = arith.constant 0 : index
      %c0_13 = arith.constant 0 : index
      %14 = vector.load %arg5[%c0_12, %c0_13] : memref<1x32xf32, #tpu.memory_space<vmem>>, vector<1x32xf32>
      %15 = vector.broadcast %14 : vector<1x32xf32> to vector<16x32xf32>
      %16 = arith.addf %13, %15 : vector<16x32xf32>
      %c0_14 = arith.constant 0 : index
      %c0_15 = arith.constant 0 : index
      %17 = vector.load %arg6[%c0_14, %c0_15] : memref<16x32xf32, #tpu.memory_space<vmem>>, vector<16x32xf32>
      tpu.vector_store %arg6[%c0_14, %c0_15], %16 {strides = array<i32>} : memref<16x32xf32, #tpu.memory_space<vmem>>, vector<16x32xf32>,
    } else {
    }
    return
  }
  func.func @transform_0(%arg0: i32, %arg1: i32, %arg2: i32) -> (i32, i32) {
    %c0_i32 = arith.constant 0 : i32
    return %arg0, %arg2 : i32, i32
  }
  func.func @transform_1(%arg0: i32, %arg1: i32, %arg2: i32) -> (i32, i32) {
    %c0_i32 = arith.constant 0 : i32
    return %arg2, %arg1 : i32, i32
  }
  func.func @transform_2(%arg0: i32, %arg1: i32, %arg2: i32) -> (i32, i32) {
    %c0_i32 = arith.constant 0 : i32
    %c0_i32_0 = arith.constant 0 : i32
    return %c0_i32, %arg1 : i32, i32
  }
  func.func @transform_3(%arg0: i32, %arg1: i32, %arg2: i32) -> (i32, i32) {
    %c0_i32 = arith.constant 0 : i32
    return %arg0, %arg1 : i32, i32
  }
}

module attributes {stable_mosaic.version = 11 : i64} {
  func.func @_linear_kernel(%arg0: i32, %arg1: i32, %arg2: i32, %arg3: memref<8x32xf32, #tpu.memory_space<vmem>>, %arg4: memref<32x64xbf16, #tpu.memory_space<vmem>>, %arg5: memref<1x64xf32, #tpu.memory_space<vmem>>, %arg6: memref<8x64xf32, #tpu.memory_space<vmem>>, %arg7: memref<8x64xf32, #tpu.memory_space<vmem>>) attributes {dimension_semantics = [#tpu.dimension_semantics<parallel>, #tpu.dimension_semantics<parallel>, #tpu.dimension_semantics<arbitrary>], iteration_bounds = array<i64: 2, 1, 1>, scalar_prefetch = 0 : i64, scratch_operands = 1 : i64, tpu.core_type = #tpu.core_type<tc>, window_params = [{transform_indices = @transform_0, window_bounds = array<i64: 8, 32>}, {transform_indices = @transform_1, window_bounds = array<i64: 32, 64>}, {transform_indices = @transform_2, window_bounds = array<i64: 1, 64>}, {transform_indices = @transform_3, window_bounds = array<i64: 8, 64>}]} {
    %c0_i32 = arith.constant 0 : i32
    %0 = arith.cmpi eq, %arg2, %c0_i32 : i32
    %1 = arith.extui %0 : i1 to i32
    %c0_i32_0 = arith.constant 0 : i32
    %2 = arith.cmpi ne, %1, %c0_i32_0 : i32
    scf.if %2 {
      %cst_10 = arith.constant 0.000000e+00 : f32
      %13 = vector.broadcast %cst_10 : f32 to vector<8x64xf32>
      %c0_11 = arith.constant 0 : index
      %c0_12 = arith.constant 0 : index
      %14 = vector.load %arg7[%c0_11, %c0_12] : memref<8x64xf32, #tpu.memory_space<vmem>>, vector<8x64xf32>
      tpu.vector_store %arg7[%c0_11, %c0_12], %13 {strides = array<i32>} : memref<8x64xf32, #tpu.memory_space<vmem>>, vector<8x64xf32>,
    } else {
    }
    %c0 = arith.constant 0 : index
    %c0_1 = arith.constant 0 : index
    %3 = vector.load %arg7[%c0, %c0_1] : memref<8x64xf32, #tpu.memory_space<vmem>>, vector<8x64xf32>
    %c0_2 = arith.constant 0 : index
    %c0_3 = arith.constant 0 : index
    %4 = vector.load %arg3[%c0_2, %c0_3] : memref<8x32xf32, #tpu.memory_space<vmem>>, vector<8x32xf32>
    %5 = arith.truncf %4 : vector<8x32xf32> to vector<8x32xbf16>
    %c0_4 = arith.constant 0 : index
    %c0_5 = arith.constant 0 : index
    %6 = vector.load %arg4[%c0_4, %c0_5] : memref<32x64xbf16, #tpu.memory_space<vmem>>, vector<32x64xbf16>
    %cst = arith.constant dense<0.000000e+00> : vector<8x64xf32>
    %7 = tpu.matmul %5, %6, %cst {dimension_numbers = #tpu.dot_dimension_numbers<[1], [0], [0], [1], [0, 0, 1, 1], [], []>} : vector<8x32xbf16>, vector<32x64xbf16>, vector<8x64xf32> -> vector<8x64xf32>
    %8 = arith.addf %3, %7 : vector<8x64xf32>
    %c0_6 = arith.constant 0 : index
    %c0_7 = arith.constant 0 : index
    %9 = vector.load %arg7[%c0_6, %c0_7] : memref<8x64xf32, #tpu.memory_space<vmem>>, vector<8x64xf32>
    tpu.vector_store %arg7[%c0_6, %c0_7], %8 {strides = array<i32>} : memref<8x64xf32, #tpu.memory_space<vmem>>, vector<8x64xf32>,
    %c0_i32_8 = arith.constant 0 : i32
    %10 = arith.cmpi eq, %arg2, %c0_i32_8 : i32
    %11 = arith.extui %10 : i1 to i32
    %c0_i32_9 = arith.constant 0 : i32
    %12 = arith.cmpi ne, %11, %c0_i32_9 : i32
    scf.if %12 {
      %c0_10 = arith.constant 0 : index
      %c0_11 = arith.constant 0 : index
      %13 = vector.load %arg7[%c0_10, %c0_11] : memref<8x64xf32, #tpu.memory_space<vmem>>, vector<8x64xf32>
      %c0_12 = arith.constant 0 : index
      %c0_13 = arith.constant 0 : index
      %14 = vector.load %arg5[%c0_12, %c0_13] : memref<1x64xf32, #tpu.memory_space<vmem>>, vector<1x64xf32>
      %15 = vector.broadcast %14 : vector<1x64xf32> to vector<8x64xf32>
      %16 = arith.addf %13, %15 : vector<8x64xf32>
      %c0_14 = arith.constant 0 : index
      %c0_15 = arith.constant 0 : index
      %17 = vector.load %arg6[%c0_14, %c0_15] : memref<8x64xf32, #tpu.memory_space<vmem>>, vector<8x64xf32>
      tpu.vector_store %arg6[%c0_14, %c0_15], %16 {strides = array<i32>} : memref<8x64xf32, #tpu.memory_space<vmem>>, vector<8x64xf32>,
    } else {
    }
    return
  }
  func.func @transform_0(%arg0: i32, %arg1: i32, %arg2: i32) -> (i32, i32) {
    %c0_i32 = arith.constant 0 : i32
    return %arg0, %arg2 : i32, i32
  }
  func.func @transform_1(%arg0: i32, %arg1: i32, %arg2: i32) -> (i32, i32) {
    %c0_i32 = arith.constant 0 : i32
    return %arg2, %arg1 : i32, i32
  }
  func.func @transform_2(%arg0: i32, %arg1: i32, %arg2: i32) -> (i32, i32) {
    %c0_i32 = arith.constant 0 : i32
    %c0_i32_0 = arith.constant 0 : i32
    return %c0_i32, %arg1 : i32, i32
  }
  func.func @transform_3(%arg0: i32, %arg1: i32, %arg2: i32) -> (i32, i32) {
    %c0_i32 = arith.constant 0 : i32
    return %arg0, %arg1 : i32, i32
  }
}

module attributes {stable_mosaic.version = 11 : i64} {
  func.func @_cross_attn_kernel(%arg0: i32, %arg1: memref<1x16x32xf32, #tpu.memory_space<vmem>>, %arg2: memref<1x8x64xf32, #tpu.memory_space<vmem>>, %arg3: memref<1x16x32xf32, #tpu.memory_space<vmem>>) attributes {dimension_semantics = [#tpu.dimension_semantics<parallel>], iteration_bounds = array<i64: 2>, scalar_prefetch = 0 : i64, scratch_operands = 0 : i64, tpu.core_type = #tpu.core_type<tc>, window_params = [{transform_indices = @transform_0, window_bounds = array<i64: 1, 16, 32>}, {transform_indices = @transform_1, window_bounds = array<i64: 1, 8, 64>}, {transform_indices = @transform_2, window_bounds = array<i64: 1, 16, 32>}]} {
    %c0 = arith.constant 0 : index
    %c0_0 = arith.constant 0 : index
    %c0_1 = arith.constant 0 : index
    %0 = vector.load %arg1[%c0, %c0_0, %c0_1] : memref<1x16x32xf32, #tpu.memory_space<vmem>>, vector<1x16x8xf32>
    %1 = vector.shape_cast %0 : vector<1x16x8xf32> to vector<16x8xf32>
    %cst = arith.constant 0.353553385 : f32
    %2 = vector.broadcast %cst : f32 to vector<16x8xf32>
    %3 = arith.mulf %1, %2 : vector<16x8xf32>
    %4 = arith.truncf %3 : vector<16x8xf32> to vector<16x8xbf16>
    %c0_2 = arith.constant 0 : index
    %c0_3 = arith.constant 0 : index
    %c0_4 = arith.constant 0 : index
    %5 = vector.load %arg2[%c0_2, %c0_3, %c0_4] : memref<1x8x64xf32, #tpu.memory_space<vmem>>, vector<1x8x8xf32>
    %6 = vector.shape_cast %5 : vector<1x8x8xf32> to vector<8x8xf32>
    %7 = arith.truncf %6 : vector<8x8xf32> to vector<8x8xbf16>
    %c0_5 = arith.constant 0 : index
    %c0_6 = arith.constant 0 : index
    %c32 = arith.constant 32 : index
    %8 = vector.load %arg2[%c0_5, %c0_6, %c32] : memref<1x8x64xf32, #tpu.memory_space<vmem>>, vector<1x8x8xf32>
    %9 = vector.shape_cast %8 : vector<1x8x8xf32> to vector<8x8xf32>
    %10 = arith.truncf %9 : vector<8x8xf32> to vector<8x8xbf16>
    %cst_7 = arith.constant dense<0.000000e+00> : vector<16x8xf32>
    %11 = tpu.matmul %4, %7, %cst_7 {dimension_numbers = #tpu.dot_dimension_numbers<[1], [1], [0], [0], [0, 0, 1, 0], [], []>} : vector<16x8xbf16>, vector<8x8xbf16>, vector<16x8xf32> -> vector<16x8xf32>
    %cst_8 = arith.constant dense<0xFF800000> : vector<16xf32>
    %12 = vector.multi_reduction <maximumf>, %11, %cst_8 [1] : vector<16x8xf32> to vector<16xf32>
    %13 = vector.shape_cast %12 : vector<16xf32> to vector<16x1xf32>
    %14 = vector.broadcast %13 : vector<16x1xf32> to vector<16x8xf32>
    %15 = arith.subf %11, %14 : vector<16x8xf32>
    %16 = math.exp %15 : vector<16x8xf32>
    %cst_9 = arith.constant dense<0.000000e+00> : vector<16xf32>
    %17 = vector.multi_reduction <add>, %16, %cst_9 [1] : vector<16x8xf32> to vector<16xf32>
    %18 = vector.shape_cast %17 : vector<16xf32> to vector<16x1xf32>
    %19 = tpu.reciprocal %18 {approx = true} : vector<16x1xf32> -> vector<16x1xf32>
    %20 = vector.broadcast %19 : vector<16x1xf32> to vector<16x8xf32>
    %21 = arith.mulf %16, %20 : vector<16x8xf32>
    %22 = arith.truncf %21 : vector<16x8xf32> to vector<16x8xbf16>
    %cst_10 = arith.constant dense<0.000000e+00> : vector<16x8xf32>
    %23 = tpu.matmul %22, %10, %cst_10 {dimension_numbers = #tpu.dot_dimension_numbers<[1], [0], [0], [1], [0, 0, 1, 1], [], []>} : vector<16x8xbf16>, vector<8x8xbf16>, vector<16x8xf32> -> vector<16x8xf32>
    %c0_11 = arith.constant 0 : index
    %c0_12 = arith.constant 0 : index
    %c0_13 = arith.constant 0 : index
    %24 = vector.load %arg3[%c0_11, %c0_12, %c0_13] : memref<1x16x32xf32, #tpu.memory_space<vmem>>, vector<1x16x8xf32>
    %25 = vector.shape_cast %24 : vector<1x16x8xf32> to vector<16x8xf32>
    %26 = vector.shape_cast %23 : vector<16x8xf32> to vector<1x16x8xf32>
    tpu.vector_store %arg3[%c0_11, %c0_12, %c0_13], %26 {strides = array<i32>} : memref<1x16x32xf32, #tpu.memory_space<vmem>>, vector<1x16x8xf32>,
    %c0_14 = arith.constant 0 : index
    %c0_15 = arith.constant 0 : index
    %c8 = arith.constant 8 : index
    %27 = vector.load %arg1[%c0_14, %c0_15, %c8] : memref<1x16x32xf32, #tpu.memory_space<vmem>>, vector<1x16x8xf32>
    %28 = vector.shape_cast %27 : vector<1x16x8xf32> to vector<16x8xf32>
    %cst_16 = arith.constant 0.353553385 : f32
    %29 = vector.broadcast %cst_16 : f32 to vector<16x8xf32>
    %30 = arith.mulf %28, %29 : vector<16x8xf32>
    %31 = arith.truncf %30 : vector<16x8xf32> to vector<16x8xbf16>
    %c0_17 = arith.constant 0 : index
    %c0_18 = arith.constant 0 : index
    %c8_19 = arith.constant 8 : index
    %32 = vector.load %arg2[%c0_17, %c0_18, %c8_19] : memref<1x8x64xf32, #tpu.memory_space<vmem>>, vector<1x8x8xf32>
    %33 = vector.shape_cast %32 : vector<1x8x8xf32> to vector<8x8xf32>
    %34 = arith.truncf %33 : vector<8x8xf32> to vector<8x8xbf16>
    %c0_20 = arith.constant 0 : index
    %c0_21 = arith.constant 0 : index
    %c40 = arith.constant 40 : index
    %35 = vector.load %arg2[%c0_20, %c0_21, %c40] : memref<1x8x64xf32, #tpu.memory_space<vmem>>, vector<1x8x8xf32>
    %36 = vector.shape_cast %35 : vector<1x8x8xf32> to vector<8x8xf32>
    %37 = arith.truncf %36 : vector<8x8xf32> to vector<8x8xbf16>
    %cst_22 = arith.constant dense<0.000000e+00> : vector<16x8xf32>
    %38 = tpu.matmul %31, %34, %cst_22 {dimension_numbers = #tpu.dot_dimension_numbers<[1], [1], [0], [0], [0, 0, 1, 0], [], []>} : vector<16x8xbf16>, vector<8x8xbf16>, vector<16x8xf32> -> vector<16x8xf32>
    %cst_23 = arith.constant dense<0xFF800000> : vector<16xf32>
    %39 = vector.multi_reduction <maximumf>, %38, %cst_23 [1] : vector<16x8xf32> to vector<16xf32>
    %40 = vector.shape_cast %39 : vector<16xf32> to vector<16x1xf32>
    %41 = vector.broadcast %40 : vector<16x1xf32> to vector<16x8xf32>
    %42 = arith.subf %38, %41 : vector<16x8xf32>
    %43 = math.exp %42 : vector<16x8xf32>
    %cst_24 = arith.constant dense<0.000000e+00> : vector<16xf32>
    %44 = vector.multi_reduction <add>, %43, %cst_24 [1] : vector<16x8xf32> to vector<16xf32>
    %45 = vector.shape_cast %44 : vector<16xf32> to vector<16x1xf32>
    %46 = tpu.reciprocal %45 {approx = true} : vector<16x1xf32> -> vector<16x1xf32>
    %47 = vector.broadcast %46 : vector<16x1xf32> to vector<16x8xf32>
    %48 = arith.mulf %43, %47 : vector<16x8xf32>
    %49 = arith.truncf %48 : vector<16x8xf32> to vector<16x8xbf16>
    %cst_25 = arith.constant dense<0.000000e+00> : vector<16x8xf32>
    %50 = tpu.matmul %49, %37, %cst_25 {dimension_numbers = #tpu.dot_dimension_numbers<[1], [0], [0], [1], [0, 0, 1, 1], [], []>} : vector<16x8xbf16>, vector<8x8xbf16>, vector<16x8xf32> -> vector<16x8xf32>
    %c0_26 = arith.constant 0 : index
    %c0_27 = arith.constant 0 : index
    %c8_28 = arith.constant 8 : index
    %51 = vector.load %arg3[%c0_26, %c0_27, %c8_28] : memref<1x16x32xf32, #tpu.memory_space<vmem>>, vector<1x16x8xf32>
    %52 = vector.shape_cast %51 : vector<1x16x8xf32> to vector<16x8xf32>
    %53 = vector.shape_cast %50 : vector<16x8xf32> to vector<1x16x8xf32>
    tpu.vector_store %arg3[%c0_26, %c0_27, %c8_28], %53 {strides = array<i32>} : memref<1x16x32xf32, #tpu.memory_space<vmem>>, vector<1x16x8xf32>,
    %c0_29 = arith.constant 0 : index
    %c0_30 = arith.constant 0 : index
    %c16 = arith.constant 16 : index
    %54 = vector.load %arg1[%c0_29, %c0_30, %c16] : memref<1x16x32xf32, #tpu.memory_space<vmem>>, vector<1x16x8xf32>
    %55 = vector.shape_cast %54 : vector<1x16x8xf32> to vector<16x8xf32>
    %cst_31 = arith.constant 0.353553385 : f32
    %56 = vector.broadcast %cst_31 : f32 to vector<16x8xf32>
    %57 = arith.mulf %55, %56 : vector<16x8xf32>
    %58 = arith.truncf %57 : vector<16x8xf32> to vector<16x8xbf16>
    %c0_32 = arith.constant 0 : index
    %c0_33 = arith.constant 0 : index
    %c16_34 = arith.constant 16 : index
    %59 = vector.load %arg2[%c0_32, %c0_33, %c16_34] : memref<1x8x64xf32, #tpu.memory_space<vmem>>, vector<1x8x8xf32>
    %60 = vector.shape_cast %59 : vector<1x8x8xf32> to vector<8x8xf32>
    %61 = arith.truncf %60 : vector<8x8xf32> to vector<8x8xbf16>
    %c0_35 = arith.constant 0 : index
    %c0_36 = arith.constant 0 : index
    %c48 = arith.constant 48 : index
    %62 = vector.load %arg2[%c0_35, %c0_36, %c48] : memref<1x8x64xf32, #tpu.memory_space<vmem>>, vector<1x8x8xf32>
    %63 = vector.shape_cast %62 : vector<1x8x8xf32> to vector<8x8xf32>
    %64 = arith.truncf %63 : vector<8x8xf32> to vector<8x8xbf16>
    %cst_37 = arith.constant dense<0.000000e+00> : vector<16x8xf32>
    %65 = tpu.matmul %58, %61, %cst_37 {dimension_numbers = #tpu.dot_dimension_numbers<[1], [1], [0], [0], [0, 0, 1, 0], [], []>} : vector<16x8xbf16>, vector<8x8xbf16>, vector<16x8xf32> -> vector<16x8xf32>
    %cst_38 = arith.constant dense<0xFF800000> : vector<16xf32>
    %66 = vector.multi_reduction <maximumf>, %65, %cst_38 [1] : vector<16x8xf32> to vector<16xf32>
    %67 = vector.shape_cast %66 : vector<16xf32> to vector<16x1xf32>
    %68 = vector.broadcast %67 : vector<16x1xf32> to vector<16x8xf32>
    %69 = arith.subf %65, %68 : vector<16x8xf32>
    %70 = math.exp %69 : vector<16x8xf32>
    %cst_39 = arith.constant dense<0.000000e+00> : vector<16xf32>
    %71 = vector.multi_reduction <add>, %70, %cst_39 [1] : vector<16x8xf32> to vector<16xf32>
    %72 = vector.shape_cast %71 : vector<16xf32> to vector<16x1xf32>
    %73 = tpu.reciprocal %72 {approx = true} : vector<16x1xf32> -> vector<16x1xf32>
    %74 = vector.broadcast %73 : vector<16x1xf32> to vector<16x8xf32>
    %75 = arith.mulf %70, %74 : vector<16x8xf32>
    %76 = arith.truncf %75 : vector<16x8xf32> to vector<16x8xbf16>
    %cst_40 = arith.constant dense<0.000000e+00> : vector<16x8xf32>
    %77 = tpu.matmul %76, %64, %cst_40 {dimension_numbers = #tpu.dot_dimension_numbers<[1], [0], [0], [1], [0, 0, 1, 1], [], []>} : vector<16x8xbf16>, vector<8x8xbf16>, vector<16x8xf32> -> vector<16x8xf32>
    %c0_41 = arith.constant 0 : index
    %c0_42 = arith.constant 0 : index
    %c16_43 = arith.constant 16 : index
    %78 = vector.load %arg3[%c0_41, %c0_42, %c16_43] : memref<1x16x32xf32, #tpu.memory_space<vmem>>, vector<1x16x8xf32>
    %79 = vector.shape_cast %78 : vector<1x16x8xf32> to vector<16x8xf32>
    %80 = vector.shape_cast %77 : vector<16x8xf32> to vector<1x16x8xf32>
    tpu.vector_store %arg3[%c0_41, %c0_42, %c16_43], %80 {strides = array<i32>} : memref<1x16x32xf32, #tpu.memory_space<vmem>>, vector<1x16x8xf32>,
    %c0_44 = arith.constant 0 : index
    %c0_45 = arith.constant 0 : index
    %c24 = arith.constant 24 : index
    %81 = vector.load %arg1[%c0_44, %c0_45, %c24] : memref<1x16x32xf32, #tpu.memory_space<vmem>>, vector<1x16x8xf32>
    %82 = vector.shape_cast %81 : vector<1x16x8xf32> to vector<16x8xf32>
    %cst_46 = arith.constant 0.353553385 : f32
    %83 = vector.broadcast %cst_46 : f32 to vector<16x8xf32>
    %84 = arith.mulf %82, %83 : vector<16x8xf32>
    %85 = arith.truncf %84 : vector<16x8xf32> to vector<16x8xbf16>
    %c0_47 = arith.constant 0 : index
    %c0_48 = arith.constant 0 : index
    %c24_49 = arith.constant 24 : index
    %86 = vector.load %arg2[%c0_47, %c0_48, %c24_49] : memref<1x8x64xf32, #tpu.memory_space<vmem>>, vector<1x8x8xf32>
    %87 = vector.shape_cast %86 : vector<1x8x8xf32> to vector<8x8xf32>
    %88 = arith.truncf %87 : vector<8x8xf32> to vector<8x8xbf16>
    %c0_50 = arith.constant 0 : index
    %c0_51 = arith.constant 0 : index
    %c56 = arith.constant 56 : index
    %89 = vector.load %arg2[%c0_50, %c0_51, %c56] : memref<1x8x64xf32, #tpu.memory_space<vmem>>, vector<1x8x8xf32>
    %90 = vector.shape_cast %89 : vector<1x8x8xf32> to vector<8x8xf32>
    %91 = arith.truncf %90 : vector<8x8xf32> to vector<8x8xbf16>
    %cst_52 = arith.constant dense<0.000000e+00> : vector<16x8xf32>
    %92 = tpu.matmul %85, %88, %cst_52 {dimension_numbers = #tpu.dot_dimension_numbers<[1], [1], [0], [0], [0, 0, 1, 0], [], []>} : vector<16x8xbf16>, vector<8x8xbf16>, vector<16x8xf32> -> vector<16x8xf32>
    %cst_53 = arith.constant dense<0xFF800000> : vector<16xf32>
    %93 = vector.multi_reduction <maximumf>, %92, %cst_53 [1] : vector<16x8xf32> to vector<16xf32>
    %94 = vector.shape_cast %93 : vector<16xf32> to vector<16x1xf32>
    %95 = vector.broadcast %94 : vector<16x1xf32> to vector<16x8xf32>
    %96 = arith.subf %92, %95 : vector<16x8xf32>
    %97 = math.exp %96 : vector<16x8xf32>
    %cst_54 = arith.constant dense<0.000000e+00> : vector<16xf32>
    %98 = vector.multi_reduction <add>, %97, %cst_54 [1] : vector<16x8xf32> to vector<16xf32>
    %99 = vector.shape_cast %98 : vector<16xf32> to vector<16x1xf32>
    %100 = tpu.reciprocal %99 {approx = true} : vector<16x1xf32> -> vector<16x1xf32>
    %101 = vector.broadcast %100 : vector<16x1xf32> to vector<16x8xf32>
    %102 = arith.mulf %97, %101 : vector<16x8xf32>
    %103 = arith.truncf %102 : vector<16x8xf32> to vector<16x8xbf16>
    %cst_55 = arith.constant dense<0.000000e+00> : vector<16x8xf32>
    %104 = tpu.matmul %103, %91, %cst_55 {dimension_numbers = #tpu.dot_dimension_numbers<[1], [0], [0], [1], [0, 0, 1, 1], [], []>} : vector<16x8xbf16>, vector<8x8xbf16>, vector<16x8xf32> -> vector<16x8xf32>
    %c0_56 = arith.constant 0 : index
    %c0_57 = arith.constant 0 : index
    %c24_58 = arith.constant 24 : index
    %105 = vector.load %arg3[%c0_56, %c0_57, %c24_58] : memref<1x16x32xf32, #tpu.memory_space<vmem>>, vector<1x16x8xf32>
    %106 = vector.shape_cast %105 : vector<1x16x8xf32> to vector<16x8xf32>
    %107 = vector.shape_cast %104 : vector<16x8xf32> to vector<1x16x8xf32>
    tpu.vector_store %arg3[%c0_56, %c0_57, %c24_58], %107 {strides = array<i32>} : memref<1x16x32xf32, #tpu.memory_space<vmem>>, vector<1x16x8xf32>,
    return
  }
  func.func @transform_0(%arg0: i32) -> (i32, i32, i32) {
    %c0_i32 = arith.constant 0 : i32
    %c0_i32_0 = arith.constant 0 : i32
    %c0_i32_1 = arith.constant 0 : i32
    return %arg0, %c0_i32, %c0_i32_0 : i32, i32, i32
  }
  func.func @transform_1(%arg0: i32) -> (i32, i32, i32) {
    %c0_i32 = arith.constant 0 : i32
    %c0_i32_0 = arith.constant 0 : i32
    %c0_i32_1 = arith.constant 0 : i32
    return %arg0, %c0_i32, %c0_i32_0 : i32, i32, i32
  }
  func.func @transform_2(%arg0: i32) -> (i32, i32, i32) {
    %c0_i32 = arith.constant 0 : i32
    %c0_i32_0 = arith.constant 0 : i32
    %c0_i32_1 = arith.constant 0 : i32
    return %arg0, %c0_i32, %c0_i32_0 : i32, i32, i32
  }
}

module attributes {stable_mosaic.version = 11 : i64} {
  func.func @_linear_kernel(%arg0: i32, %arg1: i32, %arg2: i32, %arg3: memref<16x32xf32, #tpu.memory_space<vmem>>, %arg4: memref<32x64xbf16, #tpu.memory_space<vmem>>, %arg5: memref<1x64xf32, #tpu.memory_space<vmem>>, %arg6: memref<16x64xf32, #tpu.memory_space<vmem>>, %arg7: memref<16x64xf32, #tpu.memory_space<vmem>>) attributes {dimension_semantics = [#tpu.dimension_semantics<parallel>, #tpu.dimension_semantics<parallel>, #tpu.dimension_semantics<arbitrary>], iteration_bounds = array<i64: 2, 1, 1>, scalar_prefetch = 0 : i64, scratch_operands = 1 : i64, tpu.core_type = #tpu.core_type<tc>, window_params = [{transform_indices = @transform_0, window_bounds = array<i64: 16, 32>}, {transform_indices = @transform_1, window_bounds = array<i64: 32, 64>}, {transform_indices = @transform_2, window_bounds = array<i64: 1, 64>}, {transform_indices = @transform_3, window_bounds = array<i64: 16, 64>}]} {
    %c0_i32 = arith.constant 0 : i32
    %0 = arith.cmpi eq, %arg2, %c0_i32 : i32
    %1 = arith.extui %0 : i1 to i32
    %c0_i32_0 = arith.constant 0 : i32
    %2 = arith.cmpi ne, %1, %c0_i32_0 : i32
    scf.if %2 {
      %cst_10 = arith.constant 0.000000e+00 : f32
      %13 = vector.broadcast %cst_10 : f32 to vector<16x64xf32>
      %c0_11 = arith.constant 0 : index
      %c0_12 = arith.constant 0 : index
      %14 = vector.load %arg7[%c0_11, %c0_12] : memref<16x64xf32, #tpu.memory_space<vmem>>, vector<16x64xf32>
      tpu.vector_store %arg7[%c0_11, %c0_12], %13 {strides = array<i32>} : memref<16x64xf32, #tpu.memory_space<vmem>>, vector<16x64xf32>,
    } else {
    }
    %c0 = arith.constant 0 : index
    %c0_1 = arith.constant 0 : index
    %3 = vector.load %arg7[%c0, %c0_1] : memref<16x64xf32, #tpu.memory_space<vmem>>, vector<16x64xf32>
    %c0_2 = arith.constant 0 : index
    %c0_3 = arith.constant 0 : index
    %4 = vector.load %arg3[%c0_2, %c0_3] : memref<16x32xf32, #tpu.memory_space<vmem>>, vector<16x32xf32>
    %5 = arith.truncf %4 : vector<16x32xf32> to vector<16x32xbf16>
    %c0_4 = arith.constant 0 : index
    %c0_5 = arith.constant 0 : index
    %6 = vector.load %arg4[%c0_4, %c0_5] : memref<32x64xbf16, #tpu.memory_space<vmem>>, vector<32x64xbf16>
    %cst = arith.constant dense<0.000000e+00> : vector<16x64xf32>
    %7 = tpu.matmul %5, %6, %cst {dimension_numbers = #tpu.dot_dimension_numbers<[1], [0], [0], [1], [0, 0, 1, 1], [], []>} : vector<16x32xbf16>, vector<32x64xbf16>, vector<16x64xf32> -> vector<16x64xf32>
    %8 = arith.addf %3, %7 : vector<16x64xf32>
    %c0_6 = arith.constant 0 : index
    %c0_7 = arith.constant 0 : index
    %9 = vector.load %arg7[%c0_6, %c0_7] : memref<16x64xf32, #tpu.memory_space<vmem>>, vector<16x64xf32>
    tpu.vector_store %arg7[%c0_6, %c0_7], %8 {strides = array<i32>} : memref<16x64xf32, #tpu.memory_space<vmem>>, vector<16x64xf32>,
    %c0_i32_8 = arith.constant 0 : i32
    %10 = arith.cmpi eq, %arg2, %c0_i32_8 : i32
    %11 = arith.extui %10 : i1 to i32
    %c0_i32_9 = arith.constant 0 : i32
    %12 = arith.cmpi ne, %11, %c0_i32_9 : i32
    scf.if %12 {
      %c0_10 = arith.constant 0 : index
      %c0_11 = arith.constant 0 : index
      %13 = vector.load %arg7[%c0_10, %c0_11] : memref<16x64xf32, #tpu.memory_space<vmem>>, vector<16x64xf32>
      %c0_12 = arith.constant 0 : index
      %c0_13 = arith.constant 0 : index
      %14 = vector.load %arg5[%c0_12, %c0_13] : memref<1x64xf32, #tpu.memory_space<vmem>>, vector<1x64xf32>
      %15 = vector.broadcast %14 : vector<1x64xf32> to vector<16x64xf32>
      %16 = arith.addf %13, %15 : vector<16x64xf32>
      %cst_14 = arith.constant 0.000000e+00 : f32
      %17 = vector.broadcast %cst_14 : f32 to vector<16x64xf32>
      %18 = arith.maximumf %16, %17 : vector<16x64xf32>
      %c0_15 = arith.constant 0 : index
      %c0_16 = arith.constant 0 : index
      %19 = vector.load %arg6[%c0_15, %c0_16] : memref<16x64xf32, #tpu.memory_space<vmem>>, vector<16x64xf32>
      tpu.vector_store %arg6[%c0_15, %c0_16], %18 {strides = array<i32>} : memref<16x64xf32, #tpu.memory_space<vmem>>, vector<16x64xf32>,
    } else {
    }
    return
  }
  func.func @transform_0(%arg0: i32, %arg1: i32, %arg2: i32) -> (i32, i32) {
    %c0_i32 = arith.constant 0 : i32
    return %arg0, %arg2 : i32, i32
  }
  func.func @transform_1(%arg0: i32, %arg1: i32, %arg2: i32) -> (i32, i32) {
    %c0_i32 = arith.constant 0 : i32
    return %arg2, %arg1 : i32, i32
  }
  func.func @transform_2(%arg0: i32, %arg1: i32, %arg2: i32) -> (i32, i32) {
    %c0_i32 = arith.constant 0 : i32
    %c0_i32_0 = arith.constant 0 : i32
    return %c0_i32, %arg1 : i32, i32
  }
  func.func @transform_3(%arg0: i32, %arg1: i32, %arg2: i32) -> (i32, i32) {
    %c0_i32 = arith.constant 0 : i32
    return %arg0, %arg1 : i32, i32
  }
}

module attributes {stable_mosaic.version = 11 : i64} {
  func.func @_linear_add_ln_kernel(%arg0: i32, %arg1: i32, %arg2: memref<16x64xf32, #tpu.memory_space<vmem>>, %arg3: memref<64x32xbf16, #tpu.memory_space<vmem>>, %arg4: memref<1x32xf32, #tpu.memory_space<vmem>>, %arg5: memref<16x32xf32, #tpu.memory_space<vmem>>, %arg6: memref<1x32xf32, #tpu.memory_space<vmem>>, %arg7: memref<1x32xf32, #tpu.memory_space<vmem>>, %arg8: memref<16x32xf32, #tpu.memory_space<vmem>>, %arg9: memref<16x32xf32, #tpu.memory_space<vmem>>) attributes {dimension_semantics = [#tpu.dimension_semantics<parallel>, #tpu.dimension_semantics<arbitrary>], iteration_bounds = array<i64: 2, 1>, scalar_prefetch = 0 : i64, scratch_operands = 1 : i64, tpu.core_type = #tpu.core_type<tc>, window_params = [{transform_indices = @transform_0, window_bounds = array<i64: 16, 64>}, {transform_indices = @transform_1, window_bounds = array<i64: 64, 32>}, {pipeline_mode = #tpu.pipeline_mode<synchronous>, transform_indices = @transform_2, window_bounds = array<i64: 1, 32>}, {transform_indices = @transform_3, window_bounds = array<i64: 16, 32>}, {pipeline_mode = #tpu.pipeline_mode<synchronous>, transform_indices = @transform_4, window_bounds = array<i64: 1, 32>}, {pipeline_mode = #tpu.pipeline_mode<synchronous>, transform_indices = @transform_5, window_bounds = array<i64: 1, 32>}, {transform_indices = @transform_6, window_bounds = array<i64: 16, 32>}]} {
    %c0_i32 = arith.constant 0 : i32
    %0 = arith.cmpi eq, %arg1, %c0_i32 : i32
    %1 = arith.extui %0 : i1 to i32
    %c0_i32_0 = arith.constant 0 : i32
    %2 = arith.cmpi ne, %1, %c0_i32_0 : i32
    scf.if %2 {
      %cst_10 = arith.constant 0.000000e+00 : f32
      %13 = vector.broadcast %cst_10 : f32 to vector<16x32xf32>
      %c0_11 = arith.constant 0 : index
      %c0_12 = arith.constant 0 : index
      %14 = vector.load %arg9[%c0_11, %c0_12] : memref<16x32xf32, #tpu.memory_space<vmem>>, vector<16x32xf32>
      tpu.vector_store %arg9[%c0_11, %c0_12], %13 {strides = array<i32>} : memref<16x32xf32, #tpu.memory_space<vmem>>, vector<16x32xf32>,
    } else {
    }
    %c0 = arith.constant 0 : index
    %c0_1 = arith.constant 0 : index
    %3 = vector.load %arg9[%c0, %c0_1] : memref<16x32xf32, #tpu.memory_space<vmem>>, vector<16x32xf32>
    %c0_2 = arith.constant 0 : index
    %c0_3 = arith.constant 0 : index
    %4 = vector.load %arg2[%c0_2, %c0_3] : memref<16x64xf32, #tpu.memory_space<vmem>>, vector<16x64xf32>
    %5 = arith.truncf %4 : vector<16x64xf32> to vector<16x64xbf16>
    %c0_4 = arith.constant 0 : index
    %c0_5 = arith.constant 0 : index
    %6 = vector.load %arg3[%c0_4, %c0_5] : memref<64x32xbf16, #tpu.memory_space<vmem>>, vector<64x32xbf16>
    %cst = arith.constant dense<0.000000e+00> : vector<16x32xf32>
    %7 = tpu.matmul %5, %6, %cst {dimension_numbers = #tpu.dot_dimension_numbers<[1], [0], [0], [1], [0, 0, 1, 1], [], []>} : vector<16x64xbf16>, vector<64x32xbf16>, vector<16x32xf32> -> vector<16x32xf32>
    %8 = arith.addf %3, %7 : vector<16x32xf32>
    %c0_6 = arith.constant 0 : index
    %c0_7 = arith.constant 0 : index
    %9 = vector.load %arg9[%c0_6, %c0_7] : memref<16x32xf32, #tpu.memory_space<vmem>>, vector<16x32xf32>
    tpu.vector_store %arg9[%c0_6, %c0_7], %8 {strides = array<i32>} : memref<16x32xf32, #tpu.memory_space<vmem>>, vector<16x32xf32>,
    %c0_i32_8 = arith.constant 0 : i32
    %10 = arith.cmpi eq, %arg1, %c0_i32_8 : i32
    %11 = arith.extui %10 : i1 to i32
    %c0_i32_9 = arith.constant 0 : i32
    %12 = arith.cmpi ne, %11, %c0_i32_9 : i32
    scf.if %12 {
      %c0_10 = arith.constant 0 : index
      %c0_11 = arith.constant 0 : index
      %13 = vector.load %arg9[%c0_10, %c0_11] : memref<16x32xf32, #tpu.memory_space<vmem>>, vector<16x32xf32>
      %c0_12 = arith.constant 0 : index
      %c0_13 = arith.constant 0 : index
      %14 = vector.load %arg4[%c0_12, %c0_13] : memref<1x32xf32, #tpu.memory_space<vmem>>, vector<1x32xf32>
      %15 = vector.broadcast %14 : vector<1x32xf32> to vector<16x32xf32>
      %16 = arith.addf %13, %15 : vector<16x32xf32>
      %c0_14 = arith.constant 0 : index
      %c0_15 = arith.constant 0 : index
      %17 = vector.load %arg5[%c0_14, %c0_15] : memref<16x32xf32, #tpu.memory_space<vmem>>, vector<16x32xf32>
      %18 = arith.addf %16, %17 : vector<16x32xf32>
      %cst_16 = arith.constant dense<0.000000e+00> : vector<16xf32>
      %19 = vector.multi_reduction <add>, %18, %cst_16 [1] : vector<16x32xf32> to vector<16xf32>
      %20 = vector.shape_cast %19 : vector<16xf32> to vector<16x1xf32>
      %cst_17 = arith.constant 3.200000e+01 : f32
      %21 = vector.broadcast %cst_17 : f32 to vector<16x1xf32>
      %22 = arith.divf %20, %21 : vector<16x1xf32>
      %23 = vector.broadcast %22 : vector<16x1xf32> to vector<16x32xf32>
      %24 = arith.subf %18, %23 : vector<16x32xf32>
      %25 = arith.mulf %24, %24 : vector<16x32xf32>
      %cst_18 = arith.constant dense<0.000000e+00> : vector<16xf32>
      %26 = vector.multi_reduction <add>, %25, %cst_18 [1] : vector<16x32xf32> to vector<16xf32>
      %27 = vector.shape_cast %26 : vector<16xf32> to vector<16x1xf32>
      %cst_19 = arith.constant 3.200000e+01 : f32
      %28 = vector.broadcast %cst_19 : f32 to vector<16x1xf32>
      %29 = arith.divf %27, %28 : vector<16x1xf32>
      %30 = vector.broadcast %22 : vector<16x1xf32> to vector<16x32xf32>
      %31 = arith.subf %18, %30 : vector<16x32xf32>
      %cst_20 = arith.constant 9.99999974E-6 : f32
      %32 = vector.broadcast %cst_20 : f32 to vector<16x1xf32>
      %33 = arith.addf %29, %32 : vector<16x1xf32>
      %34 = math.rsqrt %33 : vector<16x1xf32>
      %35 = vector.broadcast %34 : vector<16x1xf32> to vector<16x32xf32>
      %36 = arith.mulf %31, %35 : vector<16x32xf32>
      %c0_21 = arith.constant 0 : index
      %c0_22 = arith.constant 0 : index
      %37 = vector.load %arg6[%c0_21, %c0_22] : memref<1x32xf32, #tpu.memory_space<vmem>>, vector<1x32xf32>
      %38 = vector.broadcast %37 : vector<1x32xf32> to vector<16x32xf32>
      %39 = arith.mulf %36, %38 : vector<16x32xf32>
      %c0_23 = arith.constant 0 : index
      %c0_24 = arith.constant 0 : index
      %40 = vector.load %arg7[%c0_23, %c0_24] : memref<1x32xf32, #tpu.memory_space<vmem>>, vector<1x32xf32>
      %41 = vector.broadcast %40 : vector<1x32xf32> to vector<16x32xf32>
      %42 = arith.addf %39, %41 : vector<16x32xf32>
      %c0_25 = arith.constant 0 : index
      %c0_26 = arith.constant 0 : index
      %43 = vector.load %arg8[%c0_25, %c0_26] : memref<16x32xf32, #tpu.memory_space<vmem>>, vector<16x32xf32>
      tpu.vector_store %arg8[%c0_25, %c0_26], %42 {strides = array<i32>} : memref<16x32xf32, #tpu.memory_space<vmem>>, vector<16x32xf32>,
    } else {
    }
    return
  }
  func.func @transform_0(%arg0: i32, %arg1: i32) -> (i32, i32) {
    %c0_i32 = arith.constant 0 : i32
    return %arg0, %arg1 : i32, i32
  }
  func.func @transform_1(%arg0: i32, %arg1: i32) -> (i32, i32) {
    %c0_i32 = arith.constant 0 : i32
    %c0_i32_0 = arith.constant 0 : i32
    return %arg1, %c0_i32 : i32, i32
  }
  func.func @transform_2(%arg0: i32, %arg1: i32) -> (i32, i32) {
    %c0_i32 = arith.constant 0 : i32
    %c0_i32_0 = arith.constant 0 : i32
    %c0_i32_1 = arith.constant 0 : i32
    return %c0_i32, %c0_i32_0 : i32, i32
  }
  func.func @transform_3(%arg0: i32, %arg1: i32) -> (i32, i32) {
    %c0_i32 = arith.constant 0 : i32
    %c0_i32_0 = arith.constant 0 : i32
    return %arg0, %c0_i32 : i32, i32
  }
  func.func @transform_4(%arg0: i32, %arg1: i32) -> (i32, i32) {
    %c0_i32 = arith.constant 0 : i32
    %c0_i32_0 = arith.constant 0 : i32
    %c0_i32_1 = arith.constant 0 : i32
    return %c0_i32, %c0_i32_0 : i32, i32
  }
  func.func @transform_5(%arg0: i32, %arg1: i32) -> (i32, i32) {
    %c0_i32 = arith.constant 0 : i32
    %c0_i32_0 = arith.constant 0 : i32
    %c0_i32_1 = arith.constant 0 : i32
    return %c0_i32, %c0_i32_0 : i32, i32
  }
  func.func @transform_6(%arg0: i32, %arg1: i32) -> (i32, i32) {
    %c0_i32 = arith.constant 0 : i32
    %c0_i32_0 = arith.constant 0 : i32
    return %arg0, %c0_i32 : i32, i32
  }
}

module attributes {stable_mosaic.version = 11 : i64} {
  func.func @_linear_kernel(%arg0: i32, %arg1: i32, %arg2: i32, %arg3: memref<16x32xf32, #tpu.memory_space<vmem>>, %arg4: memref<32x8xbf16, #tpu.memory_space<vmem>>, %arg5: memref<1x8xf32, #tpu.memory_space<vmem>>, %arg6: memref<16x8xf32, #tpu.memory_space<vmem>>, %arg7: memref<16x8xf32, #tpu.memory_space<vmem>>) attributes {dimension_semantics = [#tpu.dimension_semantics<parallel>, #tpu.dimension_semantics<parallel>, #tpu.dimension_semantics<arbitrary>], iteration_bounds = array<i64: 2, 1, 1>, scalar_prefetch = 0 : i64, scratch_operands = 1 : i64, tpu.core_type = #tpu.core_type<tc>, window_params = [{transform_indices = @transform_0, window_bounds = array<i64: 16, 32>}, {transform_indices = @transform_1, window_bounds = array<i64: 32, 8>}, {transform_indices = @transform_2, window_bounds = array<i64: 1, 8>}, {transform_indices = @transform_3, window_bounds = array<i64: 16, 8>}]} {
    %c0_i32 = arith.constant 0 : i32
    %0 = arith.cmpi eq, %arg2, %c0_i32 : i32
    %1 = arith.extui %0 : i1 to i32
    %c0_i32_0 = arith.constant 0 : i32
    %2 = arith.cmpi ne, %1, %c0_i32_0 : i32
    scf.if %2 {
      %cst_10 = arith.constant 0.000000e+00 : f32
      %13 = vector.broadcast %cst_10 : f32 to vector<16x8xf32>
      %c0_11 = arith.constant 0 : index
      %c0_12 = arith.constant 0 : index
      %14 = vector.load %arg7[%c0_11, %c0_12] : memref<16x8xf32, #tpu.memory_space<vmem>>, vector<16x8xf32>
      tpu.vector_store %arg7[%c0_11, %c0_12], %13 {strides = array<i32>} : memref<16x8xf32, #tpu.memory_space<vmem>>, vector<16x8xf32>,
    } else {
    }
    %c0 = arith.constant 0 : index
    %c0_1 = arith.constant 0 : index
    %3 = vector.load %arg7[%c0, %c0_1] : memref<16x8xf32, #tpu.memory_space<vmem>>, vector<16x8xf32>
    %c0_2 = arith.constant 0 : index
    %c0_3 = arith.constant 0 : index
    %4 = vector.load %arg3[%c0_2, %c0_3] : memref<16x32xf32, #tpu.memory_space<vmem>>, vector<16x32xf32>
    %5 = arith.truncf %4 : vector<16x32xf32> to vector<16x32xbf16>
    %c0_4 = arith.constant 0 : index
    %c0_5 = arith.constant 0 : index
    %6 = vector.load %arg4[%c0_4, %c0_5] : memref<32x8xbf16, #tpu.memory_space<vmem>>, vector<32x8xbf16>
    %cst = arith.constant dense<0.000000e+00> : vector<16x8xf32>
    %7 = tpu.matmul %5, %6, %cst {dimension_numbers = #tpu.dot_dimension_numbers<[1], [0], [0], [1], [0, 0, 1, 1], [], []>} : vector<16x32xbf16>, vector<32x8xbf16>, vector<16x8xf32> -> vector<16x8xf32>
    %8 = arith.addf %3, %7 : vector<16x8xf32>
    %c0_6 = arith.constant 0 : index
    %c0_7 = arith.constant 0 : index
    %9 = vector.load %arg7[%c0_6, %c0_7] : memref<16x8xf32, #tpu.memory_space<vmem>>, vector<16x8xf32>
    tpu.vector_store %arg7[%c0_6, %c0_7], %8 {strides = array<i32>} : memref<16x8xf32, #tpu.memory_space<vmem>>, vector<16x8xf32>,
    %c0_i32_8 = arith.constant 0 : i32
    %10 = arith.cmpi eq, %arg2, %c0_i32_8 : i32
    %11 = arith.extui %10 : i1 to i32
    %c0_i32_9 = arith.constant 0 : i32
    %12 = arith.cmpi ne, %11, %c0_i32_9 : i32
    scf.if %12 {
      %c0_10 = arith.constant 0 : index
      %c0_11 = arith.constant 0 : index
      %13 = vector.load %arg7[%c0_10, %c0_11] : memref<16x8xf32, #tpu.memory_space<vmem>>, vector<16x8xf32>
      %c0_12 = arith.constant 0 : index
      %c0_13 = arith.constant 0 : index
      %14 = vector.load %arg5[%c0_12, %c0_13] : memref<1x8xf32, #tpu.memory_space<vmem>>, vector<1x8xf32>
      %15 = vector.broadcast %14 : vector<1x8xf32> to vector<16x8xf32>
      %16 = arith.addf %13, %15 : vector<16x8xf32>
      %cst_14 = arith.constant 0.000000e+00 : f32
      %17 = vector.broadcast %cst_14 : f32 to vector<16x8xf32>
      %18 = arith.maximumf %16, %17 : vector<16x8xf32>
      %c0_15 = arith.constant 0 : index
      %c0_16 = arith.constant 0 : index
      %19 = vector.load %arg6[%c0_15, %c0_16] : memref<16x8xf32, #tpu.memory_space<vmem>>, vector<16x8xf32>
      tpu.vector_store %arg6[%c0_15, %c0_16], %18 {strides = array<i32>} : memref<16x8xf32, #tpu.memory_space<vmem>>, vector<16x8xf32>,
    } else {
    }
    return
  }
  func.func @transform_0(%arg0: i32, %arg1: i32, %arg2: i32) -> (i32, i32) {
    %c0_i32 = arith.constant 0 : i32
    return %arg0, %arg2 : i32, i32
  }
  func.func @transform_1(%arg0: i32, %arg1: i32, %arg2: i32) -> (i32, i32) {
    %c0_i32 = arith.constant 0 : i32
    return %arg2, %arg1 : i32, i32
  }
  func.func @transform_2(%arg0: i32, %arg1: i32, %arg2: i32) -> (i32, i32) {
    %c0_i32 = arith.constant 0 : i32
    %c0_i32_0 = arith.constant 0 : i32
    return %c0_i32, %arg1 : i32, i32
  }
  func.func @transform_3(%arg0: i32, %arg1: i32, %arg2: i32) -> (i32, i32) {
    %c0_i32 = arith.constant 0 : i32
    return %arg0, %arg1 : i32, i32
  }
}

</mosaic_0001>

<llo_original>
// kernel: transformer_d_forward.33
$region0: #{transformer_d_forward.33}
  #allocation0 [shape = 'u32[]', space=smem, size = 0x4, offset = 0x4, fixed_abs, tag = 'smem constant byte address 0x4 - core index']
  #allocation1 [shape = 'u32[72,128]{1,0:T(1,128)}', space=vmem, size = 0x9000, scoped, tag = 'internal scratch']
  #allocation2 [shape = 'f32[16,96]{1,0:T(8,128)}', space=vmem, size = 0x2000, scoped, tag = 'scratch operand']
  %s0 = inlined_call_operand.vmem [shape: f32[32,32], index: 0, kind: input, shape index: {}]
  %s1 = inlined_call_operand.vmem [shape: bf16[32,96], index: 1, kind: input, shape index: {}]
  %s2 = inlined_call_operand.vmem [shape: f32[1,96], index: 2, kind: input, shape index: {}]
  %s3 = inlined_call_operand.vmem [shape: f32[32,96], index: 3, kind: output, shape index: {}]
  %s4 = sld [smem:[#allocation0]]
  $region53: #{transformer_d_forward.33} parent=0
    _
  %s6 = ssub.s32 1, %s4
  %s7 = scalar_select 0, %s6, %s4
  loop: start=0, step=1, limit=4
  $region2: #{transformer_d_forward.33} parent=0 // loop_pre_header
    _
  $region3: #{transformer_d_forward.33} parent=0 // loop_header
    %s9 = sphi 0, %s13
    %p10 = scmp.ge.s32.totalorder %s9, 4
    %s16 = sphi 0, %s35
    %s17 = sphi 0, %s31
    %s18 = sphi 0, %s27
    %s19 = sphi 0, %s16
    %s20 = sphi 0, %s17
    %s21 = sphi 0, %s18
    %s22 = sphi 0, %s19
    %s23 = sphi 0, %s20
    %s24 = sphi 0, %s21
    %s40 = sphi 0, %s42
    %s43 = sphi 0, %s40
    %s44 = sphi 0, %s43
    %s60 = sphi 0, %s44
    %s68 = sphi 0, %s70
    %s71 = sphi 0, %s68
    %s72 = sphi 0, %s71
    %s88 = sphi 0, %s72
    %s94 = sphi 0, %s96
    %s97 = sphi 0, %s94
    %s98 = sphi 0, %s97
    %s114 = sphi 0, %s98
    %s122 = sphi 0, %s124
    %s125 = sphi 0, %s122
    %s126 = sphi 0, %s125
    %s142 = sphi 0, %s126
  $region4: #{transformer_d_forward.33} parent=0 // loop_header_branch
    %12 = sbr.rel (%p10) target = $region8
  $region5: #{transformer_d_forward.33} parent=0 // loop_body
    %s14 = ssub.s32 %s9, 1
    %s15 = ssub.s32 %s9, 2
    %s25 = sadd.s32 1, %s18
    %p26 = scmp.ge.s32.totalorder %s25, 1
    %s27 = scalar_select %p26, 0, %s25
    %s28 = sadd.s32 1, %s17
    %s29 = scalar_select %p26, %s28, %s17
    %p30 = scmp.ge.s32.totalorder %s29, 1
    %s31 = scalar_select %p30, 0, %s29
    %s32 = sadd.s32 1, %s16
    %s33 = scalar_select %p30, %s32, %s16
    %p34 = scmp.ge.s32.totalorder %s33, 2
    %s35 = scalar_select %p34, 0, %s33
    %s36 = ssub.s32 %s16, %s35
    %s37 = ssub.s32 %s18, %s27
    %s38 = sor.u32 %s36, %s37
    %p39 = scmp.eq.s32.totalorder %s38, 0
    %s41 = sadd.s32 %s40, 1
    %s42 = scalar_select %p39, %s40, %s41
    %p45 = pneg %p39
    %p46 = scmp.eq.s32.totalorder %s9, 1
    %p47 = por %p45, %p46
    %p48 = scmp.ne.s32.totalorder %s40, %s43
    %p49 = scmp.eq.s32.totalorder %s9, 0
    %p50 = por %p48, %p49
    %p51 = scmp.ne.s32.totalorder %s40, %s43
    %p52 = scmp.eq.s32.totalorder %s14, 1
    %p53 = por %p51, %p52
    %p54 = scmp.ne.s32.totalorder %s43, %s44
    %p55 = scmp.eq.s32.totalorder %s14, 0
    %p56 = por %p54, %p55
    %p57 = scmp.ne.s32.totalorder %s43, %s44
    %p58 = scmp.eq.s32.totalorder %s15, 1
    %p59 = por %p57, %p58
    %p61 = scmp.ne.s32.totalorder %s44, %s60
    %p62 = scmp.eq.s32.totalorder %s15, 0
    %p63 = por %p61, %p62
    %s64 = ssub.s32 %s18, %s27
    %s65 = ssub.s32 %s17, %s31
    %s66 = sor.u32 %s64, %s65
    %p67 = scmp.eq.s32.totalorder %s66, 0
    %s69 = sadd.s32 %s68, 1
    %s70 = scalar_select %p67, %s68, %s69
    %p73 = pneg %p67
    %p74 = scmp.eq.s32.totalorder %s9, 1
    %p75 = por %p73, %p74
    %p76 = scmp.ne.s32.totalorder %s68, %s71
    %p77 = scmp.eq.s32.totalorder %s9, 0
    %p78 = por %p76, %p77
    %p79 = scmp.ne.s32.totalorder %s68, %s71
    %p80 = scmp.eq.s32.totalorder %s14, 1
    %p81 = por %p79, %p80
    %p82 = scmp.ne.s32.totalorder %s71, %s72
    %p83 = scmp.eq.s32.totalorder %s14, 0
    %p84 = por %p82, %p83
    %p85 = scmp.ne.s32.totalorder %s71, %s72
    %p86 = scmp.eq.s32.totalorder %s15, 1
    %p87 = por %p85, %p86
    %p89 = scmp.ne.s32.totalorder %s72, %s88
    %p90 = scmp.eq.s32.totalorder %s15, 0
    %p91 = por %p89, %p90
    %s92 = ssub.s32 %s17, %s31
    %p93 = scmp.eq.s32.totalorder %s92, 0
    %s95 = sadd.s32 %s94, 1
    %s96 = scalar_select %p93, %s94, %s95
    %p99 = pneg %p93
    %p100 = scmp.eq.s32.totalorder %s9, 1
    %p101 = por %p99, %p100
    %p102 = scmp.ne.s32.totalorder %s94, %s97
    %p103 = scmp.eq.s32.totalorder %s9, 0
    %p104 = por %p102, %p103
    %p105 = scmp.ne.s32.totalorder %s94, %s97
    %p106 = scmp.eq.s32.totalorder %s14, 1
    %p107 = por %p105, %p106
    %p108 = scmp.ne.s32.totalorder %s97, %s98
    %p109 = scmp.eq.s32.totalorder %s14, 0
    %p110 = por %p108, %p109
    %p111 = scmp.ne.s32.totalorder %s97, %s98
    %p112 = scmp.eq.s32.totalorder %s15, 1
    %p113 = por %p111, %p112
    %p115 = scmp.ne.s32.totalorder %s98, %s114
    %p116 = scmp.eq.s32.totalorder %s15, 0
    %p117 = por %p115, %p116
    %s118 = ssub.s32 %s16, %s35
    %s119 = ssub.s32 %s17, %s31
    %s120 = sor.u32 %s118, %s119
    %p121 = scmp.eq.s32.totalorder %s120, 0
    %s123 = sadd.s32 %s122, 1
    %s124 = scalar_select %p121, %s122, %s123
    %p127 = pneg %p121
    %p128 = scmp.eq.s32.totalorder %s9, 1
    %p129 = por %p127, %p128
    %p130 = scmp.ne.s32.totalorder %s122, %s125
    %p131 = scmp.eq.s32.totalorder %s9, 0
    %p132 = por %p130, %p131
    %p133 = scmp.ne.s32.totalorder %s122, %s125
    %p134 = scmp.eq.s32.totalorder %s14, 1
    %p135 = por %p133, %p134
    %p136 = scmp.ne.s32.totalorder %s125, %s126
    %p137 = scmp.eq.s32.totalorder %s14, 0
    %p138 = por %p136, %p137
    %p139 = scmp.ne.s32.totalorder %s125, %s126
    %p140 = scmp.eq.s32.totalorder %s15, 1
    %p141 = por %p139, %p140
    %p143 = scmp.ne.s32.totalorder %s126, %s142
    %p144 = scmp.eq.s32.totalorder %s15, 0
    %p145 = por %p143, %p144
    %p146 = scmp.le.s32.totalorder 1, %s9
    %p147 = scmp.lt.s32.totalorder %s9, 3
    %p148 = pnand %p146, %p147
    %p149 = pneg %p148
    // Predicated region
    $region9: #{transformer_d_forward.33} parent=5 // pred_check
      _
    $region10: #{transformer_d_forward.33} parent=5 // pred_check_branch
      %151 = sbr.rel (%p148) target = $region12
    $region11: #{transformer_d_forward.33} parent=5 // pred_region
      %s152 = ssub.s32 %s9, 1
      // Predicated region
      $region13: #{transformer_d_forward.33} parent=11 // pred_check
        %p153 = pneg %p84
      $region14: #{transformer_d_forward.33} parent=11 // pred_check_branch
        %155 = sbr.rel (%p153) target = $region16
      $region15: #{transformer_d_forward.33} parent=11 // pred_region
        %s156 = smul.u32 4, %s21
        %p157 = scmp.lt.s32.totalorder %s156, 3
        %s158 = scalar_select %p157, %s156, 3
        %p159 = scmp.lt.s32.totalorder %s20, 0
        %s160 = scalar_select %p159, %s20, 0
        %s161 = sadd.s32 %s160, %s158
        %s162 = smul.addr %s161, 4
        %s163 = scalar_lea.vmem %s1, %s162
        %s164 = smul.u32 4, %s21
      $region16: #{transformer_d_forward.33} parent=11 // pred_fallthru
        _
      // Predicated region
      $region17: #{transformer_d_forward.33} parent=11 // pred_check
        %p165 = pneg %p110
      $region18: #{transformer_d_forward.33} parent=11 // pred_check_branch
        %167 = sbr.rel (%p165) target = $region20
      $region19: #{transformer_d_forward.33} parent=11 // pred_region
        %p168 = scmp.lt.s32.totalorder %s20, 0
        %s169 = scalar_select %p168, %s20, 0
        %s170 = scalar_lea.vmem %s2, %s169
      $region20: #{transformer_d_forward.33} parent=11 // pred_fallthru
        _
    $region12: #{transformer_d_forward.33} parent=5 // pred_fallthru
      _
    %p171 = scmp.lt.s32.totalorder %s9, 2
    // Predicated region
    $region21: #{transformer_d_forward.33} parent=5 // pred_check
      %p172 = pneg %p171
    $region22: #{transformer_d_forward.33} parent=5 // pred_check_branch
      %174 = sbr.rel (%p172) target = $region24
    $region23: #{transformer_d_forward.33} parent=5 // pred_region
      // Predicated region
      $region25: #{transformer_d_forward.33} parent=23 // pred_check
        %p175 = pneg %p50
      $region26: #{transformer_d_forward.33} parent=23 // pred_check_branch
        %177 = sbr.rel (%p175) target = $region28
      $region27: #{transformer_d_forward.33} parent=23 // pred_region
        %s178 = smul.u32 2, %s16
        %p179 = scmp.lt.s32.totalorder %s178, 3
        %s180 = scalar_select %p179, %s178, 3
        %p181 = scmp.lt.s32.totalorder %s18, 0
        %s182 = scalar_select %p181, %s18, 0
        %s183 = sadd.s32 %s182, %s180
        %s184 = smul.addr %s183, 8
        %s185 = scalar_lea.vmem %s0, %s184
        %s186 = smul.u32 2, %s16
      $region28: #{transformer_d_forward.33} parent=23 // pred_fallthru
        _
    $region24: #{transformer_d_forward.33} parent=5 // pred_fallthru
      _
    %p187 = scmp.le.s32.totalorder 1, %s9
    %p188 = scmp.lt.s32.totalorder %s9, 3
    %p189 = pnand %p187, %p188
    %p190 = pneg %p189
    // Predicated region
    $region29: #{transformer_d_forward.33} parent=5 // pred_check
      _
    $region30: #{transformer_d_forward.33} parent=5 // pred_check_branch
      %192 = sbr.rel (%p189) target = $region32
    $region31: #{transformer_d_forward.33} parent=5 // pred_region
      %s193 = ssub.s32 %s9, 1
      %s194 = smul.u32 2, %s19
      %p195 = scmp.lt.s32.totalorder %s194, 3
      %s196 = scalar_select %p195, %s194, 3
      %p197 = scmp.lt.s32.totalorder %s21, 0
      %s198 = scalar_select %p197, %s21, 0
      %s199 = sadd.s32 %s198, %s196
      %s200 = smul.addr %s199, 8
      %s201 = scalar_lea.vmem %s0, %s200
      %p202 = pneg %p56
      %p203 = pneg %p53
      %s204 = smul.u32 4, %s21
      %p205 = scmp.lt.s32.totalorder %s204, 3
      %s206 = scalar_select %p205, %s204, 3
      %p207 = scmp.lt.s32.totalorder %s20, 0
      %s208 = scalar_select %p207, %s20, 0
      %s209 = sadd.s32 %s208, %s206
      %s210 = smul.addr %s209, 4
      %s211 = scalar_lea.vmem %s1, %s210
      %p212 = pneg %p84
      %p213 = pneg %p81
      %p214 = scmp.lt.s32.totalorder %s20, 0
      %s215 = scalar_select %p214, %s20, 0
      %s216 = scalar_lea.vmem %s2, %s215
      %p217 = pneg %p110
      %p218 = pneg %p107
      %p219 = pneg %p138
      %p220 = pneg %p135
      %s221 = smul.u32 2, %s19
      %p222 = scmp.lt.s32.totalorder %s221, 3
      %s223 = scalar_select %p222, %s221, 3
      %p224 = scmp.lt.s32.totalorder %s20, 0
      %s225 = scalar_select %p224, %s20, 0
      %s226 = sadd.s32 %s225, %s223
      %s227 = smul.addr %s226, 8
      %s228 = scalar_lea.vmem %s3, %s227
      %s229 = smul.u32 2, %s19
      %p230 = scmp.lt.s32.totalorder %s229, 3
      %s231 = scalar_select %p230, %s229, 3
      %p232 = scmp.lt.s32.totalorder %s21, 0
      %s233 = scalar_select %p232, %s21, 0
      %s234 = sadd.s32 %s233, %s231
      %s235 = smul.addr %s234, 8
      %s236 = scalar_lea.vmem %s0, %s235
      %s237 = smul.u32 2, %s19
      %s238 = smul.u32 4, %s21
      %p239 = scmp.lt.s32.totalorder %s238, 3
      %s240 = scalar_select %p239, %s238, 3
      %p241 = scmp.lt.s32.totalorder %s20, 0
      %s242 = scalar_select %p241, %s20, 0
      %s243 = sadd.s32 %s242, %s240
      %s244 = smul.addr %s243, 4
      %s245 = scalar_lea.vmem %s1, %s244
      %s246 = smul.u32 4, %s21
      %p247 = scmp.lt.s32.totalorder %s20, 0
      %s248 = scalar_select %p247, %s20, 0
      %s249 = scalar_lea.vmem %s2, %s248
      %s250 = smul.u32 2, %s19
      %p251 = scmp.lt.s32.totalorder %s250, 3
      %s252 = scalar_select %p251, %s250, 3
      %p253 = scmp.lt.s32.totalorder %s20, 0
      %s254 = scalar_select %p253, %s20, 0
      %s255 = sadd.s32 %s254, %s252
      %s256 = smul.addr %s255, 8
      %s257 = scalar_lea.vmem %s3, %s256
      %s258 = smul.u32 2, %s19
      %p260 = scmp.eq.s32.totalorder %s21, 0
      // Predicated region
      $region33: #{transformer_d_forward.33} parent=31 // pred_check
        %p261 = pneg %p260
      $region34: #{transformer_d_forward.33} parent=31 // pred_check_branch
        %263 = sbr.rel (%p261) target = $region36
      $region35: #{transformer_d_forward.33} parent=31 // pred_region
        %vm264 = vcmask 785408
        %265 = vst.msk [vmem:[#allocation2] sm:$0xff] %vm264, 0.0
        %266 = vst.msk [vmem:[#allocation2 + $0x8] sm:$0xff] %vm264, 0.0
      $region36: #{transformer_d_forward.33} parent=31 // pred_fallthru
        _
      %v267 = vld [vmem:[#allocation2] sm:$0xff]
      %v268 = vld [vmem:[#allocation2 + $0x8] sm:$0xff]
      %v269 = vld [vmem:[%s236] sm:$0xff]
      %v270 = vld [vmem:[%s236 + $0x8] sm:$0xff]
      %v271 = vpack.c.bf16 %v270, %v269
      %v272 = vld [vmem:[%s245] sm:$0xf]
      %v273 = vld [vmem:[%s245 + $0x4] sm:$0xf]
      %v274 = vld [vmem:[%s245 + $0x8] sm:$0xf]
      %v275 = vld [vmem:[%s245 + $0xc] sm:$0xf]
      %v280 = vunpack.c.l.b16 %v272
      %v281 = vunpack.c.l.b16 %v273
      %v282 = vunpack.c.l.b16 %v274
      %v283 = vunpack.c.l.b16 %v275
      %v284 = vpack.c.b16 %v281, %v280
      %v285 = vpack.c.b16 %v283, %v282
      %vm288 = vcmask 261120
      %v290 = vsel %vm288, %v271, 0
      %292 = vmatpush.bf16.msra.mxu0 0
      %293 = vmatpush.bf16.msra.mxu0 0
      %294 = vmatpush.bf16.msra.mxu0 0
      %295 = vmatpush.bf16.msra.mxu0 0
      %296 = vmatpush.bf16.msra.mxu0 0
      %297 = vmatpush.bf16.msra.mxu0 0
      %298 = vmatpush.bf16.msra.mxu0 %v285
      %299 = vmatpush.bf16.msra.mxu0 %v284
      %300 = vmatmul.bf16.gmra.mxu0 %v290
      %v301 = vpop.f32.mrf.mxu0
      %v302 = vadd.f32 0.0, %v301
      %v303 = vpop.f32.mrf.mxu0
      %v304 = vadd.f32 0.0, %v303
      %305 = vdwg.mxu0
      %v306 = vadd.f32 %v267, %v302
      %v307 = vadd.f32 %v268, %v304
      %vm308 = vcmask 785408
      %309 = vst.msk [vmem:[#allocation2] sm:$0xff] %vm308, %v306
      %310 = vst.msk [vmem:[#allocation2 + $0x8] sm:$0xff] %vm308, %v307
      // Predicated region
      $region37: #{transformer_d_forward.33} parent=31 // pred_check
        %p311 = pneg %p260
      $region38: #{transformer_d_forward.33} parent=31 // pred_check_branch
        %313 = sbr.rel (%p311) target = $region40
      $region39: #{transformer_d_forward.33} parent=31 // pred_region
        %v314 = vld [vmem:[#allocation2] sm:$0xff]
        %v315 = vld [vmem:[#allocation2 + $0x8] sm:$0xff]
        %v316 = vld [vmem:[%s249] sm:$0x1]
        %v318 = vperm.slane %v316, 0
        %v320 = vadd.f32 %v314, %v318
        %v321 = vadd.f32 %v315, %v318
        %322 = vst.msk [vmem:[%s257] sm:$0xff] %vm308, %v320
        %323 = vst.msk [vmem:[%s257 + $0x8] sm:$0xff] %vm308, %v321
      $region40: #{transformer_d_forward.33} parent=31 // pred_fallthru
        _
      %s324 = smul.u32 2, %s19
      %p325 = scmp.lt.s32.totalorder %s324, 3
      %s326 = scalar_select %p325, %s324, 3
      %p327 = scmp.lt.s32.totalorder %s20, 0
      %s328 = scalar_select %p327, %s20, 0
      %s329 = sadd.s32 %s328, %s326
      %s330 = smul.addr %s329, 8
      %s331 = scalar_lea.vmem %s3, %s330
      // Predicated region
      $region41: #{transformer_d_forward.33} parent=31 // pred_check
        %p332 = pneg %p135
      $region42: #{transformer_d_forward.33} parent=31 // pred_check_branch
        %334 = sbr.rel (%p332) target = $region44
      $region43: #{transformer_d_forward.33} parent=31 // pred_region
        %s335 = smul.u32 2, %s19
      $region44: #{transformer_d_forward.33} parent=31 // pred_fallthru
        _
    $region32: #{transformer_d_forward.33} parent=5 // pred_fallthru
      _
    %p336 = scmp.le.s32.totalorder 2, %s9
    // Predicated region
    $region45: #{transformer_d_forward.33} parent=5 // pred_check
      %p337 = pneg %p336
    $region46: #{transformer_d_forward.33} parent=5 // pred_check_branch
      %339 = sbr.rel (%p337) target = $region48
    $region47: #{transformer_d_forward.33} parent=5 // pred_region
      %s340 = ssub.s32 %s9, 2
      // Predicated region
      $region49: #{transformer_d_forward.33} parent=47 // pred_check
        %p341 = pneg %p141
      $region50: #{transformer_d_forward.33} parent=47 // pred_check_branch
        %343 = sbr.rel (%p341) target = $region52
      $region51: #{transformer_d_forward.33} parent=47 // pred_region
        %s344 = smul.u32 2, %s22
        %p345 = scmp.lt.s32.totalorder %s344, 3
        %s346 = scalar_select %p345, %s344, 3
        %p347 = scmp.lt.s32.totalorder %s23, 0
        %s348 = scalar_select %p347, %s23, 0
        %s349 = sadd.s32 %s348, %s346
        %s350 = smul.addr %s349, 8
        %s351 = scalar_lea.vmem %s3, %s350
      $region52: #{transformer_d_forward.33} parent=47 // pred_fallthru
        _
    $region48: #{transformer_d_forward.33} parent=5 // pred_fallthru
      _
  $region6: #{transformer_d_forward.33} parent=0 // loop_footer
    %s13 = sadd.s32 1, %s9
  $region7: #{transformer_d_forward.33} parent=0 // loop_footer_branch
    %8 = sbr.rel target = $region3
  $region8: #{transformer_d_forward.33} parent=0 // loop_exit
    _

// kernel: transformer_d_forward.26
$region0: #{transformer_d_forward.26}
  #allocation0 [shape = 'u32[]', space=smem, size = 0x4, offset = 0x4, fixed_abs, tag = 'smem constant byte address 0x4 - core index']
  #allocation1 [shape = 'u32[72,128]{1,0:T(1,128)}', space=vmem, size = 0x9000, scoped, tag = 'internal scratch']
  %s0 = inlined_call_operand.vmem [shape: f32[2,18,8], index: 0, kind: input, shape index: {}]
  %s1 = inlined_call_operand.vmem [shape: bf16[3,8,32], index: 1, kind: input, shape index: {}]
  %s2 = inlined_call_operand.vmem [shape: f32[1,32], index: 2, kind: input, shape index: {}]
  %s3 = inlined_call_operand.vmem [shape: f32[16,32], index: 3, kind: input, shape index: {}]
  %s4 = inlined_call_operand.vmem [shape: f32[16,32], index: 4, kind: input, shape index: {}]
  %s5 = inlined_call_operand.vmem [shape: f32[2,16,32], index: 5, kind: output, shape index: {}]
  %s6 = sld [smem:[#allocation0]]
  $region53: #{transformer_d_forward.26} parent=0
    _
  %s8 = ssub.s32 1, %s6
  %s9 = scalar_select 0, %s8, %s6
  loop: start=0, step=1, limit=4
  $region2: #{transformer_d_forward.26} parent=0 // loop_pre_header
    _
  $region3: #{transformer_d_forward.26} parent=0 // loop_header
    %s11 = sphi 0, %s15
    %p12 = scmp.ge.s32.totalorder %s11, 4
    %s21 = sphi 0, %s23
    %s24 = sphi 0, %s21
    %s25 = sphi 0, %s24
    %s41 = sphi 0, %s25
    %s45 = sphi 0, %s45
    %s47 = sphi 0, %s45
    %s48 = sphi 0, %s47
    %s62 = sphi 0, %s48
    %s66 = sphi 0, %s66
    %s68 = sphi 0, %s66
    %s69 = sphi 0, %s68
    %s83 = sphi 0, %s69
    %s87 = sphi 0, %s87
    %s89 = sphi 0, %s87
    %s90 = sphi 0, %s89
    %s104 = sphi 0, %s90
    %s108 = sphi 0, %s108
    %s110 = sphi 0, %s108
    %s111 = sphi 0, %s110
    %s125 = sphi 0, %s111
    %s131 = sphi 0, %s133
    %s134 = sphi 0, %s131
    %s135 = sphi 0, %s134
    %s151 = sphi 0, %s135
  $region4: #{transformer_d_forward.26} parent=0 // loop_header_branch
    %14 = sbr.rel (%p12) target = $region8
  $region5: #{transformer_d_forward.26} parent=0 // loop_body
    %s16 = ssub.s32 %s11, 1
    %s17 = ssub.s32 %s11, 2
    %s18 = sadd.s32 %s11, 1
    %s19 = ssub.s32 %s11, %s18
    %p20 = scmp.eq.s32.totalorder %s19, 0
    %s22 = sadd.s32 %s21, 1
    %s23 = scalar_select %p20, %s21, %s22
    %p26 = pneg %p20
    %p27 = scmp.eq.s32.totalorder %s11, 1
    %p28 = por %p26, %p27
    %p29 = scmp.ne.s32.totalorder %s21, %s24
    %p30 = scmp.eq.s32.totalorder %s11, 0
    %p31 = por %p29, %p30
    %p32 = scmp.ne.s32.totalorder %s21, %s24
    %p33 = scmp.eq.s32.totalorder %s16, 1
    %p34 = por %p32, %p33
    %p35 = scmp.ne.s32.totalorder %s24, %s25
    %p36 = scmp.eq.s32.totalorder %s16, 0
    %p37 = por %p35, %p36
    %p38 = scmp.ne.s32.totalorder %s24, %s25
    %p39 = scmp.eq.s32.totalorder %s17, 1
    %p40 = por %p38, %p39
    %p42 = scmp.ne.s32.totalorder %s25, %s41
    %p43 = scmp.eq.s32.totalorder %s17, 0
    %p44 = por %p42, %p43
    %s46 = sadd.s32 %s45, 1
    %p49 = scmp.eq.s32.totalorder %s11, 1
    %p50 = scmp.ne.s32.totalorder %s45, %s47
    %p51 = scmp.eq.s32.totalorder %s11, 0
    %p52 = por %p50, %p51
    %p53 = scmp.ne.s32.totalorder %s45, %s47
    %p54 = scmp.eq.s32.totalorder %s16, 1
    %p55 = por %p53, %p54
    %p56 = scmp.ne.s32.totalorder %s47, %s48
    %p57 = scmp.eq.s32.totalorder %s16, 0
    %p58 = por %p56, %p57
    %p59 = scmp.ne.s32.totalorder %s47, %s48
    %p60 = scmp.eq.s32.totalorder %s17, 1
    %p61 = por %p59, %p60
    %p63 = scmp.ne.s32.totalorder %s48, %s62
    %p64 = scmp.eq.s32.totalorder %s17, 0
    %p65 = por %p63, %p64
    %s67 = sadd.s32 %s66, 1
    %p70 = scmp.eq.s32.totalorder %s11, 1
    %p71 = scmp.ne.s32.totalorder %s66, %s68
    %p72 = scmp.eq.s32.totalorder %s11, 0
    %p73 = por %p71, %p72
    %p74 = scmp.ne.s32.totalorder %s66, %s68
    %p75 = scmp.eq.s32.totalorder %s16, 1
    %p76 = por %p74, %p75
    %p77 = scmp.ne.s32.totalorder %s68, %s69
    %p78 = scmp.eq.s32.totalorder %s16, 0
    %p79 = por %p77, %p78
    %p80 = scmp.ne.s32.totalorder %s68, %s69
    %p81 = scmp.eq.s32.totalorder %s17, 1
    %p82 = por %p80, %p81
    %p84 = scmp.ne.s32.totalorder %s69, %s83
    %p85 = scmp.eq.s32.totalorder %s17, 0
    %p86 = por %p84, %p85
    %s88 = sadd.s32 %s87, 1
    %p91 = scmp.eq.s32.totalorder %s11, 1
    %p92 = scmp.ne.s32.totalorder %s87, %s89
    %p93 = scmp.eq.s32.totalorder %s11, 0
    %p94 = por %p92, %p93
    %p95 = scmp.ne.s32.totalorder %s87, %s89
    %p96 = scmp.eq.s32.totalorder %s16, 1
    %p97 = por %p95, %p96
    %p98 = scmp.ne.s32.totalorder %s89, %s90
    %p99 = scmp.eq.s32.totalorder %s16, 0
    %p100 = por %p98, %p99
    %p101 = scmp.ne.s32.totalorder %s89, %s90
    %p102 = scmp.eq.s32.totalorder %s17, 1
    %p103 = por %p101, %p102
    %p105 = scmp.ne.s32.totalorder %s90, %s104
    %p106 = scmp.eq.s32.totalorder %s17, 0
    %p107 = por %p105, %p106
    %s109 = sadd.s32 %s108, 1
    %p112 = scmp.eq.s32.totalorder %s11, 1
    %p113 = scmp.ne.s32.totalorder %s108, %s110
    %p114 = scmp.eq.s32.totalorder %s11, 0
    %p115 = por %p113, %p114
    %p116 = scmp.ne.s32.totalorder %s108, %s110
    %p117 = scmp.eq.s32.totalorder %s16, 1
    %p118 = por %p116, %p117
    %p119 = scmp.ne.s32.totalorder %s110, %s111
    %p120 = scmp.eq.s32.totalorder %s16, 0
    %p121 = por %p119, %p120
    %p122 = scmp.ne.s32.totalorder %s110, %s111
    %p123 = scmp.eq.s32.totalorder %s17, 1
    %p124 = por %p122, %p123
    %p126 = scmp.ne.s32.totalorder %s111, %s125
    %p127 = scmp.eq.s32.totalorder %s17, 0
    %p128 = por %p126, %p127
    %s129 = ssub.s32 %s11, %s18
    %p130 = scmp.eq.s32.totalorder %s129, 0
    %s132 = sadd.s32 %s131, 1
    %s133 = scalar_select %p130, %s131, %s132
    %p136 = pneg %p130
    %p137 = scmp.eq.s32.totalorder %s11, 1
    %p138 = por %p136, %p137
    %p139 = scmp.ne.s32.totalorder %s131, %s134
    %p140 = scmp.eq.s32.totalorder %s11, 0
    %p141 = por %p139, %p140
    %p142 = scmp.ne.s32.totalorder %s131, %s134
    %p143 = scmp.eq.s32.totalorder %s16, 1
    %p144 = por %p142, %p143
    %p145 = scmp.ne.s32.totalorder %s134, %s135
    %p146 = scmp.eq.s32.totalorder %s16, 0
    %p147 = por %p145, %p146
    %p148 = scmp.ne.s32.totalorder %s134, %s135
    %p149 = scmp.eq.s32.totalorder %s17, 1
    %p150 = por %p148, %p149
    %p152 = scmp.ne.s32.totalorder %s135, %s151
    %p153 = scmp.eq.s32.totalorder %s17, 0
    %p154 = por %p152, %p153
    %p155 = scmp.le.s32.totalorder 1, %s11
    %p156 = scmp.lt.s32.totalorder %s11, 3
    %p157 = pnand %p155, %p156
    %p158 = pneg %p157
    // Predicated region
    $region9: #{transformer_d_forward.26} parent=5 // pred_check
      _
    $region10: #{transformer_d_forward.26} parent=5 // pred_check_branch
      %160 = sbr.rel (%p157) target = $region12
    $region11: #{transformer_d_forward.26} parent=5 // pred_region
      %s161 = ssub.s32 %s11, 1
      // Predicated region
      $region13: #{transformer_d_forward.26} parent=11 // pred_check
        %p162 = pneg %p58
      $region14: #{transformer_d_forward.26} parent=11 // pred_check_branch
        %164 = sbr.rel (%p162) target = $region16
      $region15: #{transformer_d_forward.26} parent=11 // pred_region
        _
      $region16: #{transformer_d_forward.26} parent=11 // pred_fallthru
        _
      // Predicated region
      $region17: #{transformer_d_forward.26} parent=11 // pred_check
        %p165 = pneg %p79
      $region18: #{transformer_d_forward.26} parent=11 // pred_check_branch
        %167 = sbr.rel (%p165) target = $region20
      $region19: #{transformer_d_forward.26} parent=11 // pred_region
        _
      $region20: #{transformer_d_forward.26} parent=11 // pred_fallthru
        _
      // Predicated region
      $region21: #{transformer_d_forward.26} parent=11 // pred_check
        %p168 = pneg %p100
      $region22: #{transformer_d_forward.26} parent=11 // pred_check_branch
        %170 = sbr.rel (%p168) target = $region24
      $region23: #{transformer_d_forward.26} parent=11 // pred_region
        _
      $region24: #{transformer_d_forward.26} parent=11 // pred_fallthru
        _
      // Predicated region
      $region25: #{transformer_d_forward.26} parent=11 // pred_check
        %p171 = pneg %p121
      $region26: #{transformer_d_forward.26} parent=11 // pred_check_branch
        %173 = sbr.rel (%p171) target = $region28
      $region27: #{transformer_d_forward.26} parent=11 // pred_region
        _
      $region28: #{transformer_d_forward.26} parent=11 // pred_fallthru
        _
    $region12: #{transformer_d_forward.26} parent=5 // pred_fallthru
      _
    %p174 = scmp.lt.s32.totalorder %s11, 2
    // Predicated region
    $region29: #{transformer_d_forward.26} parent=5 // pred_check
      %p175 = pneg %p174
    $region30: #{transformer_d_forward.26} parent=5 // pred_check_branch
      %177 = sbr.rel (%p175) target = $region32
    $region31: #{transformer_d_forward.26} parent=5 // pred_region
      // Predicated region
      $region33: #{transformer_d_forward.26} parent=31 // pred_check
        %p178 = pneg %p31
      $region34: #{transformer_d_forward.26} parent=31 // pred_check_branch
        %180 = sbr.rel (%p178) target = $region36
      $region35: #{transformer_d_forward.26} parent=31 // pred_region
        %p181 = scmp.lt.s32.totalorder %s11, 1
        %s182 = scalar_select %p181, %s11, 1
        %s183 = smul.addr %s182, 3
        %s184 = smul.addr %s183, 8
        %s185 = scalar_lea.vmem %s0, %s184
      $region36: #{transformer_d_forward.26} parent=31 // pred_fallthru
        _
    $region32: #{transformer_d_forward.26} parent=5 // pred_fallthru
      _
    %p186 = scmp.le.s32.totalorder 1, %s11
    %p187 = scmp.lt.s32.totalorder %s11, 3
    %p188 = pnand %p186, %p187
    %p189 = pneg %p188
    // Predicated region
    $region37: #{transformer_d_forward.26} parent=5 // pred_check
      _
    $region38: #{transformer_d_forward.26} parent=5 // pred_check_branch
      %191 = sbr.rel (%p188) target = $region40
    $region39: #{transformer_d_forward.26} parent=5 // pred_region
      %s192 = ssub.s32 %s11, 1
      %p193 = scmp.lt.s32.totalorder %s16, 1
      %s194 = scalar_select %p193, %s16, 1
      %s195 = smul.addr %s194, 3
      %s196 = smul.addr %s195, 8
      %s197 = scalar_lea.vmem %s0, %s196
      %p198 = pneg %p37
      %p199 = pneg %p34
      %p200 = pneg %p58
      %p201 = pneg %p55
      %p202 = pneg %p79
      %p203 = pneg %p76
      %p204 = pneg %p100
      %p205 = pneg %p97
      %p206 = pneg %p121
      %p207 = pneg %p118
      %p208 = pneg %p147
      %p209 = pneg %p144
      %p210 = scmp.lt.s32.totalorder %s16, 1
      %s211 = scalar_select %p210, %s16, 1
      %s212 = smul.addr %s211, 2
      %s213 = smul.addr %s212, 8
      %s214 = scalar_lea.vmem %s5, %s213
      %p215 = scmp.lt.s32.totalorder %s16, 1
      %s216 = scalar_select %p215, %s16, 1
      %s217 = smul.addr %s216, 3
      %s218 = smul.addr %s217, 8
      %s219 = scalar_lea.vmem %s0, %s218
      %p220 = scmp.lt.s32.totalorder %s16, 1
      %s221 = scalar_select %p220, %s16, 1
      %s222 = smul.addr %s221, 2
      %s223 = smul.addr %s222, 8
      %s224 = scalar_lea.vmem %s5, %s223
      %v226 = vld [vmem:[%s219] sm:$0xff]
      %v227 = vld [vmem:[%s219 + $0x8] sm:$0xff]
      %v228 = vpack.c.bf16 %v227, %v226
      %v229 = vld [vmem:[%s1] sm:$0xf]
      %v230 = vld [vmem:[%s219 + $0x1] sm:$0xff]
      %v231 = vld [vmem:[%s219 + $0x9] sm:$0xff]
      %v232 = vpack.c.bf16 %v231, %v230
      %s233 = scalar_lea.vmem %s1, 4
      %v234 = vld [vmem:[%s233] sm:$0xf]
      %vm235 = vcmask 64512
      %v237 = vsel %vm235, %v232, 0
      %vm239 = vcmask 1043456
      %v241 = vsel %vm239, %v234, 0
      %243 = vmatpush.bf16.msra.mxu0 0
      %244 = vmatpush.bf16.msra.mxu0 0
      %245 = vmatpush.bf16.msra.mxu0 0
      %246 = vmatpush.bf16.msra.mxu0 0
      %247 = vmatpush.bf16.msra.mxu0 0
      %248 = vmatpush.bf16.msra.mxu0 0
      %249 = vmatpush.bf16.msra.mxu0 0
      %250 = vmatpush.bf16.msra.mxu0 %v241
      %251 = vmatmul.bf16.gmra.mxu0 %v237
      %v252 = vpop.f32.mrf.mxu0
      %v253 = vadd.f32 0.0, %v252
      %v254 = vpop.f32.mrf.mxu0
      %v255 = vadd.f32 0.0, %v254
      %256 = vdwg.mxu0
      %v258 = vsel %vm235, %v228, 0
      %v261 = vsel %vm239, %v229, 0
      %263 = vmatpush.bf16.msra.mxu0 0
      %264 = vmatpush.bf16.msra.mxu0 0
      %265 = vmatpush.bf16.msra.mxu0 0
      %266 = vmatpush.bf16.msra.mxu0 0
      %267 = vmatpush.bf16.msra.mxu0 0
      %268 = vmatpush.bf16.msra.mxu0 0
      %269 = vmatpush.bf16.msra.mxu0 0
      %270 = vmatpush.bf16.msra.mxu0 %v261
      %271 = vmatmul.bf16.gmra.mxu0 %v258
      %v272 = vpop.f32.mrf.mxu0
      %v273 = vadd.f32 %v253, %v272
      %v274 = vpop.f32.mrf.mxu0
      %v275 = vadd.f32 %v255, %v274
      %276 = vdwg.mxu0
      %v277 = vld [vmem:[%s219 + $0x2] sm:$0xff]
      %v278 = vld [vmem:[%s219 + $0xa] sm:$0xff]
      %v279 = vpack.c.bf16 %v278, %v277
      %s280 = scalar_lea.vmem %s1, 8
      %v281 = vld [vmem:[%s280] sm:$0xf]
      %v283 = vsel %vm235, %v279, 0
      %v286 = vsel %vm239, %v281, 0
      %288 = vmatpush.bf16.msra.mxu0 0
      %289 = vmatpush.bf16.msra.mxu0 0
      %290 = vmatpush.bf16.msra.mxu0 0
      %291 = vmatpush.bf16.msra.mxu0 0
      %292 = vmatpush.bf16.msra.mxu0 0
      %293 = vmatpush.bf16.msra.mxu0 0
      %294 = vmatpush.bf16.msra.mxu0 0
      %295 = vmatpush.bf16.msra.mxu0 %v286
      %296 = vmatmul.bf16.gmra.mxu0 %v283
      %v297 = vpop.f32.mrf.mxu0
      %v298 = vadd.f32 0.0, %v297
      %v299 = vpop.f32.mrf.mxu0
      %v300 = vadd.f32 0.0, %v299
      %301 = vdwg.mxu0
      %v302 = vadd.f32 %v273, %v298
      %v303 = vadd.f32 %v275, %v300
      %v304 = vld [vmem:[%s2] sm:$0x1]
      %v306 = vperm.slane %v304, 0
      %v308 = vadd.f32 %v302, %v306
      %v309 = vadd.f32 %v303, %v306
      %vm310 = vcmask 261120
      %v311 = vsel %vm310, %v308, 0.0
      %v312 = vsel %vm310, %v309, 0.0
      %v313 = vadd.f32 %v311, %v312
      %314 = vadd.xlane.f32.xlu0 %v313
      %v315 = vpop.xlane.xlu0 %314
      %v316 = vrot.slane %v315, 4
      %v317 = vadd.f32 %v315, %v316
      %v318 = vrot.slane %v317, 2
      %v319 = vadd.f32 %v317, %v318
      %v320 = vrot.slane %v319, 1
      %v321 = vadd.f32 %v319, %v320
      %s322 = vtos %v321
      %v323 = vrcp.pop 512.0
      %v324 = vmul.f32 512.0, %v323
      %v325 = vsub.f32 1.0, %v324
      %v326 = vmul.f32 %v323, %v325
      %v327 = vadd.f32 %v323, %v326
      %vm328 = vweird.f32 %v323
      %v329 = vsel %vm328, %v323, %v327
      %s330 = vtos %v329
      %s331 = smul.f32 %s322, %s330
      %v332 = vstv %s331
      %v333 = vsub.f32 %v308, %v332
      %v334 = vsub.f32 %v309, %v332
      %v335 = vmul.f32 %v333, %v333
      %v336 = vmul.f32 %v334, %v334
      %v337 = vsel %vm310, %v335, 0.0
      %v338 = vsel %vm310, %v336, 0.0
      %v339 = vadd.f32 %v337, %v338
      %340 = vadd.xlane.f32.xlu0 %v339
      %v341 = vpop.xlane.xlu0 %340
      %v342 = vrot.slane %v341, 4
      %v343 = vadd.f32 %v341, %v342
      %v344 = vrot.slane %v343, 2
      %v345 = vadd.f32 %v343, %v344
      %v346 = vrot.slane %v345, 1
      %v347 = vadd.f32 %v345, %v346
      %s348 = vtos %v347
      %v349 = vrcp.pop 512.0
      %v350 = vmul.f32 512.0, %v349
      %v351 = vsub.f32 1.0, %v350
      %v352 = vmul.f32 %v349, %v351
      %v353 = vadd.f32 %v349, %v352
      %vm354 = vweird.f32 %v349
      %v355 = vsel %vm354, %v349, %v353
      %s356 = vtos %v355
      %s357 = smul.f32 %s348, %s356
      %s358 = sadd.f32 %s357, 1e-06
      %v359 = vstv %s358
      %v360 = vrsqrt.pop %v359
      %v361 = vmul.f32 %v360, %v359
      %v362 = vmul.f32 %v361, %v360
      %v363 = vmul.f32 0.5, %v362
      %v364 = vsub.f32 1.5, %v363
      %v365 = vmul.f32 %v360, %v364
      %vm366 = vweird.f32 %v359
      %vm367 = vweird.f32 %v360
      %vm368 = vmor %vm366, %vm367
      %v369 = vsel %vm368, %v360, %v365
      %s370 = vtos %v369
      %v371 = vstv %s370
      %v372 = vmul.f32 %v333, %v371
      %v373 = vmul.f32 %v334, %v371
      %v374 = vld [vmem:[%s3] sm:$0xff]
      %v375 = vld [vmem:[%s3 + $0x8] sm:$0xff]
      %v376 = vmul.f32 %v372, %v374
      %v377 = vmul.f32 %v373, %v375
      %v378 = vld [vmem:[%s4] sm:$0xff]
      %v379 = vld [vmem:[%s4 + $0x8] sm:$0xff]
      %v380 = vadd.f32 %v376, %v378
      %v381 = vadd.f32 %v377, %v379
      %v382 = vmax.f32 %v380, 0.0
      %v383 = vmax.f32 %v381, 0.0
      %384 = vst.msk [vmem:[%s224] sm:$0xff] %vm310, %v382
      %385 = vst.msk [vmem:[%s224 + $0x8] sm:$0xff] %vm310, %v383
      %p386 = scmp.lt.s32.totalorder %s16, 1
      %s387 = scalar_select %p386, %s16, 1
      %s388 = smul.addr %s387, 2
      %s389 = smul.addr %s388, 8
      %s390 = scalar_lea.vmem %s5, %s389
      // Predicated region
      $region41: #{transformer_d_forward.26} parent=39 // pred_check
        %p391 = pneg %p144
      $region42: #{transformer_d_forward.26} parent=39 // pred_check_branch
        %393 = sbr.rel (%p391) target = $region44
      $region43: #{transformer_d_forward.26} parent=39 // pred_region
        _
      $region44: #{transformer_d_forward.26} parent=39 // pred_fallthru
        _
    $region40: #{transformer_d_forward.26} parent=5 // pred_fallthru
      _
    %p394 = scmp.le.s32.totalorder 2, %s11
    // Predicated region
    $region45: #{transformer_d_forward.26} parent=5 // pred_check
      %p395 = pneg %p394
    $region46: #{transformer_d_forward.26} parent=5 // pred_check_branch
      %397 = sbr.rel (%p395) target = $region48
    $region47: #{transformer_d_forward.26} parent=5 // pred_region
      %s398 = ssub.s32 %s11, 2
      // Predicated region
      $region49: #{transformer_d_forward.26} parent=47 // pred_check
        %p399 = pneg %p150
      $region50: #{transformer_d_forward.26} parent=47 // pred_check_branch
        %401 = sbr.rel (%p399) target = $region52
      $region51: #{transformer_d_forward.26} parent=47 // pred_region
        %p402 = scmp.lt.s32.totalorder %s17, 1
        %s403 = scalar_select %p402, %s17, 1
        %s404 = smul.addr %s403, 2
        %s405 = smul.addr %s404, 8
        %s406 = scalar_lea.vmem %s5, %s405
      $region52: #{transformer_d_forward.26} parent=47 // pred_fallthru
        _
    $region48: #{transformer_d_forward.26} parent=5 // pred_fallthru
      _
  $region6: #{transformer_d_forward.26} parent=0 // loop_footer
    %s15 = sadd.s32 1, %s11
  $region7: #{transformer_d_forward.26} parent=0 // loop_footer_branch
    %10 = sbr.rel target = $region3
  $region8: #{transformer_d_forward.26} parent=0 // loop_exit
    _

// kernel: transformer_d_forward.27
$region0: #{transformer_d_forward.27}
  #allocation0 [shape = 'u32[]', space=smem, size = 0x4, offset = 0x4, fixed_abs, tag = 'smem constant byte address 0x4 - core index']
  #allocation1 [shape = 'u32[72,128]{1,0:T(1,128)}', space=vmem, size = 0x9000, scoped, tag = 'internal scratch']
  %s0 = inlined_call_operand.vmem [shape: f32[2,18,32], index: 0, kind: input, shape index: {}]
  %s1 = inlined_call_operand.vmem [shape: bf16[3,32,32], index: 1, kind: input, shape index: {}]
  %s2 = inlined_call_operand.vmem [shape: f32[1,32], index: 2, kind: input, shape index: {}]
  %s3 = inlined_call_operand.vmem [shape: f32[16,32], index: 3, kind: input, shape index: {}]
  %s4 = inlined_call_operand.vmem [shape: f32[16,32], index: 4, kind: input, shape index: {}]
  %s5 = inlined_call_operand.vmem [shape: f32[2,16,32], index: 5, kind: output, shape index: {}]
  %s6 = sld [smem:[#allocation0]]
  $region53: #{transformer_d_forward.27} parent=0
    _
  %s8 = ssub.s32 1, %s6
  %s9 = scalar_select 0, %s8, %s6
  loop: start=0, step=1, limit=4
  $region2: #{transformer_d_forward.27} parent=0 // loop_pre_header
    _
  $region3: #{transformer_d_forward.27} parent=0 // loop_header
    %s11 = sphi 0, %s15
    %p12 = scmp.ge.s32.totalorder %s11, 4
    %s21 = sphi 0, %s23
    %s24 = sphi 0, %s21
    %s25 = sphi 0, %s24
    %s41 = sphi 0, %s25
    %s45 = sphi 0, %s45
    %s47 = sphi 0, %s45
    %s48 = sphi 0, %s47
    %s62 = sphi 0, %s48
    %s66 = sphi 0, %s66
    %s68 = sphi 0, %s66
    %s69 = sphi 0, %s68
    %s83 = sphi 0, %s69
    %s87 = sphi 0, %s87
    %s89 = sphi 0, %s87
    %s90 = sphi 0, %s89
    %s104 = sphi 0, %s90
    %s108 = sphi 0, %s108
    %s110 = sphi 0, %s108
    %s111 = sphi 0, %s110
    %s125 = sphi 0, %s111
    %s131 = sphi 0, %s133
    %s134 = sphi 0, %s131
    %s135 = sphi 0, %s134
    %s151 = sphi 0, %s135
  $region4: #{transformer_d_forward.27} parent=0 // loop_header_branch
    %14 = sbr.rel (%p12) target = $region8
  $region5: #{transformer_d_forward.27} parent=0 // loop_body
    %s16 = ssub.s32 %s11, 1
    %s17 = ssub.s32 %s11, 2
    %s18 = sadd.s32 %s11, 1
    %s19 = ssub.s32 %s11, %s18
    %p20 = scmp.eq.s32.totalorder %s19, 0
    %s22 = sadd.s32 %s21, 1
    %s23 = scalar_select %p20, %s21, %s22
    %p26 = pneg %p20
    %p27 = scmp.eq.s32.totalorder %s11, 1
    %p28 = por %p26, %p27
    %p29 = scmp.ne.s32.totalorder %s21, %s24
    %p30 = scmp.eq.s32.totalorder %s11, 0
    %p31 = por %p29, %p30
    %p32 = scmp.ne.s32.totalorder %s21, %s24
    %p33 = scmp.eq.s32.totalorder %s16, 1
    %p34 = por %p32, %p33
    %p35 = scmp.ne.s32.totalorder %s24, %s25
    %p36 = scmp.eq.s32.totalorder %s16, 0
    %p37 = por %p35, %p36
    %p38 = scmp.ne.s32.totalorder %s24, %s25
    %p39 = scmp.eq.s32.totalorder %s17, 1
    %p40 = por %p38, %p39
    %p42 = scmp.ne.s32.totalorder %s25, %s41
    %p43 = scmp.eq.s32.totalorder %s17, 0
    %p44 = por %p42, %p43
    %s46 = sadd.s32 %s45, 1
    %p49 = scmp.eq.s32.totalorder %s11, 1
    %p50 = scmp.ne.s32.totalorder %s45, %s47
    %p51 = scmp.eq.s32.totalorder %s11, 0
    %p52 = por %p50, %p51
    %p53 = scmp.ne.s32.totalorder %s45, %s47
    %p54 = scmp.eq.s32.totalorder %s16, 1
    %p55 = por %p53, %p54
    %p56 = scmp.ne.s32.totalorder %s47, %s48
    %p57 = scmp.eq.s32.totalorder %s16, 0
    %p58 = por %p56, %p57
    %p59 = scmp.ne.s32.totalorder %s47, %s48
    %p60 = scmp.eq.s32.totalorder %s17, 1
    %p61 = por %p59, %p60
    %p63 = scmp.ne.s32.totalorder %s48, %s62
    %p64 = scmp.eq.s32.totalorder %s17, 0
    %p65 = por %p63, %p64
    %s67 = sadd.s32 %s66, 1
    %p70 = scmp.eq.s32.totalorder %s11, 1
    %p71 = scmp.ne.s32.totalorder %s66, %s68
    %p72 = scmp.eq.s32.totalorder %s11, 0
    %p73 = por %p71, %p72
    %p74 = scmp.ne.s32.totalorder %s66, %s68
    %p75 = scmp.eq.s32.totalorder %s16, 1
    %p76 = por %p74, %p75
    %p77 = scmp.ne.s32.totalorder %s68, %s69
    %p78 = scmp.eq.s32.totalorder %s16, 0
    %p79 = por %p77, %p78
    %p80 = scmp.ne.s32.totalorder %s68, %s69
    %p81 = scmp.eq.s32.totalorder %s17, 1
    %p82 = por %p80, %p81
    %p84 = scmp.ne.s32.totalorder %s69, %s83
    %p85 = scmp.eq.s32.totalorder %s17, 0
    %p86 = por %p84, %p85
    %s88 = sadd.s32 %s87, 1
    %p91 = scmp.eq.s32.totalorder %s11, 1
    %p92 = scmp.ne.s32.totalorder %s87, %s89
    %p93 = scmp.eq.s32.totalorder %s11, 0
    %p94 = por %p92, %p93
    %p95 = scmp.ne.s32.totalorder %s87, %s89
    %p96 = scmp.eq.s32.totalorder %s16, 1
    %p97 = por %p95, %p96
    %p98 = scmp.ne.s32.totalorder %s89, %s90
    %p99 = scmp.eq.s32.totalorder %s16, 0
    %p100 = por %p98, %p99
    %p101 = scmp.ne.s32.totalorder %s89, %s90
    %p102 = scmp.eq.s32.totalorder %s17, 1
    %p103 = por %p101, %p102
    %p105 = scmp.ne.s32.totalorder %s90, %s104
    %p106 = scmp.eq.s32.totalorder %s17, 0
    %p107 = por %p105, %p106
    %s109 = sadd.s32 %s108, 1
    %p112 = scmp.eq.s32.totalorder %s11, 1
    %p113 = scmp.ne.s32.totalorder %s108, %s110
    %p114 = scmp.eq.s32.totalorder %s11, 0
    %p115 = por %p113, %p114
    %p116 = scmp.ne.s32.totalorder %s108, %s110
    %p117 = scmp.eq.s32.totalorder %s16, 1
    %p118 = por %p116, %p117
    %p119 = scmp.ne.s32.totalorder %s110, %s111
    %p120 = scmp.eq.s32.totalorder %s16, 0
    %p121 = por %p119, %p120
    %p122 = scmp.ne.s32.totalorder %s110, %s111
    %p123 = scmp.eq.s32.totalorder %s17, 1
    %p124 = por %p122, %p123
    %p126 = scmp.ne.s32.totalorder %s111, %s125
    %p127 = scmp.eq.s32.totalorder %s17, 0
    %p128 = por %p126, %p127
    %s129 = ssub.s32 %s11, %s18
    %p130 = scmp.eq.s32.totalorder %s129, 0
    %s132 = sadd.s32 %s131, 1
    %s133 = scalar_select %p130, %s131, %s132
    %p136 = pneg %p130
    %p137 = scmp.eq.s32.totalorder %s11, 1
    %p138 = por %p136, %p137
    %p139 = scmp.ne.s32.totalorder %s131, %s134
    %p140 = scmp.eq.s32.totalorder %s11, 0
    %p141 = por %p139, %p140
    %p142 = scmp.ne.s32.totalorder %s131, %s134
    %p143 = scmp.eq.s32.totalorder %s16, 1
    %p144 = por %p142, %p143
    %p145 = scmp.ne.s32.totalorder %s134, %s135
    %p146 = scmp.eq.s32.totalorder %s16, 0
    %p147 = por %p145, %p146
    %p148 = scmp.ne.s32.totalorder %s134, %s135
    %p149 = scmp.eq.s32.totalorder %s17, 1
    %p150 = por %p148, %p149
    %p152 = scmp.ne.s32.totalorder %s135, %s151
    %p153 = scmp.eq.s32.totalorder %s17, 0
    %p154 = por %p152, %p153
    %p155 = scmp.le.s32.totalorder 1, %s11
    %p156 = scmp.lt.s32.totalorder %s11, 3
    %p157 = pnand %p155, %p156
    %p158 = pneg %p157
    // Predicated region
    $region9: #{transformer_d_forward.27} parent=5 // pred_check
      _
    $region10: #{transformer_d_forward.27} parent=5 // pred_check_branch
      %160 = sbr.rel (%p157) target = $region12
    $region11: #{transformer_d_forward.27} parent=5 // pred_region
      %s161 = ssub.s32 %s11, 1
      // Predicated region
      $region13: #{transformer_d_forward.27} parent=11 // pred_check
        %p162 = pneg %p58
      $region14: #{transformer_d_forward.27} parent=11 // pred_check_branch
        %164 = sbr.rel (%p162) target = $region16
      $region15: #{transformer_d_forward.27} parent=11 // pred_region
        _
      $region16: #{transformer_d_forward.27} parent=11 // pred_fallthru
        _
      // Predicated region
      $region17: #{transformer_d_forward.27} parent=11 // pred_check
        %p165 = pneg %p79
      $region18: #{transformer_d_forward.27} parent=11 // pred_check_branch
        %167 = sbr.rel (%p165) target = $region20
      $region19: #{transformer_d_forward.27} parent=11 // pred_region
        _
      $region20: #{transformer_d_forward.27} parent=11 // pred_fallthru
        _
      // Predicated region
      $region21: #{transformer_d_forward.27} parent=11 // pred_check
        %p168 = pneg %p100
      $region22: #{transformer_d_forward.27} parent=11 // pred_check_branch
        %170 = sbr.rel (%p168) target = $region24
      $region23: #{transformer_d_forward.27} parent=11 // pred_region
        _
      $region24: #{transformer_d_forward.27} parent=11 // pred_fallthru
        _
      // Predicated region
      $region25: #{transformer_d_forward.27} parent=11 // pred_check
        %p171 = pneg %p121
      $region26: #{transformer_d_forward.27} parent=11 // pred_check_branch
        %173 = sbr.rel (%p171) target = $region28
      $region27: #{transformer_d_forward.27} parent=11 // pred_region
        _
      $region28: #{transformer_d_forward.27} parent=11 // pred_fallthru
        _
    $region12: #{transformer_d_forward.27} parent=5 // pred_fallthru
      _
    %p174 = scmp.lt.s32.totalorder %s11, 2
    // Predicated region
    $region29: #{transformer_d_forward.27} parent=5 // pred_check
      %p175 = pneg %p174
    $region30: #{transformer_d_forward.27} parent=5 // pred_check_branch
      %177 = sbr.rel (%p175) target = $region32
    $region31: #{transformer_d_forward.27} parent=5 // pred_region
      // Predicated region
      $region33: #{transformer_d_forward.27} parent=31 // pred_check
        %p178 = pneg %p31
      $region34: #{transformer_d_forward.27} parent=31 // pred_check_branch
        %180 = sbr.rel (%p178) target = $region36
      $region35: #{transformer_d_forward.27} parent=31 // pred_region
        %p181 = scmp.lt.s32.totalorder %s11, 1
        %s182 = scalar_select %p181, %s11, 1
        %s183 = smul.addr %s182, 3
        %s184 = smul.addr %s183, 8
        %s185 = scalar_lea.vmem %s0, %s184
      $region36: #{transformer_d_forward.27} parent=31 // pred_fallthru
        _
    $region32: #{transformer_d_forward.27} parent=5 // pred_fallthru
      _
    %p186 = scmp.le.s32.totalorder 1, %s11
    %p187 = scmp.lt.s32.totalorder %s11, 3
    %p188 = pnand %p186, %p187
    %p189 = pneg %p188
    // Predicated region
    $region37: #{transformer_d_forward.27} parent=5 // pred_check
      _
    $region38: #{transformer_d_forward.27} parent=5 // pred_check_branch
      %191 = sbr.rel (%p188) target = $region40
    $region39: #{transformer_d_forward.27} parent=5 // pred_region
      %s192 = ssub.s32 %s11, 1
      %p193 = scmp.lt.s32.totalorder %s16, 1
      %s194 = scalar_select %p193, %s16, 1
      %s195 = smul.addr %s194, 3
      %s196 = smul.addr %s195, 8
      %s197 = scalar_lea.vmem %s0, %s196
      %p198 = pneg %p37
      %p199 = pneg %p34
      %p200 = pneg %p58
      %p201 = pneg %p55
      %p202 = pneg %p79
      %p203 = pneg %p76
      %p204 = pneg %p100
      %p205 = pneg %p97
      %p206 = pneg %p121
      %p207 = pneg %p118
      %p208 = pneg %p147
      %p209 = pneg %p144
      %p210 = scmp.lt.s32.totalorder %s16, 1
      %s211 = scalar_select %p210, %s16, 1
      %s212 = smul.addr %s211, 2
      %s213 = smul.addr %s212, 8
      %s214 = scalar_lea.vmem %s5, %s213
      %p215 = scmp.lt.s32.totalorder %s16, 1
      %s216 = scalar_select %p215, %s16, 1
      %s217 = smul.addr %s216, 3
      %s218 = smul.addr %s217, 8
      %s219 = scalar_lea.vmem %s0, %s218
      %p220 = scmp.lt.s32.totalorder %s16, 1
      %s221 = scalar_select %p220, %s16, 1
      %s222 = smul.addr %s221, 2
      %s223 = smul.addr %s222, 8
      %s224 = scalar_lea.vmem %s5, %s223
      %v226 = vld [vmem:[%s219] sm:$0xff]
      %v227 = vld [vmem:[%s219 + $0x8] sm:$0xff]
      %v228 = vpack.c.bf16 %v227, %v226
      %v229 = vld [vmem:[%s1] sm:$0xf]
      %v230 = vld [vmem:[%s1 + $0x4] sm:$0xf]
      %v231 = vld [vmem:[%s1 + $0x8] sm:$0xf]
      %v232 = vld [vmem:[%s1 + $0xc] sm:$0xf]
      %v233 = vld [vmem:[%s219 + $0x1] sm:$0xff]
      %v234 = vld [vmem:[%s219 + $0x9] sm:$0xff]
      %v235 = vpack.c.bf16 %v234, %v233
      %s236 = scalar_lea.vmem %s1, 16
      %v237 = vld [vmem:[%s236] sm:$0xf]
      %v238 = vld [vmem:[%s236 + $0x4] sm:$0xf]
      %v239 = vld [vmem:[%s236 + $0x8] sm:$0xf]
      %v240 = vld [vmem:[%s236 + $0xc] sm:$0xf]
      %v245 = vunpack.c.l.b16 %v237
      %v246 = vunpack.c.l.b16 %v238
      %v247 = vunpack.c.l.b16 %v239
      %v248 = vunpack.c.l.b16 %v240
      %v249 = vpack.c.b16 %v246, %v245
      %v250 = vpack.c.b16 %v248, %v247
      %vm253 = vcmask 261120
      %v255 = vsel %vm253, %v235, 0
      %257 = vmatpush.bf16.msra.mxu0 0
      %258 = vmatpush.bf16.msra.mxu0 0
      %259 = vmatpush.bf16.msra.mxu0 0
      %260 = vmatpush.bf16.msra.mxu0 0
      %261 = vmatpush.bf16.msra.mxu0 0
      %262 = vmatpush.bf16.msra.mxu0 0
      %263 = vmatpush.bf16.msra.mxu0 %v250
      %264 = vmatpush.bf16.msra.mxu0 %v249
      %265 = vmatmul.bf16.gmra.mxu0 %v255
      %v266 = vpop.f32.mrf.mxu0
      %v267 = vadd.f32 0.0, %v266
      %v268 = vpop.f32.mrf.mxu0
      %v269 = vadd.f32 0.0, %v268
      %270 = vdwg.mxu0
      %v275 = vunpack.c.l.b16 %v229
      %v276 = vunpack.c.l.b16 %v230
      %v277 = vunpack.c.l.b16 %v231
      %v278 = vunpack.c.l.b16 %v232
      %v279 = vpack.c.b16 %v276, %v275
      %v280 = vpack.c.b16 %v278, %v277
      %v284 = vsel %vm253, %v228, 0
      %286 = vmatpush.bf16.msra.mxu0 0
      %287 = vmatpush.bf16.msra.mxu0 0
      %288 = vmatpush.bf16.msra.mxu0 0
      %289 = vmatpush.bf16.msra.mxu0 0
      %290 = vmatpush.bf16.msra.mxu0 0
      %291 = vmatpush.bf16.msra.mxu0 0
      %292 = vmatpush.bf16.msra.mxu0 %v280
      %293 = vmatpush.bf16.msra.mxu0 %v279
      %294 = vmatmul.bf16.gmra.mxu0 %v284
      %v295 = vpop.f32.mrf.mxu0
      %v296 = vadd.f32 %v267, %v295
      %v297 = vpop.f32.mrf.mxu0
      %v298 = vadd.f32 %v269, %v297
      %299 = vdwg.mxu0
      %v300 = vld [vmem:[%s219 + $0x2] sm:$0xff]
      %v301 = vld [vmem:[%s219 + $0xa] sm:$0xff]
      %v302 = vpack.c.bf16 %v301, %v300
      %s303 = scalar_lea.vmem %s1, 32
      %v304 = vld [vmem:[%s303] sm:$0xf]
      %v305 = vld [vmem:[%s303 + $0x4] sm:$0xf]
      %v306 = vld [vmem:[%s303 + $0x8] sm:$0xf]
      %v307 = vld [vmem:[%s303 + $0xc] sm:$0xf]
      %v312 = vunpack.c.l.b16 %v304
      %v313 = vunpack.c.l.b16 %v305
      %v314 = vunpack.c.l.b16 %v306
      %v315 = vunpack.c.l.b16 %v307
      %v316 = vpack.c.b16 %v313, %v312
      %v317 = vpack.c.b16 %v315, %v314
      %v321 = vsel %vm253, %v302, 0
      %323 = vmatpush.bf16.msra.mxu0 0
      %324 = vmatpush.bf16.msra.mxu0 0
      %325 = vmatpush.bf16.msra.mxu0 0
      %326 = vmatpush.bf16.msra.mxu0 0
      %327 = vmatpush.bf16.msra.mxu0 0
      %328 = vmatpush.bf16.msra.mxu0 0
      %329 = vmatpush.bf16.msra.mxu0 %v317
      %330 = vmatpush.bf16.msra.mxu0 %v316
      %331 = vmatmul.bf16.gmra.mxu0 %v321
      %v332 = vpop.f32.mrf.mxu0
      %v333 = vadd.f32 0.0, %v332
      %v334 = vpop.f32.mrf.mxu0
      %v335 = vadd.f32 0.0, %v334
      %336 = vdwg.mxu0
      %v337 = vadd.f32 %v296, %v333
      %v338 = vadd.f32 %v298, %v335
      %v339 = vld [vmem:[%s2] sm:$0x1]
      %v341 = vperm.slane %v339, 0
      %v343 = vadd.f32 %v337, %v341
      %v344 = vadd.f32 %v338, %v341
      %v345 = vsel %vm253, %v343, 0.0
      %v346 = vsel %vm253, %v344, 0.0
      %v347 = vadd.f32 %v345, %v346
      %348 = vadd.xlane.f32.xlu0 %v347
      %v349 = vpop.xlane.xlu0 %348
      %v350 = vrot.slane %v349, 4
      %v351 = vadd.f32 %v349, %v350
      %v352 = vrot.slane %v351, 2
      %v353 = vadd.f32 %v351, %v352
      %v354 = vrot.slane %v353, 1
      %v355 = vadd.f32 %v353, %v354
      %s356 = vtos %v355
      %v357 = vrcp.pop 512.0
      %v358 = vmul.f32 512.0, %v357
      %v359 = vsub.f32 1.0, %v358
      %v360 = vmul.f32 %v357, %v359
      %v361 = vadd.f32 %v357, %v360
      %vm362 = vweird.f32 %v357
      %v363 = vsel %vm362, %v357, %v361
      %s364 = vtos %v363
      %s365 = smul.f32 %s356, %s364
      %v366 = vstv %s365
      %v367 = vsub.f32 %v343, %v366
      %v368 = vsub.f32 %v344, %v366
      %v369 = vmul.f32 %v367, %v367
      %v370 = vmul.f32 %v368, %v368
      %v371 = vsel %vm253, %v369, 0.0
      %v372 = vsel %vm253, %v370, 0.0
      %v373 = vadd.f32 %v371, %v372
      %374 = vadd.xlane.f32.xlu0 %v373
      %v375 = vpop.xlane.xlu0 %374
      %v376 = vrot.slane %v375, 4
      %v377 = vadd.f32 %v375, %v376
      %v378 = vrot.slane %v377, 2
      %v379 = vadd.f32 %v377, %v378
      %v380 = vrot.slane %v379, 1
      %v381 = vadd.f32 %v379, %v380
      %s382 = vtos %v381
      %v383 = vrcp.pop 512.0
      %v384 = vmul.f32 512.0, %v383
      %v385 = vsub.f32 1.0, %v384
      %v386 = vmul.f32 %v383, %v385
      %v387 = vadd.f32 %v383, %v386
      %vm388 = vweird.f32 %v383
      %v389 = vsel %vm388, %v383, %v387
      %s390 = vtos %v389
      %s391 = smul.f32 %s382, %s390
      %s392 = sadd.f32 %s391, 1e-06
      %v393 = vstv %s392
      %v394 = vrsqrt.pop %v393
      %v395 = vmul.f32 %v394, %v393
      %v396 = vmul.f32 %v395, %v394
      %v397 = vmul.f32 0.5, %v396
      %v398 = vsub.f32 1.5, %v397
      %v399 = vmul.f32 %v394, %v398
      %vm400 = vweird.f32 %v393
      %vm401 = vweird.f32 %v394
      %vm402 = vmor %vm400, %vm401
      %v403 = vsel %vm402, %v394, %v399
      %s404 = vtos %v403
      %v405 = vstv %s404
      %v406 = vmul.f32 %v367, %v405
      %v407 = vmul.f32 %v368, %v405
      %v408 = vld [vmem:[%s3] sm:$0xff]
      %v409 = vld [vmem:[%s3 + $0x8] sm:$0xff]
      %v410 = vmul.f32 %v406, %v408
      %v411 = vmul.f32 %v407, %v409
      %v412 = vld [vmem:[%s4] sm:$0xff]
      %v413 = vld [vmem:[%s4 + $0x8] sm:$0xff]
      %v414 = vadd.f32 %v410, %v412
      %v415 = vadd.f32 %v411, %v413
      %v416 = vmax.f32 %v414, 0.0
      %v417 = vmax.f32 %v415, 0.0
      %418 = vst.msk [vmem:[%s224] sm:$0xff] %vm253, %v416
      %419 = vst.msk [vmem:[%s224 + $0x8] sm:$0xff] %vm253, %v417
      %p420 = scmp.lt.s32.totalorder %s16, 1
      %s421 = scalar_select %p420, %s16, 1
      %s422 = smul.addr %s421, 2
      %s423 = smul.addr %s422, 8
      %s424 = scalar_lea.vmem %s5, %s423
      // Predicated region
      $region41: #{transformer_d_forward.27} parent=39 // pred_check
        %p425 = pneg %p144
      $region42: #{transformer_d_forward.27} parent=39 // pred_check_branch
        %427 = sbr.rel (%p425) target = $region44
      $region43: #{transformer_d_forward.27} parent=39 // pred_region
        _
      $region44: #{transformer_d_forward.27} parent=39 // pred_fallthru
        _
    $region40: #{transformer_d_forward.27} parent=5 // pred_fallthru
      _
    %p428 = scmp.le.s32.totalorder 2, %s11
    // Predicated region
    $region45: #{transformer_d_forward.27} parent=5 // pred_check
      %p429 = pneg %p428
    $region46: #{transformer_d_forward.27} parent=5 // pred_check_branch
      %431 = sbr.rel (%p429) target = $region48
    $region47: #{transformer_d_forward.27} parent=5 // pred_region
      %s432 = ssub.s32 %s11, 2
      // Predicated region
      $region49: #{transformer_d_forward.27} parent=47 // pred_check
        %p433 = pneg %p150
      $region50: #{transformer_d_forward.27} parent=47 // pred_check_branch
        %435 = sbr.rel (%p433) target = $region52
      $region51: #{transformer_d_forward.27} parent=47 // pred_region
        %p436 = scmp.lt.s32.totalorder %s17, 1
        %s437 = scalar_select %p436, %s17, 1
        %s438 = smul.addr %s437, 2
        %s439 = smul.addr %s438, 8
        %s440 = scalar_lea.vmem %s5, %s439
      $region52: #{transformer_d_forward.27} parent=47 // pred_fallthru
        _
    $region48: #{transformer_d_forward.27} parent=5 // pred_fallthru
      _
  $region6: #{transformer_d_forward.27} parent=0 // loop_footer
    %s15 = sadd.s32 1, %s11
  $region7: #{transformer_d_forward.27} parent=0 // loop_footer_branch
    %10 = sbr.rel target = $region3
  $region8: #{transformer_d_forward.27} parent=0 // loop_exit
    _

// kernel: transformer_d_forward.34
$region0: #{transformer_d_forward.34}
  #allocation0 [shape = 'u32[]', space=smem, size = 0x4, offset = 0x4, fixed_abs, tag = 'smem constant byte address 0x4 - core index']
  #allocation1 [shape = 'u32[72,128]{1,0:T(1,128)}', space=vmem, size = 0x9000, scoped, tag = 'internal scratch']
  %s0 = inlined_call_operand.vmem [shape: f32[2,16,96], index: 0, kind: input, shape index: {}]
  %s1 = inlined_call_operand.vmem [shape: f32[2,16,32], index: 1, kind: output, shape index: {}]
  %s2 = sld [smem:[#allocation0]]
  $region37: #{transformer_d_forward.34} parent=0
    _
  %s4 = ssub.s32 1, %s2
  %s5 = scalar_select 0, %s4, %s2
  loop: start=0, step=1, limit=4
  $region2: #{transformer_d_forward.34} parent=0 // loop_pre_header
    _
  $region3: #{transformer_d_forward.34} parent=0 // loop_header
    %s7 = sphi 0, %s11
    %p8 = scmp.ge.s32.totalorder %s7, 4
    %s17 = sphi 0, %s19
    %s20 = sphi 0, %s17
    %s21 = sphi 0, %s20
    %s37 = sphi 0, %s21
    %s43 = sphi 0, %s45
    %s46 = sphi 0, %s43
    %s47 = sphi 0, %s46
    %s63 = sphi 0, %s47
  $region4: #{transformer_d_forward.34} parent=0 // loop_header_branch
    %10 = sbr.rel (%p8) target = $region8
  $region5: #{transformer_d_forward.34} parent=0 // loop_body
    %s12 = ssub.s32 %s7, 1
    %s13 = ssub.s32 %s7, 2
    %s14 = sadd.s32 %s7, 1
    %s15 = ssub.s32 %s7, %s14
    %p16 = scmp.eq.s32.totalorder %s15, 0
    %s18 = sadd.s32 %s17, 1
    %s19 = scalar_select %p16, %s17, %s18
    %p22 = pneg %p16
    %p23 = scmp.eq.s32.totalorder %s7, 1
    %p24 = por %p22, %p23
    %p25 = scmp.ne.s32.totalorder %s17, %s20
    %p26 = scmp.eq.s32.totalorder %s7, 0
    %p27 = por %p25, %p26
    %p28 = scmp.ne.s32.totalorder %s17, %s20
    %p29 = scmp.eq.s32.totalorder %s12, 1
    %p30 = por %p28, %p29
    %p31 = scmp.ne.s32.totalorder %s20, %s21
    %p32 = scmp.eq.s32.totalorder %s12, 0
    %p33 = por %p31, %p32
    %p34 = scmp.ne.s32.totalorder %s20, %s21
    %p35 = scmp.eq.s32.totalorder %s13, 1
    %p36 = por %p34, %p35
    %p38 = scmp.ne.s32.totalorder %s21, %s37
    %p39 = scmp.eq.s32.totalorder %s13, 0
    %p40 = por %p38, %p39
    %s41 = ssub.s32 %s7, %s14
    %p42 = scmp.eq.s32.totalorder %s41, 0
    %s44 = sadd.s32 %s43, 1
    %s45 = scalar_select %p42, %s43, %s44
    %p48 = pneg %p42
    %p49 = scmp.eq.s32.totalorder %s7, 1
    %p50 = por %p48, %p49
    %p51 = scmp.ne.s32.totalorder %s43, %s46
    %p52 = scmp.eq.s32.totalorder %s7, 0
    %p53 = por %p51, %p52
    %p54 = scmp.ne.s32.totalorder %s43, %s46
    %p55 = scmp.eq.s32.totalorder %s12, 1
    %p56 = por %p54, %p55
    %p57 = scmp.ne.s32.totalorder %s46, %s47
    %p58 = scmp.eq.s32.totalorder %s12, 0
    %p59 = por %p57, %p58
    %p60 = scmp.ne.s32.totalorder %s46, %s47
    %p61 = scmp.eq.s32.totalorder %s13, 1
    %p62 = por %p60, %p61
    %p64 = scmp.ne.s32.totalorder %s47, %s63
    %p65 = scmp.eq.s32.totalorder %s13, 0
    %p66 = por %p64, %p65
    %p67 = scmp.le.s32.totalorder 1, %s7
    %p68 = scmp.lt.s32.totalorder %s7, 3
    %p69 = pnand %p67, %p68
    %p70 = pneg %p69
    // Predicated region
    $region9: #{transformer_d_forward.34} parent=5 // pred_check
      _
    $region10: #{transformer_d_forward.34} parent=5 // pred_check_branch
      %72 = sbr.rel (%p69) target = $region12
    $region11: #{transformer_d_forward.34} parent=5 // pred_region
      %s73 = ssub.s32 %s7, 1
    $region12: #{transformer_d_forward.34} parent=5 // pred_fallthru
      _
    %p74 = scmp.lt.s32.totalorder %s7, 2
    // Predicated region
    $region13: #{transformer_d_forward.34} parent=5 // pred_check
      %p75 = pneg %p74
    $region14: #{transformer_d_forward.34} parent=5 // pred_check_branch
      %77 = sbr.rel (%p75) target = $region16
    $region15: #{transformer_d_forward.34} parent=5 // pred_region
      // Predicated region
      $region17: #{transformer_d_forward.34} parent=15 // pred_check
        %p78 = pneg %p27
      $region18: #{transformer_d_forward.34} parent=15 // pred_check_branch
        %80 = sbr.rel (%p78) target = $region20
      $region19: #{transformer_d_forward.34} parent=15 // pred_region
        %p81 = scmp.lt.s32.totalorder %s7, 1
        %s82 = scalar_select %p81, %s7, 1
        %s83 = smul.addr %s82, 2
        %s84 = smul.addr %s83, 8
        %s85 = scalar_lea.vmem %s0, %s84
      $region20: #{transformer_d_forward.34} parent=15 // pred_fallthru
        _
    $region16: #{transformer_d_forward.34} parent=5 // pred_fallthru
      _
    %p86 = scmp.le.s32.totalorder 1, %s7
    %p87 = scmp.lt.s32.totalorder %s7, 3
    %p88 = pnand %p86, %p87
    %p89 = pneg %p88
    // Predicated region
    $region21: #{transformer_d_forward.34} parent=5 // pred_check
      _
    $region22: #{transformer_d_forward.34} parent=5 // pred_check_branch
      %91 = sbr.rel (%p88) target = $region24
    $region23: #{transformer_d_forward.34} parent=5 // pred_region
      %s92 = ssub.s32 %s7, 1
      %p93 = scmp.lt.s32.totalorder %s12, 1
      %s94 = scalar_select %p93, %s12, 1
      %s95 = smul.addr %s94, 2
      %s96 = smul.addr %s95, 8
      %s97 = scalar_lea.vmem %s0, %s96
      %p98 = pneg %p33
      %p99 = pneg %p30
      %p100 = pneg %p59
      %p101 = pneg %p56
      %p102 = scmp.lt.s32.totalorder %s12, 1
      %s103 = scalar_select %p102, %s12, 1
      %s104 = smul.addr %s103, 2
      %s105 = smul.addr %s104, 8
      %s106 = scalar_lea.vmem %s1, %s105
      %p107 = scmp.lt.s32.totalorder %s12, 1
      %s108 = scalar_select %p107, %s12, 1
      %s109 = smul.addr %s108, 2
      %s110 = smul.addr %s109, 8
      %s111 = scalar_lea.vmem %s0, %s110
      %p112 = scmp.lt.s32.totalorder %s12, 1
      %s113 = scalar_select %p112, %s12, 1
      %s114 = smul.addr %s113, 2
      %s115 = smul.addr %s114, 8
      %s116 = scalar_lea.vmem %s1, %s115
      %v118 = vlaneseq
      %v119 = vshrl.u32 %v118, 7
      %v120 = vadd.s32 %v119, 8
      %v121 = vlaneseq
      %v122 = vand.u32 %v121, 127
      %vm123 = vcmp.gt.s32.totalorder %v122, %v119
      %vm124 = vcmp.gt.s32.totalorder %v122, %v120
      %v125 = vsel %vm123, -1e+09, 0.0
      %v126 = vsel %vm124, -1e+09, 0.0
      %v127 = vld [vmem:[%s111] sm:$0xff]
      %v128 = vld [vmem:[%s111 + $0x8] sm:$0xff]
      %v129 = vmul.f32 %v127, 0.35355338
      %v130 = vmul.f32 %v128, 0.35355338
      %v131 = vpack.c.bf16 %v130, %v129
      %v132 = vpack.c.bf16 %v128, %v127
      %134 = vrot.lane.b32.xlu0 %v132, 96
      %v135 = vpop.permute.xlu0 %134
      %vm136 = vcmask 64512
      %v138 = vsel %vm136, %v131, 0
      %v141 = vsel %vm136, %v135, 0
      %143 = vmatpush.bf16.xpose.msra.mxu0 0
      %144 = vmatpush.bf16.xpose.msra.mxu0 0
      %145 = vmatpush.bf16.xpose.msra.mxu0 0
      %146 = vmatpush.bf16.xpose.msra.mxu0 0
      %147 = vmatpush.bf16.xpose.msra.mxu0 0
      %148 = vmatpush.bf16.xpose.msra.mxu0 0
      %149 = vmatpush.bf16.xpose.msra.mxu0 0
      %150 = vmatpush.bf16.xpose.msra.mxu0 %v141
      %151 = vmatmul.bf16.gmra.mxu0 %v138
      %v152 = vpop.f32.mrf.mxu0
      %v153 = vadd.f32 %v125, %v152
      %v154 = vpop.f32.mrf.mxu0
      %v155 = vadd.f32 %v126, %v154
      %156 = vdwg.mxu0
      %vm157 = vcmask 130048
      %v158 = vsel %vm157, %v153, -inf
      %159 = vmax.xlane.f32.xlu0 %v158
      %v160 = vpop.xlane.xlu0 %159
      %v161 = vsel %vm157, %v155, -inf
      %162 = vmax.xlane.f32.xlu0 %v161
      %v163 = vpop.xlane.xlu0 %162
      %v164 = vsub.f32 %v153, %v160
      %v165 = vsub.f32 %v155, %v163
      %v166 = vmul.f32 %v164, 1.442695
      %v167 = vpow.pop %v166
      %v168 = vmul.f32 %v165, 1.442695
      %v169 = vpow.pop %v168
      %v170 = vsel %vm157, %v167, 0.0
      %171 = vadd.xlane.f32.xlu0 %v170
      %v172 = vpop.xlane.xlu0 %171
      %v173 = vsel %vm157, %v169, 0.0
      %174 = vadd.xlane.f32.xlu0 %v173
      %v175 = vpop.xlane.xlu0 %174
      %v176 = vrcp.pop %v172
      %v177 = vrcp.pop %v175
      %v178 = vmul.f32 %v167, %v176
      %v179 = vmul.f32 %v169, %v177
      %v180 = vpack.c.bf16 %v179, %v178
      %181 = vrot.lane.b32.xlu0 %v132, 64
      %v182 = vpop.permute.xlu0 %181
      %v185 = vsel %vm157, %v180, 0
      %187 = vmatpush.bf16.msra.mxu0 0
      %188 = vmatpush.bf16.msra.mxu0 0
      %189 = vmatpush.bf16.msra.mxu0 0
      %190 = vmatpush.bf16.msra.mxu0 0
      %191 = vmatpush.bf16.msra.mxu0 0
      %192 = vmatpush.bf16.msra.mxu0 0
      %193 = vmatpush.bf16.msra.mxu0 0
      %194 = vmatpush.bf16.msra.mxu0 %v182
      %195 = vmatmul.bf16.gmra.mxu0 %v185
      %v196 = vpop.f32.mrf.mxu0
      %v197 = vadd.f32 0.0, %v196
      %v198 = vpop.f32.mrf.mxu0
      %v199 = vadd.f32 0.0, %v198
      %200 = vdwg.mxu0
      %201 = vst.msk [vmem:[%s116] sm:$0xff] %vm136, %v197
      %202 = vst.msk [vmem:[%s116 + $0x8] sm:$0xff] %vm136, %v199
      %v203 = vld [vmem:[%s111] sm:$0xff]
      %v204 = vld [vmem:[%s111 + $0x8] sm:$0xff]
      %v205 = vmul.f32 %v203, 0.35355338
      %v206 = vmul.f32 %v204, 0.35355338
      %v207 = vpack.c.bf16 %v206, %v205
      %v208 = vpack.c.bf16 %v204, %v203
      %210 = vrot.lane.b32.xlu0 %v207, 120
      %v211 = vpop.permute.xlu0 %210
      %213 = vrot.lane.b32.xlu0 %v208, 88
      %v214 = vpop.permute.xlu0 %213
      %v216 = vsel %vm136, %v211, 0
      %v219 = vsel %vm136, %v214, 0
      %221 = vmatpush.bf16.xpose.msra.mxu0 0
      %222 = vmatpush.bf16.xpose.msra.mxu0 0
      %223 = vmatpush.bf16.xpose.msra.mxu0 0
      %224 = vmatpush.bf16.xpose.msra.mxu0 0
      %225 = vmatpush.bf16.xpose.msra.mxu0 0
      %226 = vmatpush.bf16.xpose.msra.mxu0 0
      %227 = vmatpush.bf16.xpose.msra.mxu0 0
      %228 = vmatpush.bf16.xpose.msra.mxu0 %v219
      %229 = vmatmul.bf16.gmra.mxu0 %v216
      %v230 = vpop.f32.mrf.mxu0
      %v231 = vadd.f32 %v125, %v230
      %v232 = vpop.f32.mrf.mxu0
      %v233 = vadd.f32 %v126, %v232
      %234 = vdwg.mxu0
      %v235 = vsel %vm157, %v231, -inf
      %236 = vmax.xlane.f32.xlu0 %v235
      %v237 = vpop.xlane.xlu0 %236
      %v238 = vsel %vm157, %v233, -inf
      %239 = vmax.xlane.f32.xlu0 %v238
      %v240 = vpop.xlane.xlu0 %239
      %v241 = vsub.f32 %v231, %v237
      %v242 = vsub.f32 %v233, %v240
      %v243 = vmul.f32 %v241, 1.442695
      %v244 = vpow.pop %v243
      %v245 = vmul.f32 %v242, 1.442695
      %v246 = vpow.pop %v245
      %v247 = vsel %vm157, %v244, 0.0
      %248 = vadd.xlane.f32.xlu0 %v247
      %v249 = vpop.xlane.xlu0 %248
      %v250 = vsel %vm157, %v246, 0.0
      %251 = vadd.xlane.f32.xlu0 %v250
      %v252 = vpop.xlane.xlu0 %251
      %v253 = vrcp.pop %v249
      %v254 = vrcp.pop %v252
      %v255 = vmul.f32 %v244, %v253
      %v256 = vmul.f32 %v246, %v254
      %v257 = vpack.c.bf16 %v256, %v255
      %258 = vrot.lane.b32.xlu0 %v208, 56
      %v259 = vpop.permute.xlu0 %258
      %v262 = vsel %vm157, %v257, 0
      %264 = vmatpush.bf16.msra.mxu0 0
      %265 = vmatpush.bf16.msra.mxu0 0
      %266 = vmatpush.bf16.msra.mxu0 0
      %267 = vmatpush.bf16.msra.mxu0 0
      %268 = vmatpush.bf16.msra.mxu0 0
      %269 = vmatpush.bf16.msra.mxu0 0
      %270 = vmatpush.bf16.msra.mxu0 0
      %271 = vmatpush.bf16.msra.mxu0 %v259
      %272 = vmatmul.bf16.gmra.mxu0 %v262
      %v273 = vpop.f32.mrf.mxu0
      %v274 = vadd.f32 0.0, %v273
      %v275 = vpop.f32.mrf.mxu0
      %v276 = vadd.f32 0.0, %v275
      %277 = vdwg.mxu0
      %280 = vrot.lane.b32.xlu0 %v274, 8
      %v281 = vpop.permute.xlu0 %280
      %282 = vrot.lane.b32.xlu0 %v276, 8
      %v283 = vpop.permute.xlu0 %282
      %vm286 = vcmask 130112
      %287 = vst.msk [vmem:[%s116] sm:$0xff] %vm286, %v281
      %288 = vst.msk [vmem:[%s116 + $0x8] sm:$0xff] %vm286, %v283
      %v289 = vld [vmem:[%s111] sm:$0xff]
      %v290 = vld [vmem:[%s111 + $0x8] sm:$0xff]
      %v291 = vmul.f32 %v289, 0.35355338
      %v292 = vmul.f32 %v290, 0.35355338
      %v293 = vpack.c.bf16 %v292, %v291
      %v294 = vpack.c.bf16 %v290, %v289
      %296 = vrot.lane.b32.xlu0 %v293, 112
      %v297 = vpop.permute.xlu0 %296
      %299 = vrot.lane.b32.xlu0 %v294, 80
      %v300 = vpop.permute.xlu0 %299
      %v302 = vsel %vm136, %v297, 0
      %v305 = vsel %vm136, %v300, 0
      %307 = vmatpush.bf16.xpose.msra.mxu0 0
      %308 = vmatpush.bf16.xpose.msra.mxu0 0
      %309 = vmatpush.bf16.xpose.msra.mxu0 0
      %310 = vmatpush.bf16.xpose.msra.mxu0 0
      %311 = vmatpush.bf16.xpose.msra.mxu0 0
      %312 = vmatpush.bf16.xpose.msra.mxu0 0
      %313 = vmatpush.bf16.xpose.msra.mxu0 0
      %314 = vmatpush.bf16.xpose.msra.mxu0 %v305
      %315 = vmatmul.bf16.gmra.mxu0 %v302
      %v316 = vpop.f32.mrf.mxu0
      %v317 = vadd.f32 %v125, %v316
      %v318 = vpop.f32.mrf.mxu0
      %v319 = vadd.f32 %v126, %v318
      %320 = vdwg.mxu0
      %v321 = vsel %vm157, %v317, -inf
      %322 = vmax.xlane.f32.xlu0 %v321
      %v323 = vpop.xlane.xlu0 %322
      %v324 = vsel %vm157, %v319, -inf
      %325 = vmax.xlane.f32.xlu0 %v324
      %v326 = vpop.xlane.xlu0 %325
      %v327 = vsub.f32 %v317, %v323
      %v328 = vsub.f32 %v319, %v326
      %v329 = vmul.f32 %v327, 1.442695
      %v330 = vpow.pop %v329
      %v331 = vmul.f32 %v328, 1.442695
      %v332 = vpow.pop %v331
      %v333 = vsel %vm157, %v330, 0.0
      %334 = vadd.xlane.f32.xlu0 %v333
      %v335 = vpop.xlane.xlu0 %334
      %v336 = vsel %vm157, %v332, 0.0
      %337 = vadd.xlane.f32.xlu0 %v336
      %v338 = vpop.xlane.xlu0 %337
      %v339 = vrcp.pop %v335
      %v340 = vrcp.pop %v338
      %v341 = vmul.f32 %v330, %v339
      %v342 = vmul.f32 %v332, %v340
      %v343 = vpack.c.bf16 %v342, %v341
      %344 = vrot.lane.b32.xlu0 %v294, 48
      %v345 = vpop.permute.xlu0 %344
      %v348 = vsel %vm157, %v343, 0
      %350 = vmatpush.bf16.msra.mxu0 0
      %351 = vmatpush.bf16.msra.mxu0 0
      %352 = vmatpush.bf16.msra.mxu0 0
      %353 = vmatpush.bf16.msra.mxu0 0
      %354 = vmatpush.bf16.msra.mxu0 0
      %355 = vmatpush.bf16.msra.mxu0 0
      %356 = vmatpush.bf16.msra.mxu0 0
      %357 = vmatpush.bf16.msra.mxu0 %v345
      %358 = vmatmul.bf16.gmra.mxu0 %v348
      %v359 = vpop.f32.mrf.mxu0
      %v360 = vadd.f32 0.0, %v359
      %v361 = vpop.f32.mrf.mxu0
      %v362 = vadd.f32 0.0, %v361
      %363 = vdwg.mxu0
      %366 = vrot.lane.b32.xlu0 %v360, 16
      %v367 = vpop.permute.xlu0 %366
      %368 = vrot.lane.b32.xlu0 %v362, 16
      %v369 = vpop.permute.xlu0 %368
      %vm372 = vcmask 195712
      %373 = vst.msk [vmem:[%s116] sm:$0xff] %vm372, %v367
      %374 = vst.msk [vmem:[%s116 + $0x8] sm:$0xff] %vm372, %v369
      %v375 = vld [vmem:[%s111] sm:$0xff]
      %v376 = vld [vmem:[%s111 + $0x8] sm:$0xff]
      %v377 = vmul.f32 %v375, 0.35355338
      %v378 = vmul.f32 %v376, 0.35355338
      %v379 = vpack.c.bf16 %v378, %v377
      %v380 = vpack.c.bf16 %v376, %v375
      %382 = vrot.lane.b32.xlu0 %v379, 104
      %v383 = vpop.permute.xlu0 %382
      %385 = vrot.lane.b32.xlu0 %v380, 72
      %v386 = vpop.permute.xlu0 %385
      %v388 = vsel %vm136, %v383, 0
      %v391 = vsel %vm136, %v386, 0
      %393 = vmatpush.bf16.xpose.msra.mxu0 0
      %394 = vmatpush.bf16.xpose.msra.mxu0 0
      %395 = vmatpush.bf16.xpose.msra.mxu0 0
      %396 = vmatpush.bf16.xpose.msra.mxu0 0
      %397 = vmatpush.bf16.xpose.msra.mxu0 0
      %398 = vmatpush.bf16.xpose.msra.mxu0 0
      %399 = vmatpush.bf16.xpose.msra.mxu0 0
      %400 = vmatpush.bf16.xpose.msra.mxu0 %v391
      %401 = vmatmul.bf16.gmra.mxu0 %v388
      %v402 = vpop.f32.mrf.mxu0
      %v403 = vadd.f32 %v125, %v402
      %v404 = vpop.f32.mrf.mxu0
      %v405 = vadd.f32 %v126, %v404
      %406 = vdwg.mxu0
      %v407 = vsel %vm157, %v403, -inf
      %408 = vmax.xlane.f32.xlu0 %v407
      %v409 = vpop.xlane.xlu0 %408
      %v410 = vsel %vm157, %v405, -inf
      %411 = vmax.xlane.f32.xlu0 %v410
      %v412 = vpop.xlane.xlu0 %411
      %v413 = vsub.f32 %v403, %v409
      %v414 = vsub.f32 %v405, %v412
      %v415 = vmul.f32 %v413, 1.442695
      %v416 = vpow.pop %v415
      %v417 = vmul.f32 %v414, 1.442695
      %v418 = vpow.pop %v417
      %v419 = vsel %vm157, %v416, 0.0
      %420 = vadd.xlane.f32.xlu0 %v419
      %v421 = vpop.xlane.xlu0 %420
      %v422 = vsel %vm157, %v418, 0.0
      %423 = vadd.xlane.f32.xlu0 %v422
      %v424 = vpop.xlane.xlu0 %423
      %v425 = vrcp.pop %v421
      %v426 = vrcp.pop %v424
      %v427 = vmul.f32 %v416, %v425
      %v428 = vmul.f32 %v418, %v426
      %v429 = vpack.c.bf16 %v428, %v427
      %430 = vrot.lane.b32.xlu0 %v380, 40
      %v431 = vpop.permute.xlu0 %430
      %v434 = vsel %vm157, %v429, 0
      %436 = vmatpush.bf16.msra.mxu0 0
      %437 = vmatpush.bf16.msra.mxu0 0
      %438 = vmatpush.bf16.msra.mxu0 0
      %439 = vmatpush.bf16.msra.mxu0 0
      %440 = vmatpush.bf16.msra.mxu0 0
      %441 = vmatpush.bf16.msra.mxu0 0
      %442 = vmatpush.bf16.msra.mxu0 0
      %443 = vmatpush.bf16.msra.mxu0 %v431
      %444 = vmatmul.bf16.gmra.mxu0 %v434
      %v445 = vpop.f32.mrf.mxu0
      %v446 = vadd.f32 0.0, %v445
      %v447 = vpop.f32.mrf.mxu0
      %v448 = vadd.f32 0.0, %v447
      %449 = vdwg.mxu0
      %452 = vrot.lane.b32.xlu0 %v446, 24
      %v453 = vpop.permute.xlu0 %452
      %454 = vrot.lane.b32.xlu0 %v448, 24
      %v455 = vpop.permute.xlu0 %454
      %vm458 = vcmask 261312
      %459 = vst.msk [vmem:[%s116] sm:$0xff] %vm458, %v453
      %460 = vst.msk [vmem:[%s116 + $0x8] sm:$0xff] %vm458, %v455
      %p461 = scmp.lt.s32.totalorder %s12, 1
      %s462 = scalar_select %p461, %s12, 1
      %s463 = smul.addr %s462, 2
      %s464 = smul.addr %s463, 8
      %s465 = scalar_lea.vmem %s1, %s464
      // Predicated region
      $region25: #{transformer_d_forward.34} parent=23 // pred_check
        %p466 = pneg %p56
      $region26: #{transformer_d_forward.34} parent=23 // pred_check_branch
        %468 = sbr.rel (%p466) target = $region28
      $region27: #{transformer_d_forward.34} parent=23 // pred_region
        _
      $region28: #{transformer_d_forward.34} parent=23 // pred_fallthru
        _
    $region24: #{transformer_d_forward.34} parent=5 // pred_fallthru
      _
    %p469 = scmp.le.s32.totalorder 2, %s7
    // Predicated region
    $region29: #{transformer_d_forward.34} parent=5 // pred_check
      %p470 = pneg %p469
    $region30: #{transformer_d_forward.34} parent=5 // pred_check_branch
      %472 = sbr.rel (%p470) target = $region32
    $region31: #{transformer_d_forward.34} parent=5 // pred_region
      %s473 = ssub.s32 %s7, 2
      // Predicated region
      $region33: #{transformer_d_forward.34} parent=31 // pred_check
        %p474 = pneg %p62
      $region34: #{transformer_d_forward.34} parent=31 // pred_check_branch
        %476 = sbr.rel (%p474) target = $region36
      $region35: #{transformer_d_forward.34} parent=31 // pred_region
        %p477 = scmp.lt.s32.totalorder %s13, 1
        %s478 = scalar_select %p477, %s13, 1
        %s479 = smul.addr %s478, 2
        %s480 = smul.addr %s479, 8
        %s481 = scalar_lea.vmem %s1, %s480
      $region36: #{transformer_d_forward.34} parent=31 // pred_fallthru
        _
    $region32: #{transformer_d_forward.34} parent=5 // pred_fallthru
      _
  $region6: #{transformer_d_forward.34} parent=0 // loop_footer
    %s11 = sadd.s32 1, %s7
  $region7: #{transformer_d_forward.34} parent=0 // loop_footer_branch
    %6 = sbr.rel target = $region3
  $region8: #{transformer_d_forward.34} parent=0 // loop_exit
    _

// kernel: transformer_d_forward.36
$region0: #{transformer_d_forward.36}
  #allocation0 [shape = 'u32[]', space=smem, size = 0x4, offset = 0x4, fixed_abs, tag = 'smem constant byte address 0x4 - core index']
  #allocation1 [shape = 'u32[72,128]{1,0:T(1,128)}', space=vmem, size = 0x9000, scoped, tag = 'internal scratch']
  #allocation2 [shape = 'f32[16,32]{1,0:T(8,128)}', space=vmem, size = 0x2000, scoped, tag = 'scratch operand']
  %s0 = inlined_call_operand.vmem [shape: f32[32,32], index: 0, kind: input, shape index: {}]
  %s1 = inlined_call_operand.vmem [shape: bf16[32,32], index: 1, kind: input, shape index: {}]
  %s2 = inlined_call_operand.vmem [shape: f32[1,32], index: 2, kind: input, shape index: {}]
  %s3 = inlined_call_operand.vmem [shape: f32[32,32], index: 3, kind: output, shape index: {}]
  %s4 = sld [smem:[#allocation0]]
  $region53: #{transformer_d_forward.36} parent=0
    _
  %s6 = ssub.s32 1, %s4
  %s7 = scalar_select 0, %s6, %s4
  loop: start=0, step=1, limit=4
  $region2: #{transformer_d_forward.36} parent=0 // loop_pre_header
    _
  $region3: #{transformer_d_forward.36} parent=0 // loop_header
    %s9 = sphi 0, %s13
    %p10 = scmp.ge.s32.totalorder %s9, 4
    %s16 = sphi 0, %s35
    %s17 = sphi 0, %s31
    %s18 = sphi 0, %s27
    %s19 = sphi 0, %s16
    %s20 = sphi 0, %s17
    %s21 = sphi 0, %s18
    %s22 = sphi 0, %s19
    %s23 = sphi 0, %s20
    %s24 = sphi 0, %s21
    %s40 = sphi 0, %s42
    %s43 = sphi 0, %s40
    %s44 = sphi 0, %s43
    %s60 = sphi 0, %s44
    %s68 = sphi 0, %s70
    %s71 = sphi 0, %s68
    %s72 = sphi 0, %s71
    %s88 = sphi 0, %s72
    %s94 = sphi 0, %s96
    %s97 = sphi 0, %s94
    %s98 = sphi 0, %s97
    %s114 = sphi 0, %s98
    %s122 = sphi 0, %s124
    %s125 = sphi 0, %s122
    %s126 = sphi 0, %s125
    %s142 = sphi 0, %s126
  $region4: #{transformer_d_forward.36} parent=0 // loop_header_branch
    %12 = sbr.rel (%p10) target = $region8
  $region5: #{transformer_d_forward.36} parent=0 // loop_body
    %s14 = ssub.s32 %s9, 1
    %s15 = ssub.s32 %s9, 2
    %s25 = sadd.s32 1, %s18
    %p26 = scmp.ge.s32.totalorder %s25, 1
    %s27 = scalar_select %p26, 0, %s25
    %s28 = sadd.s32 1, %s17
    %s29 = scalar_select %p26, %s28, %s17
    %p30 = scmp.ge.s32.totalorder %s29, 1
    %s31 = scalar_select %p30, 0, %s29
    %s32 = sadd.s32 1, %s16
    %s33 = scalar_select %p30, %s32, %s16
    %p34 = scmp.ge.s32.totalorder %s33, 2
    %s35 = scalar_select %p34, 0, %s33
    %s36 = ssub.s32 %s16, %s35
    %s37 = ssub.s32 %s18, %s27
    %s38 = sor.u32 %s36, %s37
    %p39 = scmp.eq.s32.totalorder %s38, 0
    %s41 = sadd.s32 %s40, 1
    %s42 = scalar_select %p39, %s40, %s41
    %p45 = pneg %p39
    %p46 = scmp.eq.s32.totalorder %s9, 1
    %p47 = por %p45, %p46
    %p48 = scmp.ne.s32.totalorder %s40, %s43
    %p49 = scmp.eq.s32.totalorder %s9, 0
    %p50 = por %p48, %p49
    %p51 = scmp.ne.s32.totalorder %s40, %s43
    %p52 = scmp.eq.s32.totalorder %s14, 1
    %p53 = por %p51, %p52
    %p54 = scmp.ne.s32.totalorder %s43, %s44
    %p55 = scmp.eq.s32.totalorder %s14, 0
    %p56 = por %p54, %p55
    %p57 = scmp.ne.s32.totalorder %s43, %s44
    %p58 = scmp.eq.s32.totalorder %s15, 1
    %p59 = por %p57, %p58
    %p61 = scmp.ne.s32.totalorder %s44, %s60
    %p62 = scmp.eq.s32.totalorder %s15, 0
    %p63 = por %p61, %p62
    %s64 = ssub.s32 %s18, %s27
    %s65 = ssub.s32 %s17, %s31
    %s66 = sor.u32 %s64, %s65
    %p67 = scmp.eq.s32.totalorder %s66, 0
    %s69 = sadd.s32 %s68, 1
    %s70 = scalar_select %p67, %s68, %s69
    %p73 = pneg %p67
    %p74 = scmp.eq.s32.totalorder %s9, 1
    %p75 = por %p73, %p74
    %p76 = scmp.ne.s32.totalorder %s68, %s71
    %p77 = scmp.eq.s32.totalorder %s9, 0
    %p78 = por %p76, %p77
    %p79 = scmp.ne.s32.totalorder %s68, %s71
    %p80 = scmp.eq.s32.totalorder %s14, 1
    %p81 = por %p79, %p80
    %p82 = scmp.ne.s32.totalorder %s71, %s72
    %p83 = scmp.eq.s32.totalorder %s14, 0
    %p84 = por %p82, %p83
    %p85 = scmp.ne.s32.totalorder %s71, %s72
    %p86 = scmp.eq.s32.totalorder %s15, 1
    %p87 = por %p85, %p86
    %p89 = scmp.ne.s32.totalorder %s72, %s88
    %p90 = scmp.eq.s32.totalorder %s15, 0
    %p91 = por %p89, %p90
    %s92 = ssub.s32 %s17, %s31
    %p93 = scmp.eq.s32.totalorder %s92, 0
    %s95 = sadd.s32 %s94, 1
    %s96 = scalar_select %p93, %s94, %s95
    %p99 = pneg %p93
    %p100 = scmp.eq.s32.totalorder %s9, 1
    %p101 = por %p99, %p100
    %p102 = scmp.ne.s32.totalorder %s94, %s97
    %p103 = scmp.eq.s32.totalorder %s9, 0
    %p104 = por %p102, %p103
    %p105 = scmp.ne.s32.totalorder %s94, %s97
    %p106 = scmp.eq.s32.totalorder %s14, 1
    %p107 = por %p105, %p106
    %p108 = scmp.ne.s32.totalorder %s97, %s98
    %p109 = scmp.eq.s32.totalorder %s14, 0
    %p110 = por %p108, %p109
    %p111 = scmp.ne.s32.totalorder %s97, %s98
    %p112 = scmp.eq.s32.totalorder %s15, 1
    %p113 = por %p111, %p112
    %p115 = scmp.ne.s32.totalorder %s98, %s114
    %p116 = scmp.eq.s32.totalorder %s15, 0
    %p117 = por %p115, %p116
    %s118 = ssub.s32 %s16, %s35
    %s119 = ssub.s32 %s17, %s31
    %s120 = sor.u32 %s118, %s119
    %p121 = scmp.eq.s32.totalorder %s120, 0
    %s123 = sadd.s32 %s122, 1
    %s124 = scalar_select %p121, %s122, %s123
    %p127 = pneg %p121
    %p128 = scmp.eq.s32.totalorder %s9, 1
    %p129 = por %p127, %p128
    %p130 = scmp.ne.s32.totalorder %s122, %s125
    %p131 = scmp.eq.s32.totalorder %s9, 0
    %p132 = por %p130, %p131
    %p133 = scmp.ne.s32.totalorder %s122, %s125
    %p134 = scmp.eq.s32.totalorder %s14, 1
    %p135 = por %p133, %p134
    %p136 = scmp.ne.s32.totalorder %s125, %s126
    %p137 = scmp.eq.s32.totalorder %s14, 0
    %p138 = por %p136, %p137
    %p139 = scmp.ne.s32.totalorder %s125, %s126
    %p140 = scmp.eq.s32.totalorder %s15, 1
    %p141 = por %p139, %p140
    %p143 = scmp.ne.s32.totalorder %s126, %s142
    %p144 = scmp.eq.s32.totalorder %s15, 0
    %p145 = por %p143, %p144
    %p146 = scmp.le.s32.totalorder 1, %s9
    %p147 = scmp.lt.s32.totalorder %s9, 3
    %p148 = pnand %p146, %p147
    %p149 = pneg %p148
    // Predicated region
    $region9: #{transformer_d_forward.36} parent=5 // pred_check
      _
    $region10: #{transformer_d_forward.36} parent=5 // pred_check_branch
      %151 = sbr.rel (%p148) target = $region12
    $region11: #{transformer_d_forward.36} parent=5 // pred_region
      %s152 = ssub.s32 %s9, 1
      // Predicated region
      $region13: #{transformer_d_forward.36} parent=11 // pred_check
        %p153 = pneg %p84
      $region14: #{transformer_d_forward.36} parent=11 // pred_check_branch
        %155 = sbr.rel (%p153) target = $region16
      $region15: #{transformer_d_forward.36} parent=11 // pred_region
        %s156 = smul.u32 4, %s21
        %p157 = scmp.lt.s32.totalorder %s156, 3
        %s158 = scalar_select %p157, %s156, 3
        %p159 = scmp.lt.s32.totalorder %s20, 0
        %s160 = scalar_select %p159, %s20, 0
        %s161 = sadd.s32 %s160, %s158
        %s162 = smul.addr %s161, 4
        %s163 = scalar_lea.vmem %s1, %s162
        %s164 = smul.u32 4, %s21
      $region16: #{transformer_d_forward.36} parent=11 // pred_fallthru
        _
      // Predicated region
      $region17: #{transformer_d_forward.36} parent=11 // pred_check
        %p165 = pneg %p110
      $region18: #{transformer_d_forward.36} parent=11 // pred_check_branch
        %167 = sbr.rel (%p165) target = $region20
      $region19: #{transformer_d_forward.36} parent=11 // pred_region
        %p168 = scmp.lt.s32.totalorder %s20, 0
        %s169 = scalar_select %p168, %s20, 0
        %s170 = scalar_lea.vmem %s2, %s169
      $region20: #{transformer_d_forward.36} parent=11 // pred_fallthru
        _
    $region12: #{transformer_d_forward.36} parent=5 // pred_fallthru
      _
    %p171 = scmp.lt.s32.totalorder %s9, 2
    // Predicated region
    $region21: #{transformer_d_forward.36} parent=5 // pred_check
      %p172 = pneg %p171
    $region22: #{transformer_d_forward.36} parent=5 // pred_check_branch
      %174 = sbr.rel (%p172) target = $region24
    $region23: #{transformer_d_forward.36} parent=5 // pred_region
      // Predicated region
      $region25: #{transformer_d_forward.36} parent=23 // pred_check
        %p175 = pneg %p50
      $region26: #{transformer_d_forward.36} parent=23 // pred_check_branch
        %177 = sbr.rel (%p175) target = $region28
      $region27: #{transformer_d_forward.36} parent=23 // pred_region
        %s178 = smul.u32 2, %s16
        %p179 = scmp.lt.s32.totalorder %s178, 3
        %s180 = scalar_select %p179, %s178, 3
        %p181 = scmp.lt.s32.totalorder %s18, 0
        %s182 = scalar_select %p181, %s18, 0
        %s183 = sadd.s32 %s182, %s180
        %s184 = smul.addr %s183, 8
        %s185 = scalar_lea.vmem %s0, %s184
        %s186 = smul.u32 2, %s16
      $region28: #{transformer_d_forward.36} parent=23 // pred_fallthru
        _
    $region24: #{transformer_d_forward.36} parent=5 // pred_fallthru
      _
    %p187 = scmp.le.s32.totalorder 1, %s9
    %p188 = scmp.lt.s32.totalorder %s9, 3
    %p189 = pnand %p187, %p188
    %p190 = pneg %p189
    // Predicated region
    $region29: #{transformer_d_forward.36} parent=5 // pred_check
      _
    $region30: #{transformer_d_forward.36} parent=5 // pred_check_branch
      %192 = sbr.rel (%p189) target = $region32
    $region31: #{transformer_d_forward.36} parent=5 // pred_region
      %s193 = ssub.s32 %s9, 1
      %s194 = smul.u32 2, %s19
      %p195 = scmp.lt.s32.totalorder %s194, 3
      %s196 = scalar_select %p195, %s194, 3
      %p197 = scmp.lt.s32.totalorder %s21, 0
      %s198 = scalar_select %p197, %s21, 0
      %s199 = sadd.s32 %s198, %s196
      %s200 = smul.addr %s199, 8
      %s201 = scalar_lea.vmem %s0, %s200
      %p202 = pneg %p56
      %p203 = pneg %p53
      %s204 = smul.u32 4, %s21
      %p205 = scmp.lt.s32.totalorder %s204, 3
      %s206 = scalar_select %p205, %s204, 3
      %p207 = scmp.lt.s32.totalorder %s20, 0
      %s208 = scalar_select %p207, %s20, 0
      %s209 = sadd.s32 %s208, %s206
      %s210 = smul.addr %s209, 4
      %s211 = scalar_lea.vmem %s1, %s210
      %p212 = pneg %p84
      %p213 = pneg %p81
      %p214 = scmp.lt.s32.totalorder %s20, 0
      %s215 = scalar_select %p214, %s20, 0
      %s216 = scalar_lea.vmem %s2, %s215
      %p217 = pneg %p110
      %p218 = pneg %p107
      %p219 = pneg %p138
      %p220 = pneg %p135
      %s221 = smul.u32 2, %s19
      %p222 = scmp.lt.s32.totalorder %s221, 3
      %s223 = scalar_select %p222, %s221, 3
      %p224 = scmp.lt.s32.totalorder %s20, 0
      %s225 = scalar_select %p224, %s20, 0
      %s226 = sadd.s32 %s225, %s223
      %s227 = smul.addr %s226, 8
      %s228 = scalar_lea.vmem %s3, %s227
      %s229 = smul.u32 2, %s19
      %p230 = scmp.lt.s32.totalorder %s229, 3
      %s231 = scalar_select %p230, %s229, 3
      %p232 = scmp.lt.s32.totalorder %s21, 0
      %s233 = scalar_select %p232, %s21, 0
      %s234 = sadd.s32 %s233, %s231
      %s235 = smul.addr %s234, 8
      %s236 = scalar_lea.vmem %s0, %s235
      %s237 = smul.u32 2, %s19
      %s238 = smul.u32 4, %s21
      %p239 = scmp.lt.s32.totalorder %s238, 3
      %s240 = scalar_select %p239, %s238, 3
      %p241 = scmp.lt.s32.totalorder %s20, 0
      %s242 = scalar_select %p241, %s20, 0
      %s243 = sadd.s32 %s242, %s240
      %s244 = smul.addr %s243, 4
      %s245 = scalar_lea.vmem %s1, %s244
      %s246 = smul.u32 4, %s21
      %p247 = scmp.lt.s32.totalorder %s20, 0
      %s248 = scalar_select %p247, %s20, 0
      %s249 = scalar_lea.vmem %s2, %s248
      %s250 = smul.u32 2, %s19
      %p251 = scmp.lt.s32.totalorder %s250, 3
      %s252 = scalar_select %p251, %s250, 3
      %p253 = scmp.lt.s32.totalorder %s20, 0
      %s254 = scalar_select %p253, %s20, 0
      %s255 = sadd.s32 %s254, %s252
      %s256 = smul.addr %s255, 8
      %s257 = scalar_lea.vmem %s3, %s256
      %s258 = smul.u32 2, %s19
      %p260 = scmp.eq.s32.totalorder %s21, 0
      // Predicated region
      $region33: #{transformer_d_forward.36} parent=31 // pred_check
        %p261 = pneg %p260
      $region34: #{transformer_d_forward.36} parent=31 // pred_check_branch
        %263 = sbr.rel (%p261) target = $region36
      $region35: #{transformer_d_forward.36} parent=31 // pred_region
        %vm264 = vcmask 261120
        %265 = vst.msk [vmem:[#allocation2] sm:$0xff] %vm264, 0.0
        %266 = vst.msk [vmem:[#allocation2 + $0x8] sm:$0xff] %vm264, 0.0
      $region36: #{transformer_d_forward.36} parent=31 // pred_fallthru
        _
      %v267 = vld [vmem:[#allocation2] sm:$0xff]
      %v268 = vld [vmem:[#allocation2 + $0x8] sm:$0xff]
      %v269 = vld [vmem:[%s236] sm:$0xff]
      %v270 = vld [vmem:[%s236 + $0x8] sm:$0xff]
      %v271 = vpack.c.bf16 %v270, %v269
      %v272 = vld [vmem:[%s245] sm:$0xf]
      %v273 = vld [vmem:[%s245 + $0x4] sm:$0xf]
      %v274 = vld [vmem:[%s245 + $0x8] sm:$0xf]
      %v275 = vld [vmem:[%s245 + $0xc] sm:$0xf]
      %v280 = vunpack.c.l.b16 %v272
      %v281 = vunpack.c.l.b16 %v273
      %v282 = vunpack.c.l.b16 %v274
      %v283 = vunpack.c.l.b16 %v275
      %v284 = vpack.c.b16 %v281, %v280
      %v285 = vpack.c.b16 %v283, %v282
      %vm288 = vcmask 261120
      %v290 = vsel %vm288, %v271, 0
      %292 = vmatpush.bf16.msra.mxu0 0
      %293 = vmatpush.bf16.msra.mxu0 0
      %294 = vmatpush.bf16.msra.mxu0 0
      %295 = vmatpush.bf16.msra.mxu0 0
      %296 = vmatpush.bf16.msra.mxu0 0
      %297 = vmatpush.bf16.msra.mxu0 0
      %298 = vmatpush.bf16.msra.mxu0 %v285
      %299 = vmatpush.bf16.msra.mxu0 %v284
      %300 = vmatmul.bf16.gmra.mxu0 %v290
      %v301 = vpop.f32.mrf.mxu0
      %v302 = vadd.f32 0.0, %v301
      %v303 = vpop.f32.mrf.mxu0
      %v304 = vadd.f32 0.0, %v303
      %305 = vdwg.mxu0
      %v306 = vadd.f32 %v267, %v302
      %v307 = vadd.f32 %v268, %v304
      %308 = vst.msk [vmem:[#allocation2] sm:$0xff] %vm288, %v306
      %309 = vst.msk [vmem:[#allocation2 + $0x8] sm:$0xff] %vm288, %v307
      // Predicated region
      $region37: #{transformer_d_forward.36} parent=31 // pred_check
        %p310 = pneg %p260
      $region38: #{transformer_d_forward.36} parent=31 // pred_check_branch
        %312 = sbr.rel (%p310) target = $region40
      $region39: #{transformer_d_forward.36} parent=31 // pred_region
        %v313 = vld [vmem:[#allocation2] sm:$0xff]
        %v314 = vld [vmem:[#allocation2 + $0x8] sm:$0xff]
        %v315 = vld [vmem:[%s249] sm:$0x1]
        %v317 = vperm.slane %v315, 0
        %v319 = vadd.f32 %v313, %v317
        %v320 = vadd.f32 %v314, %v317
        %321 = vst.msk [vmem:[%s257] sm:$0xff] %vm288, %v319
        %322 = vst.msk [vmem:[%s257 + $0x8] sm:$0xff] %vm288, %v320
      $region40: #{transformer_d_forward.36} parent=31 // pred_fallthru
        _
      %s323 = smul.u32 2, %s19
      %p324 = scmp.lt.s32.totalorder %s323, 3
      %s325 = scalar_select %p324, %s323, 3
      %p326 = scmp.lt.s32.totalorder %s20, 0
      %s327 = scalar_select %p326, %s20, 0
      %s328 = sadd.s32 %s327, %s325
      %s329 = smul.addr %s328, 8
      %s330 = scalar_lea.vmem %s3, %s329
      // Predicated region
      $region41: #{transformer_d_forward.36} parent=31 // pred_check
        %p331 = pneg %p135
      $region42: #{transformer_d_forward.36} parent=31 // pred_check_branch
        %333 = sbr.rel (%p331) target = $region44
      $region43: #{transformer_d_forward.36} parent=31 // pred_region
        %s334 = smul.u32 2, %s19
      $region44: #{transformer_d_forward.36} parent=31 // pred_fallthru
        _
    $region32: #{transformer_d_forward.36} parent=5 // pred_fallthru
      _
    %p335 = scmp.le.s32.totalorder 2, %s9
    // Predicated region
    $region45: #{transformer_d_forward.36} parent=5 // pred_check
      %p336 = pneg %p335
    $region46: #{transformer_d_forward.36} parent=5 // pred_check_branch
      %338 = sbr.rel (%p336) target = $region48
    $region47: #{transformer_d_forward.36} parent=5 // pred_region
      %s339 = ssub.s32 %s9, 2
      // Predicated region
      $region49: #{transformer_d_forward.36} parent=47 // pred_check
        %p340 = pneg %p141
      $region50: #{transformer_d_forward.36} parent=47 // pred_check_branch
        %342 = sbr.rel (%p340) target = $region52
      $region51: #{transformer_d_forward.36} parent=47 // pred_region
        %s343 = smul.u32 2, %s22
        %p344 = scmp.lt.s32.totalorder %s343, 3
        %s345 = scalar_select %p344, %s343, 3
        %p346 = scmp.lt.s32.totalorder %s23, 0
        %s347 = scalar_select %p346, %s23, 0
        %s348 = sadd.s32 %s347, %s345
        %s349 = smul.addr %s348, 8
        %s350 = scalar_lea.vmem %s3, %s349
      $region52: #{transformer_d_forward.36} parent=47 // pred_fallthru
        _
    $region48: #{transformer_d_forward.36} parent=5 // pred_fallthru
      _
  $region6: #{transformer_d_forward.36} parent=0 // loop_footer
    %s13 = sadd.s32 1, %s9
  $region7: #{transformer_d_forward.36} parent=0 // loop_footer_branch
    %8 = sbr.rel target = $region3
  $region8: #{transformer_d_forward.36} parent=0 // loop_exit
    _

// kernel: transformer_d_forward.35
$region0: #{transformer_d_forward.35}
  #allocation0 [shape = 'u32[]', space=smem, size = 0x4, offset = 0x4, fixed_abs, tag = 'smem constant byte address 0x4 - core index']
  #allocation1 [shape = 'u32[72,128]{1,0:T(1,128)}', space=vmem, size = 0x9000, scoped, tag = 'internal scratch']
  #allocation2 [shape = 'f32[16,32]{1,0:T(8,128)}', space=vmem, size = 0x2000, scoped, tag = 'scratch operand']
  %s0 = inlined_call_operand.vmem [shape: f32[32,32], index: 0, kind: input, shape index: {}]
  %s1 = inlined_call_operand.vmem [shape: bf16[32,32], index: 1, kind: input, shape index: {}]
  %s2 = inlined_call_operand.vmem [shape: f32[1,32], index: 2, kind: input, shape index: {}]
  %s3 = inlined_call_operand.vmem [shape: f32[32,32], index: 3, kind: input, shape index: {}]
  %s4 = inlined_call_operand.vmem [shape: f32[1,32], index: 4, kind: input, shape index: {}]
  %s5 = inlined_call_operand.vmem [shape: f32[1,32], index: 5, kind: input, shape index: {}]
  %s6 = inlined_call_operand.vmem [shape: f32[32,32], index: 6, kind: output, shape index: {}]
  %s7 = sld [smem:[#allocation0]]
  $region65: #{transformer_d_forward.35} parent=0
    _
  %s9 = ssub.s32 1, %s7
  %s10 = scalar_select 0, %s9, %s7
  loop: start=0, step=1, limit=4
  $region2: #{transformer_d_forward.35} parent=0 // loop_pre_header
    _
  $region3: #{transformer_d_forward.35} parent=0 // loop_header
    %s12 = sphi 0, %s16
    %p13 = scmp.ge.s32.totalorder %s12, 4
    %s19 = sphi 0, %s31
    %s20 = sphi 0, %s27
    %s21 = sphi 0, %s19
    %s22 = sphi 0, %s20
    %s23 = sphi 0, %s21
    %s24 = sphi 0, %s22
    %s36 = sphi 0, %s38
    %s39 = sphi 0, %s36
    %s40 = sphi 0, %s39
    %s56 = sphi 0, %s40
    %s62 = sphi 0, %s64
    %s65 = sphi 0, %s62
    %s66 = sphi 0, %s65
    %s82 = sphi 0, %s66
    %s86 = sphi 0, %s86
    %s88 = sphi 0, %s86
    %s89 = sphi 0, %s88
    %s103 = sphi 0, %s89
    %s109 = sphi 0, %s111
    %s112 = sphi 0, %s109
    %s113 = sphi 0, %s112
    %s129 = sphi 0, %s113
    %s133 = sphi 0, %s133
    %s135 = sphi 0, %s133
    %s136 = sphi 0, %s135
    %s150 = sphi 0, %s136
    %s154 = sphi 0, %s154
    %s156 = sphi 0, %s154
    %s157 = sphi 0, %s156
    %s171 = sphi 0, %s157
    %s177 = sphi 0, %s179
    %s180 = sphi 0, %s177
    %s181 = sphi 0, %s180
    %s197 = sphi 0, %s181
  $region4: #{transformer_d_forward.35} parent=0 // loop_header_branch
    %15 = sbr.rel (%p13) target = $region8
  $region5: #{transformer_d_forward.35} parent=0 // loop_body
    %s17 = ssub.s32 %s12, 1
    %s18 = ssub.s32 %s12, 2
    %s25 = sadd.s32 1, %s20
    %p26 = scmp.ge.s32.totalorder %s25, 1
    %s27 = scalar_select %p26, 0, %s25
    %s28 = sadd.s32 1, %s19
    %s29 = scalar_select %p26, %s28, %s19
    %p30 = scmp.ge.s32.totalorder %s29, 2
    %s31 = scalar_select %p30, 0, %s29
    %s32 = ssub.s32 %s19, %s31
    %s33 = ssub.s32 %s20, %s27
    %s34 = sor.u32 %s32, %s33
    %p35 = scmp.eq.s32.totalorder %s34, 0
    %s37 = sadd.s32 %s36, 1
    %s38 = scalar_select %p35, %s36, %s37
    %p41 = pneg %p35
    %p42 = scmp.eq.s32.totalorder %s12, 1
    %p43 = por %p41, %p42
    %p44 = scmp.ne.s32.totalorder %s36, %s39
    %p45 = scmp.eq.s32.totalorder %s12, 0
    %p46 = por %p44, %p45
    %p47 = scmp.ne.s32.totalorder %s36, %s39
    %p48 = scmp.eq.s32.totalorder %s17, 1
    %p49 = por %p47, %p48
    %p50 = scmp.ne.s32.totalorder %s39, %s40
    %p51 = scmp.eq.s32.totalorder %s17, 0
    %p52 = por %p50, %p51
    %p53 = scmp.ne.s32.totalorder %s39, %s40
    %p54 = scmp.eq.s32.totalorder %s18, 1
    %p55 = por %p53, %p54
    %p57 = scmp.ne.s32.totalorder %s40, %s56
    %p58 = scmp.eq.s32.totalorder %s18, 0
    %p59 = por %p57, %p58
    %s60 = ssub.s32 %s20, %s27
    %p61 = scmp.eq.s32.totalorder %s60, 0
    %s63 = sadd.s32 %s62, 1
    %s64 = scalar_select %p61, %s62, %s63
    %p67 = pneg %p61
    %p68 = scmp.eq.s32.totalorder %s12, 1
    %p69 = por %p67, %p68
    %p70 = scmp.ne.s32.totalorder %s62, %s65
    %p71 = scmp.eq.s32.totalorder %s12, 0
    %p72 = por %p70, %p71
    %p73 = scmp.ne.s32.totalorder %s62, %s65
    %p74 = scmp.eq.s32.totalorder %s17, 1
    %p75 = por %p73, %p74
    %p76 = scmp.ne.s32.totalorder %s65, %s66
    %p77 = scmp.eq.s32.totalorder %s17, 0
    %p78 = por %p76, %p77
    %p79 = scmp.ne.s32.totalorder %s65, %s66
    %p80 = scmp.eq.s32.totalorder %s18, 1
    %p81 = por %p79, %p80
    %p83 = scmp.ne.s32.totalorder %s66, %s82
    %p84 = scmp.eq.s32.totalorder %s18, 0
    %p85 = por %p83, %p84
    %s87 = sadd.s32 %s86, 1
    %p90 = scmp.eq.s32.totalorder %s12, 1
    %p91 = scmp.ne.s32.totalorder %s86, %s88
    %p92 = scmp.eq.s32.totalorder %s12, 0
    %p93 = por %p91, %p92
    %p94 = scmp.ne.s32.totalorder %s86, %s88
    %p95 = scmp.eq.s32.totalorder %s17, 1
    %p96 = por %p94, %p95
    %p97 = scmp.ne.s32.totalorder %s88, %s89
    %p98 = scmp.eq.s32.totalorder %s17, 0
    %p99 = por %p97, %p98
    %p100 = scmp.ne.s32.totalorder %s88, %s89
    %p101 = scmp.eq.s32.totalorder %s18, 1
    %p102 = por %p100, %p101
    %p104 = scmp.ne.s32.totalorder %s89, %s103
    %p105 = scmp.eq.s32.totalorder %s18, 0
    %p106 = por %p104, %p105
    %s107 = ssub.s32 %s19, %s31
    %p108 = scmp.eq.s32.totalorder %s107, 0
    %s110 = sadd.s32 %s109, 1
    %s111 = scalar_select %p108, %s109, %s110
    %p114 = pneg %p108
    %p115 = scmp.eq.s32.totalorder %s12, 1
    %p116 = por %p114, %p115
    %p117 = scmp.ne.s32.totalorder %s109, %s112
    %p118 = scmp.eq.s32.totalorder %s12, 0
    %p119 = por %p117, %p118
    %p120 = scmp.ne.s32.totalorder %s109, %s112
    %p121 = scmp.eq.s32.totalorder %s17, 1
    %p122 = por %p120, %p121
    %p123 = scmp.ne.s32.totalorder %s112, %s113
    %p124 = scmp.eq.s32.totalorder %s17, 0
    %p125 = por %p123, %p124
    %p126 = scmp.ne.s32.totalorder %s112, %s113
    %p127 = scmp.eq.s32.totalorder %s18, 1
    %p128 = por %p126, %p127
    %p130 = scmp.ne.s32.totalorder %s113, %s129
    %p131 = scmp.eq.s32.totalorder %s18, 0
    %p132 = por %p130, %p131
    %s134 = sadd.s32 %s133, 1
    %p137 = scmp.eq.s32.totalorder %s12, 1
    %p138 = scmp.ne.s32.totalorder %s133, %s135
    %p139 = scmp.eq.s32.totalorder %s12, 0
    %p140 = por %p138, %p139
    %p141 = scmp.ne.s32.totalorder %s133, %s135
    %p142 = scmp.eq.s32.totalorder %s17, 1
    %p143 = por %p141, %p142
    %p144 = scmp.ne.s32.totalorder %s135, %s136
    %p145 = scmp.eq.s32.totalorder %s17, 0
    %p146 = por %p144, %p145
    %p147 = scmp.ne.s32.totalorder %s135, %s136
    %p148 = scmp.eq.s32.totalorder %s18, 1
    %p149 = por %p147, %p148
    %p151 = scmp.ne.s32.totalorder %s136, %s150
    %p152 = scmp.eq.s32.totalorder %s18, 0
    %p153 = por %p151, %p152
    %s155 = sadd.s32 %s154, 1
    %p158 = scmp.eq.s32.totalorder %s12, 1
    %p159 = scmp.ne.s32.totalorder %s154, %s156
    %p160 = scmp.eq.s32.totalorder %s12, 0
    %p161 = por %p159, %p160
    %p162 = scmp.ne.s32.totalorder %s154, %s156
    %p163 = scmp.eq.s32.totalorder %s17, 1
    %p164 = por %p162, %p163
    %p165 = scmp.ne.s32.totalorder %s156, %s157
    %p166 = scmp.eq.s32.totalorder %s17, 0
    %p167 = por %p165, %p166
    %p168 = scmp.ne.s32.totalorder %s156, %s157
    %p169 = scmp.eq.s32.totalorder %s18, 1
    %p170 = por %p168, %p169
    %p172 = scmp.ne.s32.totalorder %s157, %s171
    %p173 = scmp.eq.s32.totalorder %s18, 0
    %p174 = por %p172, %p173
    %s175 = ssub.s32 %s19, %s31
    %p176 = scmp.eq.s32.totalorder %s175, 0
    %s178 = sadd.s32 %s177, 1
    %s179 = scalar_select %p176, %s177, %s178
    %p182 = pneg %p176
    %p183 = scmp.eq.s32.totalorder %s12, 1
    %p184 = por %p182, %p183
    %p185 = scmp.ne.s32.totalorder %s177, %s180
    %p186 = scmp.eq.s32.totalorder %s12, 0
    %p187 = por %p185, %p186
    %p188 = scmp.ne.s32.totalorder %s177, %s180
    %p189 = scmp.eq.s32.totalorder %s17, 1
    %p190 = por %p188, %p189
    %p191 = scmp.ne.s32.totalorder %s180, %s181
    %p192 = scmp.eq.s32.totalorder %s17, 0
    %p193 = por %p191, %p192
    %p194 = scmp.ne.s32.totalorder %s180, %s181
    %p195 = scmp.eq.s32.totalorder %s18, 1
    %p196 = por %p194, %p195
    %p198 = scmp.ne.s32.totalorder %s181, %s197
    %p199 = scmp.eq.s32.totalorder %s18, 0
    %p200 = por %p198, %p199
    %p201 = scmp.le.s32.totalorder 1, %s12
    %p202 = scmp.lt.s32.totalorder %s12, 3
    %p203 = pnand %p201, %p202
    %p204 = pneg %p203
    // Predicated region
    $region9: #{transformer_d_forward.35} parent=5 // pred_check
      _
    $region10: #{transformer_d_forward.35} parent=5 // pred_check_branch
      %206 = sbr.rel (%p203) target = $region12
    $region11: #{transformer_d_forward.35} parent=5 // pred_region
      %s207 = ssub.s32 %s12, 1
      // Predicated region
      $region13: #{transformer_d_forward.35} parent=11 // pred_check
        %p208 = pneg %p78
      $region14: #{transformer_d_forward.35} parent=11 // pred_check_branch
        %210 = sbr.rel (%p208) target = $region16
      $region15: #{transformer_d_forward.35} parent=11 // pred_region
        %s211 = smul.u32 4, %s22
        %p212 = scmp.lt.s32.totalorder %s211, 3
        %s213 = scalar_select %p212, %s211, 3
        %s214 = smul.addr %s213, 4
        %s215 = scalar_lea.vmem %s1, %s214
        %s216 = smul.u32 4, %s22
      $region16: #{transformer_d_forward.35} parent=11 // pred_fallthru
        _
      // Predicated region
      $region17: #{transformer_d_forward.35} parent=11 // pred_check
        %p217 = pneg %p99
      $region18: #{transformer_d_forward.35} parent=11 // pred_check_branch
        %219 = sbr.rel (%p217) target = $region20
      $region19: #{transformer_d_forward.35} parent=11 // pred_region
        _
      $region20: #{transformer_d_forward.35} parent=11 // pred_fallthru
        _
      // Predicated region
      $region21: #{transformer_d_forward.35} parent=11 // pred_check
        %p220 = pneg %p146
      $region22: #{transformer_d_forward.35} parent=11 // pred_check_branch
        %222 = sbr.rel (%p220) target = $region24
      $region23: #{transformer_d_forward.35} parent=11 // pred_region
        _
      $region24: #{transformer_d_forward.35} parent=11 // pred_fallthru
        _
      // Predicated region
      $region25: #{transformer_d_forward.35} parent=11 // pred_check
        %p223 = pneg %p167
      $region26: #{transformer_d_forward.35} parent=11 // pred_check_branch
        %225 = sbr.rel (%p223) target = $region28
      $region27: #{transformer_d_forward.35} parent=11 // pred_region
        _
      $region28: #{transformer_d_forward.35} parent=11 // pred_fallthru
        _
    $region12: #{transformer_d_forward.35} parent=5 // pred_fallthru
      _
    %p226 = scmp.lt.s32.totalorder %s12, 2
    // Predicated region
    $region29: #{transformer_d_forward.35} parent=5 // pred_check
      %p227 = pneg %p226
    $region30: #{transformer_d_forward.35} parent=5 // pred_check_branch
      %229 = sbr.rel (%p227) target = $region32
    $region31: #{transformer_d_forward.35} parent=5 // pred_region
      // Predicated region
      $region33: #{transformer_d_forward.35} parent=31 // pred_check
        %p230 = pneg %p46
      $region34: #{transformer_d_forward.35} parent=31 // pred_check_branch
        %232 = sbr.rel (%p230) target = $region36
      $region35: #{transformer_d_forward.35} parent=31 // pred_region
        %s233 = smul.u32 2, %s19
        %p234 = scmp.lt.s32.totalorder %s233, 3
        %s235 = scalar_select %p234, %s233, 3
        %p236 = scmp.lt.s32.totalorder %s20, 0
        %s237 = scalar_select %p236, %s20, 0
        %s238 = sadd.s32 %s237, %s235
        %s239 = smul.addr %s238, 8
        %s240 = scalar_lea.vmem %s0, %s239
        %s241 = smul.u32 2, %s19
      $region36: #{transformer_d_forward.35} parent=31 // pred_fallthru
        _
      // Predicated region
      $region37: #{transformer_d_forward.35} parent=31 // pred_check
        %p242 = pneg %p119
      $region38: #{transformer_d_forward.35} parent=31 // pred_check_branch
        %244 = sbr.rel (%p242) target = $region40
      $region39: #{transformer_d_forward.35} parent=31 // pred_region
        %s245 = smul.u32 2, %s19
        %p246 = scmp.lt.s32.totalorder %s245, 3
        %s247 = scalar_select %p246, %s245, 3
        %s248 = smul.addr %s247, 8
        %s249 = scalar_lea.vmem %s3, %s248
        %s250 = smul.u32 2, %s19
      $region40: #{transformer_d_forward.35} parent=31 // pred_fallthru
        _
    $region32: #{transformer_d_forward.35} parent=5 // pred_fallthru
      _
    %p251 = scmp.le.s32.totalorder 1, %s12
    %p252 = scmp.lt.s32.totalorder %s12, 3
    %p253 = pnand %p251, %p252
    %p254 = pneg %p253
    // Predicated region
    $region41: #{transformer_d_forward.35} parent=5 // pred_check
      _
    $region42: #{transformer_d_forward.35} parent=5 // pred_check_branch
      %256 = sbr.rel (%p253) target = $region44
    $region43: #{transformer_d_forward.35} parent=5 // pred_region
      %s257 = ssub.s32 %s12, 1
      %s258 = smul.u32 2, %s21
      %p259 = scmp.lt.s32.totalorder %s258, 3
      %s260 = scalar_select %p259, %s258, 3
      %p261 = scmp.lt.s32.totalorder %s22, 0
      %s262 = scalar_select %p261, %s22, 0
      %s263 = sadd.s32 %s262, %s260
      %s264 = smul.addr %s263, 8
      %s265 = scalar_lea.vmem %s0, %s264
      %p266 = pneg %p52
      %p267 = pneg %p49
      %s268 = smul.u32 4, %s22
      %p269 = scmp.lt.s32.totalorder %s268, 3
      %s270 = scalar_select %p269, %s268, 3
      %s271 = smul.addr %s270, 4
      %s272 = scalar_lea.vmem %s1, %s271
      %p273 = pneg %p78
      %p274 = pneg %p75
      %p275 = pneg %p99
      %p276 = pneg %p96
      %s277 = smul.u32 2, %s21
      %p278 = scmp.lt.s32.totalorder %s277, 3
      %s279 = scalar_select %p278, %s277, 3
      %s280 = smul.addr %s279, 8
      %s281 = scalar_lea.vmem %s3, %s280
      %p282 = pneg %p125
      %p283 = pneg %p122
      %p284 = pneg %p146
      %p285 = pneg %p143
      %p286 = pneg %p167
      %p287 = pneg %p164
      %p288 = pneg %p193
      %p289 = pneg %p190
      %s290 = smul.u32 2, %s21
      %p291 = scmp.lt.s32.totalorder %s290, 3
      %s292 = scalar_select %p291, %s290, 3
      %s293 = smul.addr %s292, 8
      %s294 = scalar_lea.vmem %s6, %s293
      %s295 = smul.u32 2, %s21
      %p296 = scmp.lt.s32.totalorder %s295, 3
      %s297 = scalar_select %p296, %s295, 3
      %p298 = scmp.lt.s32.totalorder %s22, 0
      %s299 = scalar_select %p298, %s22, 0
      %s300 = sadd.s32 %s299, %s297
      %s301 = smul.addr %s300, 8
      %s302 = scalar_lea.vmem %s0, %s301
      %s303 = smul.u32 2, %s21
      %s304 = smul.u32 4, %s22
      %p305 = scmp.lt.s32.totalorder %s304, 3
      %s306 = scalar_select %p305, %s304, 3
      %s307 = smul.addr %s306, 4
      %s308 = scalar_lea.vmem %s1, %s307
      %s309 = smul.u32 4, %s22
      %s310 = smul.u32 2, %s21
      %p311 = scmp.lt.s32.totalorder %s310, 3
      %s312 = scalar_select %p311, %s310, 3
      %s313 = smul.addr %s312, 8
      %s314 = scalar_lea.vmem %s3, %s313
      %s315 = smul.u32 2, %s21
      %s316 = smul.u32 2, %s21
      %p317 = scmp.lt.s32.totalorder %s316, 3
      %s318 = scalar_select %p317, %s316, 3
      %s319 = smul.addr %s318, 8
      %s320 = scalar_lea.vmem %s6, %s319
      %s321 = smul.u32 2, %s21
      %p323 = scmp.eq.s32.totalorder %s22, 0
      // Predicated region
      $region45: #{transformer_d_forward.35} parent=43 // pred_check
        %p324 = pneg %p323
      $region46: #{transformer_d_forward.35} parent=43 // pred_check_branch
        %326 = sbr.rel (%p324) target = $region48
      $region47: #{transformer_d_forward.35} parent=43 // pred_region
        %vm327 = vcmask 261120
        %328 = vst.msk [vmem:[#allocation2] sm:$0xff] %vm327, 0.0
        %329 = vst.msk [vmem:[#allocation2 + $0x8] sm:$0xff] %vm327, 0.0
      $region48: #{transformer_d_forward.35} parent=43 // pred_fallthru
        _
      %v330 = vld [vmem:[#allocation2] sm:$0xff]
      %v331 = vld [vmem:[#allocation2 + $0x8] sm:$0xff]
      %v332 = vld [vmem:[%s302] sm:$0xff]
      %v333 = vld [vmem:[%s302 + $0x8] sm:$0xff]
      %v334 = vpack.c.bf16 %v333, %v332
      %v335 = vld [vmem:[%s308] sm:$0xf]
      %v336 = vld [vmem:[%s308 + $0x4] sm:$0xf]
      %v337 = vld [vmem:[%s308 + $0x8] sm:$0xf]
      %v338 = vld [vmem:[%s308 + $0xc] sm:$0xf]
      %v343 = vunpack.c.l.b16 %v335
      %v344 = vunpack.c.l.b16 %v336
      %v345 = vunpack.c.l.b16 %v337
      %v346 = vunpack.c.l.b16 %v338
      %v347 = vpack.c.b16 %v344, %v343
      %v348 = vpack.c.b16 %v346, %v345
      %vm351 = vcmask 261120
      %v353 = vsel %vm351, %v334, 0
      %355 = vmatpush.bf16.msra.mxu0 0
      %356 = vmatpush.bf16.msra.mxu0 0
      %357 = vmatpush.bf16.msra.mxu0 0
      %358 = vmatpush.bf16.msra.mxu0 0
      %359 = vmatpush.bf16.msra.mxu0 0
      %360 = vmatpush.bf16.msra.mxu0 0
      %361 = vmatpush.bf16.msra.mxu0 %v348
      %362 = vmatpush.bf16.msra.mxu0 %v347
      %363 = vmatmul.bf16.gmra.mxu0 %v353
      %v364 = vpop.f32.mrf.mxu0
      %v365 = vadd.f32 0.0, %v364
      %v366 = vpop.f32.mrf.mxu0
      %v367 = vadd.f32 0.0, %v366
      %368 = vdwg.mxu0
      %v369 = vadd.f32 %v330, %v365
      %v370 = vadd.f32 %v331, %v367
      %371 = vst.msk [vmem:[#allocation2] sm:$0xff] %vm351, %v369
      %372 = vst.msk [vmem:[#allocation2 + $0x8] sm:$0xff] %vm351, %v370
      // Predicated region
      $region49: #{transformer_d_forward.35} parent=43 // pred_check
        %p373 = pneg %p323
      $region50: #{transformer_d_forward.35} parent=43 // pred_check_branch
        %375 = sbr.rel (%p373) target = $region52
      $region51: #{transformer_d_forward.35} parent=43 // pred_region
        %v376 = vld [vmem:[#allocation2] sm:$0xff]
        %v377 = vld [vmem:[#allocation2 + $0x8] sm:$0xff]
        %v378 = vld [vmem:[%s2] sm:$0x1]
        %v380 = vperm.slane %v378, 0
        %v382 = vadd.f32 %v376, %v380
        %v383 = vadd.f32 %v377, %v380
        %v384 = vld [vmem:[%s314] sm:$0xff]
        %v385 = vld [vmem:[%s314 + $0x8] sm:$0xff]
        %v386 = vadd.f32 %v382, %v384
        %v387 = vadd.f32 %v383, %v385
        %v388 = vsel %vm351, %v386, 0.0
        %389 = vadd.xlane.f32.xlu0 %v388
        %v390 = vpop.xlane.xlu0 %389
        %v391 = vsel %vm351, %v387, 0.0
        %392 = vadd.xlane.f32.xlu0 %v391
        %v393 = vpop.xlane.xlu0 %392
        %v394 = vrcp.pop 32.0
        %v395 = vmul.f32 32.0, %v394
        %v396 = vsub.f32 1.0, %v395
        %v397 = vmul.f32 %v394, %v396
        %v398 = vadd.f32 %v394, %v397
        %vm399 = vweird.f32 %v394
        %v400 = vsel %vm399, %v394, %v398
        %v401 = vmul.f32 %v390, %v400
        %v402 = vmul.f32 %v393, %v400
        %v403 = vsub.f32 %v386, %v401
        %v404 = vsub.f32 %v387, %v402
        %v405 = vmul.f32 %v403, %v403
        %v406 = vmul.f32 %v404, %v404
        %v407 = vsel %vm351, %v405, 0.0
        %408 = vadd.xlane.f32.xlu0 %v407
        %v409 = vpop.xlane.xlu0 %408
        %v410 = vsel %vm351, %v406, 0.0
        %411 = vadd.xlane.f32.xlu0 %v410
        %v412 = vpop.xlane.xlu0 %411
        %v413 = vmul.f32 %v409, %v400
        %v414 = vmul.f32 %v412, %v400
        %v415 = vadd.f32 %v413, 1e-05
        %v416 = vadd.f32 %v414, 1e-05
        %v417 = vrsqrt.pop %v415
        %v418 = vmul.f32 %v417, %v415
        %v419 = vmul.f32 %v418, %v417
        %v420 = vmul.f32 0.5, %v419
        %v421 = vsub.f32 1.5, %v420
        %v422 = vmul.f32 %v417, %v421
        %vm423 = vweird.f32 %v415
        %vm424 = vweird.f32 %v417
        %vm425 = vmor %vm423, %vm424
        %v426 = vsel %vm425, %v417, %v422
        %v427 = vrsqrt.pop %v416
        %v428 = vmul.f32 %v427, %v416
        %v429 = vmul.f32 %v428, %v427
        %v430 = vmul.f32 0.5, %v429
        %v431 = vsub.f32 1.5, %v430
        %v432 = vmul.f32 %v427, %v431
        %vm433 = vweird.f32 %v416
        %vm434 = vweird.f32 %v427
        %vm435 = vmor %vm433, %vm434
        %v436 = vsel %vm435, %v427, %v432
        %v437 = vmul.f32 %v403, %v426
        %v438 = vmul.f32 %v404, %v436
        %v439 = vld [vmem:[%s4] sm:$0x1]
        %v441 = vperm.slane %v439, 0
        %v443 = vmul.f32 %v437, %v441
        %v444 = vmul.f32 %v438, %v441
        %v445 = vld [vmem:[%s5] sm:$0x1]
        %v447 = vperm.slane %v445, 0
        %v449 = vadd.f32 %v443, %v447
        %v450 = vadd.f32 %v444, %v447
        %451 = vst.msk [vmem:[%s320] sm:$0xff] %vm351, %v449
        %452 = vst.msk [vmem:[%s320 + $0x8] sm:$0xff] %vm351, %v450
      $region52: #{transformer_d_forward.35} parent=43 // pred_fallthru
        _
      %s453 = smul.u32 2, %s21
      %p454 = scmp.lt.s32.totalorder %s453, 3
      %s455 = scalar_select %p454, %s453, 3
      %s456 = smul.addr %s455, 8
      %s457 = scalar_lea.vmem %s6, %s456
      // Predicated region
      $region53: #{transformer_d_forward.35} parent=43 // pred_check
        %p458 = pneg %p190
      $region54: #{transformer_d_forward.35} parent=43 // pred_check_branch
        %460 = sbr.rel (%p458) target = $region56
      $region55: #{transformer_d_forward.35} parent=43 // pred_region
        %s461 = smul.u32 2, %s21
      $region56: #{transformer_d_forward.35} parent=43 // pred_fallthru
        _
    $region44: #{transformer_d_forward.35} parent=5 // pred_fallthru
      _
    %p462 = scmp.le.s32.totalorder 2, %s12
    // Predicated region
    $region57: #{transformer_d_forward.35} parent=5 // pred_check
      %p463 = pneg %p462
    $region58: #{transformer_d_forward.35} parent=5 // pred_check_branch
      %465 = sbr.rel (%p463) target = $region60
    $region59: #{transformer_d_forward.35} parent=5 // pred_region
      %s466 = ssub.s32 %s12, 2
      // Predicated region
      $region61: #{transformer_d_forward.35} parent=59 // pred_check
        %p467 = pneg %p196
      $region62: #{transformer_d_forward.35} parent=59 // pred_check_branch
        %469 = sbr.rel (%p467) target = $region64
      $region63: #{transformer_d_forward.35} parent=59 // pred_region
        %s470 = smul.u32 2, %s23
        %p471 = scmp.lt.s32.totalorder %s470, 3
        %s472 = scalar_select %p471, %s470, 3
        %s473 = smul.addr %s472, 8
        %s474 = scalar_lea.vmem %s6, %s473
      $region64: #{transformer_d_forward.35} parent=59 // pred_fallthru
        _
    $region60: #{transformer_d_forward.35} parent=5 // pred_fallthru
      _
  $region6: #{transformer_d_forward.35} parent=0 // loop_footer
    %s16 = sadd.s32 1, %s12
  $region7: #{transformer_d_forward.35} parent=0 // loop_footer_branch
    %11 = sbr.rel target = $region3
  $region8: #{transformer_d_forward.35} parent=0 // loop_exit
    _

// kernel: transformer_d_forward.37
$region0: #{transformer_d_forward.37}
  #allocation0 [shape = 'u32[]', space=smem, size = 0x4, offset = 0x4, fixed_abs, tag = 'smem constant byte address 0x4 - core index']
  #allocation1 [shape = 'u32[72,128]{1,0:T(1,128)}', space=vmem, size = 0x9000, scoped, tag = 'internal scratch']
  #allocation2 [shape = 'f32[8,64]{1,0:T(8,128)}', space=vmem, size = 0x1000, scoped, tag = 'scratch operand']
  %s0 = inlined_call_operand.vmem [shape: f32[16,32], index: 0, kind: input, shape index: {}]
  %s1 = inlined_call_operand.vmem [shape: bf16[32,64], index: 1, kind: input, shape index: {}]
  %s2 = inlined_call_operand.vmem [shape: f32[1,64], index: 2, kind: input, shape index: {}]
  %s3 = inlined_call_operand.vmem [shape: f32[16,64], index: 3, kind: output, shape index: {}]
  %s4 = sld [smem:[#allocation0]]
  $region53: #{transformer_d_forward.37} parent=0
    _
  %s6 = ssub.s32 1, %s4
  %s7 = scalar_select 0, %s6, %s4
  loop: start=0, step=1, limit=4
  $region2: #{transformer_d_forward.37} parent=0 // loop_pre_header
    _
  $region3: #{transformer_d_forward.37} parent=0 // loop_header
    %s9 = sphi 0, %s13
    %p10 = scmp.ge.s32.totalorder %s9, 4
    %s16 = sphi 0, %s35
    %s17 = sphi 0, %s31
    %s18 = sphi 0, %s27
    %s19 = sphi 0, %s16
    %s20 = sphi 0, %s17
    %s21 = sphi 0, %s18
    %s22 = sphi 0, %s19
    %s23 = sphi 0, %s20
    %s24 = sphi 0, %s21
    %s40 = sphi 0, %s42
    %s43 = sphi 0, %s40
    %s44 = sphi 0, %s43
    %s60 = sphi 0, %s44
    %s68 = sphi 0, %s70
    %s71 = sphi 0, %s68
    %s72 = sphi 0, %s71
    %s88 = sphi 0, %s72
    %s94 = sphi 0, %s96
    %s97 = sphi 0, %s94
    %s98 = sphi 0, %s97
    %s114 = sphi 0, %s98
    %s122 = sphi 0, %s124
    %s125 = sphi 0, %s122
    %s126 = sphi 0, %s125
    %s142 = sphi 0, %s126
  $region4: #{transformer_d_forward.37} parent=0 // loop_header_branch
    %12 = sbr.rel (%p10) target = $region8
  $region5: #{transformer_d_forward.37} parent=0 // loop_body
    %s14 = ssub.s32 %s9, 1
    %s15 = ssub.s32 %s9, 2
    %s25 = sadd.s32 1, %s18
    %p26 = scmp.ge.s32.totalorder %s25, 1
    %s27 = scalar_select %p26, 0, %s25
    %s28 = sadd.s32 1, %s17
    %s29 = scalar_select %p26, %s28, %s17
    %p30 = scmp.ge.s32.totalorder %s29, 1
    %s31 = scalar_select %p30, 0, %s29
    %s32 = sadd.s32 1, %s16
    %s33 = scalar_select %p30, %s32, %s16
    %p34 = scmp.ge.s32.totalorder %s33, 2
    %s35 = scalar_select %p34, 0, %s33
    %s36 = ssub.s32 %s16, %s35
    %s37 = ssub.s32 %s18, %s27
    %s38 = sor.u32 %s36, %s37
    %p39 = scmp.eq.s32.totalorder %s38, 0
    %s41 = sadd.s32 %s40, 1
    %s42 = scalar_select %p39, %s40, %s41
    %p45 = pneg %p39
    %p46 = scmp.eq.s32.totalorder %s9, 1
    %p47 = por %p45, %p46
    %p48 = scmp.ne.s32.totalorder %s40, %s43
    %p49 = scmp.eq.s32.totalorder %s9, 0
    %p50 = por %p48, %p49
    %p51 = scmp.ne.s32.totalorder %s40, %s43
    %p52 = scmp.eq.s32.totalorder %s14, 1
    %p53 = por %p51, %p52
    %p54 = scmp.ne.s32.totalorder %s43, %s44
    %p55 = scmp.eq.s32.totalorder %s14, 0
    %p56 = por %p54, %p55
    %p57 = scmp.ne.s32.totalorder %s43, %s44
    %p58 = scmp.eq.s32.totalorder %s15, 1
    %p59 = por %p57, %p58
    %p61 = scmp.ne.s32.totalorder %s44, %s60
    %p62 = scmp.eq.s32.totalorder %s15, 0
    %p63 = por %p61, %p62
    %s64 = ssub.s32 %s18, %s27
    %s65 = ssub.s32 %s17, %s31
    %s66 = sor.u32 %s64, %s65
    %p67 = scmp.eq.s32.totalorder %s66, 0
    %s69 = sadd.s32 %s68, 1
    %s70 = scalar_select %p67, %s68, %s69
    %p73 = pneg %p67
    %p74 = scmp.eq.s32.totalorder %s9, 1
    %p75 = por %p73, %p74
    %p76 = scmp.ne.s32.totalorder %s68, %s71
    %p77 = scmp.eq.s32.totalorder %s9, 0
    %p78 = por %p76, %p77
    %p79 = scmp.ne.s32.totalorder %s68, %s71
    %p80 = scmp.eq.s32.totalorder %s14, 1
    %p81 = por %p79, %p80
    %p82 = scmp.ne.s32.totalorder %s71, %s72
    %p83 = scmp.eq.s32.totalorder %s14, 0
    %p84 = por %p82, %p83
    %p85 = scmp.ne.s32.totalorder %s71, %s72
    %p86 = scmp.eq.s32.totalorder %s15, 1
    %p87 = por %p85, %p86
    %p89 = scmp.ne.s32.totalorder %s72, %s88
    %p90 = scmp.eq.s32.totalorder %s15, 0
    %p91 = por %p89, %p90
    %s92 = ssub.s32 %s17, %s31
    %p93 = scmp.eq.s32.totalorder %s92, 0
    %s95 = sadd.s32 %s94, 1
    %s96 = scalar_select %p93, %s94, %s95
    %p99 = pneg %p93
    %p100 = scmp.eq.s32.totalorder %s9, 1
    %p101 = por %p99, %p100
    %p102 = scmp.ne.s32.totalorder %s94, %s97
    %p103 = scmp.eq.s32.totalorder %s9, 0
    %p104 = por %p102, %p103
    %p105 = scmp.ne.s32.totalorder %s94, %s97
    %p106 = scmp.eq.s32.totalorder %s14, 1
    %p107 = por %p105, %p106
    %p108 = scmp.ne.s32.totalorder %s97, %s98
    %p109 = scmp.eq.s32.totalorder %s14, 0
    %p110 = por %p108, %p109
    %p111 = scmp.ne.s32.totalorder %s97, %s98
    %p112 = scmp.eq.s32.totalorder %s15, 1
    %p113 = por %p111, %p112
    %p115 = scmp.ne.s32.totalorder %s98, %s114
    %p116 = scmp.eq.s32.totalorder %s15, 0
    %p117 = por %p115, %p116
    %s118 = ssub.s32 %s16, %s35
    %s119 = ssub.s32 %s17, %s31
    %s120 = sor.u32 %s118, %s119
    %p121 = scmp.eq.s32.totalorder %s120, 0
    %s123 = sadd.s32 %s122, 1
    %s124 = scalar_select %p121, %s122, %s123
    %p127 = pneg %p121
    %p128 = scmp.eq.s32.totalorder %s9, 1
    %p129 = por %p127, %p128
    %p130 = scmp.ne.s32.totalorder %s122, %s125
    %p131 = scmp.eq.s32.totalorder %s9, 0
    %p132 = por %p130, %p131
    %p133 = scmp.ne.s32.totalorder %s122, %s125
    %p134 = scmp.eq.s32.totalorder %s14, 1
    %p135 = por %p133, %p134
    %p136 = scmp.ne.s32.totalorder %s125, %s126
    %p137 = scmp.eq.s32.totalorder %s14, 0
    %p138 = por %p136, %p137
    %p139 = scmp.ne.s32.totalorder %s125, %s126
    %p140 = scmp.eq.s32.totalorder %s15, 1
    %p141 = por %p139, %p140
    %p143 = scmp.ne.s32.totalorder %s126, %s142
    %p144 = scmp.eq.s32.totalorder %s15, 0
    %p145 = por %p143, %p144
    %p146 = scmp.le.s32.totalorder 1, %s9
    %p147 = scmp.lt.s32.totalorder %s9, 3
    %p148 = pnand %p146, %p147
    %p149 = pneg %p148
    // Predicated region
    $region9: #{transformer_d_forward.37} parent=5 // pred_check
      _
    $region10: #{transformer_d_forward.37} parent=5 // pred_check_branch
      %151 = sbr.rel (%p148) target = $region12
    $region11: #{transformer_d_forward.37} parent=5 // pred_region
      %s152 = ssub.s32 %s9, 1
      // Predicated region
      $region13: #{transformer_d_forward.37} parent=11 // pred_check
        %p153 = pneg %p84
      $region14: #{transformer_d_forward.37} parent=11 // pred_check_branch
        %155 = sbr.rel (%p153) target = $region16
      $region15: #{transformer_d_forward.37} parent=11 // pred_region
        %s156 = smul.u32 4, %s21
        %p157 = scmp.lt.s32.totalorder %s156, 3
        %s158 = scalar_select %p157, %s156, 3
        %p159 = scmp.lt.s32.totalorder %s20, 0
        %s160 = scalar_select %p159, %s20, 0
        %s161 = sadd.s32 %s160, %s158
        %s162 = smul.addr %s161, 4
        %s163 = scalar_lea.vmem %s1, %s162
        %s164 = smul.u32 4, %s21
      $region16: #{transformer_d_forward.37} parent=11 // pred_fallthru
        _
      // Predicated region
      $region17: #{transformer_d_forward.37} parent=11 // pred_check
        %p165 = pneg %p110
      $region18: #{transformer_d_forward.37} parent=11 // pred_check_branch
        %167 = sbr.rel (%p165) target = $region20
      $region19: #{transformer_d_forward.37} parent=11 // pred_region
        %p168 = scmp.lt.s32.totalorder %s20, 0
        %s169 = scalar_select %p168, %s20, 0
        %s170 = scalar_lea.vmem %s2, %s169
      $region20: #{transformer_d_forward.37} parent=11 // pred_fallthru
        _
    $region12: #{transformer_d_forward.37} parent=5 // pred_fallthru
      _
    %p171 = scmp.lt.s32.totalorder %s9, 2
    // Predicated region
    $region21: #{transformer_d_forward.37} parent=5 // pred_check
      %p172 = pneg %p171
    $region22: #{transformer_d_forward.37} parent=5 // pred_check_branch
      %174 = sbr.rel (%p172) target = $region24
    $region23: #{transformer_d_forward.37} parent=5 // pred_region
      // Predicated region
      $region25: #{transformer_d_forward.37} parent=23 // pred_check
        %p175 = pneg %p50
      $region26: #{transformer_d_forward.37} parent=23 // pred_check_branch
        %177 = sbr.rel (%p175) target = $region28
      $region27: #{transformer_d_forward.37} parent=23 // pred_region
        %p178 = scmp.lt.s32.totalorder %s16, 1
        %s179 = scalar_select %p178, %s16, 1
        %p180 = scmp.lt.s32.totalorder %s18, 0
        %s181 = scalar_select %p180, %s18, 0
        %s182 = sadd.s32 %s181, %s179
        %s183 = smul.addr %s182, 8
        %s184 = scalar_lea.vmem %s0, %s183
      $region28: #{transformer_d_forward.37} parent=23 // pred_fallthru
        _
    $region24: #{transformer_d_forward.37} parent=5 // pred_fallthru
      _
    %p185 = scmp.le.s32.totalorder 1, %s9
    %p186 = scmp.lt.s32.totalorder %s9, 3
    %p187 = pnand %p185, %p186
    %p188 = pneg %p187
    // Predicated region
    $region29: #{transformer_d_forward.37} parent=5 // pred_check
      _
    $region30: #{transformer_d_forward.37} parent=5 // pred_check_branch
      %190 = sbr.rel (%p187) target = $region32
    $region31: #{transformer_d_forward.37} parent=5 // pred_region
      %s191 = ssub.s32 %s9, 1
      %p192 = scmp.lt.s32.totalorder %s19, 1
      %s193 = scalar_select %p192, %s19, 1
      %p194 = scmp.lt.s32.totalorder %s21, 0
      %s195 = scalar_select %p194, %s21, 0
      %s196 = sadd.s32 %s195, %s193
      %s197 = smul.addr %s196, 8
      %s198 = scalar_lea.vmem %s0, %s197
      %p199 = pneg %p56
      %p200 = pneg %p53
      %s201 = smul.u32 4, %s21
      %p202 = scmp.lt.s32.totalorder %s201, 3
      %s203 = scalar_select %p202, %s201, 3
      %p204 = scmp.lt.s32.totalorder %s20, 0
      %s205 = scalar_select %p204, %s20, 0
      %s206 = sadd.s32 %s205, %s203
      %s207 = smul.addr %s206, 4
      %s208 = scalar_lea.vmem %s1, %s207
      %p209 = pneg %p84
      %p210 = pneg %p81
      %p211 = scmp.lt.s32.totalorder %s20, 0
      %s212 = scalar_select %p211, %s20, 0
      %s213 = scalar_lea.vmem %s2, %s212
      %p214 = pneg %p110
      %p215 = pneg %p107
      %p216 = pneg %p138
      %p217 = pneg %p135
      %p218 = scmp.lt.s32.totalorder %s19, 1
      %s219 = scalar_select %p218, %s19, 1
      %p220 = scmp.lt.s32.totalorder %s20, 0
      %s221 = scalar_select %p220, %s20, 0
      %s222 = sadd.s32 %s221, %s219
      %s223 = smul.addr %s222, 8
      %s224 = scalar_lea.vmem %s3, %s223
      %p225 = scmp.lt.s32.totalorder %s19, 1
      %s226 = scalar_select %p225, %s19, 1
      %p227 = scmp.lt.s32.totalorder %s21, 0
      %s228 = scalar_select %p227, %s21, 0
      %s229 = sadd.s32 %s228, %s226
      %s230 = smul.addr %s229, 8
      %s231 = scalar_lea.vmem %s0, %s230
      %s232 = smul.u32 4, %s21
      %p233 = scmp.lt.s32.totalorder %s232, 3
      %s234 = scalar_select %p233, %s232, 3
      %p235 = scmp.lt.s32.totalorder %s20, 0
      %s236 = scalar_select %p235, %s20, 0
      %s237 = sadd.s32 %s236, %s234
      %s238 = smul.addr %s237, 4
      %s239 = scalar_lea.vmem %s1, %s238
      %s240 = smul.u32 4, %s21
      %p241 = scmp.lt.s32.totalorder %s20, 0
      %s242 = scalar_select %p241, %s20, 0
      %s243 = scalar_lea.vmem %s2, %s242
      %p244 = scmp.lt.s32.totalorder %s19, 1
      %s245 = scalar_select %p244, %s19, 1
      %p246 = scmp.lt.s32.totalorder %s20, 0
      %s247 = scalar_select %p246, %s20, 0
      %s248 = sadd.s32 %s247, %s245
      %s249 = smul.addr %s248, 8
      %s250 = scalar_lea.vmem %s3, %s249
      %p252 = scmp.eq.s32.totalorder %s21, 0
      // Predicated region
      $region33: #{transformer_d_forward.37} parent=31 // pred_check
        %p253 = pneg %p252
      $region34: #{transformer_d_forward.37} parent=31 // pred_check_branch
        %255 = sbr.rel (%p253) target = $region36
      $region35: #{transformer_d_forward.37} parent=31 // pred_region
        %vm256 = vcmask 523264
        %257 = vst.msk [vmem:[#allocation2] sm:$0xff] %vm256, 0.0
      $region36: #{transformer_d_forward.37} parent=31 // pred_fallthru
        _
      %v258 = vld [vmem:[#allocation2] sm:$0xff]
      %v259 = vld [vmem:[%s231] sm:$0xff]
      %v260 = vpack.c.bf16 %v259, %v259
      %v261 = vld [vmem:[%s239] sm:$0xf]
      %v262 = vld [vmem:[%s239 + $0x4] sm:$0xf]
      %v263 = vld [vmem:[%s239 + $0x8] sm:$0xf]
      %v264 = vld [vmem:[%s239 + $0xc] sm:$0xf]
      %v269 = vunpack.c.l.b16 %v261
      %v270 = vunpack.c.l.b16 %v262
      %v271 = vunpack.c.l.b16 %v263
      %v272 = vunpack.c.l.b16 %v264
      %v273 = vpack.c.b16 %v270, %v269
      %v274 = vpack.c.b16 %v272, %v271
      %vm277 = vcmask 261120
      %v279 = vsel %vm277, %v260, 0
      %281 = vmatpush.bf16.msra.mxu0 0
      %282 = vmatpush.bf16.msra.mxu0 0
      %283 = vmatpush.bf16.msra.mxu0 0
      %284 = vmatpush.bf16.msra.mxu0 0
      %285 = vmatpush.bf16.msra.mxu0 0
      %286 = vmatpush.bf16.msra.mxu0 0
      %287 = vmatpush.bf16.msra.mxu0 %v274
      %288 = vmatpush.bf16.msra.mxu0 %v273
      %289 = vmatmul.bf16.gmra.mxu0 %v279
      %v290 = vpop.f32.mrf.mxu0
      %v291 = vadd.f32 0.0, %v290
      %v292 = vpop.f32.mrf.mxu0
      %293 = vdwg.mxu0
      %v294 = vadd.f32 %v258, %v291
      %vm295 = vcmask 523264
      %296 = vst.msk [vmem:[#allocation2] sm:$0xff] %vm295, %v294
      // Predicated region
      $region37: #{transformer_d_forward.37} parent=31 // pred_check
        %p297 = pneg %p252
      $region38: #{transformer_d_forward.37} parent=31 // pred_check_branch
        %299 = sbr.rel (%p297) target = $region40
      $region39: #{transformer_d_forward.37} parent=31 // pred_region
        %v300 = vld [vmem:[#allocation2] sm:$0xff]
        %v301 = vld [vmem:[%s243] sm:$0x1]
        %v303 = vperm.slane %v301, 0
        %v305 = vadd.f32 %v300, %v303
        %306 = vst.msk [vmem:[%s250] sm:$0xff] %vm295, %v305
      $region40: #{transformer_d_forward.37} parent=31 // pred_fallthru
        _
      %p307 = scmp.lt.s32.totalorder %s19, 1
      %s308 = scalar_select %p307, %s19, 1
      %p309 = scmp.lt.s32.totalorder %s20, 0
      %s310 = scalar_select %p309, %s20, 0
      %s311 = sadd.s32 %s310, %s308
      %s312 = smul.addr %s311, 8
      %s313 = scalar_lea.vmem %s3, %s312
      // Predicated region
      $region41: #{transformer_d_forward.37} parent=31 // pred_check
        %p314 = pneg %p135
      $region42: #{transformer_d_forward.37} parent=31 // pred_check_branch
        %316 = sbr.rel (%p314) target = $region44
      $region43: #{transformer_d_forward.37} parent=31 // pred_region
        _
      $region44: #{transformer_d_forward.37} parent=31 // pred_fallthru
        _
    $region32: #{transformer_d_forward.37} parent=5 // pred_fallthru
      _
    %p317 = scmp.le.s32.totalorder 2, %s9
    // Predicated region
    $region45: #{transformer_d_forward.37} parent=5 // pred_check
      %p318 = pneg %p317
    $region46: #{transformer_d_forward.37} parent=5 // pred_check_branch
      %320 = sbr.rel (%p318) target = $region48
    $region47: #{transformer_d_forward.37} parent=5 // pred_region
      %s321 = ssub.s32 %s9, 2
      // Predicated region
      $region49: #{transformer_d_forward.37} parent=47 // pred_check
        %p322 = pneg %p141
      $region50: #{transformer_d_forward.37} parent=47 // pred_check_branch
        %324 = sbr.rel (%p322) target = $region52
      $region51: #{transformer_d_forward.37} parent=47 // pred_region
        %p325 = scmp.lt.s32.totalorder %s22, 1
        %s326 = scalar_select %p325, %s22, 1
        %p327 = scmp.lt.s32.totalorder %s23, 0
        %s328 = scalar_select %p327, %s23, 0
        %s329 = sadd.s32 %s328, %s326
        %s330 = smul.addr %s329, 8
        %s331 = scalar_lea.vmem %s3, %s330
      $region52: #{transformer_d_forward.37} parent=47 // pred_fallthru
        _
    $region48: #{transformer_d_forward.37} parent=5 // pred_fallthru
      _
  $region6: #{transformer_d_forward.37} parent=0 // loop_footer
    %s13 = sadd.s32 1, %s9
  $region7: #{transformer_d_forward.37} parent=0 // loop_footer_branch
    %8 = sbr.rel target = $region3
  $region8: #{transformer_d_forward.37} parent=0 // loop_exit
    _

// kernel: transformer_d_forward.40
$region0: #{transformer_d_forward.40}
  #allocation0 [shape = 'u32[]', space=smem, size = 0x4, offset = 0x4, fixed_abs, tag = 'smem constant byte address 0x4 - core index']
  #allocation1 [shape = 'u32[72,128]{1,0:T(1,128)}', space=vmem, size = 0x9000, scoped, tag = 'internal scratch']
  #allocation2 [shape = 'f32[16,64]{1,0:T(8,128)}', space=vmem, size = 0x2000, scoped, tag = 'scratch operand']
  %s0 = inlined_call_operand.vmem [shape: f32[32,32], index: 0, kind: input, shape index: {}]
  %s1 = inlined_call_operand.vmem [shape: bf16[32,64], index: 1, kind: input, shape index: {}]
  %s2 = inlined_call_operand.vmem [shape: f32[1,64], index: 2, kind: input, shape index: {}]
  %s3 = inlined_call_operand.vmem [shape: f32[32,64], index: 3, kind: output, shape index: {}]
  %s4 = sld [smem:[#allocation0]]
  $region53: #{transformer_d_forward.40} parent=0
    _
  %s6 = ssub.s32 1, %s4
  %s7 = scalar_select 0, %s6, %s4
  loop: start=0, step=1, limit=4
  $region2: #{transformer_d_forward.40} parent=0 // loop_pre_header
    _
  $region3: #{transformer_d_forward.40} parent=0 // loop_header
    %s9 = sphi 0, %s13
    %p10 = scmp.ge.s32.totalorder %s9, 4
    %s16 = sphi 0, %s35
    %s17 = sphi 0, %s31
    %s18 = sphi 0, %s27
    %s19 = sphi 0, %s16
    %s20 = sphi 0, %s17
    %s21 = sphi 0, %s18
    %s22 = sphi 0, %s19
    %s23 = sphi 0, %s20
    %s24 = sphi 0, %s21
    %s40 = sphi 0, %s42
    %s43 = sphi 0, %s40
    %s44 = sphi 0, %s43
    %s60 = sphi 0, %s44
    %s68 = sphi 0, %s70
    %s71 = sphi 0, %s68
    %s72 = sphi 0, %s71
    %s88 = sphi 0, %s72
    %s94 = sphi 0, %s96
    %s97 = sphi 0, %s94
    %s98 = sphi 0, %s97
    %s114 = sphi 0, %s98
    %s122 = sphi 0, %s124
    %s125 = sphi 0, %s122
    %s126 = sphi 0, %s125
    %s142 = sphi 0, %s126
  $region4: #{transformer_d_forward.40} parent=0 // loop_header_branch
    %12 = sbr.rel (%p10) target = $region8
  $region5: #{transformer_d_forward.40} parent=0 // loop_body
    %s14 = ssub.s32 %s9, 1
    %s15 = ssub.s32 %s9, 2
    %s25 = sadd.s32 1, %s18
    %p26 = scmp.ge.s32.totalorder %s25, 1
    %s27 = scalar_select %p26, 0, %s25
    %s28 = sadd.s32 1, %s17
    %s29 = scalar_select %p26, %s28, %s17
    %p30 = scmp.ge.s32.totalorder %s29, 1
    %s31 = scalar_select %p30, 0, %s29
    %s32 = sadd.s32 1, %s16
    %s33 = scalar_select %p30, %s32, %s16
    %p34 = scmp.ge.s32.totalorder %s33, 2
    %s35 = scalar_select %p34, 0, %s33
    %s36 = ssub.s32 %s16, %s35
    %s37 = ssub.s32 %s18, %s27
    %s38 = sor.u32 %s36, %s37
    %p39 = scmp.eq.s32.totalorder %s38, 0
    %s41 = sadd.s32 %s40, 1
    %s42 = scalar_select %p39, %s40, %s41
    %p45 = pneg %p39
    %p46 = scmp.eq.s32.totalorder %s9, 1
    %p47 = por %p45, %p46
    %p48 = scmp.ne.s32.totalorder %s40, %s43
    %p49 = scmp.eq.s32.totalorder %s9, 0
    %p50 = por %p48, %p49
    %p51 = scmp.ne.s32.totalorder %s40, %s43
    %p52 = scmp.eq.s32.totalorder %s14, 1
    %p53 = por %p51, %p52
    %p54 = scmp.ne.s32.totalorder %s43, %s44
    %p55 = scmp.eq.s32.totalorder %s14, 0
    %p56 = por %p54, %p55
    %p57 = scmp.ne.s32.totalorder %s43, %s44
    %p58 = scmp.eq.s32.totalorder %s15, 1
    %p59 = por %p57, %p58
    %p61 = scmp.ne.s32.totalorder %s44, %s60
    %p62 = scmp.eq.s32.totalorder %s15, 0
    %p63 = por %p61, %p62
    %s64 = ssub.s32 %s18, %s27
    %s65 = ssub.s32 %s17, %s31
    %s66 = sor.u32 %s64, %s65
    %p67 = scmp.eq.s32.totalorder %s66, 0
    %s69 = sadd.s32 %s68, 1
    %s70 = scalar_select %p67, %s68, %s69
    %p73 = pneg %p67
    %p74 = scmp.eq.s32.totalorder %s9, 1
    %p75 = por %p73, %p74
    %p76 = scmp.ne.s32.totalorder %s68, %s71
    %p77 = scmp.eq.s32.totalorder %s9, 0
    %p78 = por %p76, %p77
    %p79 = scmp.ne.s32.totalorder %s68, %s71
    %p80 = scmp.eq.s32.totalorder %s14, 1
    %p81 = por %p79, %p80
    %p82 = scmp.ne.s32.totalorder %s71, %s72
    %p83 = scmp.eq.s32.totalorder %s14, 0
    %p84 = por %p82, %p83
    %p85 = scmp.ne.s32.totalorder %s71, %s72
    %p86 = scmp.eq.s32.totalorder %s15, 1
    %p87 = por %p85, %p86
    %p89 = scmp.ne.s32.totalorder %s72, %s88
    %p90 = scmp.eq.s32.totalorder %s15, 0
    %p91 = por %p89, %p90
    %s92 = ssub.s32 %s17, %s31
    %p93 = scmp.eq.s32.totalorder %s92, 0
    %s95 = sadd.s32 %s94, 1
    %s96 = scalar_select %p93, %s94, %s95
    %p99 = pneg %p93
    %p100 = scmp.eq.s32.totalorder %s9, 1
    %p101 = por %p99, %p100
    %p102 = scmp.ne.s32.totalorder %s94, %s97
    %p103 = scmp.eq.s32.totalorder %s9, 0
    %p104 = por %p102, %p103
    %p105 = scmp.ne.s32.totalorder %s94, %s97
    %p106 = scmp.eq.s32.totalorder %s14, 1
    %p107 = por %p105, %p106
    %p108 = scmp.ne.s32.totalorder %s97, %s98
    %p109 = scmp.eq.s32.totalorder %s14, 0
    %p110 = por %p108, %p109
    %p111 = scmp.ne.s32.totalorder %s97, %s98
    %p112 = scmp.eq.s32.totalorder %s15, 1
    %p113 = por %p111, %p112
    %p115 = scmp.ne.s32.totalorder %s98, %s114
    %p116 = scmp.eq.s32.totalorder %s15, 0
    %p117 = por %p115, %p116
    %s118 = ssub.s32 %s16, %s35
    %s119 = ssub.s32 %s17, %s31
    %s120 = sor.u32 %s118, %s119
    %p121 = scmp.eq.s32.totalorder %s120, 0
    %s123 = sadd.s32 %s122, 1
    %s124 = scalar_select %p121, %s122, %s123
    %p127 = pneg %p121
    %p128 = scmp.eq.s32.totalorder %s9, 1
    %p129 = por %p127, %p128
    %p130 = scmp.ne.s32.totalorder %s122, %s125
    %p131 = scmp.eq.s32.totalorder %s9, 0
    %p132 = por %p130, %p131
    %p133 = scmp.ne.s32.totalorder %s122, %s125
    %p134 = scmp.eq.s32.totalorder %s14, 1
    %p135 = por %p133, %p134
    %p136 = scmp.ne.s32.totalorder %s125, %s126
    %p137 = scmp.eq.s32.totalorder %s14, 0
    %p138 = por %p136, %p137
    %p139 = scmp.ne.s32.totalorder %s125, %s126
    %p140 = scmp.eq.s32.totalorder %s15, 1
    %p141 = por %p139, %p140
    %p143 = scmp.ne.s32.totalorder %s126, %s142
    %p144 = scmp.eq.s32.totalorder %s15, 0
    %p145 = por %p143, %p144
    %p146 = scmp.le.s32.totalorder 1, %s9
    %p147 = scmp.lt.s32.totalorder %s9, 3
    %p148 = pnand %p146, %p147
    %p149 = pneg %p148
    // Predicated region
    $region9: #{transformer_d_forward.40} parent=5 // pred_check
      _
    $region10: #{transformer_d_forward.40} parent=5 // pred_check_branch
      %151 = sbr.rel (%p148) target = $region12
    $region11: #{transformer_d_forward.40} parent=5 // pred_region
      %s152 = ssub.s32 %s9, 1
      // Predicated region
      $region13: #{transformer_d_forward.40} parent=11 // pred_check
        %p153 = pneg %p84
      $region14: #{transformer_d_forward.40} parent=11 // pred_check_branch
        %155 = sbr.rel (%p153) target = $region16
      $region15: #{transformer_d_forward.40} parent=11 // pred_region
        %s156 = smul.u32 4, %s21
        %p157 = scmp.lt.s32.totalorder %s156, 3
        %s158 = scalar_select %p157, %s156, 3
        %p159 = scmp.lt.s32.totalorder %s20, 0
        %s160 = scalar_select %p159, %s20, 0
        %s161 = sadd.s32 %s160, %s158
        %s162 = smul.addr %s161, 4
        %s163 = scalar_lea.vmem %s1, %s162
        %s164 = smul.u32 4, %s21
      $region16: #{transformer_d_forward.40} parent=11 // pred_fallthru
        _
      // Predicated region
      $region17: #{transformer_d_forward.40} parent=11 // pred_check
        %p165 = pneg %p110
      $region18: #{transformer_d_forward.40} parent=11 // pred_check_branch
        %167 = sbr.rel (%p165) target = $region20
      $region19: #{transformer_d_forward.40} parent=11 // pred_region
        %p168 = scmp.lt.s32.totalorder %s20, 0
        %s169 = scalar_select %p168, %s20, 0
        %s170 = scalar_lea.vmem %s2, %s169
      $region20: #{transformer_d_forward.40} parent=11 // pred_fallthru
        _
    $region12: #{transformer_d_forward.40} parent=5 // pred_fallthru
      _
    %p171 = scmp.lt.s32.totalorder %s9, 2
    // Predicated region
    $region21: #{transformer_d_forward.40} parent=5 // pred_check
      %p172 = pneg %p171
    $region22: #{transformer_d_forward.40} parent=5 // pred_check_branch
      %174 = sbr.rel (%p172) target = $region24
    $region23: #{transformer_d_forward.40} parent=5 // pred_region
      // Predicated region
      $region25: #{transformer_d_forward.40} parent=23 // pred_check
        %p175 = pneg %p50
      $region26: #{transformer_d_forward.40} parent=23 // pred_check_branch
        %177 = sbr.rel (%p175) target = $region28
      $region27: #{transformer_d_forward.40} parent=23 // pred_region
        %s178 = smul.u32 2, %s16
        %p179 = scmp.lt.s32.totalorder %s178, 3
        %s180 = scalar_select %p179, %s178, 3
        %p181 = scmp.lt.s32.totalorder %s18, 0
        %s182 = scalar_select %p181, %s18, 0
        %s183 = sadd.s32 %s182, %s180
        %s184 = smul.addr %s183, 8
        %s185 = scalar_lea.vmem %s0, %s184
        %s186 = smul.u32 2, %s16
      $region28: #{transformer_d_forward.40} parent=23 // pred_fallthru
        _
    $region24: #{transformer_d_forward.40} parent=5 // pred_fallthru
      _
    %p187 = scmp.le.s32.totalorder 1, %s9
    %p188 = scmp.lt.s32.totalorder %s9, 3
    %p189 = pnand %p187, %p188
    %p190 = pneg %p189
    // Predicated region
    $region29: #{transformer_d_forward.40} parent=5 // pred_check
      _
    $region30: #{transformer_d_forward.40} parent=5 // pred_check_branch
      %192 = sbr.rel (%p189) target = $region32
    $region31: #{transformer_d_forward.40} parent=5 // pred_region
      %s193 = ssub.s32 %s9, 1
      %s194 = smul.u32 2, %s19
      %p195 = scmp.lt.s32.totalorder %s194, 3
      %s196 = scalar_select %p195, %s194, 3
      %p197 = scmp.lt.s32.totalorder %s21, 0
      %s198 = scalar_select %p197, %s21, 0
      %s199 = sadd.s32 %s198, %s196
      %s200 = smul.addr %s199, 8
      %s201 = scalar_lea.vmem %s0, %s200
      %p202 = pneg %p56
      %p203 = pneg %p53
      %s204 = smul.u32 4, %s21
      %p205 = scmp.lt.s32.totalorder %s204, 3
      %s206 = scalar_select %p205, %s204, 3
      %p207 = scmp.lt.s32.totalorder %s20, 0
      %s208 = scalar_select %p207, %s20, 0
      %s209 = sadd.s32 %s208, %s206
      %s210 = smul.addr %s209, 4
      %s211 = scalar_lea.vmem %s1, %s210
      %p212 = pneg %p84
      %p213 = pneg %p81
      %p214 = scmp.lt.s32.totalorder %s20, 0
      %s215 = scalar_select %p214, %s20, 0
      %s216 = scalar_lea.vmem %s2, %s215
      %p217 = pneg %p110
      %p218 = pneg %p107
      %p219 = pneg %p138
      %p220 = pneg %p135
      %s221 = smul.u32 2, %s19
      %p222 = scmp.lt.s32.totalorder %s221, 3
      %s223 = scalar_select %p222, %s221, 3
      %p224 = scmp.lt.s32.totalorder %s20, 0
      %s225 = scalar_select %p224, %s20, 0
      %s226 = sadd.s32 %s225, %s223
      %s227 = smul.addr %s226, 8
      %s228 = scalar_lea.vmem %s3, %s227
      %s229 = smul.u32 2, %s19
      %p230 = scmp.lt.s32.totalorder %s229, 3
      %s231 = scalar_select %p230, %s229, 3
      %p232 = scmp.lt.s32.totalorder %s21, 0
      %s233 = scalar_select %p232, %s21, 0
      %s234 = sadd.s32 %s233, %s231
      %s235 = smul.addr %s234, 8
      %s236 = scalar_lea.vmem %s0, %s235
      %s237 = smul.u32 2, %s19
      %s238 = smul.u32 4, %s21
      %p239 = scmp.lt.s32.totalorder %s238, 3
      %s240 = scalar_select %p239, %s238, 3
      %p241 = scmp.lt.s32.totalorder %s20, 0
      %s242 = scalar_select %p241, %s20, 0
      %s243 = sadd.s32 %s242, %s240
      %s244 = smul.addr %s243, 4
      %s245 = scalar_lea.vmem %s1, %s244
      %s246 = smul.u32 4, %s21
      %p247 = scmp.lt.s32.totalorder %s20, 0
      %s248 = scalar_select %p247, %s20, 0
      %s249 = scalar_lea.vmem %s2, %s248
      %s250 = smul.u32 2, %s19
      %p251 = scmp.lt.s32.totalorder %s250, 3
      %s252 = scalar_select %p251, %s250, 3
      %p253 = scmp.lt.s32.totalorder %s20, 0
      %s254 = scalar_select %p253, %s20, 0
      %s255 = sadd.s32 %s254, %s252
      %s256 = smul.addr %s255, 8
      %s257 = scalar_lea.vmem %s3, %s256
      %s258 = smul.u32 2, %s19
      %p260 = scmp.eq.s32.totalorder %s21, 0
      // Predicated region
      $region33: #{transformer_d_forward.40} parent=31 // pred_check
        %p261 = pneg %p260
      $region34: #{transformer_d_forward.40} parent=31 // pred_check_branch
        %263 = sbr.rel (%p261) target = $region36
      $region35: #{transformer_d_forward.40} parent=31 // pred_region
        %vm264 = vcmask 523264
        %265 = vst.msk [vmem:[#allocation2] sm:$0xff] %vm264, 0.0
        %266 = vst.msk [vmem:[#allocation2 + $0x8] sm:$0xff] %vm264, 0.0
      $region36: #{transformer_d_forward.40} parent=31 // pred_fallthru
        _
      %v267 = vld [vmem:[#allocation2] sm:$0xff]
      %v268 = vld [vmem:[#allocation2 + $0x8] sm:$0xff]
      %v269 = vld [vmem:[%s236] sm:$0xff]
      %v270 = vld [vmem:[%s236 + $0x8] sm:$0xff]
      %v271 = vpack.c.bf16 %v270, %v269
      %v272 = vld [vmem:[%s245] sm:$0xf]
      %v273 = vld [vmem:[%s245 + $0x4] sm:$0xf]
      %v274 = vld [vmem:[%s245 + $0x8] sm:$0xf]
      %v275 = vld [vmem:[%s245 + $0xc] sm:$0xf]
      %v280 = vunpack.c.l.b16 %v272
      %v281 = vunpack.c.l.b16 %v273
      %v282 = vunpack.c.l.b16 %v274
      %v283 = vunpack.c.l.b16 %v275
      %v284 = vpack.c.b16 %v281, %v280
      %v285 = vpack.c.b16 %v283, %v282
      %vm288 = vcmask 261120
      %v290 = vsel %vm288, %v271, 0
      %292 = vmatpush.bf16.msra.mxu0 0
      %293 = vmatpush.bf16.msra.mxu0 0
      %294 = vmatpush.bf16.msra.mxu0 0
      %295 = vmatpush.bf16.msra.mxu0 0
      %296 = vmatpush.bf16.msra.mxu0 0
      %297 = vmatpush.bf16.msra.mxu0 0
      %298 = vmatpush.bf16.msra.mxu0 %v285
      %299 = vmatpush.bf16.msra.mxu0 %v284
      %300 = vmatmul.bf16.gmra.mxu0 %v290
      %v301 = vpop.f32.mrf.mxu0
      %v302 = vadd.f32 0.0, %v301
      %v303 = vpop.f32.mrf.mxu0
      %v304 = vadd.f32 0.0, %v303
      %305 = vdwg.mxu0
      %v306 = vadd.f32 %v267, %v302
      %v307 = vadd.f32 %v268, %v304
      %vm308 = vcmask 523264
      %309 = vst.msk [vmem:[#allocation2] sm:$0xff] %vm308, %v306
      %310 = vst.msk [vmem:[#allocation2 + $0x8] sm:$0xff] %vm308, %v307
      // Predicated region
      $region37: #{transformer_d_forward.40} parent=31 // pred_check
        %p311 = pneg %p260
      $region38: #{transformer_d_forward.40} parent=31 // pred_check_branch
        %313 = sbr.rel (%p311) target = $region40
      $region39: #{transformer_d_forward.40} parent=31 // pred_region
        %v314 = vld [vmem:[#allocation2] sm:$0xff]
        %v315 = vld [vmem:[#allocation2 + $0x8] sm:$0xff]
        %v316 = vld [vmem:[%s249] sm:$0x1]
        %v318 = vperm.slane %v316, 0
        %v320 = vadd.f32 %v314, %v318
        %v321 = vadd.f32 %v315, %v318
        %v322 = vmax.f32 %v320, 0.0
        %v323 = vmax.f32 %v321, 0.0
        %324 = vst.msk [vmem:[%s257] sm:$0xff] %vm308, %v322
        %325 = vst.msk [vmem:[%s257 + $0x8] sm:$0xff] %vm308, %v323
      $region40: #{transformer_d_forward.40} parent=31 // pred_fallthru
        _
      %s326 = smul.u32 2, %s19
      %p327 = scmp.lt.s32.totalorder %s326, 3
      %s328 = scalar_select %p327, %s326, 3
      %p329 = scmp.lt.s32.totalorder %s20, 0
      %s330 = scalar_select %p329, %s20, 0
      %s331 = sadd.s32 %s330, %s328
      %s332 = smul.addr %s331, 8
      %s333 = scalar_lea.vmem %s3, %s332
      // Predicated region
      $region41: #{transformer_d_forward.40} parent=31 // pred_check
        %p334 = pneg %p135
      $region42: #{transformer_d_forward.40} parent=31 // pred_check_branch
        %336 = sbr.rel (%p334) target = $region44
      $region43: #{transformer_d_forward.40} parent=31 // pred_region
        %s337 = smul.u32 2, %s19
      $region44: #{transformer_d_forward.40} parent=31 // pred_fallthru
        _
    $region32: #{transformer_d_forward.40} parent=5 // pred_fallthru
      _
    %p338 = scmp.le.s32.totalorder 2, %s9
    // Predicated region
    $region45: #{transformer_d_forward.40} parent=5 // pred_check
      %p339 = pneg %p338
    $region46: #{transformer_d_forward.40} parent=5 // pred_check_branch
      %341 = sbr.rel (%p339) target = $region48
    $region47: #{transformer_d_forward.40} parent=5 // pred_region
      %s342 = ssub.s32 %s9, 2
      // Predicated region
      $region49: #{transformer_d_forward.40} parent=47 // pred_check
        %p343 = pneg %p141
      $region50: #{transformer_d_forward.40} parent=47 // pred_check_branch
        %345 = sbr.rel (%p343) target = $region52
      $region51: #{transformer_d_forward.40} parent=47 // pred_region
        %s346 = smul.u32 2, %s22
        %p347 = scmp.lt.s32.totalorder %s346, 3
        %s348 = scalar_select %p347, %s346, 3
        %p349 = scmp.lt.s32.totalorder %s23, 0
        %s350 = scalar_select %p349, %s23, 0
        %s351 = sadd.s32 %s350, %s348
        %s352 = smul.addr %s351, 8
        %s353 = scalar_lea.vmem %s3, %s352
      $region52: #{transformer_d_forward.40} parent=47 // pred_fallthru
        _
    $region48: #{transformer_d_forward.40} parent=5 // pred_fallthru
      _
  $region6: #{transformer_d_forward.40} parent=0 // loop_footer
    %s13 = sadd.s32 1, %s9
  $region7: #{transformer_d_forward.40} parent=0 // loop_footer_branch
    %8 = sbr.rel target = $region3
  $region8: #{transformer_d_forward.40} parent=0 // loop_exit
    _

// kernel: transformer_d_forward.38
$region0: #{transformer_d_forward.38}
  #allocation0 [shape = 'u32[]', space=smem, size = 0x4, offset = 0x4, fixed_abs, tag = 'smem constant byte address 0x4 - core index']
  #allocation1 [shape = 'u32[72,128]{1,0:T(1,128)}', space=vmem, size = 0x9000, scoped, tag = 'internal scratch']
  %s0 = inlined_call_operand.vmem [shape: f32[2,16,32], index: 0, kind: input, shape index: {}]
  %s1 = inlined_call_operand.vmem [shape: f32[2,8,64], index: 1, kind: input, shape index: {}]
  %s2 = inlined_call_operand.vmem [shape: f32[2,16,32], index: 2, kind: output, shape index: {}]
  %s3 = sld [smem:[#allocation0]]
  $region41: #{transformer_d_forward.38} parent=0
    _
  %s5 = ssub.s32 1, %s3
  %s6 = scalar_select 0, %s5, %s3
  loop: start=0, step=1, limit=4
  $region2: #{transformer_d_forward.38} parent=0 // loop_pre_header
    _
  $region3: #{transformer_d_forward.38} parent=0 // loop_header
    %s8 = sphi 0, %s12
    %p9 = scmp.ge.s32.totalorder %s8, 4
    %s18 = sphi 0, %s20
    %s21 = sphi 0, %s18
    %s22 = sphi 0, %s21
    %s38 = sphi 0, %s22
    %s44 = sphi 0, %s46
    %s47 = sphi 0, %s44
    %s48 = sphi 0, %s47
    %s64 = sphi 0, %s48
    %s70 = sphi 0, %s72
    %s73 = sphi 0, %s70
    %s74 = sphi 0, %s73
    %s90 = sphi 0, %s74
  $region4: #{transformer_d_forward.38} parent=0 // loop_header_branch
    %11 = sbr.rel (%p9) target = $region8
  $region5: #{transformer_d_forward.38} parent=0 // loop_body
    %s13 = ssub.s32 %s8, 1
    %s14 = ssub.s32 %s8, 2
    %s15 = sadd.s32 %s8, 1
    %s16 = ssub.s32 %s8, %s15
    %p17 = scmp.eq.s32.totalorder %s16, 0
    %s19 = sadd.s32 %s18, 1
    %s20 = scalar_select %p17, %s18, %s19
    %p23 = pneg %p17
    %p24 = scmp.eq.s32.totalorder %s8, 1
    %p25 = por %p23, %p24
    %p26 = scmp.ne.s32.totalorder %s18, %s21
    %p27 = scmp.eq.s32.totalorder %s8, 0
    %p28 = por %p26, %p27
    %p29 = scmp.ne.s32.totalorder %s18, %s21
    %p30 = scmp.eq.s32.totalorder %s13, 1
    %p31 = por %p29, %p30
    %p32 = scmp.ne.s32.totalorder %s21, %s22
    %p33 = scmp.eq.s32.totalorder %s13, 0
    %p34 = por %p32, %p33
    %p35 = scmp.ne.s32.totalorder %s21, %s22
    %p36 = scmp.eq.s32.totalorder %s14, 1
    %p37 = por %p35, %p36
    %p39 = scmp.ne.s32.totalorder %s22, %s38
    %p40 = scmp.eq.s32.totalorder %s14, 0
    %p41 = por %p39, %p40
    %s42 = ssub.s32 %s8, %s15
    %p43 = scmp.eq.s32.totalorder %s42, 0
    %s45 = sadd.s32 %s44, 1
    %s46 = scalar_select %p43, %s44, %s45
    %p49 = pneg %p43
    %p50 = scmp.eq.s32.totalorder %s8, 1
    %p51 = por %p49, %p50
    %p52 = scmp.ne.s32.totalorder %s44, %s47
    %p53 = scmp.eq.s32.totalorder %s8, 0
    %p54 = por %p52, %p53
    %p55 = scmp.ne.s32.totalorder %s44, %s47
    %p56 = scmp.eq.s32.totalorder %s13, 1
    %p57 = por %p55, %p56
    %p58 = scmp.ne.s32.totalorder %s47, %s48
    %p59 = scmp.eq.s32.totalorder %s13, 0
    %p60 = por %p58, %p59
    %p61 = scmp.ne.s32.totalorder %s47, %s48
    %p62 = scmp.eq.s32.totalorder %s14, 1
    %p63 = por %p61, %p62
    %p65 = scmp.ne.s32.totalorder %s48, %s64
    %p66 = scmp.eq.s32.totalorder %s14, 0
    %p67 = por %p65, %p66
    %s68 = ssub.s32 %s8, %s15
    %p69 = scmp.eq.s32.totalorder %s68, 0
    %s71 = sadd.s32 %s70, 1
    %s72 = scalar_select %p69, %s70, %s71
    %p75 = pneg %p69
    %p76 = scmp.eq.s32.totalorder %s8, 1
    %p77 = por %p75, %p76
    %p78 = scmp.ne.s32.totalorder %s70, %s73
    %p79 = scmp.eq.s32.totalorder %s8, 0
    %p80 = por %p78, %p79
    %p81 = scmp.ne.s32.totalorder %s70, %s73
    %p82 = scmp.eq.s32.totalorder %s13, 1
    %p83 = por %p81, %p82
    %p84 = scmp.ne.s32.totalorder %s73, %s74
    %p85 = scmp.eq.s32.totalorder %s13, 0
    %p86 = por %p84, %p85
    %p87 = scmp.ne.s32.totalorder %s73, %s74
    %p88 = scmp.eq.s32.totalorder %s14, 1
    %p89 = por %p87, %p88
    %p91 = scmp.ne.s32.totalorder %s74, %s90
    %p92 = scmp.eq.s32.totalorder %s14, 0
    %p93 = por %p91, %p92
    %p94 = scmp.le.s32.totalorder 1, %s8
    %p95 = scmp.lt.s32.totalorder %s8, 3
    %p96 = pnand %p94, %p95
    %p97 = pneg %p96
    // Predicated region
    $region9: #{transformer_d_forward.38} parent=5 // pred_check
      _
    $region10: #{transformer_d_forward.38} parent=5 // pred_check_branch
      %99 = sbr.rel (%p96) target = $region12
    $region11: #{transformer_d_forward.38} parent=5 // pred_region
      %s100 = ssub.s32 %s8, 1
    $region12: #{transformer_d_forward.38} parent=5 // pred_fallthru
      _
    %p101 = scmp.lt.s32.totalorder %s8, 2
    // Predicated region
    $region13: #{transformer_d_forward.38} parent=5 // pred_check
      %p102 = pneg %p101
    $region14: #{transformer_d_forward.38} parent=5 // pred_check_branch
      %104 = sbr.rel (%p102) target = $region16
    $region15: #{transformer_d_forward.38} parent=5 // pred_region
      // Predicated region
      $region17: #{transformer_d_forward.38} parent=15 // pred_check
        %p105 = pneg %p28
      $region18: #{transformer_d_forward.38} parent=15 // pred_check_branch
        %107 = sbr.rel (%p105) target = $region20
      $region19: #{transformer_d_forward.38} parent=15 // pred_region
        %p108 = scmp.lt.s32.totalorder %s8, 1
        %s109 = scalar_select %p108, %s8, 1
        %s110 = smul.addr %s109, 2
        %s111 = smul.addr %s110, 8
        %s112 = scalar_lea.vmem %s0, %s111
      $region20: #{transformer_d_forward.38} parent=15 // pred_fallthru
        _
      // Predicated region
      $region21: #{transformer_d_forward.38} parent=15 // pred_check
        %p113 = pneg %p54
      $region22: #{transformer_d_forward.38} parent=15 // pred_check_branch
        %115 = sbr.rel (%p113) target = $region24
      $region23: #{transformer_d_forward.38} parent=15 // pred_region
        %p116 = scmp.lt.s32.totalorder %s8, 1
        %s117 = scalar_select %p116, %s8, 1
        %s118 = smul.addr %s117, 8
        %s119 = scalar_lea.vmem %s1, %s118
      $region24: #{transformer_d_forward.38} parent=15 // pred_fallthru
        _
    $region16: #{transformer_d_forward.38} parent=5 // pred_fallthru
      _
    %p120 = scmp.le.s32.totalorder 1, %s8
    %p121 = scmp.lt.s32.totalorder %s8, 3
    %p122 = pnand %p120, %p121
    %p123 = pneg %p122
    // Predicated region
    $region25: #{transformer_d_forward.38} parent=5 // pred_check
      _
    $region26: #{transformer_d_forward.38} parent=5 // pred_check_branch
      %125 = sbr.rel (%p122) target = $region28
    $region27: #{transformer_d_forward.38} parent=5 // pred_region
      %s126 = ssub.s32 %s8, 1
      %p127 = scmp.lt.s32.totalorder %s13, 1
      %s128 = scalar_select %p127, %s13, 1
      %s129 = smul.addr %s128, 2
      %s130 = smul.addr %s129, 8
      %s131 = scalar_lea.vmem %s0, %s130
      %p132 = pneg %p34
      %p133 = pneg %p31
      %p134 = scmp.lt.s32.totalorder %s13, 1
      %s135 = scalar_select %p134, %s13, 1
      %s136 = smul.addr %s135, 8
      %s137 = scalar_lea.vmem %s1, %s136
      %p138 = pneg %p60
      %p139 = pneg %p57
      %p140 = pneg %p86
      %p141 = pneg %p83
      %p142 = scmp.lt.s32.totalorder %s13, 1
      %s143 = scalar_select %p142, %s13, 1
      %s144 = smul.addr %s143, 2
      %s145 = smul.addr %s144, 8
      %s146 = scalar_lea.vmem %s2, %s145
      %p147 = scmp.lt.s32.totalorder %s13, 1
      %s148 = scalar_select %p147, %s13, 1
      %s149 = smul.addr %s148, 2
      %s150 = smul.addr %s149, 8
      %s151 = scalar_lea.vmem %s0, %s150
      %p152 = scmp.lt.s32.totalorder %s13, 1
      %s153 = scalar_select %p152, %s13, 1
      %s154 = smul.addr %s153, 8
      %s155 = scalar_lea.vmem %s1, %s154
      %p156 = scmp.lt.s32.totalorder %s13, 1
      %s157 = scalar_select %p156, %s13, 1
      %s158 = smul.addr %s157, 2
      %s159 = smul.addr %s158, 8
      %s160 = scalar_lea.vmem %s2, %s159
      %v162 = vld [vmem:[%s151] sm:$0xff]
      %v163 = vld [vmem:[%s151 + $0x8] sm:$0xff]
      %v164 = vmul.f32 %v162, 0.35355338
      %v165 = vmul.f32 %v163, 0.35355338
      %v166 = vpack.c.bf16 %v165, %v164
      %v167 = vld [vmem:[%s155] sm:$0xff]
      %v168 = vpack.c.bf16 %v167, %v167
      %vm169 = vcmask 64512
      %v171 = vsel %vm169, %v166, 0
      %v174 = vsel %vm169, %v168, 0
      %176 = vmatpush.bf16.xpose.msra.mxu0 0
      %177 = vmatpush.bf16.xpose.msra.mxu0 0
      %178 = vmatpush.bf16.xpose.msra.mxu0 0
      %179 = vmatpush.bf16.xpose.msra.mxu0 0
      %180 = vmatpush.bf16.xpose.msra.mxu0 0
      %181 = vmatpush.bf16.xpose.msra.mxu0 0
      %182 = vmatpush.bf16.xpose.msra.mxu0 0
      %183 = vmatpush.bf16.xpose.msra.mxu0 %v174
      %184 = vmatmul.bf16.gmra.mxu0 %v171
      %v185 = vpop.f32.mrf.mxu0
      %v186 = vadd.f32 0.0, %v185
      %v187 = vpop.f32.mrf.mxu0
      %v188 = vadd.f32 0.0, %v187
      %189 = vdwg.mxu0
      %v190 = vsel %vm169, %v186, -inf
      %191 = vmax.xlane.f32.xlu0 %v190
      %v192 = vpop.xlane.xlu0 %191
      %v193 = vsel %vm169, %v188, -inf
      %194 = vmax.xlane.f32.xlu0 %v193
      %v195 = vpop.xlane.xlu0 %194
      %v196 = vsub.f32 %v186, %v192
      %v197 = vsub.f32 %v188, %v195
      %v198 = vmul.f32 %v196, 1.442695
      %v199 = vpow.pop %v198
      %v200 = vmul.f32 %v197, 1.442695
      %v201 = vpow.pop %v200
      %v202 = vsel %vm169, %v199, 0.0
      %203 = vadd.xlane.f32.xlu0 %v202
      %v204 = vpop.xlane.xlu0 %203
      %v205 = vsel %vm169, %v201, 0.0
      %206 = vadd.xlane.f32.xlu0 %v205
      %v207 = vpop.xlane.xlu0 %206
      %v208 = vrcp.pop %v204
      %v209 = vrcp.pop %v207
      %v210 = vmul.f32 %v199, %v208
      %v211 = vmul.f32 %v201, %v209
      %v212 = vpack.c.bf16 %v211, %v210
      %214 = vrot.lane.b32.xlu0 %v168, 96
      %v215 = vpop.permute.xlu0 %214
      %v217 = vsel %vm169, %v212, 0
      %vm219 = vcmask 1043456
      %v221 = vsel %vm219, %v215, 0
      %223 = vmatpush.bf16.msra.mxu0 0
      %224 = vmatpush.bf16.msra.mxu0 0
      %225 = vmatpush.bf16.msra.mxu0 0
      %226 = vmatpush.bf16.msra.mxu0 0
      %227 = vmatpush.bf16.msra.mxu0 0
      %228 = vmatpush.bf16.msra.mxu0 0
      %229 = vmatpush.bf16.msra.mxu0 0
      %230 = vmatpush.bf16.msra.mxu0 %v221
      %231 = vmatmul.bf16.gmra.mxu0 %v217
      %v232 = vpop.f32.mrf.mxu0
      %v233 = vadd.f32 0.0, %v232
      %v234 = vpop.f32.mrf.mxu0
      %v235 = vadd.f32 0.0, %v234
      %236 = vdwg.mxu0
      %237 = vst.msk [vmem:[%s160] sm:$0xff] %vm169, %v233
      %238 = vst.msk [vmem:[%s160 + $0x8] sm:$0xff] %vm169, %v235
      %v239 = vld [vmem:[%s151] sm:$0xff]
      %v240 = vld [vmem:[%s151 + $0x8] sm:$0xff]
      %v241 = vmul.f32 %v239, 0.35355338
      %v242 = vmul.f32 %v240, 0.35355338
      %v243 = vpack.c.bf16 %v242, %v241
      %v244 = vld [vmem:[%s155] sm:$0xff]
      %v245 = vpack.c.bf16 %v244, %v244
      %247 = vrot.lane.b32.xlu0 %v243, 120
      %v248 = vpop.permute.xlu0 %247
      %250 = vrot.lane.b32.xlu0 %v245, 120
      %v251 = vpop.permute.xlu0 %250
      %v253 = vsel %vm169, %v248, 0
      %v256 = vsel %vm169, %v251, 0
      %258 = vmatpush.bf16.xpose.msra.mxu0 0
      %259 = vmatpush.bf16.xpose.msra.mxu0 0
      %260 = vmatpush.bf16.xpose.msra.mxu0 0
      %261 = vmatpush.bf16.xpose.msra.mxu0 0
      %262 = vmatpush.bf16.xpose.msra.mxu0 0
      %263 = vmatpush.bf16.xpose.msra.mxu0 0
      %264 = vmatpush.bf16.xpose.msra.mxu0 0
      %265 = vmatpush.bf16.xpose.msra.mxu0 %v256
      %266 = vmatmul.bf16.gmra.mxu0 %v253
      %v267 = vpop.f32.mrf.mxu0
      %v268 = vadd.f32 0.0, %v267
      %v269 = vpop.f32.mrf.mxu0
      %v270 = vadd.f32 0.0, %v269
      %271 = vdwg.mxu0
      %v272 = vsel %vm169, %v268, -inf
      %273 = vmax.xlane.f32.xlu0 %v272
      %v274 = vpop.xlane.xlu0 %273
      %v275 = vsel %vm169, %v270, -inf
      %276 = vmax.xlane.f32.xlu0 %v275
      %v277 = vpop.xlane.xlu0 %276
      %v278 = vsub.f32 %v268, %v274
      %v279 = vsub.f32 %v270, %v277
      %v280 = vmul.f32 %v278, 1.442695
      %v281 = vpow.pop %v280
      %v282 = vmul.f32 %v279, 1.442695
      %v283 = vpow.pop %v282
      %v284 = vsel %vm169, %v281, 0.0
      %285 = vadd.xlane.f32.xlu0 %v284
      %v286 = vpop.xlane.xlu0 %285
      %v287 = vsel %vm169, %v283, 0.0
      %288 = vadd.xlane.f32.xlu0 %v287
      %v289 = vpop.xlane.xlu0 %288
      %v290 = vrcp.pop %v286
      %v291 = vrcp.pop %v289
      %v292 = vmul.f32 %v281, %v290
      %v293 = vmul.f32 %v283, %v291
      %v294 = vpack.c.bf16 %v293, %v292
      %295 = vrot.lane.b32.xlu0 %v245, 88
      %v296 = vpop.permute.xlu0 %295
      %v298 = vsel %vm169, %v294, 0
      %v301 = vsel %vm219, %v296, 0
      %303 = vmatpush.bf16.msra.mxu0 0
      %304 = vmatpush.bf16.msra.mxu0 0
      %305 = vmatpush.bf16.msra.mxu0 0
      %306 = vmatpush.bf16.msra.mxu0 0
      %307 = vmatpush.bf16.msra.mxu0 0
      %308 = vmatpush.bf16.msra.mxu0 0
      %309 = vmatpush.bf16.msra.mxu0 0
      %310 = vmatpush.bf16.msra.mxu0 %v301
      %311 = vmatmul.bf16.gmra.mxu0 %v298
      %v312 = vpop.f32.mrf.mxu0
      %v313 = vadd.f32 0.0, %v312
      %v314 = vpop.f32.mrf.mxu0
      %v315 = vadd.f32 0.0, %v314
      %316 = vdwg.mxu0
      %319 = vrot.lane.b32.xlu0 %v313, 8
      %v320 = vpop.permute.xlu0 %319
      %321 = vrot.lane.b32.xlu0 %v315, 8
      %v322 = vpop.permute.xlu0 %321
      %vm325 = vcmask 130112
      %326 = vst.msk [vmem:[%s160] sm:$0xff] %vm325, %v320
      %327 = vst.msk [vmem:[%s160 + $0x8] sm:$0xff] %vm325, %v322
      %v328 = vld [vmem:[%s151] sm:$0xff]
      %v329 = vld [vmem:[%s151 + $0x8] sm:$0xff]
      %v330 = vmul.f32 %v328, 0.35355338
      %v331 = vmul.f32 %v329, 0.35355338
      %v332 = vpack.c.bf16 %v331, %v330
      %v333 = vld [vmem:[%s155] sm:$0xff]
      %v334 = vpack.c.bf16 %v333, %v333
      %336 = vrot.lane.b32.xlu0 %v332, 112
      %v337 = vpop.permute.xlu0 %336
      %339 = vrot.lane.b32.xlu0 %v334, 112
      %v340 = vpop.permute.xlu0 %339
      %v342 = vsel %vm169, %v337, 0
      %v345 = vsel %vm169, %v340, 0
      %347 = vmatpush.bf16.xpose.msra.mxu0 0
      %348 = vmatpush.bf16.xpose.msra.mxu0 0
      %349 = vmatpush.bf16.xpose.msra.mxu0 0
      %350 = vmatpush.bf16.xpose.msra.mxu0 0
      %351 = vmatpush.bf16.xpose.msra.mxu0 0
      %352 = vmatpush.bf16.xpose.msra.mxu0 0
      %353 = vmatpush.bf16.xpose.msra.mxu0 0
      %354 = vmatpush.bf16.xpose.msra.mxu0 %v345
      %355 = vmatmul.bf16.gmra.mxu0 %v342
      %v356 = vpop.f32.mrf.mxu0
      %v357 = vadd.f32 0.0, %v356
      %v358 = vpop.f32.mrf.mxu0
      %v359 = vadd.f32 0.0, %v358
      %360 = vdwg.mxu0
      %v361 = vsel %vm169, %v357, -inf
      %362 = vmax.xlane.f32.xlu0 %v361
      %v363 = vpop.xlane.xlu0 %362
      %v364 = vsel %vm169, %v359, -inf
      %365 = vmax.xlane.f32.xlu0 %v364
      %v366 = vpop.xlane.xlu0 %365
      %v367 = vsub.f32 %v357, %v363
      %v368 = vsub.f32 %v359, %v366
      %v369 = vmul.f32 %v367, 1.442695
      %v370 = vpow.pop %v369
      %v371 = vmul.f32 %v368, 1.442695
      %v372 = vpow.pop %v371
      %v373 = vsel %vm169, %v370, 0.0
      %374 = vadd.xlane.f32.xlu0 %v373
      %v375 = vpop.xlane.xlu0 %374
      %v376 = vsel %vm169, %v372, 0.0
      %377 = vadd.xlane.f32.xlu0 %v376
      %v378 = vpop.xlane.xlu0 %377
      %v379 = vrcp.pop %v375
      %v380 = vrcp.pop %v378
      %v381 = vmul.f32 %v370, %v379
      %v382 = vmul.f32 %v372, %v380
      %v383 = vpack.c.bf16 %v382, %v381
      %384 = vrot.lane.b32.xlu0 %v334, 80
      %v385 = vpop.permute.xlu0 %384
      %v387 = vsel %vm169, %v383, 0
      %v390 = vsel %vm219, %v385, 0
      %392 = vmatpush.bf16.msra.mxu0 0
      %393 = vmatpush.bf16.msra.mxu0 0
      %394 = vmatpush.bf16.msra.mxu0 0
      %395 = vmatpush.bf16.msra.mxu0 0
      %396 = vmatpush.bf16.msra.mxu0 0
      %397 = vmatpush.bf16.msra.mxu0 0
      %398 = vmatpush.bf16.msra.mxu0 0
      %399 = vmatpush.bf16.msra.mxu0 %v390
      %400 = vmatmul.bf16.gmra.mxu0 %v387
      %v401 = vpop.f32.mrf.mxu0
      %v402 = vadd.f32 0.0, %v401
      %v403 = vpop.f32.mrf.mxu0
      %v404 = vadd.f32 0.0, %v403
      %405 = vdwg.mxu0
      %408 = vrot.lane.b32.xlu0 %v402, 16
      %v409 = vpop.permute.xlu0 %408
      %410 = vrot.lane.b32.xlu0 %v404, 16
      %v411 = vpop.permute.xlu0 %410
      %vm414 = vcmask 195712
      %415 = vst.msk [vmem:[%s160] sm:$0xff] %vm414, %v409
      %416 = vst.msk [vmem:[%s160 + $0x8] sm:$0xff] %vm414, %v411
      %v417 = vld [vmem:[%s151] sm:$0xff]
      %v418 = vld [vmem:[%s151 + $0x8] sm:$0xff]
      %v419 = vmul.f32 %v417, 0.35355338
      %v420 = vmul.f32 %v418, 0.35355338
      %v421 = vpack.c.bf16 %v420, %v419
      %v422 = vld [vmem:[%s155] sm:$0xff]
      %v423 = vpack.c.bf16 %v422, %v422
      %425 = vrot.lane.b32.xlu0 %v421, 104
      %v426 = vpop.permute.xlu0 %425
      %428 = vrot.lane.b32.xlu0 %v423, 104
      %v429 = vpop.permute.xlu0 %428
      %v431 = vsel %vm169, %v426, 0
      %v434 = vsel %vm169, %v429, 0
      %436 = vmatpush.bf16.xpose.msra.mxu0 0
      %437 = vmatpush.bf16.xpose.msra.mxu0 0
      %438 = vmatpush.bf16.xpose.msra.mxu0 0
      %439 = vmatpush.bf16.xpose.msra.mxu0 0
      %440 = vmatpush.bf16.xpose.msra.mxu0 0
      %441 = vmatpush.bf16.xpose.msra.mxu0 0
      %442 = vmatpush.bf16.xpose.msra.mxu0 0
      %443 = vmatpush.bf16.xpose.msra.mxu0 %v434
      %444 = vmatmul.bf16.gmra.mxu0 %v431
      %v445 = vpop.f32.mrf.mxu0
      %v446 = vadd.f32 0.0, %v445
      %v447 = vpop.f32.mrf.mxu0
      %v448 = vadd.f32 0.0, %v447
      %449 = vdwg.mxu0
      %v450 = vsel %vm169, %v446, -inf
      %451 = vmax.xlane.f32.xlu0 %v450
      %v452 = vpop.xlane.xlu0 %451
      %v453 = vsel %vm169, %v448, -inf
      %454 = vmax.xlane.f32.xlu0 %v453
      %v455 = vpop.xlane.xlu0 %454
      %v456 = vsub.f32 %v446, %v452
      %v457 = vsub.f32 %v448, %v455
      %v458 = vmul.f32 %v456, 1.442695
      %v459 = vpow.pop %v458
      %v460 = vmul.f32 %v457, 1.442695
      %v461 = vpow.pop %v460
      %v462 = vsel %vm169, %v459, 0.0
      %463 = vadd.xlane.f32.xlu0 %v462
      %v464 = vpop.xlane.xlu0 %463
      %v465 = vsel %vm169, %v461, 0.0
      %466 = vadd.xlane.f32.xlu0 %v465
      %v467 = vpop.xlane.xlu0 %466
      %v468 = vrcp.pop %v464
      %v469 = vrcp.pop %v467
      %v470 = vmul.f32 %v459, %v468
      %v471 = vmul.f32 %v461, %v469
      %v472 = vpack.c.bf16 %v471, %v470
      %473 = vrot.lane.b32.xlu0 %v423, 72
      %v474 = vpop.permute.xlu0 %473
      %v476 = vsel %vm169, %v472, 0
      %v479 = vsel %vm219, %v474, 0
      %481 = vmatpush.bf16.msra.mxu0 0
      %482 = vmatpush.bf16.msra.mxu0 0
      %483 = vmatpush.bf16.msra.mxu0 0
      %484 = vmatpush.bf16.msra.mxu0 0
      %485 = vmatpush.bf16.msra.mxu0 0
      %486 = vmatpush.bf16.msra.mxu0 0
      %487 = vmatpush.bf16.msra.mxu0 0
      %488 = vmatpush.bf16.msra.mxu0 %v479
      %489 = vmatmul.bf16.gmra.mxu0 %v476
      %v490 = vpop.f32.mrf.mxu0
      %v491 = vadd.f32 0.0, %v490
      %v492 = vpop.f32.mrf.mxu0
      %v493 = vadd.f32 0.0, %v492
      %494 = vdwg.mxu0
      %497 = vrot.lane.b32.xlu0 %v491, 24
      %v498 = vpop.permute.xlu0 %497
      %499 = vrot.lane.b32.xlu0 %v493, 24
      %v500 = vpop.permute.xlu0 %499
      %vm503 = vcmask 261312
      %504 = vst.msk [vmem:[%s160] sm:$0xff] %vm503, %v498
      %505 = vst.msk [vmem:[%s160 + $0x8] sm:$0xff] %vm503, %v500
      %p506 = scmp.lt.s32.totalorder %s13, 1
      %s507 = scalar_select %p506, %s13, 1
      %s508 = smul.addr %s507, 2
      %s509 = smul.addr %s508, 8
      %s510 = scalar_lea.vmem %s2, %s509
      // Predicated region
      $region29: #{transformer_d_forward.38} parent=27 // pred_check
        %p511 = pneg %p83
      $region30: #{transformer_d_forward.38} parent=27 // pred_check_branch
        %513 = sbr.rel (%p511) target = $region32
      $region31: #{transformer_d_forward.38} parent=27 // pred_region
        _
      $region32: #{transformer_d_forward.38} parent=27 // pred_fallthru
        _
    $region28: #{transformer_d_forward.38} parent=5 // pred_fallthru
      _
    %p514 = scmp.le.s32.totalorder 2, %s8
    // Predicated region
    $region33: #{transformer_d_forward.38} parent=5 // pred_check
      %p515 = pneg %p514
    $region34: #{transformer_d_forward.38} parent=5 // pred_check_branch
      %517 = sbr.rel (%p515) target = $region36
    $region35: #{transformer_d_forward.38} parent=5 // pred_region
      %s518 = ssub.s32 %s8, 2
      // Predicated region
      $region37: #{transformer_d_forward.38} parent=35 // pred_check
        %p519 = pneg %p89
      $region38: #{transformer_d_forward.38} parent=35 // pred_check_branch
        %521 = sbr.rel (%p519) target = $region40
      $region39: #{transformer_d_forward.38} parent=35 // pred_region
        %p522 = scmp.lt.s32.totalorder %s14, 1
        %s523 = scalar_select %p522, %s14, 1
        %s524 = smul.addr %s523, 2
        %s525 = smul.addr %s524, 8
        %s526 = scalar_lea.vmem %s2, %s525
      $region40: #{transformer_d_forward.38} parent=35 // pred_fallthru
        _
    $region36: #{transformer_d_forward.38} parent=5 // pred_fallthru
      _
  $region6: #{transformer_d_forward.38} parent=0 // loop_footer
    %s12 = sadd.s32 1, %s8
  $region7: #{transformer_d_forward.38} parent=0 // loop_footer_branch
    %7 = sbr.rel target = $region3
  $region8: #{transformer_d_forward.38} parent=0 // loop_exit
    _

// kernel: transformer_d_forward.51
$region0: #{transformer_d_forward.51}
  #allocation0 [shape = 'u32[]', space=smem, size = 0x4, offset = 0x4, fixed_abs, tag = 'smem constant byte address 0x4 - core index']
  #allocation1 [shape = 'u32[72,128]{1,0:T(1,128)}', space=vmem, size = 0x9000, scoped, tag = 'internal scratch']
  #allocation2 [shape = 'f32[16,8]{1,0:T(8,128)}', space=vmem, size = 0x2000, scoped, tag = 'scratch operand']
  %s0 = inlined_call_operand.vmem [shape: f32[32,32], index: 0, kind: input, shape index: {}]
  %s1 = inlined_call_operand.vmem [shape: bf16[32,8], index: 1, kind: input, shape index: {}]
  %s2 = inlined_call_operand.vmem [shape: f32[1,8], index: 2, kind: input, shape index: {}]
  %s3 = inlined_call_operand.vmem [shape: f32[32,8], index: 3, kind: output, shape index: {}]
  %s4 = sld [smem:[#allocation0]]
  $region53: #{transformer_d_forward.51} parent=0
    _
  %s6 = ssub.s32 1, %s4
  %s7 = scalar_select 0, %s6, %s4
  loop: start=0, step=1, limit=4
  $region2: #{transformer_d_forward.51} parent=0 // loop_pre_header
    _
  $region3: #{transformer_d_forward.51} parent=0 // loop_header
    %s9 = sphi 0, %s13
    %p10 = scmp.ge.s32.totalorder %s9, 4
    %s16 = sphi 0, %s35
    %s17 = sphi 0, %s31
    %s18 = sphi 0, %s27
    %s19 = sphi 0, %s16
    %s20 = sphi 0, %s17
    %s21 = sphi 0, %s18
    %s22 = sphi 0, %s19
    %s23 = sphi 0, %s20
    %s24 = sphi 0, %s21
    %s40 = sphi 0, %s42
    %s43 = sphi 0, %s40
    %s44 = sphi 0, %s43
    %s60 = sphi 0, %s44
    %s68 = sphi 0, %s70
    %s71 = sphi 0, %s68
    %s72 = sphi 0, %s71
    %s88 = sphi 0, %s72
    %s94 = sphi 0, %s96
    %s97 = sphi 0, %s94
    %s98 = sphi 0, %s97
    %s114 = sphi 0, %s98
    %s122 = sphi 0, %s124
    %s125 = sphi 0, %s122
    %s126 = sphi 0, %s125
    %s142 = sphi 0, %s126
  $region4: #{transformer_d_forward.51} parent=0 // loop_header_branch
    %12 = sbr.rel (%p10) target = $region8
  $region5: #{transformer_d_forward.51} parent=0 // loop_body
    %s14 = ssub.s32 %s9, 1
    %s15 = ssub.s32 %s9, 2
    %s25 = sadd.s32 1, %s18
    %p26 = scmp.ge.s32.totalorder %s25, 1
    %s27 = scalar_select %p26, 0, %s25
    %s28 = sadd.s32 1, %s17
    %s29 = scalar_select %p26, %s28, %s17
    %p30 = scmp.ge.s32.totalorder %s29, 1
    %s31 = scalar_select %p30, 0, %s29
    %s32 = sadd.s32 1, %s16
    %s33 = scalar_select %p30, %s32, %s16
    %p34 = scmp.ge.s32.totalorder %s33, 2
    %s35 = scalar_select %p34, 0, %s33
    %s36 = ssub.s32 %s16, %s35
    %s37 = ssub.s32 %s18, %s27
    %s38 = sor.u32 %s36, %s37
    %p39 = scmp.eq.s32.totalorder %s38, 0
    %s41 = sadd.s32 %s40, 1
    %s42 = scalar_select %p39, %s40, %s41
    %p45 = pneg %p39
    %p46 = scmp.eq.s32.totalorder %s9, 1
    %p47 = por %p45, %p46
    %p48 = scmp.ne.s32.totalorder %s40, %s43
    %p49 = scmp.eq.s32.totalorder %s9, 0
    %p50 = por %p48, %p49
    %p51 = scmp.ne.s32.totalorder %s40, %s43
    %p52 = scmp.eq.s32.totalorder %s14, 1
    %p53 = por %p51, %p52
    %p54 = scmp.ne.s32.totalorder %s43, %s44
    %p55 = scmp.eq.s32.totalorder %s14, 0
    %p56 = por %p54, %p55
    %p57 = scmp.ne.s32.totalorder %s43, %s44
    %p58 = scmp.eq.s32.totalorder %s15, 1
    %p59 = por %p57, %p58
    %p61 = scmp.ne.s32.totalorder %s44, %s60
    %p62 = scmp.eq.s32.totalorder %s15, 0
    %p63 = por %p61, %p62
    %s64 = ssub.s32 %s18, %s27
    %s65 = ssub.s32 %s17, %s31
    %s66 = sor.u32 %s64, %s65
    %p67 = scmp.eq.s32.totalorder %s66, 0
    %s69 = sadd.s32 %s68, 1
    %s70 = scalar_select %p67, %s68, %s69
    %p73 = pneg %p67
    %p74 = scmp.eq.s32.totalorder %s9, 1
    %p75 = por %p73, %p74
    %p76 = scmp.ne.s32.totalorder %s68, %s71
    %p77 = scmp.eq.s32.totalorder %s9, 0
    %p78 = por %p76, %p77
    %p79 = scmp.ne.s32.totalorder %s68, %s71
    %p80 = scmp.eq.s32.totalorder %s14, 1
    %p81 = por %p79, %p80
    %p82 = scmp.ne.s32.totalorder %s71, %s72
    %p83 = scmp.eq.s32.totalorder %s14, 0
    %p84 = por %p82, %p83
    %p85 = scmp.ne.s32.totalorder %s71, %s72
    %p86 = scmp.eq.s32.totalorder %s15, 1
    %p87 = por %p85, %p86
    %p89 = scmp.ne.s32.totalorder %s72, %s88
    %p90 = scmp.eq.s32.totalorder %s15, 0
    %p91 = por %p89, %p90
    %s92 = ssub.s32 %s17, %s31
    %p93 = scmp.eq.s32.totalorder %s92, 0
    %s95 = sadd.s32 %s94, 1
    %s96 = scalar_select %p93, %s94, %s95
    %p99 = pneg %p93
    %p100 = scmp.eq.s32.totalorder %s9, 1
    %p101 = por %p99, %p100
    %p102 = scmp.ne.s32.totalorder %s94, %s97
    %p103 = scmp.eq.s32.totalorder %s9, 0
    %p104 = por %p102, %p103
    %p105 = scmp.ne.s32.totalorder %s94, %s97
    %p106 = scmp.eq.s32.totalorder %s14, 1
    %p107 = por %p105, %p106
    %p108 = scmp.ne.s32.totalorder %s97, %s98
    %p109 = scmp.eq.s32.totalorder %s14, 0
    %p110 = por %p108, %p109
    %p111 = scmp.ne.s32.totalorder %s97, %s98
    %p112 = scmp.eq.s32.totalorder %s15, 1
    %p113 = por %p111, %p112
    %p115 = scmp.ne.s32.totalorder %s98, %s114
    %p116 = scmp.eq.s32.totalorder %s15, 0
    %p117 = por %p115, %p116
    %s118 = ssub.s32 %s16, %s35
    %s119 = ssub.s32 %s17, %s31
    %s120 = sor.u32 %s118, %s119
    %p121 = scmp.eq.s32.totalorder %s120, 0
    %s123 = sadd.s32 %s122, 1
    %s124 = scalar_select %p121, %s122, %s123
    %p127 = pneg %p121
    %p128 = scmp.eq.s32.totalorder %s9, 1
    %p129 = por %p127, %p128
    %p130 = scmp.ne.s32.totalorder %s122, %s125
    %p131 = scmp.eq.s32.totalorder %s9, 0
    %p132 = por %p130, %p131
    %p133 = scmp.ne.s32.totalorder %s122, %s125
    %p134 = scmp.eq.s32.totalorder %s14, 1
    %p135 = por %p133, %p134
    %p136 = scmp.ne.s32.totalorder %s125, %s126
    %p137 = scmp.eq.s32.totalorder %s14, 0
    %p138 = por %p136, %p137
    %p139 = scmp.ne.s32.totalorder %s125, %s126
    %p140 = scmp.eq.s32.totalorder %s15, 1
    %p141 = por %p139, %p140
    %p143 = scmp.ne.s32.totalorder %s126, %s142
    %p144 = scmp.eq.s32.totalorder %s15, 0
    %p145 = por %p143, %p144
    %p146 = scmp.le.s32.totalorder 1, %s9
    %p147 = scmp.lt.s32.totalorder %s9, 3
    %p148 = pnand %p146, %p147
    %p149 = pneg %p148
    // Predicated region
    $region9: #{transformer_d_forward.51} parent=5 // pred_check
      _
    $region10: #{transformer_d_forward.51} parent=5 // pred_check_branch
      %151 = sbr.rel (%p148) target = $region12
    $region11: #{transformer_d_forward.51} parent=5 // pred_region
      %s152 = ssub.s32 %s9, 1
      // Predicated region
      $region13: #{transformer_d_forward.51} parent=11 // pred_check
        %p153 = pneg %p84
      $region14: #{transformer_d_forward.51} parent=11 // pred_check_branch
        %155 = sbr.rel (%p153) target = $region16
      $region15: #{transformer_d_forward.51} parent=11 // pred_region
        %s156 = smul.u32 4, %s21
        %p157 = scmp.lt.s32.totalorder %s156, 3
        %s158 = scalar_select %p157, %s156, 3
        %p159 = scmp.lt.s32.totalorder %s20, 0
        %s160 = scalar_select %p159, %s20, 0
        %s161 = sadd.s32 %s160, %s158
        %s162 = smul.addr %s161, 4
        %s163 = scalar_lea.vmem %s1, %s162
        %s164 = smul.u32 4, %s21
      $region16: #{transformer_d_forward.51} parent=11 // pred_fallthru
        _
      // Predicated region
      $region17: #{transformer_d_forward.51} parent=11 // pred_check
        %p165 = pneg %p110
      $region18: #{transformer_d_forward.51} parent=11 // pred_check_branch
        %167 = sbr.rel (%p165) target = $region20
      $region19: #{transformer_d_forward.51} parent=11 // pred_region
        %p168 = scmp.lt.s32.totalorder %s20, 0
        %s169 = scalar_select %p168, %s20, 0
        %s170 = scalar_lea.vmem %s2, %s169
      $region20: #{transformer_d_forward.51} parent=11 // pred_fallthru
        _
    $region12: #{transformer_d_forward.51} parent=5 // pred_fallthru
      _
    %p171 = scmp.lt.s32.totalorder %s9, 2
    // Predicated region
    $region21: #{transformer_d_forward.51} parent=5 // pred_check
      %p172 = pneg %p171
    $region22: #{transformer_d_forward.51} parent=5 // pred_check_branch
      %174 = sbr.rel (%p172) target = $region24
    $region23: #{transformer_d_forward.51} parent=5 // pred_region
      // Predicated region
      $region25: #{transformer_d_forward.51} parent=23 // pred_check
        %p175 = pneg %p50
      $region26: #{transformer_d_forward.51} parent=23 // pred_check_branch
        %177 = sbr.rel (%p175) target = $region28
      $region27: #{transformer_d_forward.51} parent=23 // pred_region
        %s178 = smul.u32 2, %s16
        %p179 = scmp.lt.s32.totalorder %s178, 3
        %s180 = scalar_select %p179, %s178, 3
        %p181 = scmp.lt.s32.totalorder %s18, 0
        %s182 = scalar_select %p181, %s18, 0
        %s183 = sadd.s32 %s182, %s180
        %s184 = smul.addr %s183, 8
        %s185 = scalar_lea.vmem %s0, %s184
        %s186 = smul.u32 2, %s16
      $region28: #{transformer_d_forward.51} parent=23 // pred_fallthru
        _
    $region24: #{transformer_d_forward.51} parent=5 // pred_fallthru
      _
    %p187 = scmp.le.s32.totalorder 1, %s9
    %p188 = scmp.lt.s32.totalorder %s9, 3
    %p189 = pnand %p187, %p188
    %p190 = pneg %p189
    // Predicated region
    $region29: #{transformer_d_forward.51} parent=5 // pred_check
      _
    $region30: #{transformer_d_forward.51} parent=5 // pred_check_branch
      %192 = sbr.rel (%p189) target = $region32
    $region31: #{transformer_d_forward.51} parent=5 // pred_region
      %s193 = ssub.s32 %s9, 1
      %s194 = smul.u32 2, %s19
      %p195 = scmp.lt.s32.totalorder %s194, 3
      %s196 = scalar_select %p195, %s194, 3
      %p197 = scmp.lt.s32.totalorder %s21, 0
      %s198 = scalar_select %p197, %s21, 0
      %s199 = sadd.s32 %s198, %s196
      %s200 = smul.addr %s199, 8
      %s201 = scalar_lea.vmem %s0, %s200
      %p202 = pneg %p56
      %p203 = pneg %p53
      %s204 = smul.u32 4, %s21
      %p205 = scmp.lt.s32.totalorder %s204, 3
      %s206 = scalar_select %p205, %s204, 3
      %p207 = scmp.lt.s32.totalorder %s20, 0
      %s208 = scalar_select %p207, %s20, 0
      %s209 = sadd.s32 %s208, %s206
      %s210 = smul.addr %s209, 4
      %s211 = scalar_lea.vmem %s1, %s210
      %p212 = pneg %p84
      %p213 = pneg %p81
      %p214 = scmp.lt.s32.totalorder %s20, 0
      %s215 = scalar_select %p214, %s20, 0
      %s216 = scalar_lea.vmem %s2, %s215
      %p217 = pneg %p110
      %p218 = pneg %p107
      %p219 = pneg %p138
      %p220 = pneg %p135
      %s221 = smul.u32 2, %s19
      %p222 = scmp.lt.s32.totalorder %s221, 3
      %s223 = scalar_select %p222, %s221, 3
      %p224 = scmp.lt.s32.totalorder %s20, 0
      %s225 = scalar_select %p224, %s20, 0
      %s226 = sadd.s32 %s225, %s223
      %s227 = smul.addr %s226, 8
      %s228 = scalar_lea.vmem %s3, %s227
      %s229 = smul.u32 2, %s19
      %p230 = scmp.lt.s32.totalorder %s229, 3
      %s231 = scalar_select %p230, %s229, 3
      %p232 = scmp.lt.s32.totalorder %s21, 0
      %s233 = scalar_select %p232, %s21, 0
      %s234 = sadd.s32 %s233, %s231
      %s235 = smul.addr %s234, 8
      %s236 = scalar_lea.vmem %s0, %s235
      %s237 = smul.u32 2, %s19
      %s238 = smul.u32 4, %s21
      %p239 = scmp.lt.s32.totalorder %s238, 3
      %s240 = scalar_select %p239, %s238, 3
      %p241 = scmp.lt.s32.totalorder %s20, 0
      %s242 = scalar_select %p241, %s20, 0
      %s243 = sadd.s32 %s242, %s240
      %s244 = smul.addr %s243, 4
      %s245 = scalar_lea.vmem %s1, %s244
      %s246 = smul.u32 4, %s21
      %p247 = scmp.lt.s32.totalorder %s20, 0
      %s248 = scalar_select %p247, %s20, 0
      %s249 = scalar_lea.vmem %s2, %s248
      %s250 = smul.u32 2, %s19
      %p251 = scmp.lt.s32.totalorder %s250, 3
      %s252 = scalar_select %p251, %s250, 3
      %p253 = scmp.lt.s32.totalorder %s20, 0
      %s254 = scalar_select %p253, %s20, 0
      %s255 = sadd.s32 %s254, %s252
      %s256 = smul.addr %s255, 8
      %s257 = scalar_lea.vmem %s3, %s256
      %s258 = smul.u32 2, %s19
      %p260 = scmp.eq.s32.totalorder %s21, 0
      // Predicated region
      $region33: #{transformer_d_forward.51} parent=31 // pred_check
        %p261 = pneg %p260
      $region34: #{transformer_d_forward.51} parent=31 // pred_check_branch
        %263 = sbr.rel (%p261) target = $region36
      $region35: #{transformer_d_forward.51} parent=31 // pred_region
        %vm264 = vcmask 64512
        %265 = vst.msk [vmem:[#allocation2] sm:$0xff] %vm264, 0.0
        %266 = vst.msk [vmem:[#allocation2 + $0x8] sm:$0xff] %vm264, 0.0
      $region36: #{transformer_d_forward.51} parent=31 // pred_fallthru
        _
      %v267 = vld [vmem:[#allocation2] sm:$0xff]
      %v268 = vld [vmem:[#allocation2 + $0x8] sm:$0xff]
      %v269 = vld [vmem:[%s236] sm:$0xff]
      %v270 = vld [vmem:[%s236 + $0x8] sm:$0xff]
      %v271 = vpack.c.bf16 %v270, %v269
      %v272 = vld [vmem:[%s245] sm:$0xf]
      %v273 = vld [vmem:[%s245 + $0x4] sm:$0xf]
      %v274 = vld [vmem:[%s245 + $0x8] sm:$0xf]
      %v275 = vld [vmem:[%s245 + $0xc] sm:$0xf]
      %v280 = vunpack.c.l.b16 %v272
      %v281 = vunpack.c.l.b16 %v273
      %v282 = vunpack.c.l.b16 %v274
      %v283 = vunpack.c.l.b16 %v275
      %v284 = vpack.c.b16 %v281, %v280
      %v285 = vpack.c.b16 %v283, %v282
      %vm288 = vcmask 261120
      %v290 = vsel %vm288, %v271, 0
      %292 = vmatpush.bf16.msra.mxu0 0
      %293 = vmatpush.bf16.msra.mxu0 0
      %294 = vmatpush.bf16.msra.mxu0 0
      %295 = vmatpush.bf16.msra.mxu0 0
      %296 = vmatpush.bf16.msra.mxu0 0
      %297 = vmatpush.bf16.msra.mxu0 0
      %298 = vmatpush.bf16.msra.mxu0 %v285
      %299 = vmatpush.bf16.msra.mxu0 %v284
      %300 = vmatmul.bf16.gmra.mxu0 %v290
      %v301 = vpop.f32.mrf.mxu0
      %v302 = vadd.f32 0.0, %v301
      %v303 = vpop.f32.mrf.mxu0
      %v304 = vadd.f32 0.0, %v303
      %305 = vdwg.mxu0
      %v306 = vadd.f32 %v267, %v302
      %v307 = vadd.f32 %v268, %v304
      %vm308 = vcmask 64512
      %309 = vst.msk [vmem:[#allocation2] sm:$0xff] %vm308, %v306
      %310 = vst.msk [vmem:[#allocation2 + $0x8] sm:$0xff] %vm308, %v307
      // Predicated region
      $region37: #{transformer_d_forward.51} parent=31 // pred_check
        %p311 = pneg %p260
      $region38: #{transformer_d_forward.51} parent=31 // pred_check_branch
        %313 = sbr.rel (%p311) target = $region40
      $region39: #{transformer_d_forward.51} parent=31 // pred_region
        %v314 = vld [vmem:[#allocation2] sm:$0xff]
        %v315 = vld [vmem:[#allocation2 + $0x8] sm:$0xff]
        %v316 = vld [vmem:[%s249] sm:$0x1]
        %v318 = vperm.slane %v316, 0
        %v320 = vadd.f32 %v314, %v318
        %v321 = vadd.f32 %v315, %v318
        %v322 = vmax.f32 %v320, 0.0
        %v323 = vmax.f32 %v321, 0.0
        %324 = vst.msk [vmem:[%s257] sm:$0xff] %vm308, %v322
        %325 = vst.msk [vmem:[%s257 + $0x8] sm:$0xff] %vm308, %v323
      $region40: #{transformer_d_forward.51} parent=31 // pred_fallthru
        _
      %s326 = smul.u32 2, %s19
      %p327 = scmp.lt.s32.totalorder %s326, 3
      %s328 = scalar_select %p327, %s326, 3
      %p329 = scmp.lt.s32.totalorder %s20, 0
      %s330 = scalar_select %p329, %s20, 0
      %s331 = sadd.s32 %s330, %s328
      %s332 = smul.addr %s331, 8
      %s333 = scalar_lea.vmem %s3, %s332
      // Predicated region
      $region41: #{transformer_d_forward.51} parent=31 // pred_check
        %p334 = pneg %p135
      $region42: #{transformer_d_forward.51} parent=31 // pred_check_branch
        %336 = sbr.rel (%p334) target = $region44
      $region43: #{transformer_d_forward.51} parent=31 // pred_region
        %s337 = smul.u32 2, %s19
      $region44: #{transformer_d_forward.51} parent=31 // pred_fallthru
        _
    $region32: #{transformer_d_forward.51} parent=5 // pred_fallthru
      _
    %p338 = scmp.le.s32.totalorder 2, %s9
    // Predicated region
    $region45: #{transformer_d_forward.51} parent=5 // pred_check
      %p339 = pneg %p338
    $region46: #{transformer_d_forward.51} parent=5 // pred_check_branch
      %341 = sbr.rel (%p339) target = $region48
    $region47: #{transformer_d_forward.51} parent=5 // pred_region
      %s342 = ssub.s32 %s9, 2
      // Predicated region
      $region49: #{transformer_d_forward.51} parent=47 // pred_check
        %p343 = pneg %p141
      $region50: #{transformer_d_forward.51} parent=47 // pred_check_branch
        %345 = sbr.rel (%p343) target = $region52
      $region51: #{transformer_d_forward.51} parent=47 // pred_region
        %s346 = smul.u32 2, %s22
        %p347 = scmp.lt.s32.totalorder %s346, 3
        %s348 = scalar_select %p347, %s346, 3
        %p349 = scmp.lt.s32.totalorder %s23, 0
        %s350 = scalar_select %p349, %s23, 0
        %s351 = sadd.s32 %s350, %s348
        %s352 = smul.addr %s351, 8
        %s353 = scalar_lea.vmem %s3, %s352
      $region52: #{transformer_d_forward.51} parent=47 // pred_fallthru
        _
    $region48: #{transformer_d_forward.51} parent=5 // pred_fallthru
      _
  $region6: #{transformer_d_forward.51} parent=0 // loop_footer
    %s13 = sadd.s32 1, %s9
  $region7: #{transformer_d_forward.51} parent=0 // loop_footer_branch
    %8 = sbr.rel target = $region3
  $region8: #{transformer_d_forward.51} parent=0 // loop_exit
    _

// kernel: transformer_d_forward.41
$region0: #{transformer_d_forward.41}
  #allocation0 [shape = 'u32[]', space=smem, size = 0x4, offset = 0x4, fixed_abs, tag = 'smem constant byte address 0x4 - core index']
  #allocation1 [shape = 'u32[72,128]{1,0:T(1,128)}', space=vmem, size = 0x9000, scoped, tag = 'internal scratch']
  #allocation2 [shape = 'f32[16,32]{1,0:T(8,128)}', space=vmem, size = 0x2000, scoped, tag = 'scratch operand']
  %s0 = inlined_call_operand.vmem [shape: f32[32,64], index: 0, kind: input, shape index: {}]
  %s1 = inlined_call_operand.vmem [shape: bf16[64,32], index: 1, kind: input, shape index: {}]
  %s2 = inlined_call_operand.vmem [shape: f32[1,32], index: 2, kind: input, shape index: {}]
  %s3 = inlined_call_operand.vmem [shape: f32[32,32], index: 3, kind: input, shape index: {}]
  %s4 = inlined_call_operand.vmem [shape: f32[1,32], index: 4, kind: input, shape index: {}]
  %s5 = inlined_call_operand.vmem [shape: f32[1,32], index: 5, kind: input, shape index: {}]
  %s6 = inlined_call_operand.vmem [shape: f32[32,32], index: 6, kind: output, shape index: {}]
  %s7 = sld [smem:[#allocation0]]
  $region65: #{transformer_d_forward.41} parent=0
    _
  %s9 = ssub.s32 1, %s7
  %s10 = scalar_select 0, %s9, %s7
  loop: start=0, step=1, limit=4
  $region2: #{transformer_d_forward.41} parent=0 // loop_pre_header
    _
  $region3: #{transformer_d_forward.41} parent=0 // loop_header
    %s12 = sphi 0, %s16
    %p13 = scmp.ge.s32.totalorder %s12, 4
    %s19 = sphi 0, %s31
    %s20 = sphi 0, %s27
    %s21 = sphi 0, %s19
    %s22 = sphi 0, %s20
    %s23 = sphi 0, %s21
    %s24 = sphi 0, %s22
    %s36 = sphi 0, %s38
    %s39 = sphi 0, %s36
    %s40 = sphi 0, %s39
    %s56 = sphi 0, %s40
    %s62 = sphi 0, %s64
    %s65 = sphi 0, %s62
    %s66 = sphi 0, %s65
    %s82 = sphi 0, %s66
    %s86 = sphi 0, %s86
    %s88 = sphi 0, %s86
    %s89 = sphi 0, %s88
    %s103 = sphi 0, %s89
    %s109 = sphi 0, %s111
    %s112 = sphi 0, %s109
    %s113 = sphi 0, %s112
    %s129 = sphi 0, %s113
    %s133 = sphi 0, %s133
    %s135 = sphi 0, %s133
    %s136 = sphi 0, %s135
    %s150 = sphi 0, %s136
    %s154 = sphi 0, %s154
    %s156 = sphi 0, %s154
    %s157 = sphi 0, %s156
    %s171 = sphi 0, %s157
    %s177 = sphi 0, %s179
    %s180 = sphi 0, %s177
    %s181 = sphi 0, %s180
    %s197 = sphi 0, %s181
  $region4: #{transformer_d_forward.41} parent=0 // loop_header_branch
    %15 = sbr.rel (%p13) target = $region8
  $region5: #{transformer_d_forward.41} parent=0 // loop_body
    %s17 = ssub.s32 %s12, 1
    %s18 = ssub.s32 %s12, 2
    %s25 = sadd.s32 1, %s20
    %p26 = scmp.ge.s32.totalorder %s25, 1
    %s27 = scalar_select %p26, 0, %s25
    %s28 = sadd.s32 1, %s19
    %s29 = scalar_select %p26, %s28, %s19
    %p30 = scmp.ge.s32.totalorder %s29, 2
    %s31 = scalar_select %p30, 0, %s29
    %s32 = ssub.s32 %s19, %s31
    %s33 = ssub.s32 %s20, %s27
    %s34 = sor.u32 %s32, %s33
    %p35 = scmp.eq.s32.totalorder %s34, 0
    %s37 = sadd.s32 %s36, 1
    %s38 = scalar_select %p35, %s36, %s37
    %p41 = pneg %p35
    %p42 = scmp.eq.s32.totalorder %s12, 1
    %p43 = por %p41, %p42
    %p44 = scmp.ne.s32.totalorder %s36, %s39
    %p45 = scmp.eq.s32.totalorder %s12, 0
    %p46 = por %p44, %p45
    %p47 = scmp.ne.s32.totalorder %s36, %s39
    %p48 = scmp.eq.s32.totalorder %s17, 1
    %p49 = por %p47, %p48
    %p50 = scmp.ne.s32.totalorder %s39, %s40
    %p51 = scmp.eq.s32.totalorder %s17, 0
    %p52 = por %p50, %p51
    %p53 = scmp.ne.s32.totalorder %s39, %s40
    %p54 = scmp.eq.s32.totalorder %s18, 1
    %p55 = por %p53, %p54
    %p57 = scmp.ne.s32.totalorder %s40, %s56
    %p58 = scmp.eq.s32.totalorder %s18, 0
    %p59 = por %p57, %p58
    %s60 = ssub.s32 %s20, %s27
    %p61 = scmp.eq.s32.totalorder %s60, 0
    %s63 = sadd.s32 %s62, 1
    %s64 = scalar_select %p61, %s62, %s63
    %p67 = pneg %p61
    %p68 = scmp.eq.s32.totalorder %s12, 1
    %p69 = por %p67, %p68
    %p70 = scmp.ne.s32.totalorder %s62, %s65
    %p71 = scmp.eq.s32.totalorder %s12, 0
    %p72 = por %p70, %p71
    %p73 = scmp.ne.s32.totalorder %s62, %s65
    %p74 = scmp.eq.s32.totalorder %s17, 1
    %p75 = por %p73, %p74
    %p76 = scmp.ne.s32.totalorder %s65, %s66
    %p77 = scmp.eq.s32.totalorder %s17, 0
    %p78 = por %p76, %p77
    %p79 = scmp.ne.s32.totalorder %s65, %s66
    %p80 = scmp.eq.s32.totalorder %s18, 1
    %p81 = por %p79, %p80
    %p83 = scmp.ne.s32.totalorder %s66, %s82
    %p84 = scmp.eq.s32.totalorder %s18, 0
    %p85 = por %p83, %p84
    %s87 = sadd.s32 %s86, 1
    %p90 = scmp.eq.s32.totalorder %s12, 1
    %p91 = scmp.ne.s32.totalorder %s86, %s88
    %p92 = scmp.eq.s32.totalorder %s12, 0
    %p93 = por %p91, %p92
    %p94 = scmp.ne.s32.totalorder %s86, %s88
    %p95 = scmp.eq.s32.totalorder %s17, 1
    %p96 = por %p94, %p95
    %p97 = scmp.ne.s32.totalorder %s88, %s89
    %p98 = scmp.eq.s32.totalorder %s17, 0
    %p99 = por %p97, %p98
    %p100 = scmp.ne.s32.totalorder %s88, %s89
    %p101 = scmp.eq.s32.totalorder %s18, 1
    %p102 = por %p100, %p101
    %p104 = scmp.ne.s32.totalorder %s89, %s103
    %p105 = scmp.eq.s32.totalorder %s18, 0
    %p106 = por %p104, %p105
    %s107 = ssub.s32 %s19, %s31
    %p108 = scmp.eq.s32.totalorder %s107, 0
    %s110 = sadd.s32 %s109, 1
    %s111 = scalar_select %p108, %s109, %s110
    %p114 = pneg %p108
    %p115 = scmp.eq.s32.totalorder %s12, 1
    %p116 = por %p114, %p115
    %p117 = scmp.ne.s32.totalorder %s109, %s112
    %p118 = scmp.eq.s32.totalorder %s12, 0
    %p119 = por %p117, %p118
    %p120 = scmp.ne.s32.totalorder %s109, %s112
    %p121 = scmp.eq.s32.totalorder %s17, 1
    %p122 = por %p120, %p121
    %p123 = scmp.ne.s32.totalorder %s112, %s113
    %p124 = scmp.eq.s32.totalorder %s17, 0
    %p125 = por %p123, %p124
    %p126 = scmp.ne.s32.totalorder %s112, %s113
    %p127 = scmp.eq.s32.totalorder %s18, 1
    %p128 = por %p126, %p127
    %p130 = scmp.ne.s32.totalorder %s113, %s129
    %p131 = scmp.eq.s32.totalorder %s18, 0
    %p132 = por %p130, %p131
    %s134 = sadd.s32 %s133, 1
    %p137 = scmp.eq.s32.totalorder %s12, 1
    %p138 = scmp.ne.s32.totalorder %s133, %s135
    %p139 = scmp.eq.s32.totalorder %s12, 0
    %p140 = por %p138, %p139
    %p141 = scmp.ne.s32.totalorder %s133, %s135
    %p142 = scmp.eq.s32.totalorder %s17, 1
    %p143 = por %p141, %p142
    %p144 = scmp.ne.s32.totalorder %s135, %s136
    %p145 = scmp.eq.s32.totalorder %s17, 0
    %p146 = por %p144, %p145
    %p147 = scmp.ne.s32.totalorder %s135, %s136
    %p148 = scmp.eq.s32.totalorder %s18, 1
    %p149 = por %p147, %p148
    %p151 = scmp.ne.s32.totalorder %s136, %s150
    %p152 = scmp.eq.s32.totalorder %s18, 0
    %p153 = por %p151, %p152
    %s155 = sadd.s32 %s154, 1
    %p158 = scmp.eq.s32.totalorder %s12, 1
    %p159 = scmp.ne.s32.totalorder %s154, %s156
    %p160 = scmp.eq.s32.totalorder %s12, 0
    %p161 = por %p159, %p160
    %p162 = scmp.ne.s32.totalorder %s154, %s156
    %p163 = scmp.eq.s32.totalorder %s17, 1
    %p164 = por %p162, %p163
    %p165 = scmp.ne.s32.totalorder %s156, %s157
    %p166 = scmp.eq.s32.totalorder %s17, 0
    %p167 = por %p165, %p166
    %p168 = scmp.ne.s32.totalorder %s156, %s157
    %p169 = scmp.eq.s32.totalorder %s18, 1
    %p170 = por %p168, %p169
    %p172 = scmp.ne.s32.totalorder %s157, %s171
    %p173 = scmp.eq.s32.totalorder %s18, 0
    %p174 = por %p172, %p173
    %s175 = ssub.s32 %s19, %s31
    %p176 = scmp.eq.s32.totalorder %s175, 0
    %s178 = sadd.s32 %s177, 1
    %s179 = scalar_select %p176, %s177, %s178
    %p182 = pneg %p176
    %p183 = scmp.eq.s32.totalorder %s12, 1
    %p184 = por %p182, %p183
    %p185 = scmp.ne.s32.totalorder %s177, %s180
    %p186 = scmp.eq.s32.totalorder %s12, 0
    %p187 = por %p185, %p186
    %p188 = scmp.ne.s32.totalorder %s177, %s180
    %p189 = scmp.eq.s32.totalorder %s17, 1
    %p190 = por %p188, %p189
    %p191 = scmp.ne.s32.totalorder %s180, %s181
    %p192 = scmp.eq.s32.totalorder %s17, 0
    %p193 = por %p191, %p192
    %p194 = scmp.ne.s32.totalorder %s180, %s181
    %p195 = scmp.eq.s32.totalorder %s18, 1
    %p196 = por %p194, %p195
    %p198 = scmp.ne.s32.totalorder %s181, %s197
    %p199 = scmp.eq.s32.totalorder %s18, 0
    %p200 = por %p198, %p199
    %p201 = scmp.le.s32.totalorder 1, %s12
    %p202 = scmp.lt.s32.totalorder %s12, 3
    %p203 = pnand %p201, %p202
    %p204 = pneg %p203
    // Predicated region
    $region9: #{transformer_d_forward.41} parent=5 // pred_check
      _
    $region10: #{transformer_d_forward.41} parent=5 // pred_check_branch
      %206 = sbr.rel (%p203) target = $region12
    $region11: #{transformer_d_forward.41} parent=5 // pred_region
      %s207 = ssub.s32 %s12, 1
      // Predicated region
      $region13: #{transformer_d_forward.41} parent=11 // pred_check
        %p208 = pneg %p78
      $region14: #{transformer_d_forward.41} parent=11 // pred_check_branch
        %210 = sbr.rel (%p208) target = $region16
      $region15: #{transformer_d_forward.41} parent=11 // pred_region
        %s211 = smul.u32 8, %s22
        %p212 = scmp.lt.s32.totalorder %s211, 7
        %s213 = scalar_select %p212, %s211, 7
        %s214 = smul.addr %s213, 4
        %s215 = scalar_lea.vmem %s1, %s214
        %s216 = smul.u32 8, %s22
      $region16: #{transformer_d_forward.41} parent=11 // pred_fallthru
        _
      // Predicated region
      $region17: #{transformer_d_forward.41} parent=11 // pred_check
        %p217 = pneg %p99
      $region18: #{transformer_d_forward.41} parent=11 // pred_check_branch
        %219 = sbr.rel (%p217) target = $region20
      $region19: #{transformer_d_forward.41} parent=11 // pred_region
        _
      $region20: #{transformer_d_forward.41} parent=11 // pred_fallthru
        _
      // Predicated region
      $region21: #{transformer_d_forward.41} parent=11 // pred_check
        %p220 = pneg %p146
      $region22: #{transformer_d_forward.41} parent=11 // pred_check_branch
        %222 = sbr.rel (%p220) target = $region24
      $region23: #{transformer_d_forward.41} parent=11 // pred_region
        _
      $region24: #{transformer_d_forward.41} parent=11 // pred_fallthru
        _
      // Predicated region
      $region25: #{transformer_d_forward.41} parent=11 // pred_check
        %p223 = pneg %p167
      $region26: #{transformer_d_forward.41} parent=11 // pred_check_branch
        %225 = sbr.rel (%p223) target = $region28
      $region27: #{transformer_d_forward.41} parent=11 // pred_region
        _
      $region28: #{transformer_d_forward.41} parent=11 // pred_fallthru
        _
    $region12: #{transformer_d_forward.41} parent=5 // pred_fallthru
      _
    %p226 = scmp.lt.s32.totalorder %s12, 2
    // Predicated region
    $region29: #{transformer_d_forward.41} parent=5 // pred_check
      %p227 = pneg %p226
    $region30: #{transformer_d_forward.41} parent=5 // pred_check_branch
      %229 = sbr.rel (%p227) target = $region32
    $region31: #{transformer_d_forward.41} parent=5 // pred_region
      // Predicated region
      $region33: #{transformer_d_forward.41} parent=31 // pred_check
        %p230 = pneg %p46
      $region34: #{transformer_d_forward.41} parent=31 // pred_check_branch
        %232 = sbr.rel (%p230) target = $region36
      $region35: #{transformer_d_forward.41} parent=31 // pred_region
        %s233 = smul.u32 2, %s19
        %p234 = scmp.lt.s32.totalorder %s233, 3
        %s235 = scalar_select %p234, %s233, 3
        %p236 = scmp.lt.s32.totalorder %s20, 0
        %s237 = scalar_select %p236, %s20, 0
        %s238 = sadd.s32 %s237, %s235
        %s239 = smul.addr %s238, 8
        %s240 = scalar_lea.vmem %s0, %s239
        %s241 = smul.u32 2, %s19
      $region36: #{transformer_d_forward.41} parent=31 // pred_fallthru
        _
      // Predicated region
      $region37: #{transformer_d_forward.41} parent=31 // pred_check
        %p242 = pneg %p119
      $region38: #{transformer_d_forward.41} parent=31 // pred_check_branch
        %244 = sbr.rel (%p242) target = $region40
      $region39: #{transformer_d_forward.41} parent=31 // pred_region
        %s245 = smul.u32 2, %s19
        %p246 = scmp.lt.s32.totalorder %s245, 3
        %s247 = scalar_select %p246, %s245, 3
        %s248 = smul.addr %s247, 8
        %s249 = scalar_lea.vmem %s3, %s248
        %s250 = smul.u32 2, %s19
      $region40: #{transformer_d_forward.41} parent=31 // pred_fallthru
        _
    $region32: #{transformer_d_forward.41} parent=5 // pred_fallthru
      _
    %p251 = scmp.le.s32.totalorder 1, %s12
    %p252 = scmp.lt.s32.totalorder %s12, 3
    %p253 = pnand %p251, %p252
    %p254 = pneg %p253
    // Predicated region
    $region41: #{transformer_d_forward.41} parent=5 // pred_check
      _
    $region42: #{transformer_d_forward.41} parent=5 // pred_check_branch
      %256 = sbr.rel (%p253) target = $region44
    $region43: #{transformer_d_forward.41} parent=5 // pred_region
      %s257 = ssub.s32 %s12, 1
      %s258 = smul.u32 2, %s21
      %p259 = scmp.lt.s32.totalorder %s258, 3
      %s260 = scalar_select %p259, %s258, 3
      %p261 = scmp.lt.s32.totalorder %s22, 0
      %s262 = scalar_select %p261, %s22, 0
      %s263 = sadd.s32 %s262, %s260
      %s264 = smul.addr %s263, 8
      %s265 = scalar_lea.vmem %s0, %s264
      %p266 = pneg %p52
      %p267 = pneg %p49
      %s268 = smul.u32 8, %s22
      %p269 = scmp.lt.s32.totalorder %s268, 7
      %s270 = scalar_select %p269, %s268, 7
      %s271 = smul.addr %s270, 4
      %s272 = scalar_lea.vmem %s1, %s271
      %p273 = pneg %p78
      %p274 = pneg %p75
      %p275 = pneg %p99
      %p276 = pneg %p96
      %s277 = smul.u32 2, %s21
      %p278 = scmp.lt.s32.totalorder %s277, 3
      %s279 = scalar_select %p278, %s277, 3
      %s280 = smul.addr %s279, 8
      %s281 = scalar_lea.vmem %s3, %s280
      %p282 = pneg %p125
      %p283 = pneg %p122
      %p284 = pneg %p146
      %p285 = pneg %p143
      %p286 = pneg %p167
      %p287 = pneg %p164
      %p288 = pneg %p193
      %p289 = pneg %p190
      %s290 = smul.u32 2, %s21
      %p291 = scmp.lt.s32.totalorder %s290, 3
      %s292 = scalar_select %p291, %s290, 3
      %s293 = smul.addr %s292, 8
      %s294 = scalar_lea.vmem %s6, %s293
      %s295 = smul.u32 2, %s21
      %p296 = scmp.lt.s32.totalorder %s295, 3
      %s297 = scalar_select %p296, %s295, 3
      %p298 = scmp.lt.s32.totalorder %s22, 0
      %s299 = scalar_select %p298, %s22, 0
      %s300 = sadd.s32 %s299, %s297
      %s301 = smul.addr %s300, 8
      %s302 = scalar_lea.vmem %s0, %s301
      %s303 = smul.u32 2, %s21
      %s304 = smul.u32 8, %s22
      %p305 = scmp.lt.s32.totalorder %s304, 7
      %s306 = scalar_select %p305, %s304, 7
      %s307 = smul.addr %s306, 4
      %s308 = scalar_lea.vmem %s1, %s307
      %s309 = smul.u32 8, %s22
      %s310 = smul.u32 2, %s21
      %p311 = scmp.lt.s32.totalorder %s310, 3
      %s312 = scalar_select %p311, %s310, 3
      %s313 = smul.addr %s312, 8
      %s314 = scalar_lea.vmem %s3, %s313
      %s315 = smul.u32 2, %s21
      %s316 = smul.u32 2, %s21
      %p317 = scmp.lt.s32.totalorder %s316, 3
      %s318 = scalar_select %p317, %s316, 3
      %s319 = smul.addr %s318, 8
      %s320 = scalar_lea.vmem %s6, %s319
      %s321 = smul.u32 2, %s21
      %p323 = scmp.eq.s32.totalorder %s22, 0
      // Predicated region
      $region45: #{transformer_d_forward.41} parent=43 // pred_check
        %p324 = pneg %p323
      $region46: #{transformer_d_forward.41} parent=43 // pred_check_branch
        %326 = sbr.rel (%p324) target = $region48
      $region47: #{transformer_d_forward.41} parent=43 // pred_region
        %vm327 = vcmask 261120
        %328 = vst.msk [vmem:[#allocation2] sm:$0xff] %vm327, 0.0
        %329 = vst.msk [vmem:[#allocation2 + $0x8] sm:$0xff] %vm327, 0.0
      $region48: #{transformer_d_forward.41} parent=43 // pred_fallthru
        _
      %v330 = vld [vmem:[#allocation2] sm:$0xff]
      %v331 = vld [vmem:[#allocation2 + $0x8] sm:$0xff]
      %v332 = vld [vmem:[%s302] sm:$0xff]
      %v333 = vld [vmem:[%s302 + $0x8] sm:$0xff]
      %v334 = vpack.c.bf16 %v333, %v332
      %v335 = vld [vmem:[%s308] sm:$0xf]
      %v336 = vld [vmem:[%s308 + $0x4] sm:$0xf]
      %v337 = vld [vmem:[%s308 + $0x8] sm:$0xf]
      %v338 = vld [vmem:[%s308 + $0xc] sm:$0xf]
      %v339 = vld [vmem:[%s308 + $0x10] sm:$0xf]
      %v340 = vld [vmem:[%s308 + $0x14] sm:$0xf]
      %v341 = vld [vmem:[%s308 + $0x18] sm:$0xf]
      %v342 = vld [vmem:[%s308 + $0x1c] sm:$0xf]
      %v351 = vunpack.c.l.b16 %v335
      %v352 = vunpack.c.l.b16 %v336
      %v353 = vunpack.c.l.b16 %v337
      %v354 = vunpack.c.l.b16 %v338
      %v355 = vunpack.c.l.b16 %v339
      %v356 = vunpack.c.l.b16 %v340
      %v357 = vunpack.c.l.b16 %v341
      %v358 = vunpack.c.l.b16 %v342
      %v359 = vpack.c.b16 %v352, %v351
      %v360 = vpack.c.b16 %v354, %v353
      %v361 = vpack.c.b16 %v356, %v355
      %v362 = vpack.c.b16 %v358, %v357
      %vm367 = vcmask 523264
      %v369 = vsel %vm367, %v334, 0
      %371 = vmatpush.bf16.msra.mxu0 0
      %372 = vmatpush.bf16.msra.mxu0 0
      %373 = vmatpush.bf16.msra.mxu0 0
      %374 = vmatpush.bf16.msra.mxu0 0
      %375 = vmatpush.bf16.msra.mxu0 %v362
      %376 = vmatpush.bf16.msra.mxu0 %v361
      %377 = vmatpush.bf16.msra.mxu0 %v360
      %378 = vmatpush.bf16.msra.mxu0 %v359
      %379 = vmatmul.bf16.gmra.mxu0 %v369
      %v380 = vpop.f32.mrf.mxu0
      %v381 = vadd.f32 0.0, %v380
      %v382 = vpop.f32.mrf.mxu0
      %v383 = vadd.f32 0.0, %v382
      %384 = vdwg.mxu0
      %v385 = vadd.f32 %v330, %v381
      %v386 = vadd.f32 %v331, %v383
      %vm387 = vcmask 261120
      %388 = vst.msk [vmem:[#allocation2] sm:$0xff] %vm387, %v385
      %389 = vst.msk [vmem:[#allocation2 + $0x8] sm:$0xff] %vm387, %v386
      // Predicated region
      $region49: #{transformer_d_forward.41} parent=43 // pred_check
        %p390 = pneg %p323
      $region50: #{transformer_d_forward.41} parent=43 // pred_check_branch
        %392 = sbr.rel (%p390) target = $region52
      $region51: #{transformer_d_forward.41} parent=43 // pred_region
        %v393 = vld [vmem:[#allocation2] sm:$0xff]
        %v394 = vld [vmem:[#allocation2 + $0x8] sm:$0xff]
        %v395 = vld [vmem:[%s2] sm:$0x1]
        %v397 = vperm.slane %v395, 0
        %v399 = vadd.f32 %v393, %v397
        %v400 = vadd.f32 %v394, %v397
        %v401 = vld [vmem:[%s314] sm:$0xff]
        %v402 = vld [vmem:[%s314 + $0x8] sm:$0xff]
        %v403 = vadd.f32 %v399, %v401
        %v404 = vadd.f32 %v400, %v402
        %v405 = vsel %vm387, %v403, 0.0
        %406 = vadd.xlane.f32.xlu0 %v405
        %v407 = vpop.xlane.xlu0 %406
        %v408 = vsel %vm387, %v404, 0.0
        %409 = vadd.xlane.f32.xlu0 %v408
        %v410 = vpop.xlane.xlu0 %409
        %v411 = vrcp.pop 32.0
        %v412 = vmul.f32 32.0, %v411
        %v413 = vsub.f32 1.0, %v412
        %v414 = vmul.f32 %v411, %v413
        %v415 = vadd.f32 %v411, %v414
        %vm416 = vweird.f32 %v411
        %v417 = vsel %vm416, %v411, %v415
        %v418 = vmul.f32 %v407, %v417
        %v419 = vmul.f32 %v410, %v417
        %v420 = vsub.f32 %v403, %v418
        %v421 = vsub.f32 %v404, %v419
        %v422 = vmul.f32 %v420, %v420
        %v423 = vmul.f32 %v421, %v421
        %v424 = vsel %vm387, %v422, 0.0
        %425 = vadd.xlane.f32.xlu0 %v424
        %v426 = vpop.xlane.xlu0 %425
        %v427 = vsel %vm387, %v423, 0.0
        %428 = vadd.xlane.f32.xlu0 %v427
        %v429 = vpop.xlane.xlu0 %428
        %v430 = vmul.f32 %v426, %v417
        %v431 = vmul.f32 %v429, %v417
        %v432 = vadd.f32 %v430, 1e-05
        %v433 = vadd.f32 %v431, 1e-05
        %v434 = vrsqrt.pop %v432
        %v435 = vmul.f32 %v434, %v432
        %v436 = vmul.f32 %v435, %v434
        %v437 = vmul.f32 0.5, %v436
        %v438 = vsub.f32 1.5, %v437
        %v439 = vmul.f32 %v434, %v438
        %vm440 = vweird.f32 %v432
        %vm441 = vweird.f32 %v434
        %vm442 = vmor %vm440, %vm441
        %v443 = vsel %vm442, %v434, %v439
        %v444 = vrsqrt.pop %v433
        %v445 = vmul.f32 %v444, %v433
        %v446 = vmul.f32 %v445, %v444
        %v447 = vmul.f32 0.5, %v446
        %v448 = vsub.f32 1.5, %v447
        %v449 = vmul.f32 %v444, %v448
        %vm450 = vweird.f32 %v433
        %vm451 = vweird.f32 %v444
        %vm452 = vmor %vm450, %vm451
        %v453 = vsel %vm452, %v444, %v449
        %v454 = vmul.f32 %v420, %v443
        %v455 = vmul.f32 %v421, %v453
        %v456 = vld [vmem:[%s4] sm:$0x1]
        %v458 = vperm.slane %v456, 0
        %v460 = vmul.f32 %v454, %v458
        %v461 = vmul.f32 %v455, %v458
        %v462 = vld [vmem:[%s5] sm:$0x1]
        %v464 = vperm.slane %v462, 0
        %v466 = vadd.f32 %v460, %v464
        %v467 = vadd.f32 %v461, %v464
        %468 = vst.msk [vmem:[%s320] sm:$0xff] %vm387, %v466
        %469 = vst.msk [vmem:[%s320 + $0x8] sm:$0xff] %vm387, %v467
      $region52: #{transformer_d_forward.41} parent=43 // pred_fallthru
        _
      %s470 = smul.u32 2, %s21
      %p471 = scmp.lt.s32.totalorder %s470, 3
      %s472 = scalar_select %p471, %s470, 3
      %s473 = smul.addr %s472, 8
      %s474 = scalar_lea.vmem %s6, %s473
      // Predicated region
      $region53: #{transformer_d_forward.41} parent=43 // pred_check
        %p475 = pneg %p190
      $region54: #{transformer_d_forward.41} parent=43 // pred_check_branch
        %477 = sbr.rel (%p475) target = $region56
      $region55: #{transformer_d_forward.41} parent=43 // pred_region
        %s478 = smul.u32 2, %s21
      $region56: #{transformer_d_forward.41} parent=43 // pred_fallthru
        _
    $region44: #{transformer_d_forward.41} parent=5 // pred_fallthru
      _
    %p479 = scmp.le.s32.totalorder 2, %s12
    // Predicated region
    $region57: #{transformer_d_forward.41} parent=5 // pred_check
      %p480 = pneg %p479
    $region58: #{transformer_d_forward.41} parent=5 // pred_check_branch
      %482 = sbr.rel (%p480) target = $region60
    $region59: #{transformer_d_forward.41} parent=5 // pred_region
      %s483 = ssub.s32 %s12, 2
      // Predicated region
      $region61: #{transformer_d_forward.41} parent=59 // pred_check
        %p484 = pneg %p196
      $region62: #{transformer_d_forward.41} parent=59 // pred_check_branch
        %486 = sbr.rel (%p484) target = $region64
      $region63: #{transformer_d_forward.41} parent=59 // pred_region
        %s487 = smul.u32 2, %s23
        %p488 = scmp.lt.s32.totalorder %s487, 3
        %s489 = scalar_select %p488, %s487, 3
        %s490 = smul.addr %s489, 8
        %s491 = scalar_lea.vmem %s6, %s490
      $region64: #{transformer_d_forward.41} parent=59 // pred_fallthru
        _
    $region60: #{transformer_d_forward.41} parent=5 // pred_fallthru
      _
  $region6: #{transformer_d_forward.41} parent=0 // loop_footer
    %s16 = sadd.s32 1, %s12
  $region7: #{transformer_d_forward.41} parent=0 // loop_footer_branch
    %11 = sbr.rel target = $region3
  $region8: #{transformer_d_forward.41} parent=0 // loop_exit
    _

</llo_original>
